<compile_context>
chip_gen: v5e
topology: v5e:2x2
jax: 0.10.0
libtpu: 0.0.40
codegen_flags: <defaults>
</compile_context>

<pallas_src>
import functools

import numpy as np
import jax
import jax.numpy as jnp
from jax.experimental import pallas as pl
from jax.experimental.pallas import tpu as pltpu

_BN_EPS = 1e-5
_VMEM_LIMIT = 48 * 1024 * 1024          # safe on v7x (64 MiB VMEM), ample on v5e/v6e

_VMEM = pl.BlockSpec(memory_space=pltpu.MemorySpace.VMEM)
_SMEM = pl.BlockSpec(memory_space=pltpu.MemorySpace.SMEM)


# ----------------------------------------------------------------------------
# Kernel 1: fused conv3x3 + BatchNorm(train) + ReLU + MaxPool2d(2), transposed
# (channels on sublanes, pooled positions on lanes), gridded over Cout tiles.
# ----------------------------------------------------------------------------
def _conv_bn_relu_maxpool_kernel(p_ref, w_ref, b_ref, g_ref, bt_ref, o_ref, *, T, M):
    # p_ref : (T, K, M) bf16  im2col patches; leading axis = 2x2 pool offset,
    #                          lanes = M = B*(H/2)*(W/2) pooled positions.
    #                          Same block every grid step -> stays resident.
    # w_ref : (ct, K)  bf16   Cout tile of flattened 3x3 conv weights
    # b/g/bt: (ct, 1)  f32    conv bias, BN gamma, BN beta (per-channel)
    # o_ref : (ct, M)  bf16   pooled activations (lane-dense store)
    w = w_ref[...]
    cs = [jnp.dot(w, p_ref[t], preferred_element_type=jnp.float32) + b_ref[...]
          for t in range(T)]                                   # T x (ct, M) f32

    # BatchNorm training-mode batch stats over all T*M = B*H*W positions.
    n = float(T * M)
    s = cs[0]
    for t in range(1, T):
        s = s + cs[t]
    mean = jnp.sum(s, axis=1, keepdims=True) * (1.0 / n)       # (ct, 1)
    ds, ssq = [], None
    for t in range(T):
        d = cs[t] - mean
        ds.append(d)
        sq = jnp.sum(d * d, axis=1, keepdims=True)
        ssq = sq if ssq is None else ssq + sq
    var = ssq * (1.0 / n)                                      # biased, two-pass
    scale = g_ref[...] * jax.lax.rsqrt(var + _BN_EPS)

    # ReLU then MaxPool2d(2): max over the T aligned pool-window offsets.
    r = None
    for t in range(T):
        a = jnp.maximum(ds[t] * scale + bt_ref[...], 0.0)
        r = a if r is None else jnp.maximum(r, a)
    o_ref[...] = r.astype(o_ref.dtype)


def _conv_maxpool_block(patches, w, b, g, bt, *, T, M):
    # patches : (T, K, M) bf16 ; w : (Cout, K) bf16 ; b/g/bt : (Cout, 1) f32
    cout, K = w.shape
    ct = max(8, cout // 2)                 # 2 Cout tiles -> v7x megacore sharding
    return pl.pallas_call(
        functools.partial(_conv_bn_relu_maxpool_kernel, T=T, M=M),
        out_shape=jax.ShapeDtypeStruct((cout, M), jnp.bfloat16),
        grid=(cout // ct,),
        in_specs=[pl.BlockSpec((T, K, M), lambda c: (0, 0, 0)),   # resident
                  pl.BlockSpec((ct, K), lambda c: (c, 0)),
                  pl.BlockSpec((ct, 1), lambda c: (c, 0)),
                  pl.BlockSpec((ct, 1), lambda c: (c, 0)),
                  pl.BlockSpec((ct, 1), lambda c: (c, 0))],
        out_specs=pl.BlockSpec((ct, M), lambda c: (c, 0)),
        compiler_params=pltpu.CompilerParams(
            dimension_semantics=("parallel",),
            vmem_limit_bytes=_VMEM_LIMIT),
    )(patches, w, b, g, bt)


# ----------------------------------------------------------------------------
# Kernel 2: conv4 + BN + ReLU + AdaptiveAvgPool2d(1) + fc_loc, fully fused.
# Here the "positions" axis is tiny (T = spatial, M = batch), so the classic
# orientation (rows = positions, 256 channels lane-dense) is the better layout.
# Avg-pool = sum of the T per-position GEMM results (no indicator matrix).
# ----------------------------------------------------------------------------
def _conv4_avgpool_fc_kernel(p_ref, w_ref, b_ref, g_ref, bt_ref,
                             w1_ref, b1_ref, w2_ref, b2_ref, th_ref, *, T, M):
    # p_ref : (T, M, K) bf16, leading axis = spatial position, M = batch
    # w_ref : (K, 256) bf16 ; b/g/bt : (1, 256) f32
    # w1/b1 : (256, 64)/(1, 64) f32 ; w2/b2 : (64, 6)/(1, 6) f32
    # th_ref: (M, 6) f32 affine parameters
    w = w_ref[...]
    cs = [jnp.dot(p_ref[t], w, preferred_element_type=jnp.float32) + b_ref[...]
          for t in range(T)]                                   # T x (M, 256) f32

    n = float(T * M)
    s = cs[0]
    for t in range(1, T):
        s = s + cs[t]
    mean = jnp.sum(s, axis=0, keepdims=True) * (1.0 / n)       # (1, 256)
    ds, ssq = [], None
    for t in range(T):
        d = cs[t] - mean
        ds.append(d)
        sq = jnp.sum(d * d, axis=0, keepdims=True)
        ssq = sq if ssq is None else ssq + sq
    var = ssq * (1.0 / n)
    scale = g_ref[...] * jax.lax.rsqrt(var + _BN_EPS)

    # ReLU then global average pool over the T spatial positions.
    xs = None
    for t in range(T):
        a = jnp.maximum(ds[t] * scale + bt_ref[...], 0.0)
        xs = a if xs is None else xs + a
    xs = xs * (1.0 / float(T))                                 # (M, 256) = (B, 256)

    # fc_loc: Linear(256,64) + ReLU + Linear(64,6)
    h = jnp.maximum(
        jnp.dot(xs, w1_ref[...], preferred_element_type=jnp.float32) + b1_ref[...], 0.0)
    th_ref[...] = jnp.dot(h, w2_ref[...], preferred_element_type=jnp.float32) + b2_ref[...]


def _conv_avgpool_fc_block(patches, w, b, g, bt, w1, b1, w2, b2, *, T, M):
    return pl.pallas_call(
        functools.partial(_conv4_avgpool_fc_kernel, T=T, M=M),
        out_shape=jax.ShapeDtypeStruct((M, 6), jnp.float32),
        in_specs=[_VMEM] * 9,
        out_specs=_VMEM,
        compiler_params=pltpu.CompilerParams(vmem_limit_bytes=_VMEM_LIMIT),
    )(patches, w, b, g, bt, w1, b1, w2, b2)


# ----------------------------------------------------------------------------
# Kernel 3: F.affine_grid + F.grid_sample (bilinear, zeros, align_corners=False)
# Separable bilinear hat:  out[c,p] = sum_h hat_y(h,p) * sum_w x[c,h,w]*hat_x(w,p)
#   * W-contraction on the MXU:  (C*H, W) bf16 @ (W, TP) bf16 -> f32
#   * H-contraction as a tiny per-channel block-indicator matmul.
# Out-of-range samples get zero weight from the hat -> padding_mode="zeros".
# ----------------------------------------------------------------------------
def _affine_grid_sample_kernel(theta_ref, x_ref, o_ref, *, C, H, W, TP):
    # theta_ref : SMEM (B, 6), rows = [t00 t01 t02 t10 t11 t12]
    # x_ref     : VMEM (1, C*H, W) bf16, row = c*H + h
    # o_ref     : VMEM (1, C, TP) f32, output-pixel tile (lane-dense)
    b = pl.program_id(0)
    pt = pl.program_id(1)

    # output pixel coordinates of this tile
    p = jax.lax.broadcasted_iota(jnp.int32, (1, TP), 1) + pt * TP
    pf = p.astype(jnp.float32)
    i_out = jnp.floor(pf / float(W))
    j_out = pf - i_out * float(W)

    # F.affine_grid base grid (align_corners=False) + affine transform
    xb = (2.0 * j_out + 1.0) / float(W) - 1.0
    yb = (2.0 * i_out + 1.0) / float(H) - 1.0
    t00 = theta_ref[b, 0]; t01 = theta_ref[b, 1]; t02 = theta_ref[b, 2]
    t10 = theta_ref[b, 3]; t11 = theta_ref[b, 4]; t12 = theta_ref[b, 5]
    u = t00 * xb + t01 * yb + t02
    v = t10 * xb + t11 * yb + t12
    # grid_sample un-normalisation (align_corners=False)
    ix = ((u + 1.0) * float(W) - 1.0) * 0.5            # (1, TP) sample column
    iy = ((v + 1.0) * float(H) - 1.0) * 0.5            # (1, TP) sample row

    # separable hat weights
    wcol = jax.lax.broadcasted_iota(jnp.int32, (W, 1), 0).astype(jnp.float32)
    hat_x = jnp.maximum(1.0 - jnp.abs(ix - wcol), 0.0).astype(jnp.bfloat16)   # (W, TP)

    qrow = jax.lax.broadcasted_iota(jnp.int32, (C * H, 1), 0).astype(jnp.float32)
    hrow = qrow - jnp.floor(qrow / float(H)) * float(H)
    hat_y = jnp.maximum(1.0 - jnp.abs(iy - hrow), 0.0)                        # (C*H, TP)

    # MXU contraction over W (bf16 x bf16, f32 accumulation)
    t1 = jnp.dot(x_ref[0], hat_x, preferred_element_type=jnp.float32)         # (C*H, TP)
    wgt = t1 * hat_y                                                          # (C*H, TP)

    # per-channel reduction over H via a tiny 0/1 block-indicator matmul
    crow = jax.lax.broadcasted_iota(jnp.int32, (C, C * H), 0)
    qcol = jax.lax.broadcasted_iota(jnp.int32, (C, C * H), 1)
    sel = jnp.where((qcol >= crow * H) & (qcol < (crow + 1) * H), 1.0, 0.0)   # (C, C*H)
    o_ref[0] = jnp.dot(sel, wgt, preferred_element_type=jnp.float32)          # (C, TP)


def _affine_grid_sample(theta, x_rows, *, C, H, W):
    # theta: (B, 6) f32 ; x_rows: (B, C*H, W) bf16
    B = x_rows.shape[0]
    P = H * W
    TP = P
    for cand in (512, 256, 128):
        if P >= cand and P % cand == 0:
            TP = cand
            break
    return pl.pallas_call(
        functools.partial(_affine_grid_sample_kernel, C=C, H=H, W=W, TP=TP),
        out_shape=jax.ShapeDtypeStruct((B, C, P), jnp.float32),
        grid=(B, P // TP),
        in_specs=[_SMEM,
                  pl.BlockSpec((1, C * H, W), lambda b, t: (b, 0, 0))],
        out_specs=pl.BlockSpec((1, C, TP), lambda b, t: (b, 0, t)),
        compiler_params=pltpu.CompilerParams(
            dimension_semantics=("parallel", "parallel"),
            vmem_limit_bytes=_VMEM_LIMIT),
    )(theta, x_rows)


# ----------------------------------------------------------------------------
# Plain-JAX glue: im2col + pool-window regrouping (layout plumbing only, bf16).
# ----------------------------------------------------------------------------
def _im2col_3x3(f):
    # f: (B, H, W, C) -> (B, H, W, 9*C), taps ordered (kh, kw) then channel
    B, H, W, C = f.shape
    fp = jnp.pad(f, ((0, 0), (1, 1), (1, 1), (0, 0)))
    return jnp.concatenate(
        [fp[:, kh:kh + H, kw:kw + W, :] for kh in range(3) for kw in range(3)], axis=-1)


def _group_for_maxpool_T(cols):
    # (B, H, W, K) -> (4, K, B*(H/2)*(W/2)); leading axis = 2x2 window offset,
    # lanes = pooled positions (b, h/2, w/2) row-major.
    B, H, W, K = cols.shape
    g = cols.reshape(B, H // 2, 2, W // 2, 2, K).transpose(2, 4, 5, 0, 1, 3)
    return g.reshape(4, K, B * (H // 2) * (W // 2))


def _group_for_avgpool_T(cols):
    # (B, H, W, K) -> (H*W, B, K); leading axis = spatial position (global avg)
    B, H, W, K = cols.shape
    return cols.transpose(1, 2, 0, 3).reshape(H * W, B, K)


# ----------------------------------------------------------------------------
# Parameters (deterministic synthetic init; fc_loc[2] matches the module exactly)
# ----------------------------------------------------------------------------
def init_params(key):
    params = {}
    cin = 3
    for i, cout in enumerate((32, 64, 128, 256), start=1):
        key, kw, kb, kg, kbt = jax.random.split(key, 5)
        w = jax.random.normal(kw, (3, 3, cin, cout), jnp.float32) / np.sqrt(9 * cin)
        wf = w.reshape(9 * cin, cout)                         # (K, Cout), tap-major
        bias = 0.01 * jax.random.normal(kb, (cout,), jnp.float32)
        gamma = 1.0 + 0.1 * jax.random.normal(kg, (cout,), jnp.float32)
        beta = 0.1 * jax.random.normal(kbt, (cout,), jnp.float32)
        if i < 4:   # transposed (channels-on-sublanes) layout for conv1-3
            params[f"conv{i}"] = (wf.T, bias[:, None], gamma[:, None], beta[:, None])
        else:       # conv4 keeps 256 channels on lanes (positions axis is tiny)
            params[f"conv{i}"] = (wf, bias[None, :], gamma[None, :], beta[None, :])
        cin = cout
    key, k1, k2 = jax.random.split(key, 3)
    params["fc1_w"] = jax.random.normal(k1, (256, 64), jnp.float32) / np.sqrt(256.0)
    params["fc1_b"] = 0.01 * jax.random.normal(k2, (1, 64), jnp.float32)
    # fc_loc[2]: weight zero-init, bias = identity affine — exactly as in __init__
    params["fc2_w"] = jnp.zeros((64, 6), jnp.float32)
    params["fc2_b"] = jnp.array([[1.0, 0.0, 0.0, 0.0, 1.0, 0.0]], jnp.float32)
    return params


# ----------------------------------------------------------------------------
# Forward pass (mirrors SpatialTransformer.forward, NCHW in / NCHW out)
# ----------------------------------------------------------------------------
def spatial_transformer_forward(x_nchw, params):
    B, C, H, W = x_nchw.shape
    x_f32 = x_nchw.astype(jnp.float32)

    # localization net: bf16 activations/weights end-to-end, f32 accumulation.
    feat = jnp.transpose(x_f32, (0, 2, 3, 1)).astype(jnp.bfloat16)   # NHWC bf16
    for i in range(1, 4):
        w, b, g, bt = params[f"conv{i}"]
        Bc, Hc, Wc, _ = feat.shape
        pat = _group_for_maxpool_T(_im2col_3x3(feat))                # (4, K, M) bf16
        M = Bc * (Hc // 2) * (Wc // 2)
        out = _conv_maxpool_block(pat, w.astype(jnp.bfloat16), b, g, bt,
                                  T=4, M=M)                          # (Cout, M) bf16
        cout = w.shape[0]
        feat = out.reshape(cout, Bc, Hc // 2, Wc // 2).transpose(1, 2, 3, 0)

    w, b, g, bt = params["conv4"]
    Bc, Hc, Wc, _ = feat.shape
    pat = _group_for_avgpool_T(_im2col_3x3(feat))                    # (T, B, K) bf16
    theta = _conv_avgpool_fc_block(
        pat, w.astype(jnp.bfloat16), b, g, bt,
        params["fc1_w"], params["fc1_b"], params["fc2_w"], params["fc2_b"],
        T=Hc * Wc, M=Bc)                                             # (B, 6) f32

    # affine_grid + grid_sample on the original input (rows = c*H + h, cols = w)
    x_rows = x_f32.reshape(B, C * H, W).astype(jnp.bfloat16)
    out_cp = _affine_grid_sample(theta, x_rows, C=C, H=H, W=W)       # (B, C, H*W) f32
    return out_cp.reshape(B, C, H, W)


if __name__ == "__main__":
    key = jax.random.PRNGKey(0)
    pkey, xkey = jax.random.split(key)
    params = init_params(pkey)
    x = jax.random.normal(xkey, (2, 3, 16, 16), jnp.float32)   # NCHW, like PyTorch

    fwd = jax.jit(spatial_transformer_forward)
    y = fwd(x, params)
    jax.block_until_ready(y)

    assert y.shape == x.shape
    # fc_loc[2] has zero weight + identity bias -> theta is the identity transform,
    # so grid_sample must reproduce the input up to bf16 rounding of the image.
    assert bool(jnp.allclose(y, x, atol=3e-2)), "identity grid_sample check failed"
    print("KERNEL_OK")
</pallas_src>

<mosaic_0001>
module attributes {stable_mosaic.version = 11 : i64} {
  func.func @_conv_bn_relu_maxpool_kernel(%arg0: i32, %arg1: memref<4x27x128xbf16, #tpu.memory_space<vmem>>, %arg2: memref<16x27xbf16, #tpu.memory_space<vmem>>, %arg3: memref<16x1xf32, #tpu.memory_space<vmem>>, %arg4: memref<16x1xf32, #tpu.memory_space<vmem>>, %arg5: memref<16x1xf32, #tpu.memory_space<vmem>>, %arg6: memref<16x128xbf16, #tpu.memory_space<vmem>>) attributes {dimension_semantics = [#tpu.dimension_semantics<parallel>], iteration_bounds = array<i64: 2>, scalar_prefetch = 0 : i64, scratch_operands = 0 : i64, tpu.core_type = #tpu.core_type<tc>, window_params = [{pipeline_mode = #tpu.pipeline_mode<synchronous>, transform_indices = @transform_0, window_bounds = array<i64: 4, 27, 128>}, {transform_indices = @transform_1, window_bounds = array<i64: 16, 27>}, {transform_indices = @transform_2, window_bounds = array<i64: 16, 1>}, {transform_indices = @transform_3, window_bounds = array<i64: 16, 1>}, {transform_indices = @transform_4, window_bounds = array<i64: 16, 1>}, {transform_indices = @transform_5, window_bounds = array<i64: 16, 128>}]} {
    %c0 = arith.constant 0 : index
    %c0_0 = arith.constant 0 : index
    %0 = vector.load %arg2[%c0, %c0_0] : memref<16x27xbf16, #tpu.memory_space<vmem>>, vector<16x27xbf16>
    %c0_1 = arith.constant 0 : index
    %c0_2 = arith.constant 0 : index
    %c0_3 = arith.constant 0 : index
    %1 = vector.load %arg1[%c0_1, %c0_2, %c0_3] : memref<4x27x128xbf16, #tpu.memory_space<vmem>>, vector<1x27x128xbf16>
    %2 = vector.shape_cast %1 : vector<1x27x128xbf16> to vector<27x128xbf16>
    %cst = arith.constant dense<0.000000e+00> : vector<16x128xf32>
    %3 = tpu.matmul %0, %2, %cst {dimension_numbers = #tpu.dot_dimension_numbers<[1], [0], [0], [1], [0, 0, 1, 1], [], []>} : vector<16x27xbf16>, vector<27x128xbf16>, vector<16x128xf32> -> vector<16x128xf32>
    %c0_4 = arith.constant 0 : index
    %c0_5 = arith.constant 0 : index
    %4 = vector.load %arg3[%c0_4, %c0_5] : memref<16x1xf32, #tpu.memory_space<vmem>>, vector<16x1xf32>
    %5 = vector.broadcast %4 : vector<16x1xf32> to vector<16x128xf32>
    %6 = arith.addf %3, %5 : vector<16x128xf32>
    %c1 = arith.constant 1 : index
    %c0_6 = arith.constant 0 : index
    %c0_7 = arith.constant 0 : index
    %7 = vector.load %arg1[%c1, %c0_6, %c0_7] : memref<4x27x128xbf16, #tpu.memory_space<vmem>>, vector<1x27x128xbf16>
    %8 = vector.shape_cast %7 : vector<1x27x128xbf16> to vector<27x128xbf16>
    %cst_8 = arith.constant dense<0.000000e+00> : vector<16x128xf32>
    %9 = tpu.matmul %0, %8, %cst_8 {dimension_numbers = #tpu.dot_dimension_numbers<[1], [0], [0], [1], [0, 0, 1, 1], [], []>} : vector<16x27xbf16>, vector<27x128xbf16>, vector<16x128xf32> -> vector<16x128xf32>
    %c0_9 = arith.constant 0 : index
    %c0_10 = arith.constant 0 : index
    %10 = vector.load %arg3[%c0_9, %c0_10] : memref<16x1xf32, #tpu.memory_space<vmem>>, vector<16x1xf32>
    %11 = vector.broadcast %10 : vector<16x1xf32> to vector<16x128xf32>
    %12 = arith.addf %9, %11 : vector<16x128xf32>
    %c2 = arith.constant 2 : index
    %c0_11 = arith.constant 0 : index
    %c0_12 = arith.constant 0 : index
    %13 = vector.load %arg1[%c2, %c0_11, %c0_12] : memref<4x27x128xbf16, #tpu.memory_space<vmem>>, vector<1x27x128xbf16>
    %14 = vector.shape_cast %13 : vector<1x27x128xbf16> to vector<27x128xbf16>
    %cst_13 = arith.constant dense<0.000000e+00> : vector<16x128xf32>
    %15 = tpu.matmul %0, %14, %cst_13 {dimension_numbers = #tpu.dot_dimension_numbers<[1], [0], [0], [1], [0, 0, 1, 1], [], []>} : vector<16x27xbf16>, vector<27x128xbf16>, vector<16x128xf32> -> vector<16x128xf32>
    %c0_14 = arith.constant 0 : index
    %c0_15 = arith.constant 0 : index
    %16 = vector.load %arg3[%c0_14, %c0_15] : memref<16x1xf32, #tpu.memory_space<vmem>>, vector<16x1xf32>
    %17 = vector.broadcast %16 : vector<16x1xf32> to vector<16x128xf32>
    %18 = arith.addf %15, %17 : vector<16x128xf32>
    %c3 = arith.constant 3 : index
    %c0_16 = arith.constant 0 : index
    %c0_17 = arith.constant 0 : index
    %19 = vector.load %arg1[%c3, %c0_16, %c0_17] : memref<4x27x128xbf16, #tpu.memory_space<vmem>>, vector<1x27x128xbf16>
    %20 = vector.shape_cast %19 : vector<1x27x128xbf16> to vector<27x128xbf16>
    %cst_18 = arith.constant dense<0.000000e+00> : vector<16x128xf32>
    %21 = tpu.matmul %0, %20, %cst_18 {dimension_numbers = #tpu.dot_dimension_numbers<[1], [0], [0], [1], [0, 0, 1, 1], [], []>} : vector<16x27xbf16>, vector<27x128xbf16>, vector<16x128xf32> -> vector<16x128xf32>
    %c0_19 = arith.constant 0 : index
    %c0_20 = arith.constant 0 : index
    %22 = vector.load %arg3[%c0_19, %c0_20] : memref<16x1xf32, #tpu.memory_space<vmem>>, vector<16x1xf32>
    %23 = vector.broadcast %22 : vector<16x1xf32> to vector<16x128xf32>
    %24 = arith.addf %21, %23 : vector<16x128xf32>
    %25 = arith.addf %6, %12 : vector<16x128xf32>
    %26 = arith.addf %25, %18 : vector<16x128xf32>
    %27 = arith.addf %26, %24 : vector<16x128xf32>
    %cst_21 = arith.constant dense<0.000000e+00> : vector<16xf32>
    %28 = vector.multi_reduction <add>, %27, %cst_21 [1] : vector<16x128xf32> to vector<16xf32>
    %29 = vector.shape_cast %28 : vector<16xf32> to vector<16x1xf32>
    %cst_22 = arith.constant 0.001953125 : f32
    %30 = vector.broadcast %cst_22 : f32 to vector<16x1xf32>
    %31 = arith.mulf %29, %30 : vector<16x1xf32>
    %32 = vector.broadcast %31 : vector<16x1xf32> to vector<16x128xf32>
    %33 = arith.subf %6, %32 : vector<16x128xf32>
    %34 = arith.mulf %33, %33 : vector<16x128xf32>
    %cst_23 = arith.constant dense<0.000000e+00> : vector<16xf32>
    %35 = vector.multi_reduction <add>, %34, %cst_23 [1] : vector<16x128xf32> to vector<16xf32>
    %36 = vector.shape_cast %35 : vector<16xf32> to vector<16x1xf32>
    %37 = vector.broadcast %31 : vector<16x1xf32> to vector<16x128xf32>
    %38 = arith.subf %12, %37 : vector<16x128xf32>
    %39 = arith.mulf %38, %38 : vector<16x128xf32>
    %cst_24 = arith.constant dense<0.000000e+00> : vector<16xf32>
    %40 = vector.multi_reduction <add>, %39, %cst_24 [1] : vector<16x128xf32> to vector<16xf32>
    %41 = vector.shape_cast %40 : vector<16xf32> to vector<16x1xf32>
    %42 = arith.addf %36, %41 : vector<16x1xf32>
    %43 = vector.broadcast %31 : vector<16x1xf32> to vector<16x128xf32>
    %44 = arith.subf %18, %43 : vector<16x128xf32>
    %45 = arith.mulf %44, %44 : vector<16x128xf32>
    %cst_25 = arith.constant dense<0.000000e+00> : vector<16xf32>
    %46 = vector.multi_reduction <add>, %45, %cst_25 [1] : vector<16x128xf32> to vector<16xf32>
    %47 = vector.shape_cast %46 : vector<16xf32> to vector<16x1xf32>
    %48 = arith.addf %42, %47 : vector<16x1xf32>
    %49 = vector.broadcast %31 : vector<16x1xf32> to vector<16x128xf32>
    %50 = arith.subf %24, %49 : vector<16x128xf32>
    %51 = arith.mulf %50, %50 : vector<16x128xf32>
    %cst_26 = arith.constant dense<0.000000e+00> : vector<16xf32>
    %52 = vector.multi_reduction <add>, %51, %cst_26 [1] : vector<16x128xf32> to vector<16xf32>
    %53 = vector.shape_cast %52 : vector<16xf32> to vector<16x1xf32>
    %54 = arith.addf %48, %53 : vector<16x1xf32>
    %cst_27 = arith.constant 0.001953125 : f32
    %55 = vector.broadcast %cst_27 : f32 to vector<16x1xf32>
    %56 = arith.mulf %54, %55 : vector<16x1xf32>
    %c0_28 = arith.constant 0 : index
    %c0_29 = arith.constant 0 : index
    %57 = vector.load %arg4[%c0_28, %c0_29] : memref<16x1xf32, #tpu.memory_space<vmem>>, vector<16x1xf32>
    %cst_30 = arith.constant 9.99999974E-6 : f32
    %58 = vector.broadcast %cst_30 : f32 to vector<16x1xf32>
    %59 = arith.addf %56, %58 : vector<16x1xf32>
    %60 = math.rsqrt %59 : vector<16x1xf32>
    %61 = arith.mulf %57, %60 : vector<16x1xf32>
    %62 = vector.broadcast %61 : vector<16x1xf32> to vector<16x128xf32>
    %63 = arith.mulf %33, %62 : vector<16x128xf32>
    %c0_31 = arith.constant 0 : index
    %c0_32 = arith.constant 0 : index
    %64 = vector.load %arg5[%c0_31, %c0_32] : memref<16x1xf32, #tpu.memory_space<vmem>>, vector<16x1xf32>
    %65 = vector.broadcast %64 : vector<16x1xf32> to vector<16x128xf32>
    %66 = arith.addf %63, %65 : vector<16x128xf32>
    %cst_33 = arith.constant 0.000000e+00 : f32
    %67 = vector.broadcast %cst_33 : f32 to vector<16x128xf32>
    %68 = arith.maximumf %66, %67 : vector<16x128xf32>
    %69 = vector.broadcast %61 : vector<16x1xf32> to vector<16x128xf32>
    %70 = arith.mulf %38, %69 : vector<16x128xf32>
    %c0_34 = arith.constant 0 : index
    %c0_35 = arith.constant 0 : index
    %71 = vector.load %arg5[%c0_34, %c0_35] : memref<16x1xf32, #tpu.memory_space<vmem>>, vector<16x1xf32>
    %72 = vector.broadcast %71 : vector<16x1xf32> to vector<16x128xf32>
    %73 = arith.addf %70, %72 : vector<16x128xf32>
    %cst_36 = arith.constant 0.000000e+00 : f32
    %74 = vector.broadcast %cst_36 : f32 to vector<16x128xf32>
    %75 = arith.maximumf %73, %74 : vector<16x128xf32>
    %76 = arith.maximumf %68, %75 : vector<16x128xf32>
    %77 = vector.broadcast %61 : vector<16x1xf32> to vector<16x128xf32>
    %78 = arith.mulf %44, %77 : vector<16x128xf32>
    %c0_37 = arith.constant 0 : index
    %c0_38 = arith.constant 0 : index
    %79 = vector.load %arg5[%c0_37, %c0_38] : memref<16x1xf32, #tpu.memory_space<vmem>>, vector<16x1xf32>
    %80 = vector.broadcast %79 : vector<16x1xf32> to vector<16x128xf32>
    %81 = arith.addf %78, %80 : vector<16x128xf32>
    %cst_39 = arith.constant 0.000000e+00 : f32
    %82 = vector.broadcast %cst_39 : f32 to vector<16x128xf32>
    %83 = arith.maximumf %81, %82 : vector<16x128xf32>
    %84 = arith.maximumf %76, %83 : vector<16x128xf32>
    %85 = vector.broadcast %61 : vector<16x1xf32> to vector<16x128xf32>
    %86 = arith.mulf %50, %85 : vector<16x128xf32>
    %c0_40 = arith.constant 0 : index
    %c0_41 = arith.constant 0 : index
    %87 = vector.load %arg5[%c0_40, %c0_41] : memref<16x1xf32, #tpu.memory_space<vmem>>, vector<16x1xf32>
    %88 = vector.broadcast %87 : vector<16x1xf32> to vector<16x128xf32>
    %89 = arith.addf %86, %88 : vector<16x128xf32>
    %cst_42 = arith.constant 0.000000e+00 : f32
    %90 = vector.broadcast %cst_42 : f32 to vector<16x128xf32>
    %91 = arith.maximumf %89, %90 : vector<16x128xf32>
    %92 = arith.maximumf %84, %91 : vector<16x128xf32>
    %93 = arith.truncf %92 : vector<16x128xf32> to vector<16x128xbf16>
    %c0_43 = arith.constant 0 : index
    %c0_44 = arith.constant 0 : index
    %94 = vector.load %arg6[%c0_43, %c0_44] : memref<16x128xbf16, #tpu.memory_space<vmem>>, vector<16x128xbf16>
    tpu.vector_store %arg6[%c0_43, %c0_44], %93 {strides = array<i32>} : memref<16x128xbf16, #tpu.memory_space<vmem>>, vector<16x128xbf16>,
    return
  }
  func.func @transform_0(%arg0: i32) -> (i32, i32, i32) {
    %c0_i32 = arith.constant 0 : i32
    %c0_i32_0 = arith.constant 0 : i32
    %c0_i32_1 = arith.constant 0 : i32
    %c0_i32_2 = arith.constant 0 : i32
    return %c0_i32, %c0_i32_0, %c0_i32_1 : i32, i32, i32
  }
  func.func @transform_1(%arg0: i32) -> (i32, i32) {
    %c0_i32 = arith.constant 0 : i32
    %c0_i32_0 = arith.constant 0 : i32
    return %arg0, %c0_i32 : i32, i32
  }
  func.func @transform_2(%arg0: i32) -> (i32, i32) {
    %c0_i32 = arith.constant 0 : i32
    %c0_i32_0 = arith.constant 0 : i32
    return %arg0, %c0_i32 : i32, i32
  }
  func.func @transform_3(%arg0: i32) -> (i32, i32) {
    %c0_i32 = arith.constant 0 : i32
    %c0_i32_0 = arith.constant 0 : i32
    return %arg0, %c0_i32 : i32, i32
  }
  func.func @transform_4(%arg0: i32) -> (i32, i32) {
    %c0_i32 = arith.constant 0 : i32
    %c0_i32_0 = arith.constant 0 : i32
    return %arg0, %c0_i32 : i32, i32
  }
  func.func @transform_5(%arg0: i32) -> (i32, i32) {
    %c0_i32 = arith.constant 0 : i32
    %c0_i32_0 = arith.constant 0 : i32
    return %arg0, %c0_i32 : i32, i32
  }
}

module attributes {stable_mosaic.version = 11 : i64} {
  func.func @_conv_bn_relu_maxpool_kernel(%arg0: i32, %arg1: memref<4x288x32xbf16, #tpu.memory_space<vmem>>, %arg2: memref<32x288xbf16, #tpu.memory_space<vmem>>, %arg3: memref<32x1xf32, #tpu.memory_space<vmem>>, %arg4: memref<32x1xf32, #tpu.memory_space<vmem>>, %arg5: memref<32x1xf32, #tpu.memory_space<vmem>>, %arg6: memref<32x32xbf16, #tpu.memory_space<vmem>>) attributes {dimension_semantics = [#tpu.dimension_semantics<parallel>], iteration_bounds = array<i64: 2>, scalar_prefetch = 0 : i64, scratch_operands = 0 : i64, tpu.core_type = #tpu.core_type<tc>, window_params = [{pipeline_mode = #tpu.pipeline_mode<synchronous>, transform_indices = @transform_0, window_bounds = array<i64: 4, 288, 32>}, {transform_indices = @transform_1, window_bounds = array<i64: 32, 288>}, {transform_indices = @transform_2, window_bounds = array<i64: 32, 1>}, {transform_indices = @transform_3, window_bounds = array<i64: 32, 1>}, {transform_indices = @transform_4, window_bounds = array<i64: 32, 1>}, {transform_indices = @transform_5, window_bounds = array<i64: 32, 32>}]} {
    %c0 = arith.constant 0 : index
    %c0_0 = arith.constant 0 : index
    %0 = vector.load %arg2[%c0, %c0_0] : memref<32x288xbf16, #tpu.memory_space<vmem>>, vector<32x288xbf16>
    %c0_1 = arith.constant 0 : index
    %c0_2 = arith.constant 0 : index
    %c0_3 = arith.constant 0 : index
    %1 = vector.load %arg1[%c0_1, %c0_2, %c0_3] : memref<4x288x32xbf16, #tpu.memory_space<vmem>>, vector<1x288x32xbf16>
    %2 = vector.shape_cast %1 : vector<1x288x32xbf16> to vector<288x32xbf16>
    %cst = arith.constant dense<0.000000e+00> : vector<32x32xf32>
    %3 = tpu.matmul %0, %2, %cst {dimension_numbers = #tpu.dot_dimension_numbers<[1], [0], [0], [1], [0, 0, 1, 1], [], []>} : vector<32x288xbf16>, vector<288x32xbf16>, vector<32x32xf32> -> vector<32x32xf32>
    %c0_4 = arith.constant 0 : index
    %c0_5 = arith.constant 0 : index
    %4 = vector.load %arg3[%c0_4, %c0_5] : memref<32x1xf32, #tpu.memory_space<vmem>>, vector<32x1xf32>
    %5 = vector.broadcast %4 : vector<32x1xf32> to vector<32x32xf32>
    %6 = arith.addf %3, %5 : vector<32x32xf32>
    %c1 = arith.constant 1 : index
    %c0_6 = arith.constant 0 : index
    %c0_7 = arith.constant 0 : index
    %7 = vector.load %arg1[%c1, %c0_6, %c0_7] : memref<4x288x32xbf16, #tpu.memory_space<vmem>>, vector<1x288x32xbf16>
    %8 = vector.shape_cast %7 : vector<1x288x32xbf16> to vector<288x32xbf16>
    %cst_8 = arith.constant dense<0.000000e+00> : vector<32x32xf32>
    %9 = tpu.matmul %0, %8, %cst_8 {dimension_numbers = #tpu.dot_dimension_numbers<[1], [0], [0], [1], [0, 0, 1, 1], [], []>} : vector<32x288xbf16>, vector<288x32xbf16>, vector<32x32xf32> -> vector<32x32xf32>
    %c0_9 = arith.constant 0 : index
    %c0_10 = arith.constant 0 : index
    %10 = vector.load %arg3[%c0_9, %c0_10] : memref<32x1xf32, #tpu.memory_space<vmem>>, vector<32x1xf32>
    %11 = vector.broadcast %10 : vector<32x1xf32> to vector<32x32xf32>
    %12 = arith.addf %9, %11 : vector<32x32xf32>
    %c2 = arith.constant 2 : index
    %c0_11 = arith.constant 0 : index
    %c0_12 = arith.constant 0 : index
    %13 = vector.load %arg1[%c2, %c0_11, %c0_12] : memref<4x288x32xbf16, #tpu.memory_space<vmem>>, vector<1x288x32xbf16>
    %14 = vector.shape_cast %13 : vector<1x288x32xbf16> to vector<288x32xbf16>
    %cst_13 = arith.constant dense<0.000000e+00> : vector<32x32xf32>
    %15 = tpu.matmul %0, %14, %cst_13 {dimension_numbers = #tpu.dot_dimension_numbers<[1], [0], [0], [1], [0, 0, 1, 1], [], []>} : vector<32x288xbf16>, vector<288x32xbf16>, vector<32x32xf32> -> vector<32x32xf32>
    %c0_14 = arith.constant 0 : index
    %c0_15 = arith.constant 0 : index
    %16 = vector.load %arg3[%c0_14, %c0_15] : memref<32x1xf32, #tpu.memory_space<vmem>>, vector<32x1xf32>
    %17 = vector.broadcast %16 : vector<32x1xf32> to vector<32x32xf32>
    %18 = arith.addf %15, %17 : vector<32x32xf32>
    %c3 = arith.constant 3 : index
    %c0_16 = arith.constant 0 : index
    %c0_17 = arith.constant 0 : index
    %19 = vector.load %arg1[%c3, %c0_16, %c0_17] : memref<4x288x32xbf16, #tpu.memory_space<vmem>>, vector<1x288x32xbf16>
    %20 = vector.shape_cast %19 : vector<1x288x32xbf16> to vector<288x32xbf16>
    %cst_18 = arith.constant dense<0.000000e+00> : vector<32x32xf32>
    %21 = tpu.matmul %0, %20, %cst_18 {dimension_numbers = #tpu.dot_dimension_numbers<[1], [0], [0], [1], [0, 0, 1, 1], [], []>} : vector<32x288xbf16>, vector<288x32xbf16>, vector<32x32xf32> -> vector<32x32xf32>
    %c0_19 = arith.constant 0 : index
    %c0_20 = arith.constant 0 : index
    %22 = vector.load %arg3[%c0_19, %c0_20] : memref<32x1xf32, #tpu.memory_space<vmem>>, vector<32x1xf32>
    %23 = vector.broadcast %22 : vector<32x1xf32> to vector<32x32xf32>
    %24 = arith.addf %21, %23 : vector<32x32xf32>
    %25 = arith.addf %6, %12 : vector<32x32xf32>
    %26 = arith.addf %25, %18 : vector<32x32xf32>
    %27 = arith.addf %26, %24 : vector<32x32xf32>
    %cst_21 = arith.constant dense<0.000000e+00> : vector<32xf32>
    %28 = vector.multi_reduction <add>, %27, %cst_21 [1] : vector<32x32xf32> to vector<32xf32>
    %29 = vector.shape_cast %28 : vector<32xf32> to vector<32x1xf32>
    %cst_22 = arith.constant 7.812500e-03 : f32
    %30 = vector.broadcast %cst_22 : f32 to vector<32x1xf32>
    %31 = arith.mulf %29, %30 : vector<32x1xf32>
    %32 = vector.broadcast %31 : vector<32x1xf32> to vector<32x32xf32>
    %33 = arith.subf %6, %32 : vector<32x32xf32>
    %34 = arith.mulf %33, %33 : vector<32x32xf32>
    %cst_23 = arith.constant dense<0.000000e+00> : vector<32xf32>
    %35 = vector.multi_reduction <add>, %34, %cst_23 [1] : vector<32x32xf32> to vector<32xf32>
    %36 = vector.shape_cast %35 : vector<32xf32> to vector<32x1xf32>
    %37 = vector.broadcast %31 : vector<32x1xf32> to vector<32x32xf32>
    %38 = arith.subf %12, %37 : vector<32x32xf32>
    %39 = arith.mulf %38, %38 : vector<32x32xf32>
    %cst_24 = arith.constant dense<0.000000e+00> : vector<32xf32>
    %40 = vector.multi_reduction <add>, %39, %cst_24 [1] : vector<32x32xf32> to vector<32xf32>
    %41 = vector.shape_cast %40 : vector<32xf32> to vector<32x1xf32>
    %42 = arith.addf %36, %41 : vector<32x1xf32>
    %43 = vector.broadcast %31 : vector<32x1xf32> to vector<32x32xf32>
    %44 = arith.subf %18, %43 : vector<32x32xf32>
    %45 = arith.mulf %44, %44 : vector<32x32xf32>
    %cst_25 = arith.constant dense<0.000000e+00> : vector<32xf32>
    %46 = vector.multi_reduction <add>, %45, %cst_25 [1] : vector<32x32xf32> to vector<32xf32>
    %47 = vector.shape_cast %46 : vector<32xf32> to vector<32x1xf32>
    %48 = arith.addf %42, %47 : vector<32x1xf32>
    %49 = vector.broadcast %31 : vector<32x1xf32> to vector<32x32xf32>
    %50 = arith.subf %24, %49 : vector<32x32xf32>
    %51 = arith.mulf %50, %50 : vector<32x32xf32>
    %cst_26 = arith.constant dense<0.000000e+00> : vector<32xf32>
    %52 = vector.multi_reduction <add>, %51, %cst_26 [1] : vector<32x32xf32> to vector<32xf32>
    %53 = vector.shape_cast %52 : vector<32xf32> to vector<32x1xf32>
    %54 = arith.addf %48, %53 : vector<32x1xf32>
    %cst_27 = arith.constant 7.812500e-03 : f32
    %55 = vector.broadcast %cst_27 : f32 to vector<32x1xf32>
    %56 = arith.mulf %54, %55 : vector<32x1xf32>
    %c0_28 = arith.constant 0 : index
    %c0_29 = arith.constant 0 : index
    %57 = vector.load %arg4[%c0_28, %c0_29] : memref<32x1xf32, #tpu.memory_space<vmem>>, vector<32x1xf32>
    %cst_30 = arith.constant 9.99999974E-6 : f32
    %58 = vector.broadcast %cst_30 : f32 to vector<32x1xf32>
    %59 = arith.addf %56, %58 : vector<32x1xf32>
    %60 = math.rsqrt %59 : vector<32x1xf32>
    %61 = arith.mulf %57, %60 : vector<32x1xf32>
    %62 = vector.broadcast %61 : vector<32x1xf32> to vector<32x32xf32>
    %63 = arith.mulf %33, %62 : vector<32x32xf32>
    %c0_31 = arith.constant 0 : index
    %c0_32 = arith.constant 0 : index
    %64 = vector.load %arg5[%c0_31, %c0_32] : memref<32x1xf32, #tpu.memory_space<vmem>>, vector<32x1xf32>
    %65 = vector.broadcast %64 : vector<32x1xf32> to vector<32x32xf32>
    %66 = arith.addf %63, %65 : vector<32x32xf32>
    %cst_33 = arith.constant 0.000000e+00 : f32
    %67 = vector.broadcast %cst_33 : f32 to vector<32x32xf32>
    %68 = arith.maximumf %66, %67 : vector<32x32xf32>
    %69 = vector.broadcast %61 : vector<32x1xf32> to vector<32x32xf32>
    %70 = arith.mulf %38, %69 : vector<32x32xf32>
    %c0_34 = arith.constant 0 : index
    %c0_35 = arith.constant 0 : index
    %71 = vector.load %arg5[%c0_34, %c0_35] : memref<32x1xf32, #tpu.memory_space<vmem>>, vector<32x1xf32>
    %72 = vector.broadcast %71 : vector<32x1xf32> to vector<32x32xf32>
    %73 = arith.addf %70, %72 : vector<32x32xf32>
    %cst_36 = arith.constant 0.000000e+00 : f32
    %74 = vector.broadcast %cst_36 : f32 to vector<32x32xf32>
    %75 = arith.maximumf %73, %74 : vector<32x32xf32>
    %76 = arith.maximumf %68, %75 : vector<32x32xf32>
    %77 = vector.broadcast %61 : vector<32x1xf32> to vector<32x32xf32>
    %78 = arith.mulf %44, %77 : vector<32x32xf32>
    %c0_37 = arith.constant 0 : index
    %c0_38 = arith.constant 0 : index
    %79 = vector.load %arg5[%c0_37, %c0_38] : memref<32x1xf32, #tpu.memory_space<vmem>>, vector<32x1xf32>
    %80 = vector.broadcast %79 : vector<32x1xf32> to vector<32x32xf32>
    %81 = arith.addf %78, %80 : vector<32x32xf32>
    %cst_39 = arith.constant 0.000000e+00 : f32
    %82 = vector.broadcast %cst_39 : f32 to vector<32x32xf32>
    %83 = arith.maximumf %81, %82 : vector<32x32xf32>
    %84 = arith.maximumf %76, %83 : vector<32x32xf32>
    %85 = vector.broadcast %61 : vector<32x1xf32> to vector<32x32xf32>
    %86 = arith.mulf %50, %85 : vector<32x32xf32>
    %c0_40 = arith.constant 0 : index
    %c0_41 = arith.constant 0 : index
    %87 = vector.load %arg5[%c0_40, %c0_41] : memref<32x1xf32, #tpu.memory_space<vmem>>, vector<32x1xf32>
    %88 = vector.broadcast %87 : vector<32x1xf32> to vector<32x32xf32>
    %89 = arith.addf %86, %88 : vector<32x32xf32>
    %cst_42 = arith.constant 0.000000e+00 : f32
    %90 = vector.broadcast %cst_42 : f32 to vector<32x32xf32>
    %91 = arith.maximumf %89, %90 : vector<32x32xf32>
    %92 = arith.maximumf %84, %91 : vector<32x32xf32>
    %93 = arith.truncf %92 : vector<32x32xf32> to vector<32x32xbf16>
    %c0_43 = arith.constant 0 : index
    %c0_44 = arith.constant 0 : index
    %94 = vector.load %arg6[%c0_43, %c0_44] : memref<32x32xbf16, #tpu.memory_space<vmem>>, vector<32x32xbf16>
    tpu.vector_store %arg6[%c0_43, %c0_44], %93 {strides = array<i32>} : memref<32x32xbf16, #tpu.memory_space<vmem>>, vector<32x32xbf16>,
    return
  }
  func.func @transform_0(%arg0: i32) -> (i32, i32, i32) {
    %c0_i32 = arith.constant 0 : i32
    %c0_i32_0 = arith.constant 0 : i32
    %c0_i32_1 = arith.constant 0 : i32
    %c0_i32_2 = arith.constant 0 : i32
    return %c0_i32, %c0_i32_0, %c0_i32_1 : i32, i32, i32
  }
  func.func @transform_1(%arg0: i32) -> (i32, i32) {
    %c0_i32 = arith.constant 0 : i32
    %c0_i32_0 = arith.constant 0 : i32
    return %arg0, %c0_i32 : i32, i32
  }
  func.func @transform_2(%arg0: i32) -> (i32, i32) {
    %c0_i32 = arith.constant 0 : i32
    %c0_i32_0 = arith.constant 0 : i32
    return %arg0, %c0_i32 : i32, i32
  }
  func.func @transform_3(%arg0: i32) -> (i32, i32) {
    %c0_i32 = arith.constant 0 : i32
    %c0_i32_0 = arith.constant 0 : i32
    return %arg0, %c0_i32 : i32, i32
  }
  func.func @transform_4(%arg0: i32) -> (i32, i32) {
    %c0_i32 = arith.constant 0 : i32
    %c0_i32_0 = arith.constant 0 : i32
    return %arg0, %c0_i32 : i32, i32
  }
  func.func @transform_5(%arg0: i32) -> (i32, i32) {
    %c0_i32 = arith.constant 0 : i32
    %c0_i32_0 = arith.constant 0 : i32
    return %arg0, %c0_i32 : i32, i32
  }
}

module attributes {stable_mosaic.version = 11 : i64} {
  func.func @_conv_bn_relu_maxpool_kernel(%arg0: i32, %arg1: memref<4x576x8xbf16, #tpu.memory_space<vmem>>, %arg2: memref<64x576xbf16, #tpu.memory_space<vmem>>, %arg3: memref<64x1xf32, #tpu.memory_space<vmem>>, %arg4: memref<64x1xf32, #tpu.memory_space<vmem>>, %arg5: memref<64x1xf32, #tpu.memory_space<vmem>>, %arg6: memref<64x8xbf16, #tpu.memory_space<vmem>>) attributes {dimension_semantics = [#tpu.dimension_semantics<parallel>], iteration_bounds = array<i64: 2>, scalar_prefetch = 0 : i64, scratch_operands = 0 : i64, tpu.core_type = #tpu.core_type<tc>, window_params = [{pipeline_mode = #tpu.pipeline_mode<synchronous>, transform_indices = @transform_0, window_bounds = array<i64: 4, 576, 8>}, {transform_indices = @transform_1, window_bounds = array<i64: 64, 576>}, {transform_indices = @transform_2, window_bounds = array<i64: 64, 1>}, {transform_indices = @transform_3, window_bounds = array<i64: 64, 1>}, {transform_indices = @transform_4, window_bounds = array<i64: 64, 1>}, {transform_indices = @transform_5, window_bounds = array<i64: 64, 8>}]} {
    %c0 = arith.constant 0 : index
    %c0_0 = arith.constant 0 : index
    %0 = vector.load %arg2[%c0, %c0_0] : memref<64x576xbf16, #tpu.memory_space<vmem>>, vector<64x576xbf16>
    %c0_1 = arith.constant 0 : index
    %c0_2 = arith.constant 0 : index
    %c0_3 = arith.constant 0 : index
    %1 = vector.load %arg1[%c0_1, %c0_2, %c0_3] : memref<4x576x8xbf16, #tpu.memory_space<vmem>>, vector<1x576x8xbf16>
    %2 = vector.shape_cast %1 : vector<1x576x8xbf16> to vector<576x8xbf16>
    %cst = arith.constant dense<0.000000e+00> : vector<64x8xf32>
    %3 = tpu.matmul %0, %2, %cst {dimension_numbers = #tpu.dot_dimension_numbers<[1], [0], [0], [1], [0, 0, 1, 1], [], []>} : vector<64x576xbf16>, vector<576x8xbf16>, vector<64x8xf32> -> vector<64x8xf32>
    %c0_4 = arith.constant 0 : index
    %c0_5 = arith.constant 0 : index
    %4 = vector.load %arg3[%c0_4, %c0_5] : memref<64x1xf32, #tpu.memory_space<vmem>>, vector<64x1xf32>
    %5 = vector.broadcast %4 : vector<64x1xf32> to vector<64x8xf32>
    %6 = arith.addf %3, %5 : vector<64x8xf32>
    %c1 = arith.constant 1 : index
    %c0_6 = arith.constant 0 : index
    %c0_7 = arith.constant 0 : index
    %7 = vector.load %arg1[%c1, %c0_6, %c0_7] : memref<4x576x8xbf16, #tpu.memory_space<vmem>>, vector<1x576x8xbf16>
    %8 = vector.shape_cast %7 : vector<1x576x8xbf16> to vector<576x8xbf16>
    %cst_8 = arith.constant dense<0.000000e+00> : vector<64x8xf32>
    %9 = tpu.matmul %0, %8, %cst_8 {dimension_numbers = #tpu.dot_dimension_numbers<[1], [0], [0], [1], [0, 0, 1, 1], [], []>} : vector<64x576xbf16>, vector<576x8xbf16>, vector<64x8xf32> -> vector<64x8xf32>
    %c0_9 = arith.constant 0 : index
    %c0_10 = arith.constant 0 : index
    %10 = vector.load %arg3[%c0_9, %c0_10] : memref<64x1xf32, #tpu.memory_space<vmem>>, vector<64x1xf32>
    %11 = vector.broadcast %10 : vector<64x1xf32> to vector<64x8xf32>
    %12 = arith.addf %9, %11 : vector<64x8xf32>
    %c2 = arith.constant 2 : index
    %c0_11 = arith.constant 0 : index
    %c0_12 = arith.constant 0 : index
    %13 = vector.load %arg1[%c2, %c0_11, %c0_12] : memref<4x576x8xbf16, #tpu.memory_space<vmem>>, vector<1x576x8xbf16>
    %14 = vector.shape_cast %13 : vector<1x576x8xbf16> to vector<576x8xbf16>
    %cst_13 = arith.constant dense<0.000000e+00> : vector<64x8xf32>
    %15 = tpu.matmul %0, %14, %cst_13 {dimension_numbers = #tpu.dot_dimension_numbers<[1], [0], [0], [1], [0, 0, 1, 1], [], []>} : vector<64x576xbf16>, vector<576x8xbf16>, vector<64x8xf32> -> vector<64x8xf32>
    %c0_14 = arith.constant 0 : index
    %c0_15 = arith.constant 0 : index
    %16 = vector.load %arg3[%c0_14, %c0_15] : memref<64x1xf32, #tpu.memory_space<vmem>>, vector<64x1xf32>
    %17 = vector.broadcast %16 : vector<64x1xf32> to vector<64x8xf32>
    %18 = arith.addf %15, %17 : vector<64x8xf32>
    %c3 = arith.constant 3 : index
    %c0_16 = arith.constant 0 : index
    %c0_17 = arith.constant 0 : index
    %19 = vector.load %arg1[%c3, %c0_16, %c0_17] : memref<4x576x8xbf16, #tpu.memory_space<vmem>>, vector<1x576x8xbf16>
    %20 = vector.shape_cast %19 : vector<1x576x8xbf16> to vector<576x8xbf16>
    %cst_18 = arith.constant dense<0.000000e+00> : vector<64x8xf32>
    %21 = tpu.matmul %0, %20, %cst_18 {dimension_numbers = #tpu.dot_dimension_numbers<[1], [0], [0], [1], [0, 0, 1, 1], [], []>} : vector<64x576xbf16>, vector<576x8xbf16>, vector<64x8xf32> -> vector<64x8xf32>
    %c0_19 = arith.constant 0 : index
    %c0_20 = arith.constant 0 : index
    %22 = vector.load %arg3[%c0_19, %c0_20] : memref<64x1xf32, #tpu.memory_space<vmem>>, vector<64x1xf32>
    %23 = vector.broadcast %22 : vector<64x1xf32> to vector<64x8xf32>
    %24 = arith.addf %21, %23 : vector<64x8xf32>
    %25 = arith.addf %6, %12 : vector<64x8xf32>
    %26 = arith.addf %25, %18 : vector<64x8xf32>
    %27 = arith.addf %26, %24 : vector<64x8xf32>
    %cst_21 = arith.constant dense<0.000000e+00> : vector<64xf32>
    %28 = vector.multi_reduction <add>, %27, %cst_21 [1] : vector<64x8xf32> to vector<64xf32>
    %29 = vector.shape_cast %28 : vector<64xf32> to vector<64x1xf32>
    %cst_22 = arith.constant 3.125000e-02 : f32
    %30 = vector.broadcast %cst_22 : f32 to vector<64x1xf32>
    %31 = arith.mulf %29, %30 : vector<64x1xf32>
    %32 = vector.broadcast %31 : vector<64x1xf32> to vector<64x8xf32>
    %33 = arith.subf %6, %32 : vector<64x8xf32>
    %34 = arith.mulf %33, %33 : vector<64x8xf32>
    %cst_23 = arith.constant dense<0.000000e+00> : vector<64xf32>
    %35 = vector.multi_reduction <add>, %34, %cst_23 [1] : vector<64x8xf32> to vector<64xf32>
    %36 = vector.shape_cast %35 : vector<64xf32> to vector<64x1xf32>
    %37 = vector.broadcast %31 : vector<64x1xf32> to vector<64x8xf32>
    %38 = arith.subf %12, %37 : vector<64x8xf32>
    %39 = arith.mulf %38, %38 : vector<64x8xf32>
    %cst_24 = arith.constant dense<0.000000e+00> : vector<64xf32>
    %40 = vector.multi_reduction <add>, %39, %cst_24 [1] : vector<64x8xf32> to vector<64xf32>
    %41 = vector.shape_cast %40 : vector<64xf32> to vector<64x1xf32>
    %42 = arith.addf %36, %41 : vector<64x1xf32>
    %43 = vector.broadcast %31 : vector<64x1xf32> to vector<64x8xf32>
    %44 = arith.subf %18, %43 : vector<64x8xf32>
    %45 = arith.mulf %44, %44 : vector<64x8xf32>
    %cst_25 = arith.constant dense<0.000000e+00> : vector<64xf32>
    %46 = vector.multi_reduction <add>, %45, %cst_25 [1] : vector<64x8xf32> to vector<64xf32>
    %47 = vector.shape_cast %46 : vector<64xf32> to vector<64x1xf32>
    %48 = arith.addf %42, %47 : vector<64x1xf32>
    %49 = vector.broadcast %31 : vector<64x1xf32> to vector<64x8xf32>
    %50 = arith.subf %24, %49 : vector<64x8xf32>
    %51 = arith.mulf %50, %50 : vector<64x8xf32>
    %cst_26 = arith.constant dense<0.000000e+00> : vector<64xf32>
    %52 = vector.multi_reduction <add>, %51, %cst_26 [1] : vector<64x8xf32> to vector<64xf32>
    %53 = vector.shape_cast %52 : vector<64xf32> to vector<64x1xf32>
    %54 = arith.addf %48, %53 : vector<64x1xf32>
    %cst_27 = arith.constant 3.125000e-02 : f32
    %55 = vector.broadcast %cst_27 : f32 to vector<64x1xf32>
    %56 = arith.mulf %54, %55 : vector<64x1xf32>
    %c0_28 = arith.constant 0 : index
    %c0_29 = arith.constant 0 : index
    %57 = vector.load %arg4[%c0_28, %c0_29] : memref<64x1xf32, #tpu.memory_space<vmem>>, vector<64x1xf32>
    %cst_30 = arith.constant 9.99999974E-6 : f32
    %58 = vector.broadcast %cst_30 : f32 to vector<64x1xf32>
    %59 = arith.addf %56, %58 : vector<64x1xf32>
    %60 = math.rsqrt %59 : vector<64x1xf32>
    %61 = arith.mulf %57, %60 : vector<64x1xf32>
    %62 = vector.broadcast %61 : vector<64x1xf32> to vector<64x8xf32>
    %63 = arith.mulf %33, %62 : vector<64x8xf32>
    %c0_31 = arith.constant 0 : index
    %c0_32 = arith.constant 0 : index
    %64 = vector.load %arg5[%c0_31, %c0_32] : memref<64x1xf32, #tpu.memory_space<vmem>>, vector<64x1xf32>
    %65 = vector.broadcast %64 : vector<64x1xf32> to vector<64x8xf32>
    %66 = arith.addf %63, %65 : vector<64x8xf32>
    %cst_33 = arith.constant 0.000000e+00 : f32
    %67 = vector.broadcast %cst_33 : f32 to vector<64x8xf32>
    %68 = arith.maximumf %66, %67 : vector<64x8xf32>
    %69 = vector.broadcast %61 : vector<64x1xf32> to vector<64x8xf32>
    %70 = arith.mulf %38, %69 : vector<64x8xf32>
    %c0_34 = arith.constant 0 : index
    %c0_35 = arith.constant 0 : index
    %71 = vector.load %arg5[%c0_34, %c0_35] : memref<64x1xf32, #tpu.memory_space<vmem>>, vector<64x1xf32>
    %72 = vector.broadcast %71 : vector<64x1xf32> to vector<64x8xf32>
    %73 = arith.addf %70, %72 : vector<64x8xf32>
    %cst_36 = arith.constant 0.000000e+00 : f32
    %74 = vector.broadcast %cst_36 : f32 to vector<64x8xf32>
    %75 = arith.maximumf %73, %74 : vector<64x8xf32>
    %76 = arith.maximumf %68, %75 : vector<64x8xf32>
    %77 = vector.broadcast %61 : vector<64x1xf32> to vector<64x8xf32>
    %78 = arith.mulf %44, %77 : vector<64x8xf32>
    %c0_37 = arith.constant 0 : index
    %c0_38 = arith.constant 0 : index
    %79 = vector.load %arg5[%c0_37, %c0_38] : memref<64x1xf32, #tpu.memory_space<vmem>>, vector<64x1xf32>
    %80 = vector.broadcast %79 : vector<64x1xf32> to vector<64x8xf32>
    %81 = arith.addf %78, %80 : vector<64x8xf32>
    %cst_39 = arith.constant 0.000000e+00 : f32
    %82 = vector.broadcast %cst_39 : f32 to vector<64x8xf32>
    %83 = arith.maximumf %81, %82 : vector<64x8xf32>
    %84 = arith.maximumf %76, %83 : vector<64x8xf32>
    %85 = vector.broadcast %61 : vector<64x1xf32> to vector<64x8xf32>
    %86 = arith.mulf %50, %85 : vector<64x8xf32>
    %c0_40 = arith.constant 0 : index
    %c0_41 = arith.constant 0 : index
    %87 = vector.load %arg5[%c0_40, %c0_41] : memref<64x1xf32, #tpu.memory_space<vmem>>, vector<64x1xf32>
    %88 = vector.broadcast %87 : vector<64x1xf32> to vector<64x8xf32>
    %89 = arith.addf %86, %88 : vector<64x8xf32>
    %cst_42 = arith.constant 0.000000e+00 : f32
    %90 = vector.broadcast %cst_42 : f32 to vector<64x8xf32>
    %91 = arith.maximumf %89, %90 : vector<64x8xf32>
    %92 = arith.maximumf %84, %91 : vector<64x8xf32>
    %93 = arith.truncf %92 : vector<64x8xf32> to vector<64x8xbf16>
    %c0_43 = arith.constant 0 : index
    %c0_44 = arith.constant 0 : index
    %94 = vector.load %arg6[%c0_43, %c0_44] : memref<64x8xbf16, #tpu.memory_space<vmem>>, vector<64x8xbf16>
    tpu.vector_store %arg6[%c0_43, %c0_44], %93 {strides = array<i32>} : memref<64x8xbf16, #tpu.memory_space<vmem>>, vector<64x8xbf16>,
    return
  }
  func.func @transform_0(%arg0: i32) -> (i32, i32, i32) {
    %c0_i32 = arith.constant 0 : i32
    %c0_i32_0 = arith.constant 0 : i32
    %c0_i32_1 = arith.constant 0 : i32
    %c0_i32_2 = arith.constant 0 : i32
    return %c0_i32, %c0_i32_0, %c0_i32_1 : i32, i32, i32
  }
  func.func @transform_1(%arg0: i32) -> (i32, i32) {
    %c0_i32 = arith.constant 0 : i32
    %c0_i32_0 = arith.constant 0 : i32
    return %arg0, %c0_i32 : i32, i32
  }
  func.func @transform_2(%arg0: i32) -> (i32, i32) {
    %c0_i32 = arith.constant 0 : i32
    %c0_i32_0 = arith.constant 0 : i32
    return %arg0, %c0_i32 : i32, i32
  }
  func.func @transform_3(%arg0: i32) -> (i32, i32) {
    %c0_i32 = arith.constant 0 : i32
    %c0_i32_0 = arith.constant 0 : i32
    return %arg0, %c0_i32 : i32, i32
  }
  func.func @transform_4(%arg0: i32) -> (i32, i32) {
    %c0_i32 = arith.constant 0 : i32
    %c0_i32_0 = arith.constant 0 : i32
    return %arg0, %c0_i32 : i32, i32
  }
  func.func @transform_5(%arg0: i32) -> (i32, i32) {
    %c0_i32 = arith.constant 0 : i32
    %c0_i32_0 = arith.constant 0 : i32
    return %arg0, %c0_i32 : i32, i32
  }
}

module attributes {stable_mosaic.version = 11 : i64} {
  func.func @_conv4_avgpool_fc_kernel(%arg0: memref<4x2x1152xbf16, #tpu.memory_space<vmem>>, %arg1: memref<1152x256xbf16, #tpu.memory_space<vmem>>, %arg2: memref<1x256xf32, #tpu.memory_space<vmem>>, %arg3: memref<1x256xf32, #tpu.memory_space<vmem>>, %arg4: memref<1x256xf32, #tpu.memory_space<vmem>>, %arg5: memref<256x64xf32, #tpu.memory_space<vmem>>, %arg6: memref<1x64xf32, #tpu.memory_space<vmem>>, %arg7: memref<64x6xf32, #tpu.memory_space<vmem>>, %arg8: memref<1x6xf32, #tpu.memory_space<vmem>>, %arg9: memref<2x6xf32, #tpu.memory_space<vmem>>) attributes {dimension_semantics = [], scalar_prefetch = 0 : i64, scratch_operands = 0 : i64, tpu.core_type = #tpu.core_type<tc>} {
    %c0 = arith.constant 0 : index
    %c0_0 = arith.constant 0 : index
    %0 = vector.load %arg1[%c0, %c0_0] : memref<1152x256xbf16, #tpu.memory_space<vmem>>, vector<1152x256xbf16>
    %c0_1 = arith.constant 0 : index
    %c0_2 = arith.constant 0 : index
    %c0_3 = arith.constant 0 : index
    %1 = vector.load %arg0[%c0_1, %c0_2, %c0_3] : memref<4x2x1152xbf16, #tpu.memory_space<vmem>>, vector<1x2x1152xbf16>
    %2 = vector.shape_cast %1 : vector<1x2x1152xbf16> to vector<2x1152xbf16>
    %cst = arith.constant dense<0.000000e+00> : vector<2x256xf32>
    %3 = tpu.matmul %2, %0, %cst {dimension_numbers = #tpu.dot_dimension_numbers<[1], [0], [0], [1], [0, 0, 1, 1], [], []>} : vector<2x1152xbf16>, vector<1152x256xbf16>, vector<2x256xf32> -> vector<2x256xf32>
    %c0_4 = arith.constant 0 : index
    %c0_5 = arith.constant 0 : index
    %4 = vector.load %arg2[%c0_4, %c0_5] : memref<1x256xf32, #tpu.memory_space<vmem>>, vector<1x256xf32>
    %5 = vector.broadcast %4 : vector<1x256xf32> to vector<2x256xf32>
    %6 = arith.addf %3, %5 : vector<2x256xf32>
    %c1 = arith.constant 1 : index
    %c0_6 = arith.constant 0 : index
    %c0_7 = arith.constant 0 : index
    %7 = vector.load %arg0[%c1, %c0_6, %c0_7] : memref<4x2x1152xbf16, #tpu.memory_space<vmem>>, vector<1x2x1152xbf16>
    %8 = vector.shape_cast %7 : vector<1x2x1152xbf16> to vector<2x1152xbf16>
    %cst_8 = arith.constant dense<0.000000e+00> : vector<2x256xf32>
    %9 = tpu.matmul %8, %0, %cst_8 {dimension_numbers = #tpu.dot_dimension_numbers<[1], [0], [0], [1], [0, 0, 1, 1], [], []>} : vector<2x1152xbf16>, vector<1152x256xbf16>, vector<2x256xf32> -> vector<2x256xf32>
    %c0_9 = arith.constant 0 : index
    %c0_10 = arith.constant 0 : index
    %10 = vector.load %arg2[%c0_9, %c0_10] : memref<1x256xf32, #tpu.memory_space<vmem>>, vector<1x256xf32>
    %11 = vector.broadcast %10 : vector<1x256xf32> to vector<2x256xf32>
    %12 = arith.addf %9, %11 : vector<2x256xf32>
    %c2 = arith.constant 2 : index
    %c0_11 = arith.constant 0 : index
    %c0_12 = arith.constant 0 : index
    %13 = vector.load %arg0[%c2, %c0_11, %c0_12] : memref<4x2x1152xbf16, #tpu.memory_space<vmem>>, vector<1x2x1152xbf16>
    %14 = vector.shape_cast %13 : vector<1x2x1152xbf16> to vector<2x1152xbf16>
    %cst_13 = arith.constant dense<0.000000e+00> : vector<2x256xf32>
    %15 = tpu.matmul %14, %0, %cst_13 {dimension_numbers = #tpu.dot_dimension_numbers<[1], [0], [0], [1], [0, 0, 1, 1], [], []>} : vector<2x1152xbf16>, vector<1152x256xbf16>, vector<2x256xf32> -> vector<2x256xf32>
    %c0_14 = arith.constant 0 : index
    %c0_15 = arith.constant 0 : index
    %16 = vector.load %arg2[%c0_14, %c0_15] : memref<1x256xf32, #tpu.memory_space<vmem>>, vector<1x256xf32>
    %17 = vector.broadcast %16 : vector<1x256xf32> to vector<2x256xf32>
    %18 = arith.addf %15, %17 : vector<2x256xf32>
    %c3 = arith.constant 3 : index
    %c0_16 = arith.constant 0 : index
    %c0_17 = arith.constant 0 : index
    %19 = vector.load %arg0[%c3, %c0_16, %c0_17] : memref<4x2x1152xbf16, #tpu.memory_space<vmem>>, vector<1x2x1152xbf16>
    %20 = vector.shape_cast %19 : vector<1x2x1152xbf16> to vector<2x1152xbf16>
    %cst_18 = arith.constant dense<0.000000e+00> : vector<2x256xf32>
    %21 = tpu.matmul %20, %0, %cst_18 {dimension_numbers = #tpu.dot_dimension_numbers<[1], [0], [0], [1], [0, 0, 1, 1], [], []>} : vector<2x1152xbf16>, vector<1152x256xbf16>, vector<2x256xf32> -> vector<2x256xf32>
    %c0_19 = arith.constant 0 : index
    %c0_20 = arith.constant 0 : index
    %22 = vector.load %arg2[%c0_19, %c0_20] : memref<1x256xf32, #tpu.memory_space<vmem>>, vector<1x256xf32>
    %23 = vector.broadcast %22 : vector<1x256xf32> to vector<2x256xf32>
    %24 = arith.addf %21, %23 : vector<2x256xf32>
    %25 = arith.addf %6, %12 : vector<2x256xf32>
    %26 = arith.addf %25, %18 : vector<2x256xf32>
    %27 = arith.addf %26, %24 : vector<2x256xf32>
    %cst_21 = arith.constant dense<0.000000e+00> : vector<256xf32>
    %28 = vector.multi_reduction <add>, %27, %cst_21 [0] : vector<2x256xf32> to vector<256xf32>
    %29 = vector.shape_cast %28 : vector<256xf32> to vector<1x256xf32>
    %cst_22 = arith.constant 1.250000e-01 : f32
    %30 = vector.broadcast %cst_22 : f32 to vector<1x256xf32>
    %31 = arith.mulf %29, %30 : vector<1x256xf32>
    %32 = vector.broadcast %31 : vector<1x256xf32> to vector<2x256xf32>
    %33 = arith.subf %6, %32 : vector<2x256xf32>
    %34 = arith.mulf %33, %33 : vector<2x256xf32>
    %cst_23 = arith.constant dense<0.000000e+00> : vector<256xf32>
    %35 = vector.multi_reduction <add>, %34, %cst_23 [0] : vector<2x256xf32> to vector<256xf32>
    %36 = vector.shape_cast %35 : vector<256xf32> to vector<1x256xf32>
    %37 = vector.broadcast %31 : vector<1x256xf32> to vector<2x256xf32>
    %38 = arith.subf %12, %37 : vector<2x256xf32>
    %39 = arith.mulf %38, %38 : vector<2x256xf32>
    %cst_24 = arith.constant dense<0.000000e+00> : vector<256xf32>
    %40 = vector.multi_reduction <add>, %39, %cst_24 [0] : vector<2x256xf32> to vector<256xf32>
    %41 = vector.shape_cast %40 : vector<256xf32> to vector<1x256xf32>
    %42 = arith.addf %36, %41 : vector<1x256xf32>
    %43 = vector.broadcast %31 : vector<1x256xf32> to vector<2x256xf32>
    %44 = arith.subf %18, %43 : vector<2x256xf32>
    %45 = arith.mulf %44, %44 : vector<2x256xf32>
    %cst_25 = arith.constant dense<0.000000e+00> : vector<256xf32>
    %46 = vector.multi_reduction <add>, %45, %cst_25 [0] : vector<2x256xf32> to vector<256xf32>
    %47 = vector.shape_cast %46 : vector<256xf32> to vector<1x256xf32>
    %48 = arith.addf %42, %47 : vector<1x256xf32>
    %49 = vector.broadcast %31 : vector<1x256xf32> to vector<2x256xf32>
    %50 = arith.subf %24, %49 : vector<2x256xf32>
    %51 = arith.mulf %50, %50 : vector<2x256xf32>
    %cst_26 = arith.constant dense<0.000000e+00> : vector<256xf32>
    %52 = vector.multi_reduction <add>, %51, %cst_26 [0] : vector<2x256xf32> to vector<256xf32>
    %53 = vector.shape_cast %52 : vector<256xf32> to vector<1x256xf32>
    %54 = arith.addf %48, %53 : vector<1x256xf32>
    %cst_27 = arith.constant 1.250000e-01 : f32
    %55 = vector.broadcast %cst_27 : f32 to vector<1x256xf32>
    %56 = arith.mulf %54, %55 : vector<1x256xf32>
    %c0_28 = arith.constant 0 : index
    %c0_29 = arith.constant 0 : index
    %57 = vector.load %arg3[%c0_28, %c0_29] : memref<1x256xf32, #tpu.memory_space<vmem>>, vector<1x256xf32>
    %cst_30 = arith.constant 9.99999974E-6 : f32
    %58 = vector.broadcast %cst_30 : f32 to vector<1x256xf32>
    %59 = arith.addf %56, %58 : vector<1x256xf32>
    %60 = math.rsqrt %59 : vector<1x256xf32>
    %61 = arith.mulf %57, %60 : vector<1x256xf32>
    %62 = vector.broadcast %61 : vector<1x256xf32> to vector<2x256xf32>
    %63 = arith.mulf %33, %62 : vector<2x256xf32>
    %c0_31 = arith.constant 0 : index
    %c0_32 = arith.constant 0 : index
    %64 = vector.load %arg4[%c0_31, %c0_32] : memref<1x256xf32, #tpu.memory_space<vmem>>, vector<1x256xf32>
    %65 = vector.broadcast %64 : vector<1x256xf32> to vector<2x256xf32>
    %66 = arith.addf %63, %65 : vector<2x256xf32>
    %cst_33 = arith.constant 0.000000e+00 : f32
    %67 = vector.broadcast %cst_33 : f32 to vector<2x256xf32>
    %68 = arith.maximumf %66, %67 : vector<2x256xf32>
    %69 = vector.broadcast %61 : vector<1x256xf32> to vector<2x256xf32>
    %70 = arith.mulf %38, %69 : vector<2x256xf32>
    %c0_34 = arith.constant 0 : index
    %c0_35 = arith.constant 0 : index
    %71 = vector.load %arg4[%c0_34, %c0_35] : memref<1x256xf32, #tpu.memory_space<vmem>>, vector<1x256xf32>
    %72 = vector.broadcast %71 : vector<1x256xf32> to vector<2x256xf32>
    %73 = arith.addf %70, %72 : vector<2x256xf32>
    %cst_36 = arith.constant 0.000000e+00 : f32
    %74 = vector.broadcast %cst_36 : f32 to vector<2x256xf32>
    %75 = arith.maximumf %73, %74 : vector<2x256xf32>
    %76 = arith.addf %68, %75 : vector<2x256xf32>
    %77 = vector.broadcast %61 : vector<1x256xf32> to vector<2x256xf32>
    %78 = arith.mulf %44, %77 : vector<2x256xf32>
    %c0_37 = arith.constant 0 : index
    %c0_38 = arith.constant 0 : index
    %79 = vector.load %arg4[%c0_37, %c0_38] : memref<1x256xf32, #tpu.memory_space<vmem>>, vector<1x256xf32>
    %80 = vector.broadcast %79 : vector<1x256xf32> to vector<2x256xf32>
    %81 = arith.addf %78, %80 : vector<2x256xf32>
    %cst_39 = arith.constant 0.000000e+00 : f32
    %82 = vector.broadcast %cst_39 : f32 to vector<2x256xf32>
    %83 = arith.maximumf %81, %82 : vector<2x256xf32>
    %84 = arith.addf %76, %83 : vector<2x256xf32>
    %85 = vector.broadcast %61 : vector<1x256xf32> to vector<2x256xf32>
    %86 = arith.mulf %50, %85 : vector<2x256xf32>
    %c0_40 = arith.constant 0 : index
    %c0_41 = arith.constant 0 : index
    %87 = vector.load %arg4[%c0_40, %c0_41] : memref<1x256xf32, #tpu.memory_space<vmem>>, vector<1x256xf32>
    %88 = vector.broadcast %87 : vector<1x256xf32> to vector<2x256xf32>
    %89 = arith.addf %86, %88 : vector<2x256xf32>
    %cst_42 = arith.constant 0.000000e+00 : f32
    %90 = vector.broadcast %cst_42 : f32 to vector<2x256xf32>
    %91 = arith.maximumf %89, %90 : vector<2x256xf32>
    %92 = arith.addf %84, %91 : vector<2x256xf32>
    %cst_43 = arith.constant 2.500000e-01 : f32
    %93 = vector.broadcast %cst_43 : f32 to vector<2x256xf32>
    %94 = arith.mulf %92, %93 : vector<2x256xf32>
    %c0_44 = arith.constant 0 : index
    %c0_45 = arith.constant 0 : index
    %95 = vector.load %arg5[%c0_44, %c0_45] : memref<256x64xf32, #tpu.memory_space<vmem>>, vector<256x64xf32>
    %cst_46 = arith.constant dense<0.000000e+00> : vector<2x64xf32>
    %96 = tpu.matmul %94, %95, %cst_46 {dimension_numbers = #tpu.dot_dimension_numbers<[1], [0], [0], [1], [0, 0, 1, 1], [], []>} : vector<2x256xf32>, vector<256x64xf32>, vector<2x64xf32> -> vector<2x64xf32>
    %c0_47 = arith.constant 0 : index
    %c0_48 = arith.constant 0 : index
    %97 = vector.load %arg6[%c0_47, %c0_48] : memref<1x64xf32, #tpu.memory_space<vmem>>, vector<1x64xf32>
    %98 = vector.broadcast %97 : vector<1x64xf32> to vector<2x64xf32>
    %99 = arith.addf %96, %98 : vector<2x64xf32>
    %cst_49 = arith.constant 0.000000e+00 : f32
    %100 = vector.broadcast %cst_49 : f32 to vector<2x64xf32>
    %101 = arith.maximumf %99, %100 : vector<2x64xf32>
    %c0_50 = arith.constant 0 : index
    %c0_51 = arith.constant 0 : index
    %102 = vector.load %arg7[%c0_50, %c0_51] : memref<64x6xf32, #tpu.memory_space<vmem>>, vector<64x6xf32>
    %cst_52 = arith.constant dense<0.000000e+00> : vector<2x6xf32>
    %103 = tpu.matmul %101, %102, %cst_52 {dimension_numbers = #tpu.dot_dimension_numbers<[1], [0], [0], [1], [0, 0, 1, 1], [], []>} : vector<2x64xf32>, vector<64x6xf32>, vector<2x6xf32> -> vector<2x6xf32>
    %c0_53 = arith.constant 0 : index
    %c0_54 = arith.constant 0 : index
    %104 = vector.load %arg8[%c0_53, %c0_54] : memref<1x6xf32, #tpu.memory_space<vmem>>, vector<1x6xf32>
    %105 = vector.broadcast %104 : vector<1x6xf32> to vector<2x6xf32>
    %106 = arith.addf %103, %105 : vector<2x6xf32>
    %c0_55 = arith.constant 0 : index
    %c0_56 = arith.constant 0 : index
    %107 = vector.load %arg9[%c0_55, %c0_56] : memref<2x6xf32, #tpu.memory_space<vmem>>, vector<2x6xf32>
    tpu.vector_store %arg9[%c0_55, %c0_56], %106 {strides = array<i32>} : memref<2x6xf32, #tpu.memory_space<vmem>>, vector<2x6xf32>,
    return
  }
}

module attributes {stable_mosaic.version = 11 : i64} {
  func.func @_affine_grid_sample_kernel(%arg0: i32, %arg1: i32, %arg2: memref<2x6xf32, #tpu.memory_space<smem>>, %arg3: memref<1x48x16xbf16, #tpu.memory_space<vmem>>, %arg4: memref<1x3x256xf32, #tpu.memory_space<vmem>>) attributes {dimension_semantics = [#tpu.dimension_semantics<parallel>, #tpu.dimension_semantics<parallel>], iteration_bounds = array<i64: 2, 1>, scalar_prefetch = 0 : i64, scratch_operands = 0 : i64, tpu.core_type = #tpu.core_type<tc>, window_params = [{transform_indices = @transform_0, window_bounds = array<i64: 2, 6>}, {transform_indices = @transform_1, window_bounds = array<i64: 1, 48, 16>}, {transform_indices = @transform_2, window_bounds = array<i64: 1, 3, 256>}]} {
    %0 = tpu.iota {dimensions = array<i32: 1>} : vector<1x256xi32>
    %c256_i32 = arith.constant 256 : i32
    %1 = arith.muli %arg1, %c256_i32 : i32
    %2 = vector.broadcast %1 : i32 to vector<1x256xi32>
    %3 = arith.addi %0, %2 : vector<1x256xi32>
    %4 = arith.sitofp %3 : vector<1x256xi32> to vector<1x256xf32>
    %cst = arith.constant 1.600000e+01 : f32
    %5 = vector.broadcast %cst : f32 to vector<1x256xf32>
    %6 = arith.divf %4, %5 : vector<1x256xf32>
    %7 = math.floor %6 : vector<1x256xf32>
    %cst_0 = arith.constant 1.600000e+01 : f32
    %8 = vector.broadcast %cst_0 : f32 to vector<1x256xf32>
    %9 = arith.mulf %7, %8 : vector<1x256xf32>
    %10 = arith.subf %4, %9 : vector<1x256xf32>
    %cst_1 = arith.constant 2.000000e+00 : f32
    %11 = vector.broadcast %cst_1 : f32 to vector<1x256xf32>
    %12 = arith.mulf %11, %10 : vector<1x256xf32>
    %cst_2 = arith.constant 1.000000e+00 : f32
    %13 = vector.broadcast %cst_2 : f32 to vector<1x256xf32>
    %14 = arith.addf %12, %13 : vector<1x256xf32>
    %cst_3 = arith.constant 1.600000e+01 : f32
    %15 = vector.broadcast %cst_3 : f32 to vector<1x256xf32>
    %16 = arith.divf %14, %15 : vector<1x256xf32>
    %cst_4 = arith.constant 1.000000e+00 : f32
    %17 = vector.broadcast %cst_4 : f32 to vector<1x256xf32>
    %18 = arith.subf %16, %17 : vector<1x256xf32>
    %cst_5 = arith.constant 2.000000e+00 : f32
    %19 = vector.broadcast %cst_5 : f32 to vector<1x256xf32>
    %20 = arith.mulf %19, %7 : vector<1x256xf32>
    %cst_6 = arith.constant 1.000000e+00 : f32
    %21 = vector.broadcast %cst_6 : f32 to vector<1x256xf32>
    %22 = arith.addf %20, %21 : vector<1x256xf32>
    %cst_7 = arith.constant 1.600000e+01 : f32
    %23 = vector.broadcast %cst_7 : f32 to vector<1x256xf32>
    %24 = arith.divf %22, %23 : vector<1x256xf32>
    %cst_8 = arith.constant 1.000000e+00 : f32
    %25 = vector.broadcast %cst_8 : f32 to vector<1x256xf32>
    %26 = arith.subf %24, %25 : vector<1x256xf32>
    %27 = arith.index_cast %arg0 : i32 to index
    %c0 = arith.constant 0 : index
    %28 = memref.load %arg2[%27, %c0] : memref<2x6xf32, #tpu.memory_space<smem>>
    %29 = arith.index_cast %arg0 : i32 to index
    %c1 = arith.constant 1 : index
    %30 = memref.load %arg2[%29, %c1] : memref<2x6xf32, #tpu.memory_space<smem>>
    %31 = arith.index_cast %arg0 : i32 to index
    %c2 = arith.constant 2 : index
    %32 = memref.load %arg2[%31, %c2] : memref<2x6xf32, #tpu.memory_space<smem>>
    %33 = arith.index_cast %arg0 : i32 to index
    %c3 = arith.constant 3 : index
    %34 = memref.load %arg2[%33, %c3] : memref<2x6xf32, #tpu.memory_space<smem>>
    %35 = arith.index_cast %arg0 : i32 to index
    %c4 = arith.constant 4 : index
    %36 = memref.load %arg2[%35, %c4] : memref<2x6xf32, #tpu.memory_space<smem>>
    %37 = arith.index_cast %arg0 : i32 to index
    %c5 = arith.constant 5 : index
    %38 = memref.load %arg2[%37, %c5] : memref<2x6xf32, #tpu.memory_space<smem>>
    %39 = vector.broadcast %28 : f32 to vector<1x256xf32>
    %40 = arith.mulf %39, %18 : vector<1x256xf32>
    %41 = vector.broadcast %30 : f32 to vector<1x256xf32>
    %42 = arith.mulf %41, %26 : vector<1x256xf32>
    %43 = arith.addf %40, %42 : vector<1x256xf32>
    %44 = vector.broadcast %32 : f32 to vector<1x256xf32>
    %45 = arith.addf %43, %44 : vector<1x256xf32>
    %46 = vector.broadcast %34 : f32 to vector<1x256xf32>
    %47 = arith.mulf %46, %18 : vector<1x256xf32>
    %48 = vector.broadcast %36 : f32 to vector<1x256xf32>
    %49 = arith.mulf %48, %26 : vector<1x256xf32>
    %50 = arith.addf %47, %49 : vector<1x256xf32>
    %51 = vector.broadcast %38 : f32 to vector<1x256xf32>
    %52 = arith.addf %50, %51 : vector<1x256xf32>
    %cst_9 = arith.constant 1.000000e+00 : f32
    %53 = vector.broadcast %cst_9 : f32 to vector<1x256xf32>
    %54 = arith.addf %45, %53 : vector<1x256xf32>
    %cst_10 = arith.constant 1.600000e+01 : f32
    %55 = vector.broadcast %cst_10 : f32 to vector<1x256xf32>
    %56 = arith.mulf %54, %55 : vector<1x256xf32>
    %cst_11 = arith.constant 1.000000e+00 : f32
    %57 = vector.broadcast %cst_11 : f32 to vector<1x256xf32>
    %58 = arith.subf %56, %57 : vector<1x256xf32>
    %cst_12 = arith.constant 5.000000e-01 : f32
    %59 = vector.broadcast %cst_12 : f32 to vector<1x256xf32>
    %60 = arith.mulf %58, %59 : vector<1x256xf32>
    %cst_13 = arith.constant 1.000000e+00 : f32
    %61 = vector.broadcast %cst_13 : f32 to vector<1x256xf32>
    %62 = arith.addf %52, %61 : vector<1x256xf32>
    %cst_14 = arith.constant 1.600000e+01 : f32
    %63 = vector.broadcast %cst_14 : f32 to vector<1x256xf32>
    %64 = arith.mulf %62, %63 : vector<1x256xf32>
    %cst_15 = arith.constant 1.000000e+00 : f32
    %65 = vector.broadcast %cst_15 : f32 to vector<1x256xf32>
    %66 = arith.subf %64, %65 : vector<1x256xf32>
    %cst_16 = arith.constant 5.000000e-01 : f32
    %67 = vector.broadcast %cst_16 : f32 to vector<1x256xf32>
    %68 = arith.mulf %66, %67 : vector<1x256xf32>
    %69 = tpu.iota {dimensions = array<i32: 0>} : vector<16x1xi32>
    %70 = arith.sitofp %69 : vector<16x1xi32> to vector<16x1xf32>
    %71 = vector.broadcast %60 : vector<1x256xf32> to vector<16x256xf32>
    %72 = vector.broadcast %70 : vector<16x1xf32> to vector<16x256xf32>
    %73 = arith.subf %71, %72 : vector<16x256xf32>
    %74 = math.absf %73 : vector<16x256xf32>
    %cst_17 = arith.constant 1.000000e+00 : f32
    %75 = vector.broadcast %cst_17 : f32 to vector<16x256xf32>
    %76 = arith.subf %75, %74 : vector<16x256xf32>
    %cst_18 = arith.constant 0.000000e+00 : f32
    %77 = vector.broadcast %cst_18 : f32 to vector<16x256xf32>
    %78 = arith.maximumf %76, %77 : vector<16x256xf32>
    %79 = arith.truncf %78 : vector<16x256xf32> to vector<16x256xbf16>
    %80 = tpu.iota {dimensions = array<i32: 0>} : vector<48x1xi32>
    %81 = arith.sitofp %80 : vector<48x1xi32> to vector<48x1xf32>
    %cst_19 = arith.constant 1.600000e+01 : f32
    %82 = vector.broadcast %cst_19 : f32 to vector<48x1xf32>
    %83 = arith.divf %81, %82 : vector<48x1xf32>
    %84 = math.floor %83 : vector<48x1xf32>
    %cst_20 = arith.constant 1.600000e+01 : f32
    %85 = vector.broadcast %cst_20 : f32 to vector<48x1xf32>
    %86 = arith.mulf %84, %85 : vector<48x1xf32>
    %87 = arith.subf %81, %86 : vector<48x1xf32>
    %88 = vector.broadcast %68 : vector<1x256xf32> to vector<48x256xf32>
    %89 = vector.broadcast %87 : vector<48x1xf32> to vector<48x256xf32>
    %90 = arith.subf %88, %89 : vector<48x256xf32>
    %91 = math.absf %90 : vector<48x256xf32>
    %cst_21 = arith.constant 1.000000e+00 : f32
    %92 = vector.broadcast %cst_21 : f32 to vector<48x256xf32>
    %93 = arith.subf %92, %91 : vector<48x256xf32>
    %cst_22 = arith.constant 0.000000e+00 : f32
    %94 = vector.broadcast %cst_22 : f32 to vector<48x256xf32>
    %95 = arith.maximumf %93, %94 : vector<48x256xf32>
    %c0_23 = arith.constant 0 : index
    %c0_24 = arith.constant 0 : index
    %c0_25 = arith.constant 0 : index
    %96 = vector.load %arg3[%c0_23, %c0_24, %c0_25] : memref<1x48x16xbf16, #tpu.memory_space<vmem>>, vector<1x48x16xbf16>
    %97 = vector.shape_cast %96 : vector<1x48x16xbf16> to vector<48x16xbf16>
    %cst_26 = arith.constant dense<0.000000e+00> : vector<48x256xf32>
    %98 = tpu.matmul %97, %79, %cst_26 {dimension_numbers = #tpu.dot_dimension_numbers<[1], [0], [0], [1], [0, 0, 1, 1], [], []>} : vector<48x16xbf16>, vector<16x256xbf16>, vector<48x256xf32> -> vector<48x256xf32>
    %99 = arith.mulf %98, %95 : vector<48x256xf32>
    %100 = tpu.iota {dimensions = array<i32: 0>} : vector<3x48xi32>
    %101 = tpu.iota {dimensions = array<i32: 1>} : vector<3x48xi32>
    %c16_i32 = arith.constant 16 : i32
    %102 = vector.broadcast %c16_i32 : i32 to vector<3x48xi32>
    %103 = arith.muli %100, %102 : vector<3x48xi32>
    %104 = arith.cmpi sge, %101, %103 : vector<3x48xi32>
    %c1_i32 = arith.constant 1 : i32
    %105 = vector.broadcast %c1_i32 : i32 to vector<3x48xi32>
    %106 = arith.addi %100, %105 : vector<3x48xi32>
    %c16_i32_27 = arith.constant 16 : i32
    %107 = vector.broadcast %c16_i32_27 : i32 to vector<3x48xi32>
    %108 = arith.muli %106, %107 : vector<3x48xi32>
    %109 = arith.cmpi slt, %101, %108 : vector<3x48xi32>
    %110 = arith.andi %104, %109 : vector<3x48xi1>
    %cst_28 = arith.constant 1.000000e+00 : f32
    %cst_29 = arith.constant 0.000000e+00 : f32
    %111 = vector.broadcast %cst_28 : f32 to vector<3x48xf32>
    %112 = vector.broadcast %cst_29 : f32 to vector<3x48xf32>
    %113 = arith.select %110, %111, %112 : vector<3x48xi1>, vector<3x48xf32>
    %cst_30 = arith.constant dense<0.000000e+00> : vector<3x256xf32>
    %114 = tpu.matmul %113, %99, %cst_30 {dimension_numbers = #tpu.dot_dimension_numbers<[1], [0], [0], [1], [0, 0, 1, 1], [], []>} : vector<3x48xf32>, vector<48x256xf32>, vector<3x256xf32> -> vector<3x256xf32>
    %c0_31 = arith.constant 0 : index
    %c0_32 = arith.constant 0 : index
    %c0_33 = arith.constant 0 : index
    %115 = vector.load %arg4[%c0_31, %c0_32, %c0_33] : memref<1x3x256xf32, #tpu.memory_space<vmem>>, vector<1x3x256xf32>
    %116 = vector.shape_cast %115 : vector<1x3x256xf32> to vector<3x256xf32>
    %117 = vector.shape_cast %114 : vector<3x256xf32> to vector<1x3x256xf32>
    tpu.vector_store %arg4[%c0_31, %c0_32, %c0_33], %117 {strides = array<i32>} : memref<1x3x256xf32, #tpu.memory_space<vmem>>, vector<1x3x256xf32>,
    return
  }
  func.func @transform_0(%arg0: i32, %arg1: i32) -> (i32, i32) {
    %c0_i32 = arith.constant 0 : i32
    %c0_i32_0 = arith.constant 0 : i32
    %c0_i32_1 = arith.constant 0 : i32
    return %c0_i32, %c0_i32_0 : i32, i32
  }
  func.func @transform_1(%arg0: i32, %arg1: i32) -> (i32, i32, i32) {
    %c0_i32 = arith.constant 0 : i32
    %c0_i32_0 = arith.constant 0 : i32
    %c0_i32_1 = arith.constant 0 : i32
    return %arg0, %c0_i32, %c0_i32_0 : i32, i32, i32
  }
  func.func @transform_2(%arg0: i32, %arg1: i32) -> (i32, i32, i32) {
    %c0_i32 = arith.constant 0 : i32
    %c0_i32_0 = arith.constant 0 : i32
    return %arg0, %c0_i32, %arg1 : i32, i32, i32
  }
}

</mosaic_0001>

<llo_original>
// kernel: spatial_transformer_forward.5
$region0: #{spatial_transformer_forward.5}
  #allocation0 [shape = 'u32[]', space=smem, size = 0x4, offset = 0x4, fixed_abs, tag = 'smem constant byte address 0x4 - core index']
  #allocation1 [shape = 'u32[72,128]{1,0:T(1,128)}', space=vmem, size = 0x9000, scoped, tag = 'internal scratch']
  %s0 = inlined_call_operand.vmem [shape: bf16[4,27,128], index: 0, kind: input, shape index: {}]
  %s1 = inlined_call_operand.vmem [shape: bf16[32,27], index: 1, kind: input, shape index: {}]
  %s2 = inlined_call_operand.vmem [shape: f32[32,1], index: 2, kind: input, shape index: {}]
  %s3 = inlined_call_operand.vmem [shape: f32[32,1], index: 3, kind: input, shape index: {}]
  %s4 = inlined_call_operand.vmem [shape: f32[32,1], index: 4, kind: input, shape index: {}]
  %s5 = inlined_call_operand.vmem [shape: bf16[32,128], index: 5, kind: output, shape index: {}]
  %s6 = sld [smem:[#allocation0]]
  $region53: #{spatial_transformer_forward.5} parent=0
    _
  %s8 = ssub.s32 1, %s6
  %s9 = scalar_select 0, %s8, %s6
  loop: start=0, step=1, limit=4
  $region2: #{spatial_transformer_forward.5} parent=0 // loop_pre_header
    _
  $region3: #{spatial_transformer_forward.5} parent=0 // loop_header
    %s11 = sphi 0, %s15
    %p12 = scmp.ge.s32.totalorder %s11, 4
    %s19 = sphi 0, %s19
    %s21 = sphi 0, %s19
    %s22 = sphi 0, %s21
    %s36 = sphi 0, %s22
    %s42 = sphi 0, %s44
    %s45 = sphi 0, %s42
    %s46 = sphi 0, %s45
    %s62 = sphi 0, %s46
    %s68 = sphi 0, %s70
    %s71 = sphi 0, %s68
    %s72 = sphi 0, %s71
    %s88 = sphi 0, %s72
    %s94 = sphi 0, %s96
    %s97 = sphi 0, %s94
    %s98 = sphi 0, %s97
    %s114 = sphi 0, %s98
    %s120 = sphi 0, %s122
    %s123 = sphi 0, %s120
    %s124 = sphi 0, %s123
    %s140 = sphi 0, %s124
    %s146 = sphi 0, %s148
    %s149 = sphi 0, %s146
    %s150 = sphi 0, %s149
    %s166 = sphi 0, %s150
  $region4: #{spatial_transformer_forward.5} parent=0 // loop_header_branch
    %14 = sbr.rel (%p12) target = $region8
  $region5: #{spatial_transformer_forward.5} parent=0 // loop_body
    %s16 = ssub.s32 %s11, 1
    %s17 = ssub.s32 %s11, 2
    %s18 = sadd.s32 %s11, 1
    %s20 = sadd.s32 %s19, 1
    %p23 = scmp.eq.s32.totalorder %s11, 1
    %p24 = scmp.ne.s32.totalorder %s19, %s21
    %p25 = scmp.eq.s32.totalorder %s11, 0
    %p26 = por %p24, %p25
    %p27 = scmp.ne.s32.totalorder %s19, %s21
    %p28 = scmp.eq.s32.totalorder %s16, 1
    %p29 = por %p27, %p28
    %p30 = scmp.ne.s32.totalorder %s21, %s22
    %p31 = scmp.eq.s32.totalorder %s16, 0
    %p32 = por %p30, %p31
    %p33 = scmp.ne.s32.totalorder %s21, %s22
    %p34 = scmp.eq.s32.totalorder %s17, 1
    %p35 = por %p33, %p34
    %p37 = scmp.ne.s32.totalorder %s22, %s36
    %p38 = scmp.eq.s32.totalorder %s17, 0
    %p39 = por %p37, %p38
    %s40 = ssub.s32 %s11, %s18
    %p41 = scmp.eq.s32.totalorder %s40, 0
    %s43 = sadd.s32 %s42, 1
    %s44 = scalar_select %p41, %s42, %s43
    %p47 = pneg %p41
    %p48 = scmp.eq.s32.totalorder %s11, 1
    %p49 = por %p47, %p48
    %p50 = scmp.ne.s32.totalorder %s42, %s45
    %p51 = scmp.eq.s32.totalorder %s11, 0
    %p52 = por %p50, %p51
    %p53 = scmp.ne.s32.totalorder %s42, %s45
    %p54 = scmp.eq.s32.totalorder %s16, 1
    %p55 = por %p53, %p54
    %p56 = scmp.ne.s32.totalorder %s45, %s46
    %p57 = scmp.eq.s32.totalorder %s16, 0
    %p58 = por %p56, %p57
    %p59 = scmp.ne.s32.totalorder %s45, %s46
    %p60 = scmp.eq.s32.totalorder %s17, 1
    %p61 = por %p59, %p60
    %p63 = scmp.ne.s32.totalorder %s46, %s62
    %p64 = scmp.eq.s32.totalorder %s17, 0
    %p65 = por %p63, %p64
    %s66 = ssub.s32 %s11, %s18
    %p67 = scmp.eq.s32.totalorder %s66, 0
    %s69 = sadd.s32 %s68, 1
    %s70 = scalar_select %p67, %s68, %s69
    %p73 = pneg %p67
    %p74 = scmp.eq.s32.totalorder %s11, 1
    %p75 = por %p73, %p74
    %p76 = scmp.ne.s32.totalorder %s68, %s71
    %p77 = scmp.eq.s32.totalorder %s11, 0
    %p78 = por %p76, %p77
    %p79 = scmp.ne.s32.totalorder %s68, %s71
    %p80 = scmp.eq.s32.totalorder %s16, 1
    %p81 = por %p79, %p80
    %p82 = scmp.ne.s32.totalorder %s71, %s72
    %p83 = scmp.eq.s32.totalorder %s16, 0
    %p84 = por %p82, %p83
    %p85 = scmp.ne.s32.totalorder %s71, %s72
    %p86 = scmp.eq.s32.totalorder %s17, 1
    %p87 = por %p85, %p86
    %p89 = scmp.ne.s32.totalorder %s72, %s88
    %p90 = scmp.eq.s32.totalorder %s17, 0
    %p91 = por %p89, %p90
    %s92 = ssub.s32 %s11, %s18
    %p93 = scmp.eq.s32.totalorder %s92, 0
    %s95 = sadd.s32 %s94, 1
    %s96 = scalar_select %p93, %s94, %s95
    %p99 = pneg %p93
    %p100 = scmp.eq.s32.totalorder %s11, 1
    %p101 = por %p99, %p100
    %p102 = scmp.ne.s32.totalorder %s94, %s97
    %p103 = scmp.eq.s32.totalorder %s11, 0
    %p104 = por %p102, %p103
    %p105 = scmp.ne.s32.totalorder %s94, %s97
    %p106 = scmp.eq.s32.totalorder %s16, 1
    %p107 = por %p105, %p106
    %p108 = scmp.ne.s32.totalorder %s97, %s98
    %p109 = scmp.eq.s32.totalorder %s16, 0
    %p110 = por %p108, %p109
    %p111 = scmp.ne.s32.totalorder %s97, %s98
    %p112 = scmp.eq.s32.totalorder %s17, 1
    %p113 = por %p111, %p112
    %p115 = scmp.ne.s32.totalorder %s98, %s114
    %p116 = scmp.eq.s32.totalorder %s17, 0
    %p117 = por %p115, %p116
    %s118 = ssub.s32 %s11, %s18
    %p119 = scmp.eq.s32.totalorder %s118, 0
    %s121 = sadd.s32 %s120, 1
    %s122 = scalar_select %p119, %s120, %s121
    %p125 = pneg %p119
    %p126 = scmp.eq.s32.totalorder %s11, 1
    %p127 = por %p125, %p126
    %p128 = scmp.ne.s32.totalorder %s120, %s123
    %p129 = scmp.eq.s32.totalorder %s11, 0
    %p130 = por %p128, %p129
    %p131 = scmp.ne.s32.totalorder %s120, %s123
    %p132 = scmp.eq.s32.totalorder %s16, 1
    %p133 = por %p131, %p132
    %p134 = scmp.ne.s32.totalorder %s123, %s124
    %p135 = scmp.eq.s32.totalorder %s16, 0
    %p136 = por %p134, %p135
    %p137 = scmp.ne.s32.totalorder %s123, %s124
    %p138 = scmp.eq.s32.totalorder %s17, 1
    %p139 = por %p137, %p138
    %p141 = scmp.ne.s32.totalorder %s124, %s140
    %p142 = scmp.eq.s32.totalorder %s17, 0
    %p143 = por %p141, %p142
    %s144 = ssub.s32 %s11, %s18
    %p145 = scmp.eq.s32.totalorder %s144, 0
    %s147 = sadd.s32 %s146, 1
    %s148 = scalar_select %p145, %s146, %s147
    %p151 = pneg %p145
    %p152 = scmp.eq.s32.totalorder %s11, 1
    %p153 = por %p151, %p152
    %p154 = scmp.ne.s32.totalorder %s146, %s149
    %p155 = scmp.eq.s32.totalorder %s11, 0
    %p156 = por %p154, %p155
    %p157 = scmp.ne.s32.totalorder %s146, %s149
    %p158 = scmp.eq.s32.totalorder %s16, 1
    %p159 = por %p157, %p158
    %p160 = scmp.ne.s32.totalorder %s149, %s150
    %p161 = scmp.eq.s32.totalorder %s16, 0
    %p162 = por %p160, %p161
    %p163 = scmp.ne.s32.totalorder %s149, %s150
    %p164 = scmp.eq.s32.totalorder %s17, 1
    %p165 = por %p163, %p164
    %p167 = scmp.ne.s32.totalorder %s150, %s166
    %p168 = scmp.eq.s32.totalorder %s17, 0
    %p169 = por %p167, %p168
    %p170 = scmp.le.s32.totalorder 1, %s11
    %p171 = scmp.lt.s32.totalorder %s11, 3
    %p172 = pnand %p170, %p171
    %p173 = pneg %p172
    // Predicated region
    $region9: #{spatial_transformer_forward.5} parent=5 // pred_check
      _
    $region10: #{spatial_transformer_forward.5} parent=5 // pred_check_branch
      %175 = sbr.rel (%p172) target = $region12
    $region11: #{spatial_transformer_forward.5} parent=5 // pred_region
      %s176 = ssub.s32 %s11, 1
      // Predicated region
      $region13: #{spatial_transformer_forward.5} parent=11 // pred_check
        %p177 = pneg %p32
      $region14: #{spatial_transformer_forward.5} parent=11 // pred_check_branch
        %179 = sbr.rel (%p177) target = $region16
      $region15: #{spatial_transformer_forward.5} parent=11 // pred_region
        _
      $region16: #{spatial_transformer_forward.5} parent=11 // pred_fallthru
        _
    $region12: #{spatial_transformer_forward.5} parent=5 // pred_fallthru
      _
    %p180 = scmp.lt.s32.totalorder %s11, 2
    // Predicated region
    $region17: #{spatial_transformer_forward.5} parent=5 // pred_check
      %p181 = pneg %p180
    $region18: #{spatial_transformer_forward.5} parent=5 // pred_check_branch
      %183 = sbr.rel (%p181) target = $region20
    $region19: #{spatial_transformer_forward.5} parent=5 // pred_region
      // Predicated region
      $region21: #{spatial_transformer_forward.5} parent=19 // pred_check
        %p184 = pneg %p52
      $region22: #{spatial_transformer_forward.5} parent=19 // pred_check_branch
        %186 = sbr.rel (%p184) target = $region24
      $region23: #{spatial_transformer_forward.5} parent=19 // pred_region
        %s187 = smul.u32 2, %s11
        %p188 = scmp.lt.s32.totalorder %s187, 3
        %s189 = scalar_select %p188, %s187, 3
        %s190 = smul.addr %s189, 4
        %s191 = scalar_lea.vmem %s1, %s190
        %s192 = smul.u32 2, %s11
      $region24: #{spatial_transformer_forward.5} parent=19 // pred_fallthru
        _
      // Predicated region
      $region25: #{spatial_transformer_forward.5} parent=19 // pred_check
        %p193 = pneg %p78
      $region26: #{spatial_transformer_forward.5} parent=19 // pred_check_branch
        %195 = sbr.rel (%p193) target = $region28
      $region27: #{spatial_transformer_forward.5} parent=19 // pred_region
        %s196 = smul.u32 2, %s11
        %p197 = scmp.lt.s32.totalorder %s196, 3
        %s198 = scalar_select %p197, %s196, 3
        %s199 = smul.addr %s198, 8
        %s200 = scalar_lea.vmem %s2, %s199
        %s201 = smul.u32 2, %s11
      $region28: #{spatial_transformer_forward.5} parent=19 // pred_fallthru
        _
      // Predicated region
      $region29: #{spatial_transformer_forward.5} parent=19 // pred_check
        %p202 = pneg %p104
      $region30: #{spatial_transformer_forward.5} parent=19 // pred_check_branch
        %204 = sbr.rel (%p202) target = $region32
      $region31: #{spatial_transformer_forward.5} parent=19 // pred_region
        %s205 = smul.u32 2, %s11
        %p206 = scmp.lt.s32.totalorder %s205, 3
        %s207 = scalar_select %p206, %s205, 3
        %s208 = smul.addr %s207, 8
        %s209 = scalar_lea.vmem %s3, %s208
        %s210 = smul.u32 2, %s11
      $region32: #{spatial_transformer_forward.5} parent=19 // pred_fallthru
        _
      // Predicated region
      $region33: #{spatial_transformer_forward.5} parent=19 // pred_check
        %p211 = pneg %p130
      $region34: #{spatial_transformer_forward.5} parent=19 // pred_check_branch
        %213 = sbr.rel (%p211) target = $region36
      $region35: #{spatial_transformer_forward.5} parent=19 // pred_region
        %s214 = smul.u32 2, %s11
        %p215 = scmp.lt.s32.totalorder %s214, 3
        %s216 = scalar_select %p215, %s214, 3
        %s217 = smul.addr %s216, 8
        %s218 = scalar_lea.vmem %s4, %s217
        %s219 = smul.u32 2, %s11
      $region36: #{spatial_transformer_forward.5} parent=19 // pred_fallthru
        _
    $region20: #{spatial_transformer_forward.5} parent=5 // pred_fallthru
      _
    %p220 = scmp.le.s32.totalorder 1, %s11
    %p221 = scmp.lt.s32.totalorder %s11, 3
    %p222 = pnand %p220, %p221
    %p223 = pneg %p222
    // Predicated region
    $region37: #{spatial_transformer_forward.5} parent=5 // pred_check
      _
    $region38: #{spatial_transformer_forward.5} parent=5 // pred_check_branch
      %225 = sbr.rel (%p222) target = $region40
    $region39: #{spatial_transformer_forward.5} parent=5 // pred_region
      %s226 = ssub.s32 %s11, 1
      %p227 = pneg %p32
      %p228 = pneg %p29
      %s229 = smul.u32 2, %s16
      %p230 = scmp.lt.s32.totalorder %s229, 3
      %s231 = scalar_select %p230, %s229, 3
      %s232 = smul.addr %s231, 4
      %s233 = scalar_lea.vmem %s1, %s232
      %p234 = pneg %p58
      %p235 = pneg %p55
      %s236 = smul.u32 2, %s16
      %p237 = scmp.lt.s32.totalorder %s236, 3
      %s238 = scalar_select %p237, %s236, 3
      %s239 = smul.addr %s238, 8
      %s240 = scalar_lea.vmem %s2, %s239
      %p241 = pneg %p84
      %p242 = pneg %p81
      %s243 = smul.u32 2, %s16
      %p244 = scmp.lt.s32.totalorder %s243, 3
      %s245 = scalar_select %p244, %s243, 3
      %s246 = smul.addr %s245, 8
      %s247 = scalar_lea.vmem %s3, %s246
      %p248 = pneg %p110
      %p249 = pneg %p107
      %s250 = smul.u32 2, %s16
      %p251 = scmp.lt.s32.totalorder %s250, 3
      %s252 = scalar_select %p251, %s250, 3
      %s253 = smul.addr %s252, 8
      %s254 = scalar_lea.vmem %s4, %s253
      %p255 = pneg %p136
      %p256 = pneg %p133
      %p257 = pneg %p162
      %p258 = pneg %p159
      %s259 = smul.u32 2, %s16
      %p260 = scmp.lt.s32.totalorder %s259, 3
      %s261 = scalar_select %p260, %s259, 3
      %s262 = smul.addr %s261, 4
      %s263 = scalar_lea.vmem %s5, %s262
      %s264 = smul.u32 2, %s16
      %p265 = scmp.lt.s32.totalorder %s264, 3
      %s266 = scalar_select %p265, %s264, 3
      %s267 = smul.addr %s266, 4
      %s268 = scalar_lea.vmem %s1, %s267
      %s269 = smul.u32 2, %s16
      %s270 = smul.u32 2, %s16
      %p271 = scmp.lt.s32.totalorder %s270, 3
      %s272 = scalar_select %p271, %s270, 3
      %s273 = smul.addr %s272, 8
      %s274 = scalar_lea.vmem %s2, %s273
      %s275 = smul.u32 2, %s16
      %s276 = smul.u32 2, %s16
      %p277 = scmp.lt.s32.totalorder %s276, 3
      %s278 = scalar_select %p277, %s276, 3
      %s279 = smul.addr %s278, 8
      %s280 = scalar_lea.vmem %s3, %s279
      %s281 = smul.u32 2, %s16
      %s282 = smul.u32 2, %s16
      %p283 = scmp.lt.s32.totalorder %s282, 3
      %s284 = scalar_select %p283, %s282, 3
      %s285 = smul.addr %s284, 8
      %s286 = scalar_lea.vmem %s4, %s285
      %s287 = smul.u32 2, %s16
      %s288 = smul.u32 2, %s16
      %p289 = scmp.lt.s32.totalorder %s288, 3
      %s290 = scalar_select %p289, %s288, 3
      %s291 = smul.addr %s290, 4
      %s292 = scalar_lea.vmem %s5, %s291
      %s293 = smul.u32 2, %s16
      %v295 = vld [vmem:[%s268] sm:$0xf]
      %v296 = vld [vmem:[%s268 + $0x4] sm:$0xf]
      %v297 = vld [vmem:[%s0] sm:$0xf]
      %v298 = vld [vmem:[%s0 + $0x4] sm:$0xf]
      %v299 = vld [vmem:[%s0 + $0x8] sm:$0xf]
      %v300 = vld [vmem:[%s0 + $0xc] sm:$0x3]
      %v301 = vld [vmem:[%s274] sm:$0xff]
      %v302 = vld [vmem:[%s274 + $0x8] sm:$0xff]
      %304 = vset.pattern.permute.xlu0 0
      %305 = vperm.xlu0 %304, %v301
      %v306 = vpop.permute.xlu0 %305
      %309 = vset.pattern.permute.xlu0 0
      %310 = vperm.xlu0 %309, %v302
      %v311 = vpop.permute.xlu0 %310
      %v315 = vunpack.c.l.b16 %v295
      %v316 = vunpack.c.l.b16 %v296
      %v317 = vpack.c.b16 %v316, %v315
      %v322 = vunpack.c.l.b16 %v297
      %v323 = vunpack.c.l.b16 %v298
      %v324 = vunpack.c.l.b16 %v299
      %v325 = vunpack.c.l.b16 %v300
      %v326 = vpack.c.b16 %v323, %v322
      %v327 = vpack.c.b16 %v325, %v324
      %vm329 = vcmask 220160
      %v331 = vsel %vm329, %v317, 0
      %vm333 = vcmask 1044480
      %vm334 = vcmask 1045504
      %v335 = vsel %vm333, 4294967295, 65535
      %v336 = vsel %vm334, %v335, 0
      %v338 = vand.u32 %v327, %v336
      %340 = vmatpush.bf16.msra.mxu0 0
      %341 = vmatpush.bf16.msra.mxu0 0
      %342 = vmatpush.bf16.msra.mxu0 0
      %343 = vmatpush.bf16.msra.mxu0 0
      %344 = vmatpush.bf16.msra.mxu0 0
      %345 = vmatpush.bf16.msra.mxu0 0
      %346 = vmatpush.bf16.msra.mxu0 %v338
      %347 = vmatpush.bf16.msra.mxu0 %v326
      %348 = vmatmul.bf16.gmra.mxu0 %v331
      %v349 = vpop.f32.mrf.mxu0
      %v350 = vadd.f32 %v306, %v349
      %v351 = vpop.f32.mrf.mxu0
      %v352 = vadd.f32 %v311, %v351
      %353 = vdwg.mxu0
      %s354 = scalar_lea.vmem %s0, 16
      %v355 = vld [vmem:[%s354] sm:$0xf]
      %v356 = vld [vmem:[%s354 + $0x4] sm:$0xf]
      %v357 = vld [vmem:[%s354 + $0x8] sm:$0xf]
      %v358 = vld [vmem:[%s354 + $0xc] sm:$0x3]
      %v363 = vunpack.c.l.b16 %v355
      %v364 = vunpack.c.l.b16 %v356
      %v365 = vunpack.c.l.b16 %v357
      %v366 = vunpack.c.l.b16 %v358
      %v367 = vpack.c.b16 %v364, %v363
      %v368 = vpack.c.b16 %v366, %v365
      %v371 = vand.u32 %v368, %v336
      %373 = vmatpush.bf16.msra.mxu0 0
      %374 = vmatpush.bf16.msra.mxu0 0
      %375 = vmatpush.bf16.msra.mxu0 0
      %376 = vmatpush.bf16.msra.mxu0 0
      %377 = vmatpush.bf16.msra.mxu0 0
      %378 = vmatpush.bf16.msra.mxu0 0
      %379 = vmatpush.bf16.msra.mxu0 %v371
      %380 = vmatpush.bf16.msra.mxu0 %v367
      %381 = vmatmul.bf16.gmra.mxu0 %v331
      %v382 = vpop.f32.mrf.mxu0
      %v383 = vadd.f32 %v306, %v382
      %v384 = vpop.f32.mrf.mxu0
      %v385 = vadd.f32 %v311, %v384
      %386 = vdwg.mxu0
      %s387 = scalar_lea.vmem %s0, 32
      %v388 = vld [vmem:[%s387] sm:$0xf]
      %v389 = vld [vmem:[%s387 + $0x4] sm:$0xf]
      %v390 = vld [vmem:[%s387 + $0x8] sm:$0xf]
      %v391 = vld [vmem:[%s387 + $0xc] sm:$0x3]
      %v396 = vunpack.c.l.b16 %v388
      %v397 = vunpack.c.l.b16 %v389
      %v398 = vunpack.c.l.b16 %v390
      %v399 = vunpack.c.l.b16 %v391
      %v400 = vpack.c.b16 %v397, %v396
      %v401 = vpack.c.b16 %v399, %v398
      %v404 = vand.u32 %v401, %v336
      %406 = vmatpush.bf16.msra.mxu0 0
      %407 = vmatpush.bf16.msra.mxu0 0
      %408 = vmatpush.bf16.msra.mxu0 0
      %409 = vmatpush.bf16.msra.mxu0 0
      %410 = vmatpush.bf16.msra.mxu0 0
      %411 = vmatpush.bf16.msra.mxu0 0
      %412 = vmatpush.bf16.msra.mxu0 %v404
      %413 = vmatpush.bf16.msra.mxu0 %v400
      %414 = vmatmul.bf16.gmra.mxu0 %v331
      %v415 = vpop.f32.mrf.mxu0
      %v416 = vadd.f32 %v306, %v415
      %v417 = vpop.f32.mrf.mxu0
      %v418 = vadd.f32 %v311, %v417
      %419 = vdwg.mxu0
      %s420 = scalar_lea.vmem %s0, 48
      %v421 = vld [vmem:[%s420] sm:$0xf]
      %v422 = vld [vmem:[%s420 + $0x4] sm:$0xf]
      %v423 = vld [vmem:[%s420 + $0x8] sm:$0xf]
      %v424 = vld [vmem:[%s420 + $0xc] sm:$0x3]
      %v429 = vunpack.c.l.b16 %v421
      %v430 = vunpack.c.l.b16 %v422
      %v431 = vunpack.c.l.b16 %v423
      %v432 = vunpack.c.l.b16 %v424
      %v433 = vpack.c.b16 %v430, %v429
      %v434 = vpack.c.b16 %v432, %v431
      %v437 = vand.u32 %v434, %v336
      %439 = vmatpush.bf16.msra.mxu0 0
      %440 = vmatpush.bf16.msra.mxu0 0
      %441 = vmatpush.bf16.msra.mxu0 0
      %442 = vmatpush.bf16.msra.mxu0 0
      %443 = vmatpush.bf16.msra.mxu0 0
      %444 = vmatpush.bf16.msra.mxu0 0
      %445 = vmatpush.bf16.msra.mxu0 %v437
      %446 = vmatpush.bf16.msra.mxu0 %v433
      %447 = vmatmul.bf16.gmra.mxu0 %v331
      %v448 = vpop.f32.mrf.mxu0
      %v449 = vadd.f32 %v306, %v448
      %v450 = vpop.f32.mrf.mxu0
      %v451 = vadd.f32 %v311, %v450
      %452 = vdwg.mxu0
      %v453 = vadd.f32 %v350, %v383
      %v454 = vadd.f32 %v352, %v385
      %v455 = vadd.f32 %v453, %v416
      %v456 = vadd.f32 %v454, %v418
      %v457 = vadd.f32 %v455, %v449
      %v458 = vadd.f32 %v456, %v451
      %459 = vadd.xlane.f32.xlu0 %v457
      %v460 = vpop.xlane.xlu0 %459
      %461 = vadd.xlane.f32.xlu0 %v458
      %v462 = vpop.xlane.xlu0 %461
      %v463 = vmul.f32 %v460, 0.001953125
      %v464 = vmul.f32 %v462, 0.001953125
      %v465 = vsub.f32 %v350, %v463
      %v466 = vsub.f32 %v352, %v464
      %v467 = vmul.f32 %v465, %v465
      %v468 = vmul.f32 %v466, %v466
      %469 = vadd.xlane.f32.xlu0 %v467
      %v470 = vpop.xlane.xlu0 %469
      %471 = vadd.xlane.f32.xlu0 %v468
      %v472 = vpop.xlane.xlu0 %471
      %v473 = vsub.f32 %v383, %v463
      %v474 = vsub.f32 %v385, %v464
      %v475 = vmul.f32 %v473, %v473
      %v476 = vmul.f32 %v474, %v474
      %477 = vadd.xlane.f32.xlu0 %v475
      %v478 = vpop.xlane.xlu0 %477
      %479 = vadd.xlane.f32.xlu0 %v476
      %v480 = vpop.xlane.xlu0 %479
      %v481 = vadd.f32 %v470, %v478
      %v482 = vadd.f32 %v472, %v480
      %v483 = vsub.f32 %v416, %v463
      %v484 = vsub.f32 %v418, %v464
      %v485 = vmul.f32 %v483, %v483
      %v486 = vmul.f32 %v484, %v484
      %487 = vadd.xlane.f32.xlu0 %v485
      %v488 = vpop.xlane.xlu0 %487
      %489 = vadd.xlane.f32.xlu0 %v486
      %v490 = vpop.xlane.xlu0 %489
      %v491 = vadd.f32 %v481, %v488
      %v492 = vadd.f32 %v482, %v490
      %v493 = vsub.f32 %v449, %v463
      %v494 = vsub.f32 %v451, %v464
      %v495 = vmul.f32 %v493, %v493
      %v496 = vmul.f32 %v494, %v494
      %497 = vadd.xlane.f32.xlu0 %v495
      %v498 = vpop.xlane.xlu0 %497
      %499 = vadd.xlane.f32.xlu0 %v496
      %v500 = vpop.xlane.xlu0 %499
      %v501 = vadd.f32 %v491, %v498
      %v502 = vadd.f32 %v492, %v500
      %v503 = vmul.f32 %v501, 0.001953125
      %v504 = vmul.f32 %v502, 0.001953125
      %v505 = vld [vmem:[%s280] sm:$0xff]
      %v506 = vld [vmem:[%s280 + $0x8] sm:$0xff]
      %v507 = vadd.f32 %v503, 1e-05
      %v508 = vadd.f32 %v504, 1e-05
      %v509 = vrsqrt.pop %v507
      %v510 = vmul.f32 %v509, %v507
      %v511 = vmul.f32 %v510, %v509
      %v512 = vmul.f32 0.5, %v511
      %v513 = vsub.f32 1.5, %v512
      %v514 = vmul.f32 %v509, %v513
      %vm515 = vweird.f32 %v507
      %vm516 = vweird.f32 %v509
      %vm517 = vmor %vm515, %vm516
      %v518 = vsel %vm517, %v509, %v514
      %v519 = vrsqrt.pop %v508
      %v520 = vmul.f32 %v519, %v508
      %v521 = vmul.f32 %v520, %v519
      %v522 = vmul.f32 0.5, %v521
      %v523 = vsub.f32 1.5, %v522
      %v524 = vmul.f32 %v519, %v523
      %vm525 = vweird.f32 %v508
      %vm526 = vweird.f32 %v519
      %vm527 = vmor %vm525, %vm526
      %v528 = vsel %vm527, %v519, %v524
      %v529 = vmul.f32 %v505, %v518
      %v530 = vmul.f32 %v506, %v528
      %532 = vset.pattern.permute.xlu0 0
      %533 = vperm.xlu0 %532, %v529
      %v534 = vpop.permute.xlu0 %533
      %537 = vset.pattern.permute.xlu0 0
      %538 = vperm.xlu0 %537, %v530
      %v539 = vpop.permute.xlu0 %538
      %v541 = vmul.f32 %v465, %v534
      %v542 = vmul.f32 %v466, %v539
      %v543 = vld [vmem:[%s286] sm:$0xff]
      %v544 = vld [vmem:[%s286 + $0x8] sm:$0xff]
      %546 = vset.pattern.permute.xlu0 0
      %547 = vperm.xlu0 %546, %v543
      %v548 = vpop.permute.xlu0 %547
      %551 = vset.pattern.permute.xlu0 0
      %552 = vperm.xlu0 %551, %v544
      %v553 = vpop.permute.xlu0 %552
      %v555 = vadd.f32 %v541, %v548
      %v556 = vadd.f32 %v542, %v553
      %v557 = vmax.f32 %v555, 0.0
      %v558 = vmax.f32 %v556, 0.0
      %v559 = vmul.f32 %v473, %v534
      %v560 = vmul.f32 %v474, %v539
      %v561 = vadd.f32 %v559, %v548
      %v562 = vadd.f32 %v560, %v553
      %v563 = vmax.f32 %v561, 0.0
      %v564 = vmax.f32 %v562, 0.0
      %v565 = vmax.f32 %v557, %v563
      %v566 = vmax.f32 %v558, %v564
      %v567 = vmul.f32 %v483, %v534
      %v568 = vmul.f32 %v484, %v539
      %v569 = vadd.f32 %v567, %v548
      %v570 = vadd.f32 %v568, %v553
      %v571 = vmax.f32 %v569, 0.0
      %v572 = vmax.f32 %v570, 0.0
      %v573 = vmax.f32 %v565, %v571
      %v574 = vmax.f32 %v566, %v572
      %v575 = vmul.f32 %v493, %v534
      %v576 = vmul.f32 %v494, %v539
      %v577 = vadd.f32 %v575, %v548
      %v578 = vadd.f32 %v576, %v553
      %v579 = vmax.f32 %v577, 0.0
      %v580 = vmax.f32 %v578, 0.0
      %v581 = vmax.f32 %v573, %v579
      %v582 = vmax.f32 %v574, %v580
      %v583 = vpack.c.bf16 %v581, %v581
      %v584 = vpack.c.bf16 %v582, %v582
      %585 = vst [vmem:[%s292] sm:$0xf] %v583
      %586 = vst [vmem:[%s292 + $0x4] sm:$0xf] %v584
      %s587 = smul.u32 2, %s16
      %p588 = scmp.lt.s32.totalorder %s587, 3
      %s589 = scalar_select %p588, %s587, 3
      %s590 = smul.addr %s589, 4
      %s591 = scalar_lea.vmem %s5, %s590
      // Predicated region
      $region41: #{spatial_transformer_forward.5} parent=39 // pred_check
        %p592 = pneg %p159
      $region42: #{spatial_transformer_forward.5} parent=39 // pred_check_branch
        %594 = sbr.rel (%p592) target = $region44
      $region43: #{spatial_transformer_forward.5} parent=39 // pred_region
        %s595 = smul.u32 2, %s16
      $region44: #{spatial_transformer_forward.5} parent=39 // pred_fallthru
        _
    $region40: #{spatial_transformer_forward.5} parent=5 // pred_fallthru
      _
    %p596 = scmp.le.s32.totalorder 2, %s11
    // Predicated region
    $region45: #{spatial_transformer_forward.5} parent=5 // pred_check
      %p597 = pneg %p596
    $region46: #{spatial_transformer_forward.5} parent=5 // pred_check_branch
      %599 = sbr.rel (%p597) target = $region48
    $region47: #{spatial_transformer_forward.5} parent=5 // pred_region
      %s600 = ssub.s32 %s11, 2
      // Predicated region
      $region49: #{spatial_transformer_forward.5} parent=47 // pred_check
        %p601 = pneg %p165
      $region50: #{spatial_transformer_forward.5} parent=47 // pred_check_branch
        %603 = sbr.rel (%p601) target = $region52
      $region51: #{spatial_transformer_forward.5} parent=47 // pred_region
        %s604 = smul.u32 2, %s17
        %p605 = scmp.lt.s32.totalorder %s604, 3
        %s606 = scalar_select %p605, %s604, 3
        %s607 = smul.addr %s606, 4
        %s608 = scalar_lea.vmem %s5, %s607
      $region52: #{spatial_transformer_forward.5} parent=47 // pred_fallthru
        _
    $region48: #{spatial_transformer_forward.5} parent=5 // pred_fallthru
      _
  $region6: #{spatial_transformer_forward.5} parent=0 // loop_footer
    %s15 = sadd.s32 1, %s11
  $region7: #{spatial_transformer_forward.5} parent=0 // loop_footer_branch
    %10 = sbr.rel target = $region3
  $region8: #{spatial_transformer_forward.5} parent=0 // loop_exit
    _

// kernel: spatial_transformer_forward.6
$region0: #{spatial_transformer_forward.6}
  #allocation0 [shape = 'u32[]', space=smem, size = 0x4, offset = 0x4, fixed_abs, tag = 'smem constant byte address 0x4 - core index']
  #allocation1 [shape = 'u32[72,128]{1,0:T(1,128)}', space=vmem, size = 0x9000, scoped, tag = 'internal scratch']
  %s0 = inlined_call_operand.vmem [shape: bf16[4,288,32], index: 0, kind: input, shape index: {}]
  %s1 = inlined_call_operand.vmem [shape: bf16[64,288], index: 1, kind: input, shape index: {}]
  %s2 = inlined_call_operand.vmem [shape: f32[64,1], index: 2, kind: input, shape index: {}]
  %s3 = inlined_call_operand.vmem [shape: f32[64,1], index: 3, kind: input, shape index: {}]
  %s4 = inlined_call_operand.vmem [shape: f32[64,1], index: 4, kind: input, shape index: {}]
  %s5 = inlined_call_operand.vmem [shape: bf16[64,32], index: 5, kind: output, shape index: {}]
  %s6 = sld [smem:[#allocation0]]
  $region53: #{spatial_transformer_forward.6} parent=0
    _
  %s8 = ssub.s32 1, %s6
  %s9 = scalar_select 0, %s8, %s6
  loop: start=0, step=1, limit=4
  $region2: #{spatial_transformer_forward.6} parent=0 // loop_pre_header
    _
  $region3: #{spatial_transformer_forward.6} parent=0 // loop_header
    %s11 = sphi 0, %s15
    %p12 = scmp.ge.s32.totalorder %s11, 4
    %s19 = sphi 0, %s19
    %s21 = sphi 0, %s19
    %s22 = sphi 0, %s21
    %s36 = sphi 0, %s22
    %s42 = sphi 0, %s44
    %s45 = sphi 0, %s42
    %s46 = sphi 0, %s45
    %s62 = sphi 0, %s46
    %s68 = sphi 0, %s70
    %s71 = sphi 0, %s68
    %s72 = sphi 0, %s71
    %s88 = sphi 0, %s72
    %s94 = sphi 0, %s96
    %s97 = sphi 0, %s94
    %s98 = sphi 0, %s97
    %s114 = sphi 0, %s98
    %s120 = sphi 0, %s122
    %s123 = sphi 0, %s120
    %s124 = sphi 0, %s123
    %s140 = sphi 0, %s124
    %s146 = sphi 0, %s148
    %s149 = sphi 0, %s146
    %s150 = sphi 0, %s149
    %s166 = sphi 0, %s150
  $region4: #{spatial_transformer_forward.6} parent=0 // loop_header_branch
    %14 = sbr.rel (%p12) target = $region8
  $region5: #{spatial_transformer_forward.6} parent=0 // loop_body
    %s16 = ssub.s32 %s11, 1
    %s17 = ssub.s32 %s11, 2
    %s18 = sadd.s32 %s11, 1
    %s20 = sadd.s32 %s19, 1
    %p23 = scmp.eq.s32.totalorder %s11, 1
    %p24 = scmp.ne.s32.totalorder %s19, %s21
    %p25 = scmp.eq.s32.totalorder %s11, 0
    %p26 = por %p24, %p25
    %p27 = scmp.ne.s32.totalorder %s19, %s21
    %p28 = scmp.eq.s32.totalorder %s16, 1
    %p29 = por %p27, %p28
    %p30 = scmp.ne.s32.totalorder %s21, %s22
    %p31 = scmp.eq.s32.totalorder %s16, 0
    %p32 = por %p30, %p31
    %p33 = scmp.ne.s32.totalorder %s21, %s22
    %p34 = scmp.eq.s32.totalorder %s17, 1
    %p35 = por %p33, %p34
    %p37 = scmp.ne.s32.totalorder %s22, %s36
    %p38 = scmp.eq.s32.totalorder %s17, 0
    %p39 = por %p37, %p38
    %s40 = ssub.s32 %s11, %s18
    %p41 = scmp.eq.s32.totalorder %s40, 0
    %s43 = sadd.s32 %s42, 1
    %s44 = scalar_select %p41, %s42, %s43
    %p47 = pneg %p41
    %p48 = scmp.eq.s32.totalorder %s11, 1
    %p49 = por %p47, %p48
    %p50 = scmp.ne.s32.totalorder %s42, %s45
    %p51 = scmp.eq.s32.totalorder %s11, 0
    %p52 = por %p50, %p51
    %p53 = scmp.ne.s32.totalorder %s42, %s45
    %p54 = scmp.eq.s32.totalorder %s16, 1
    %p55 = por %p53, %p54
    %p56 = scmp.ne.s32.totalorder %s45, %s46
    %p57 = scmp.eq.s32.totalorder %s16, 0
    %p58 = por %p56, %p57
    %p59 = scmp.ne.s32.totalorder %s45, %s46
    %p60 = scmp.eq.s32.totalorder %s17, 1
    %p61 = por %p59, %p60
    %p63 = scmp.ne.s32.totalorder %s46, %s62
    %p64 = scmp.eq.s32.totalorder %s17, 0
    %p65 = por %p63, %p64
    %s66 = ssub.s32 %s11, %s18
    %p67 = scmp.eq.s32.totalorder %s66, 0
    %s69 = sadd.s32 %s68, 1
    %s70 = scalar_select %p67, %s68, %s69
    %p73 = pneg %p67
    %p74 = scmp.eq.s32.totalorder %s11, 1
    %p75 = por %p73, %p74
    %p76 = scmp.ne.s32.totalorder %s68, %s71
    %p77 = scmp.eq.s32.totalorder %s11, 0
    %p78 = por %p76, %p77
    %p79 = scmp.ne.s32.totalorder %s68, %s71
    %p80 = scmp.eq.s32.totalorder %s16, 1
    %p81 = por %p79, %p80
    %p82 = scmp.ne.s32.totalorder %s71, %s72
    %p83 = scmp.eq.s32.totalorder %s16, 0
    %p84 = por %p82, %p83
    %p85 = scmp.ne.s32.totalorder %s71, %s72
    %p86 = scmp.eq.s32.totalorder %s17, 1
    %p87 = por %p85, %p86
    %p89 = scmp.ne.s32.totalorder %s72, %s88
    %p90 = scmp.eq.s32.totalorder %s17, 0
    %p91 = por %p89, %p90
    %s92 = ssub.s32 %s11, %s18
    %p93 = scmp.eq.s32.totalorder %s92, 0
    %s95 = sadd.s32 %s94, 1
    %s96 = scalar_select %p93, %s94, %s95
    %p99 = pneg %p93
    %p100 = scmp.eq.s32.totalorder %s11, 1
    %p101 = por %p99, %p100
    %p102 = scmp.ne.s32.totalorder %s94, %s97
    %p103 = scmp.eq.s32.totalorder %s11, 0
    %p104 = por %p102, %p103
    %p105 = scmp.ne.s32.totalorder %s94, %s97
    %p106 = scmp.eq.s32.totalorder %s16, 1
    %p107 = por %p105, %p106
    %p108 = scmp.ne.s32.totalorder %s97, %s98
    %p109 = scmp.eq.s32.totalorder %s16, 0
    %p110 = por %p108, %p109
    %p111 = scmp.ne.s32.totalorder %s97, %s98
    %p112 = scmp.eq.s32.totalorder %s17, 1
    %p113 = por %p111, %p112
    %p115 = scmp.ne.s32.totalorder %s98, %s114
    %p116 = scmp.eq.s32.totalorder %s17, 0
    %p117 = por %p115, %p116
    %s118 = ssub.s32 %s11, %s18
    %p119 = scmp.eq.s32.totalorder %s118, 0
    %s121 = sadd.s32 %s120, 1
    %s122 = scalar_select %p119, %s120, %s121
    %p125 = pneg %p119
    %p126 = scmp.eq.s32.totalorder %s11, 1
    %p127 = por %p125, %p126
    %p128 = scmp.ne.s32.totalorder %s120, %s123
    %p129 = scmp.eq.s32.totalorder %s11, 0
    %p130 = por %p128, %p129
    %p131 = scmp.ne.s32.totalorder %s120, %s123
    %p132 = scmp.eq.s32.totalorder %s16, 1
    %p133 = por %p131, %p132
    %p134 = scmp.ne.s32.totalorder %s123, %s124
    %p135 = scmp.eq.s32.totalorder %s16, 0
    %p136 = por %p134, %p135
    %p137 = scmp.ne.s32.totalorder %s123, %s124
    %p138 = scmp.eq.s32.totalorder %s17, 1
    %p139 = por %p137, %p138
    %p141 = scmp.ne.s32.totalorder %s124, %s140
    %p142 = scmp.eq.s32.totalorder %s17, 0
    %p143 = por %p141, %p142
    %s144 = ssub.s32 %s11, %s18
    %p145 = scmp.eq.s32.totalorder %s144, 0
    %s147 = sadd.s32 %s146, 1
    %s148 = scalar_select %p145, %s146, %s147
    %p151 = pneg %p145
    %p152 = scmp.eq.s32.totalorder %s11, 1
    %p153 = por %p151, %p152
    %p154 = scmp.ne.s32.totalorder %s146, %s149
    %p155 = scmp.eq.s32.totalorder %s11, 0
    %p156 = por %p154, %p155
    %p157 = scmp.ne.s32.totalorder %s146, %s149
    %p158 = scmp.eq.s32.totalorder %s16, 1
    %p159 = por %p157, %p158
    %p160 = scmp.ne.s32.totalorder %s149, %s150
    %p161 = scmp.eq.s32.totalorder %s16, 0
    %p162 = por %p160, %p161
    %p163 = scmp.ne.s32.totalorder %s149, %s150
    %p164 = scmp.eq.s32.totalorder %s17, 1
    %p165 = por %p163, %p164
    %p167 = scmp.ne.s32.totalorder %s150, %s166
    %p168 = scmp.eq.s32.totalorder %s17, 0
    %p169 = por %p167, %p168
    %p170 = scmp.le.s32.totalorder 1, %s11
    %p171 = scmp.lt.s32.totalorder %s11, 3
    %p172 = pnand %p170, %p171
    %p173 = pneg %p172
    // Predicated region
    $region9: #{spatial_transformer_forward.6} parent=5 // pred_check
      _
    $region10: #{spatial_transformer_forward.6} parent=5 // pred_check_branch
      %175 = sbr.rel (%p172) target = $region12
    $region11: #{spatial_transformer_forward.6} parent=5 // pred_region
      %s176 = ssub.s32 %s11, 1
      // Predicated region
      $region13: #{spatial_transformer_forward.6} parent=11 // pred_check
        %p177 = pneg %p32
      $region14: #{spatial_transformer_forward.6} parent=11 // pred_check_branch
        %179 = sbr.rel (%p177) target = $region16
      $region15: #{spatial_transformer_forward.6} parent=11 // pred_region
        _
      $region16: #{spatial_transformer_forward.6} parent=11 // pred_fallthru
        _
    $region12: #{spatial_transformer_forward.6} parent=5 // pred_fallthru
      _
    %p180 = scmp.lt.s32.totalorder %s11, 2
    // Predicated region
    $region17: #{spatial_transformer_forward.6} parent=5 // pred_check
      %p181 = pneg %p180
    $region18: #{spatial_transformer_forward.6} parent=5 // pred_check_branch
      %183 = sbr.rel (%p181) target = $region20
    $region19: #{spatial_transformer_forward.6} parent=5 // pred_region
      // Predicated region
      $region21: #{spatial_transformer_forward.6} parent=19 // pred_check
        %p184 = pneg %p52
      $region22: #{spatial_transformer_forward.6} parent=19 // pred_check_branch
        %186 = sbr.rel (%p184) target = $region24
      $region23: #{spatial_transformer_forward.6} parent=19 // pred_region
        %s187 = smul.u32 4, %s11
        %p188 = scmp.lt.s32.totalorder %s187, 7
        %s189 = scalar_select %p188, %s187, 7
        %s190 = smul.addr %s189, 3
        %s191 = smul.addr %s190, 4
        %s192 = scalar_lea.vmem %s1, %s191
        %s193 = smul.u32 4, %s11
      $region24: #{spatial_transformer_forward.6} parent=19 // pred_fallthru
        _
      // Predicated region
      $region25: #{spatial_transformer_forward.6} parent=19 // pred_check
        %p194 = pneg %p78
      $region26: #{spatial_transformer_forward.6} parent=19 // pred_check_branch
        %196 = sbr.rel (%p194) target = $region28
      $region27: #{spatial_transformer_forward.6} parent=19 // pred_region
        %s197 = smul.u32 4, %s11
        %p198 = scmp.lt.s32.totalorder %s197, 7
        %s199 = scalar_select %p198, %s197, 7
        %s200 = smul.addr %s199, 8
        %s201 = scalar_lea.vmem %s2, %s200
        %s202 = smul.u32 4, %s11
      $region28: #{spatial_transformer_forward.6} parent=19 // pred_fallthru
        _
      // Predicated region
      $region29: #{spatial_transformer_forward.6} parent=19 // pred_check
        %p203 = pneg %p104
      $region30: #{spatial_transformer_forward.6} parent=19 // pred_check_branch
        %205 = sbr.rel (%p203) target = $region32
      $region31: #{spatial_transformer_forward.6} parent=19 // pred_region
        %s206 = smul.u32 4, %s11
        %p207 = scmp.lt.s32.totalorder %s206, 7
        %s208 = scalar_select %p207, %s206, 7
        %s209 = smul.addr %s208, 8
        %s210 = scalar_lea.vmem %s3, %s209
        %s211 = smul.u32 4, %s11
      $region32: #{spatial_transformer_forward.6} parent=19 // pred_fallthru
        _
      // Predicated region
      $region33: #{spatial_transformer_forward.6} parent=19 // pred_check
        %p212 = pneg %p130
      $region34: #{spatial_transformer_forward.6} parent=19 // pred_check_branch
        %214 = sbr.rel (%p212) target = $region36
      $region35: #{spatial_transformer_forward.6} parent=19 // pred_region
        %s215 = smul.u32 4, %s11
        %p216 = scmp.lt.s32.totalorder %s215, 7
        %s217 = scalar_select %p216, %s215, 7
        %s218 = smul.addr %s217, 8
        %s219 = scalar_lea.vmem %s4, %s218
        %s220 = smul.u32 4, %s11
      $region36: #{spatial_transformer_forward.6} parent=19 // pred_fallthru
        _
    $region20: #{spatial_transformer_forward.6} parent=5 // pred_fallthru
      _
    %p221 = scmp.le.s32.totalorder 1, %s11
    %p222 = scmp.lt.s32.totalorder %s11, 3
    %p223 = pnand %p221, %p222
    %p224 = pneg %p223
    // Predicated region
    $region37: #{spatial_transformer_forward.6} parent=5 // pred_check
      _
    $region38: #{spatial_transformer_forward.6} parent=5 // pred_check_branch
      %226 = sbr.rel (%p223) target = $region40
    $region39: #{spatial_transformer_forward.6} parent=5 // pred_region
      %s227 = ssub.s32 %s11, 1
      %p228 = pneg %p32
      %p229 = pneg %p29
      %s230 = smul.u32 4, %s16
      %p231 = scmp.lt.s32.totalorder %s230, 7
      %s232 = scalar_select %p231, %s230, 7
      %s233 = smul.addr %s232, 3
      %s234 = smul.addr %s233, 4
      %s235 = scalar_lea.vmem %s1, %s234
      %p236 = pneg %p58
      %p237 = pneg %p55
      %s238 = smul.u32 4, %s16
      %p239 = scmp.lt.s32.totalorder %s238, 7
      %s240 = scalar_select %p239, %s238, 7
      %s241 = smul.addr %s240, 8
      %s242 = scalar_lea.vmem %s2, %s241
      %p243 = pneg %p84
      %p244 = pneg %p81
      %s245 = smul.u32 4, %s16
      %p246 = scmp.lt.s32.totalorder %s245, 7
      %s247 = scalar_select %p246, %s245, 7
      %s248 = smul.addr %s247, 8
      %s249 = scalar_lea.vmem %s3, %s248
      %p250 = pneg %p110
      %p251 = pneg %p107
      %s252 = smul.u32 4, %s16
      %p253 = scmp.lt.s32.totalorder %s252, 7
      %s254 = scalar_select %p253, %s252, 7
      %s255 = smul.addr %s254, 8
      %s256 = scalar_lea.vmem %s4, %s255
      %p257 = pneg %p136
      %p258 = pneg %p133
      %p259 = pneg %p162
      %p260 = pneg %p159
      %s261 = smul.u32 4, %s16
      %p262 = scmp.lt.s32.totalorder %s261, 7
      %s263 = scalar_select %p262, %s261, 7
      %s264 = smul.addr %s263, 4
      %s265 = scalar_lea.vmem %s5, %s264
      %s266 = smul.u32 4, %s16
      %p267 = scmp.lt.s32.totalorder %s266, 7
      %s268 = scalar_select %p267, %s266, 7
      %s269 = smul.addr %s268, 3
      %s270 = smul.addr %s269, 4
      %s271 = scalar_lea.vmem %s1, %s270
      %s272 = smul.u32 4, %s16
      %s273 = smul.u32 4, %s16
      %p274 = scmp.lt.s32.totalorder %s273, 7
      %s275 = scalar_select %p274, %s273, 7
      %s276 = smul.addr %s275, 8
      %s277 = scalar_lea.vmem %s2, %s276
      %s278 = smul.u32 4, %s16
      %s279 = smul.u32 4, %s16
      %p280 = scmp.lt.s32.totalorder %s279, 7
      %s281 = scalar_select %p280, %s279, 7
      %s282 = smul.addr %s281, 8
      %s283 = scalar_lea.vmem %s3, %s282
      %s284 = smul.u32 4, %s16
      %s285 = smul.u32 4, %s16
      %p286 = scmp.lt.s32.totalorder %s285, 7
      %s287 = scalar_select %p286, %s285, 7
      %s288 = smul.addr %s287, 8
      %s289 = scalar_lea.vmem %s4, %s288
      %s290 = smul.u32 4, %s16
      %s291 = smul.u32 4, %s16
      %p292 = scmp.lt.s32.totalorder %s291, 7
      %s293 = scalar_select %p292, %s291, 7
      %s294 = smul.addr %s293, 4
      %s295 = scalar_lea.vmem %s5, %s294
      %s296 = smul.u32 4, %s16
      %v298 = vld [vmem:[%s271] sm:$0xff]
      %v299 = vld [vmem:[%s271 + $0x8] sm:$0xf]
      %v300 = vld [vmem:[%s271 + $0xc] sm:$0xff]
      %v301 = vld [vmem:[%s271 + $0x14] sm:$0xf]
      %v302 = vld [vmem:[%s271 + $0x18] sm:$0xff]
      %v303 = vld [vmem:[%s271 + $0x20] sm:$0xf]
      %v304 = vld [vmem:[%s271 + $0x24] sm:$0xff]
      %v305 = vld [vmem:[%s271 + $0x2c] sm:$0xf]
      %v306 = vld [vmem:[%s0] sm:$0xf]
      %v307 = vld [vmem:[%s0 + $0x4] sm:$0xf]
      %v308 = vld [vmem:[%s0 + $0x8] sm:$0xf]
      %v309 = vld [vmem:[%s0 + $0xc] sm:$0xf]
      %v310 = vld [vmem:[%s0 + $0x10] sm:$0xf]
      %v311 = vld [vmem:[%s0 + $0x14] sm:$0xf]
      %v312 = vld [vmem:[%s0 + $0x18] sm:$0xf]
      %v313 = vld [vmem:[%s0 + $0x1c] sm:$0xf]
      %v314 = vld [vmem:[%s0 + $0x20] sm:$0xf]
      %v315 = vld [vmem:[%s0 + $0x24] sm:$0xf]
      %v316 = vld [vmem:[%s0 + $0x28] sm:$0xf]
      %v317 = vld [vmem:[%s0 + $0x2c] sm:$0xf]
      %v318 = vld [vmem:[%s0 + $0x30] sm:$0xf]
      %v319 = vld [vmem:[%s0 + $0x34] sm:$0xf]
      %v320 = vld [vmem:[%s0 + $0x38] sm:$0xf]
      %v321 = vld [vmem:[%s0 + $0x3c] sm:$0xf]
      %v322 = vld [vmem:[%s0 + $0x40] sm:$0xf]
      %v323 = vld [vmem:[%s0 + $0x44] sm:$0xf]
      %v324 = vld [vmem:[%s0 + $0x48] sm:$0xf]
      %v325 = vld [vmem:[%s0 + $0x4c] sm:$0xf]
      %v326 = vld [vmem:[%s0 + $0x50] sm:$0xf]
      %v327 = vld [vmem:[%s0 + $0x54] sm:$0xf]
      %v328 = vld [vmem:[%s0 + $0x58] sm:$0xf]
      %v329 = vld [vmem:[%s0 + $0x5c] sm:$0xf]
      %v330 = vld [vmem:[%s0 + $0x60] sm:$0xf]
      %v331 = vld [vmem:[%s0 + $0x64] sm:$0xf]
      %v332 = vld [vmem:[%s0 + $0x68] sm:$0xf]
      %v333 = vld [vmem:[%s0 + $0x6c] sm:$0xf]
      %v334 = vld [vmem:[%s0 + $0x70] sm:$0xf]
      %v335 = vld [vmem:[%s0 + $0x74] sm:$0xf]
      %v336 = vld [vmem:[%s0 + $0x78] sm:$0xf]
      %v337 = vld [vmem:[%s0 + $0x7c] sm:$0xf]
      %v338 = vld [vmem:[%s0 + $0x80] sm:$0xf]
      %v339 = vld [vmem:[%s0 + $0x84] sm:$0xf]
      %v340 = vld [vmem:[%s0 + $0x88] sm:$0xf]
      %v341 = vld [vmem:[%s0 + $0x8c] sm:$0xf]
      %v342 = vld [vmem:[%s277] sm:$0xff]
      %v343 = vld [vmem:[%s277 + $0x8] sm:$0xff]
      %v344 = vld [vmem:[%s277 + $0x10] sm:$0xff]
      %v345 = vld [vmem:[%s277 + $0x18] sm:$0xff]
      %347 = vset.pattern.permute.xlu0 0
      %348 = vperm.xlu0 %347, %v342
      %v349 = vpop.permute.xlu0 %348
      %352 = vset.pattern.permute.xlu0 0
      %353 = vperm.xlu0 %352, %v343
      %v354 = vpop.permute.xlu0 %353
      %357 = vset.pattern.permute.xlu0 0
      %358 = vperm.xlu0 %357, %v344
      %v359 = vpop.permute.xlu0 %358
      %362 = vset.pattern.permute.xlu0 0
      %363 = vperm.xlu0 %362, %v345
      %v364 = vpop.permute.xlu0 %363
      %v374 = vunpack.c.l.b16 %v298
      %v375 = vunpack.c.h.b16 %v298
      %v376 = vunpack.c.l.b16 %v299
      %v377 = vunpack.c.l.b16 %v300
      %v378 = vunpack.c.h.b16 %v300
      %v379 = vunpack.c.l.b16 %v301
      %v380 = vunpack.c.l.b16 %v302
      %v381 = vunpack.c.h.b16 %v302
      %v382 = vunpack.c.l.b16 %v303
      %v383 = vunpack.c.l.b16 %v304
      %v384 = vunpack.c.h.b16 %v304
      %v385 = vunpack.c.l.b16 %v305
      %v386 = vpack.c.b16 %v377, %v374
      %v387 = vpack.c.b16 %v378, %v375
      %v388 = vpack.c.b16 %v379, %v376
      %v389 = vpack.c.b16 %v383, %v380
      %v390 = vpack.c.b16 %v384, %v381
      %v391 = vpack.c.b16 %v385, %v382
      %v432 = vunpack.c.l.b16 %v306
      %v433 = vunpack.c.l.b16 %v307
      %v434 = vunpack.c.l.b16 %v308
      %v435 = vunpack.c.l.b16 %v309
      %v436 = vunpack.c.l.b16 %v310
      %v437 = vunpack.c.l.b16 %v311
      %v438 = vunpack.c.l.b16 %v312
      %v439 = vunpack.c.l.b16 %v313
      %v440 = vunpack.c.l.b16 %v314
      %v441 = vunpack.c.l.b16 %v315
      %v442 = vunpack.c.l.b16 %v316
      %v443 = vunpack.c.l.b16 %v317
      %v444 = vunpack.c.l.b16 %v318
      %v445 = vunpack.c.l.b16 %v319
      %v446 = vunpack.c.l.b16 %v320
      %v447 = vunpack.c.l.b16 %v321
      %v448 = vunpack.c.l.b16 %v322
      %v449 = vunpack.c.l.b16 %v323
      %v450 = vunpack.c.l.b16 %v324
      %v451 = vunpack.c.l.b16 %v325
      %v452 = vunpack.c.l.b16 %v326
      %v453 = vunpack.c.l.b16 %v327
      %v454 = vunpack.c.l.b16 %v328
      %v455 = vunpack.c.l.b16 %v329
      %v456 = vunpack.c.l.b16 %v330
      %v457 = vunpack.c.l.b16 %v331
      %v458 = vunpack.c.l.b16 %v332
      %v459 = vunpack.c.l.b16 %v333
      %v460 = vunpack.c.l.b16 %v334
      %v461 = vunpack.c.l.b16 %v335
      %v462 = vunpack.c.l.b16 %v336
      %v463 = vunpack.c.l.b16 %v337
      %v464 = vunpack.c.l.b16 %v338
      %v465 = vunpack.c.l.b16 %v339
      %v466 = vunpack.c.l.b16 %v340
      %v467 = vunpack.c.l.b16 %v341
      %v468 = vpack.c.b16 %v433, %v432
      %v469 = vpack.c.b16 %v435, %v434
      %v470 = vpack.c.b16 %v437, %v436
      %v471 = vpack.c.b16 %v439, %v438
      %v472 = vpack.c.b16 %v441, %v440
      %v473 = vpack.c.b16 %v443, %v442
      %v474 = vpack.c.b16 %v445, %v444
      %v475 = vpack.c.b16 %v447, %v446
      %v476 = vpack.c.b16 %v449, %v448
      %v477 = vpack.c.b16 %v451, %v450
      %v478 = vpack.c.b16 %v453, %v452
      %v479 = vpack.c.b16 %v455, %v454
      %v480 = vpack.c.b16 %v457, %v456
      %v481 = vpack.c.b16 %v459, %v458
      %v482 = vpack.c.b16 %v461, %v460
      %v483 = vpack.c.b16 %v463, %v462
      %v484 = vpack.c.b16 %v465, %v464
      %v485 = vpack.c.b16 %v467, %v466
      %vm504 = vcmask 261120
      %v506 = vsel %vm504, %v388, 0
      %v509 = vsel %vm504, %v391, 0
      %511 = vmatpush.bf16.msra.mxu0 %v475
      %512 = vmatpush.bf16.msra.mxu0 %v474
      %513 = vmatpush.bf16.msra.mxu0 %v473
      %514 = vmatpush.bf16.msra.mxu0 %v472
      %515 = vmatpush.bf16.msra.mxu0 %v471
      %516 = vmatpush.bf16.msra.mxu0 %v470
      %517 = vmatpush.bf16.msra.mxu0 %v469
      %518 = vmatpush.bf16.msra.mxu0 %v468
      %519 = vmatmul.bf16.gmra.mxu0 %v386
      %v520 = vpop.f32.mrf.mxu0
      %v521 = vadd.f32 %v349, %v520
      %v522 = vpop.f32.mrf.mxu0
      %v523 = vadd.f32 %v354, %v522
      %524 = vmatmul.bf16.gmra.mxu0 %v389
      %v525 = vpop.f32.mrf.mxu0
      %v526 = vadd.f32 %v359, %v525
      %v527 = vpop.f32.mrf.mxu0
      %v528 = vadd.f32 %v364, %v527
      %529 = vdwg.mxu0
      %530 = vmatpush.bf16.msra.mxu0 %v483
      %531 = vmatpush.bf16.msra.mxu0 %v482
      %532 = vmatpush.bf16.msra.mxu0 %v481
      %533 = vmatpush.bf16.msra.mxu0 %v480
      %534 = vmatpush.bf16.msra.mxu0 %v479
      %535 = vmatpush.bf16.msra.mxu0 %v478
      %536 = vmatpush.bf16.msra.mxu0 %v477
      %537 = vmatpush.bf16.msra.mxu0 %v476
      %538 = vmatmul.bf16.gmra.mxu0 %v387
      %v539 = vpop.f32.mrf.mxu0
      %v540 = vadd.f32 %v521, %v539
      %v541 = vpop.f32.mrf.mxu0
      %v542 = vadd.f32 %v523, %v541
      %543 = vmatmul.bf16.gmra.mxu0 %v390
      %v544 = vpop.f32.mrf.mxu0
      %v545 = vadd.f32 %v526, %v544
      %v546 = vpop.f32.mrf.mxu0
      %v547 = vadd.f32 %v528, %v546
      %548 = vdwg.mxu0
      %549 = vmatpush.bf16.msra.mxu0 0
      %550 = vmatpush.bf16.msra.mxu0 0
      %551 = vmatpush.bf16.msra.mxu0 0
      %552 = vmatpush.bf16.msra.mxu0 0
      %553 = vmatpush.bf16.msra.mxu0 0
      %554 = vmatpush.bf16.msra.mxu0 0
      %555 = vmatpush.bf16.msra.mxu0 %v485
      %556 = vmatpush.bf16.msra.mxu0 %v484
      %557 = vmatmul.bf16.gmra.mxu0 %v506
      %v558 = vpop.f32.mrf.mxu0
      %v559 = vadd.f32 %v540, %v558
      %v560 = vpop.f32.mrf.mxu0
      %v561 = vadd.f32 %v542, %v560
      %562 = vmatmul.bf16.gmra.mxu0 %v509
      %v563 = vpop.f32.mrf.mxu0
      %v564 = vadd.f32 %v545, %v563
      %v565 = vpop.f32.mrf.mxu0
      %v566 = vadd.f32 %v547, %v565
      %567 = vdwg.mxu0
      %s568 = scalar_lea.vmem %s0, 144
      %v569 = vld [vmem:[%s568] sm:$0xf]
      %v570 = vld [vmem:[%s568 + $0x4] sm:$0xf]
      %v571 = vld [vmem:[%s568 + $0x8] sm:$0xf]
      %v572 = vld [vmem:[%s568 + $0xc] sm:$0xf]
      %v573 = vld [vmem:[%s568 + $0x10] sm:$0xf]
      %v574 = vld [vmem:[%s568 + $0x14] sm:$0xf]
      %v575 = vld [vmem:[%s568 + $0x18] sm:$0xf]
      %v576 = vld [vmem:[%s568 + $0x1c] sm:$0xf]
      %v577 = vld [vmem:[%s568 + $0x20] sm:$0xf]
      %v578 = vld [vmem:[%s568 + $0x24] sm:$0xf]
      %v579 = vld [vmem:[%s568 + $0x28] sm:$0xf]
      %v580 = vld [vmem:[%s568 + $0x2c] sm:$0xf]
      %v581 = vld [vmem:[%s568 + $0x30] sm:$0xf]
      %v582 = vld [vmem:[%s568 + $0x34] sm:$0xf]
      %v583 = vld [vmem:[%s568 + $0x38] sm:$0xf]
      %v584 = vld [vmem:[%s568 + $0x3c] sm:$0xf]
      %v585 = vld [vmem:[%s568 + $0x40] sm:$0xf]
      %v586 = vld [vmem:[%s568 + $0x44] sm:$0xf]
      %v587 = vld [vmem:[%s568 + $0x48] sm:$0xf]
      %v588 = vld [vmem:[%s568 + $0x4c] sm:$0xf]
      %v589 = vld [vmem:[%s568 + $0x50] sm:$0xf]
      %v590 = vld [vmem:[%s568 + $0x54] sm:$0xf]
      %v591 = vld [vmem:[%s568 + $0x58] sm:$0xf]
      %v592 = vld [vmem:[%s568 + $0x5c] sm:$0xf]
      %v593 = vld [vmem:[%s568 + $0x60] sm:$0xf]
      %v594 = vld [vmem:[%s568 + $0x64] sm:$0xf]
      %v595 = vld [vmem:[%s568 + $0x68] sm:$0xf]
      %v596 = vld [vmem:[%s568 + $0x6c] sm:$0xf]
      %v597 = vld [vmem:[%s568 + $0x70] sm:$0xf]
      %v598 = vld [vmem:[%s568 + $0x74] sm:$0xf]
      %v599 = vld [vmem:[%s568 + $0x78] sm:$0xf]
      %v600 = vld [vmem:[%s568 + $0x7c] sm:$0xf]
      %v601 = vld [vmem:[%s568 + $0x80] sm:$0xf]
      %v602 = vld [vmem:[%s568 + $0x84] sm:$0xf]
      %v603 = vld [vmem:[%s568 + $0x88] sm:$0xf]
      %v604 = vld [vmem:[%s568 + $0x8c] sm:$0xf]
      %v641 = vunpack.c.l.b16 %v569
      %v642 = vunpack.c.l.b16 %v570
      %v643 = vunpack.c.l.b16 %v571
      %v644 = vunpack.c.l.b16 %v572
      %v645 = vunpack.c.l.b16 %v573
      %v646 = vunpack.c.l.b16 %v574
      %v647 = vunpack.c.l.b16 %v575
      %v648 = vunpack.c.l.b16 %v576
      %v649 = vunpack.c.l.b16 %v577
      %v650 = vunpack.c.l.b16 %v578
      %v651 = vunpack.c.l.b16 %v579
      %v652 = vunpack.c.l.b16 %v580
      %v653 = vunpack.c.l.b16 %v581
      %v654 = vunpack.c.l.b16 %v582
      %v655 = vunpack.c.l.b16 %v583
      %v656 = vunpack.c.l.b16 %v584
      %v657 = vunpack.c.l.b16 %v585
      %v658 = vunpack.c.l.b16 %v586
      %v659 = vunpack.c.l.b16 %v587
      %v660 = vunpack.c.l.b16 %v588
      %v661 = vunpack.c.l.b16 %v589
      %v662 = vunpack.c.l.b16 %v590
      %v663 = vunpack.c.l.b16 %v591
      %v664 = vunpack.c.l.b16 %v592
      %v665 = vunpack.c.l.b16 %v593
      %v666 = vunpack.c.l.b16 %v594
      %v667 = vunpack.c.l.b16 %v595
      %v668 = vunpack.c.l.b16 %v596
      %v669 = vunpack.c.l.b16 %v597
      %v670 = vunpack.c.l.b16 %v598
      %v671 = vunpack.c.l.b16 %v599
      %v672 = vunpack.c.l.b16 %v600
      %v673 = vunpack.c.l.b16 %v601
      %v674 = vunpack.c.l.b16 %v602
      %v675 = vunpack.c.l.b16 %v603
      %v676 = vunpack.c.l.b16 %v604
      %v677 = vpack.c.b16 %v642, %v641
      %v678 = vpack.c.b16 %v644, %v643
      %v679 = vpack.c.b16 %v646, %v645
      %v680 = vpack.c.b16 %v648, %v647
      %v681 = vpack.c.b16 %v650, %v649
      %v682 = vpack.c.b16 %v652, %v651
      %v683 = vpack.c.b16 %v654, %v653
      %v684 = vpack.c.b16 %v656, %v655
      %v685 = vpack.c.b16 %v658, %v657
      %v686 = vpack.c.b16 %v660, %v659
      %v687 = vpack.c.b16 %v662, %v661
      %v688 = vpack.c.b16 %v664, %v663
      %v689 = vpack.c.b16 %v666, %v665
      %v690 = vpack.c.b16 %v668, %v667
      %v691 = vpack.c.b16 %v670, %v669
      %v692 = vpack.c.b16 %v672, %v671
      %v693 = vpack.c.b16 %v674, %v673
      %v694 = vpack.c.b16 %v676, %v675
      %713 = vmatpush.bf16.msra.mxu0 %v684
      %714 = vmatpush.bf16.msra.mxu0 %v683
      %715 = vmatpush.bf16.msra.mxu0 %v682
      %716 = vmatpush.bf16.msra.mxu0 %v681
      %717 = vmatpush.bf16.msra.mxu0 %v680
      %718 = vmatpush.bf16.msra.mxu0 %v679
      %719 = vmatpush.bf16.msra.mxu0 %v678
      %720 = vmatpush.bf16.msra.mxu0 %v677
      %721 = vmatmul.bf16.gmra.mxu0 %v386
      %v722 = vpop.f32.mrf.mxu0
      %v723 = vadd.f32 %v349, %v722
      %v724 = vpop.f32.mrf.mxu0
      %v725 = vadd.f32 %v354, %v724
      %726 = vmatmul.bf16.gmra.mxu0 %v389
      %v727 = vpop.f32.mrf.mxu0
      %v728 = vadd.f32 %v359, %v727
      %v729 = vpop.f32.mrf.mxu0
      %v730 = vadd.f32 %v364, %v729
      %731 = vdwg.mxu0
      %732 = vmatpush.bf16.msra.mxu0 %v692
      %733 = vmatpush.bf16.msra.mxu0 %v691
      %734 = vmatpush.bf16.msra.mxu0 %v690
      %735 = vmatpush.bf16.msra.mxu0 %v689
      %736 = vmatpush.bf16.msra.mxu0 %v688
      %737 = vmatpush.bf16.msra.mxu0 %v687
      %738 = vmatpush.bf16.msra.mxu0 %v686
      %739 = vmatpush.bf16.msra.mxu0 %v685
      %740 = vmatmul.bf16.gmra.mxu0 %v387
      %v741 = vpop.f32.mrf.mxu0
      %v742 = vadd.f32 %v723, %v741
      %v743 = vpop.f32.mrf.mxu0
      %v744 = vadd.f32 %v725, %v743
      %745 = vmatmul.bf16.gmra.mxu0 %v390
      %v746 = vpop.f32.mrf.mxu0
      %v747 = vadd.f32 %v728, %v746
      %v748 = vpop.f32.mrf.mxu0
      %v749 = vadd.f32 %v730, %v748
      %750 = vdwg.mxu0
      %751 = vmatpush.bf16.msra.mxu0 0
      %752 = vmatpush.bf16.msra.mxu0 0
      %753 = vmatpush.bf16.msra.mxu0 0
      %754 = vmatpush.bf16.msra.mxu0 0
      %755 = vmatpush.bf16.msra.mxu0 0
      %756 = vmatpush.bf16.msra.mxu0 0
      %757 = vmatpush.bf16.msra.mxu0 %v694
      %758 = vmatpush.bf16.msra.mxu0 %v693
      %759 = vmatmul.bf16.gmra.mxu0 %v506
      %v760 = vpop.f32.mrf.mxu0
      %v761 = vadd.f32 %v742, %v760
      %v762 = vpop.f32.mrf.mxu0
      %v763 = vadd.f32 %v744, %v762
      %764 = vmatmul.bf16.gmra.mxu0 %v509
      %v765 = vpop.f32.mrf.mxu0
      %v766 = vadd.f32 %v747, %v765
      %v767 = vpop.f32.mrf.mxu0
      %v768 = vadd.f32 %v749, %v767
      %769 = vdwg.mxu0
      %s770 = scalar_lea.vmem %s0, 288
      %v771 = vld [vmem:[%s770] sm:$0xf]
      %v772 = vld [vmem:[%s770 + $0x4] sm:$0xf]
      %v773 = vld [vmem:[%s770 + $0x8] sm:$0xf]
      %v774 = vld [vmem:[%s770 + $0xc] sm:$0xf]
      %v775 = vld [vmem:[%s770 + $0x10] sm:$0xf]
      %v776 = vld [vmem:[%s770 + $0x14] sm:$0xf]
      %v777 = vld [vmem:[%s770 + $0x18] sm:$0xf]
      %v778 = vld [vmem:[%s770 + $0x1c] sm:$0xf]
      %v779 = vld [vmem:[%s770 + $0x20] sm:$0xf]
      %v780 = vld [vmem:[%s770 + $0x24] sm:$0xf]
      %v781 = vld [vmem:[%s770 + $0x28] sm:$0xf]
      %v782 = vld [vmem:[%s770 + $0x2c] sm:$0xf]
      %v783 = vld [vmem:[%s770 + $0x30] sm:$0xf]
      %v784 = vld [vmem:[%s770 + $0x34] sm:$0xf]
      %v785 = vld [vmem:[%s770 + $0x38] sm:$0xf]
      %v786 = vld [vmem:[%s770 + $0x3c] sm:$0xf]
      %v787 = vld [vmem:[%s770 + $0x40] sm:$0xf]
      %v788 = vld [vmem:[%s770 + $0x44] sm:$0xf]
      %v789 = vld [vmem:[%s770 + $0x48] sm:$0xf]
      %v790 = vld [vmem:[%s770 + $0x4c] sm:$0xf]
      %v791 = vld [vmem:[%s770 + $0x50] sm:$0xf]
      %v792 = vld [vmem:[%s770 + $0x54] sm:$0xf]
      %v793 = vld [vmem:[%s770 + $0x58] sm:$0xf]
      %v794 = vld [vmem:[%s770 + $0x5c] sm:$0xf]
      %v795 = vld [vmem:[%s770 + $0x60] sm:$0xf]
      %v796 = vld [vmem:[%s770 + $0x64] sm:$0xf]
      %v797 = vld [vmem:[%s770 + $0x68] sm:$0xf]
      %v798 = vld [vmem:[%s770 + $0x6c] sm:$0xf]
      %v799 = vld [vmem:[%s770 + $0x70] sm:$0xf]
      %v800 = vld [vmem:[%s770 + $0x74] sm:$0xf]
      %v801 = vld [vmem:[%s770 + $0x78] sm:$0xf]
      %v802 = vld [vmem:[%s770 + $0x7c] sm:$0xf]
      %v803 = vld [vmem:[%s770 + $0x80] sm:$0xf]
      %v804 = vld [vmem:[%s770 + $0x84] sm:$0xf]
      %v805 = vld [vmem:[%s770 + $0x88] sm:$0xf]
      %v806 = vld [vmem:[%s770 + $0x8c] sm:$0xf]
      %v843 = vunpack.c.l.b16 %v771
      %v844 = vunpack.c.l.b16 %v772
      %v845 = vunpack.c.l.b16 %v773
      %v846 = vunpack.c.l.b16 %v774
      %v847 = vunpack.c.l.b16 %v775
      %v848 = vunpack.c.l.b16 %v776
      %v849 = vunpack.c.l.b16 %v777
      %v850 = vunpack.c.l.b16 %v778
      %v851 = vunpack.c.l.b16 %v779
      %v852 = vunpack.c.l.b16 %v780
      %v853 = vunpack.c.l.b16 %v781
      %v854 = vunpack.c.l.b16 %v782
      %v855 = vunpack.c.l.b16 %v783
      %v856 = vunpack.c.l.b16 %v784
      %v857 = vunpack.c.l.b16 %v785
      %v858 = vunpack.c.l.b16 %v786
      %v859 = vunpack.c.l.b16 %v787
      %v860 = vunpack.c.l.b16 %v788
      %v861 = vunpack.c.l.b16 %v789
      %v862 = vunpack.c.l.b16 %v790
      %v863 = vunpack.c.l.b16 %v791
      %v864 = vunpack.c.l.b16 %v792
      %v865 = vunpack.c.l.b16 %v793
      %v866 = vunpack.c.l.b16 %v794
      %v867 = vunpack.c.l.b16 %v795
      %v868 = vunpack.c.l.b16 %v796
      %v869 = vunpack.c.l.b16 %v797
      %v870 = vunpack.c.l.b16 %v798
      %v871 = vunpack.c.l.b16 %v799
      %v872 = vunpack.c.l.b16 %v800
      %v873 = vunpack.c.l.b16 %v801
      %v874 = vunpack.c.l.b16 %v802
      %v875 = vunpack.c.l.b16 %v803
      %v876 = vunpack.c.l.b16 %v804
      %v877 = vunpack.c.l.b16 %v805
      %v878 = vunpack.c.l.b16 %v806
      %v879 = vpack.c.b16 %v844, %v843
      %v880 = vpack.c.b16 %v846, %v845
      %v881 = vpack.c.b16 %v848, %v847
      %v882 = vpack.c.b16 %v850, %v849
      %v883 = vpack.c.b16 %v852, %v851
      %v884 = vpack.c.b16 %v854, %v853
      %v885 = vpack.c.b16 %v856, %v855
      %v886 = vpack.c.b16 %v858, %v857
      %v887 = vpack.c.b16 %v860, %v859
      %v888 = vpack.c.b16 %v862, %v861
      %v889 = vpack.c.b16 %v864, %v863
      %v890 = vpack.c.b16 %v866, %v865
      %v891 = vpack.c.b16 %v868, %v867
      %v892 = vpack.c.b16 %v870, %v869
      %v893 = vpack.c.b16 %v872, %v871
      %v894 = vpack.c.b16 %v874, %v873
      %v895 = vpack.c.b16 %v876, %v875
      %v896 = vpack.c.b16 %v878, %v877
      %915 = vmatpush.bf16.msra.mxu0 %v886
      %916 = vmatpush.bf16.msra.mxu0 %v885
      %917 = vmatpush.bf16.msra.mxu0 %v884
      %918 = vmatpush.bf16.msra.mxu0 %v883
      %919 = vmatpush.bf16.msra.mxu0 %v882
      %920 = vmatpush.bf16.msra.mxu0 %v881
      %921 = vmatpush.bf16.msra.mxu0 %v880
      %922 = vmatpush.bf16.msra.mxu0 %v879
      %923 = vmatmul.bf16.gmra.mxu0 %v386
      %v924 = vpop.f32.mrf.mxu0
      %v925 = vadd.f32 %v349, %v924
      %v926 = vpop.f32.mrf.mxu0
      %v927 = vadd.f32 %v354, %v926
      %928 = vmatmul.bf16.gmra.mxu0 %v389
      %v929 = vpop.f32.mrf.mxu0
      %v930 = vadd.f32 %v359, %v929
      %v931 = vpop.f32.mrf.mxu0
      %v932 = vadd.f32 %v364, %v931
      %933 = vdwg.mxu0
      %934 = vmatpush.bf16.msra.mxu0 %v894
      %935 = vmatpush.bf16.msra.mxu0 %v893
      %936 = vmatpush.bf16.msra.mxu0 %v892
      %937 = vmatpush.bf16.msra.mxu0 %v891
      %938 = vmatpush.bf16.msra.mxu0 %v890
      %939 = vmatpush.bf16.msra.mxu0 %v889
      %940 = vmatpush.bf16.msra.mxu0 %v888
      %941 = vmatpush.bf16.msra.mxu0 %v887
      %942 = vmatmul.bf16.gmra.mxu0 %v387
      %v943 = vpop.f32.mrf.mxu0
      %v944 = vadd.f32 %v925, %v943
      %v945 = vpop.f32.mrf.mxu0
      %v946 = vadd.f32 %v927, %v945
      %947 = vmatmul.bf16.gmra.mxu0 %v390
      %v948 = vpop.f32.mrf.mxu0
      %v949 = vadd.f32 %v930, %v948
      %v950 = vpop.f32.mrf.mxu0
      %v951 = vadd.f32 %v932, %v950
      %952 = vdwg.mxu0
      %953 = vmatpush.bf16.msra.mxu0 0
      %954 = vmatpush.bf16.msra.mxu0 0
      %955 = vmatpush.bf16.msra.mxu0 0
      %956 = vmatpush.bf16.msra.mxu0 0
      %957 = vmatpush.bf16.msra.mxu0 0
      %958 = vmatpush.bf16.msra.mxu0 0
      %959 = vmatpush.bf16.msra.mxu0 %v896
      %960 = vmatpush.bf16.msra.mxu0 %v895
      %961 = vmatmul.bf16.gmra.mxu0 %v506
      %v962 = vpop.f32.mrf.mxu0
      %v963 = vadd.f32 %v944, %v962
      %v964 = vpop.f32.mrf.mxu0
      %v965 = vadd.f32 %v946, %v964
      %966 = vmatmul.bf16.gmra.mxu0 %v509
      %v967 = vpop.f32.mrf.mxu0
      %v968 = vadd.f32 %v949, %v967
      %v969 = vpop.f32.mrf.mxu0
      %v970 = vadd.f32 %v951, %v969
      %971 = vdwg.mxu0
      %s972 = scalar_lea.vmem %s0, 432
      %v973 = vld [vmem:[%s972] sm:$0xf]
      %v974 = vld [vmem:[%s972 + $0x4] sm:$0xf]
      %v975 = vld [vmem:[%s972 + $0x8] sm:$0xf]
      %v976 = vld [vmem:[%s972 + $0xc] sm:$0xf]
      %v977 = vld [vmem:[%s972 + $0x10] sm:$0xf]
      %v978 = vld [vmem:[%s972 + $0x14] sm:$0xf]
      %v979 = vld [vmem:[%s972 + $0x18] sm:$0xf]
      %v980 = vld [vmem:[%s972 + $0x1c] sm:$0xf]
      %v981 = vld [vmem:[%s972 + $0x20] sm:$0xf]
      %v982 = vld [vmem:[%s972 + $0x24] sm:$0xf]
      %v983 = vld [vmem:[%s972 + $0x28] sm:$0xf]
      %v984 = vld [vmem:[%s972 + $0x2c] sm:$0xf]
      %v985 = vld [vmem:[%s972 + $0x30] sm:$0xf]
      %v986 = vld [vmem:[%s972 + $0x34] sm:$0xf]
      %v987 = vld [vmem:[%s972 + $0x38] sm:$0xf]
      %v988 = vld [vmem:[%s972 + $0x3c] sm:$0xf]
      %v989 = vld [vmem:[%s972 + $0x40] sm:$0xf]
      %v990 = vld [vmem:[%s972 + $0x44] sm:$0xf]
      %v991 = vld [vmem:[%s972 + $0x48] sm:$0xf]
      %v992 = vld [vmem:[%s972 + $0x4c] sm:$0xf]
      %v993 = vld [vmem:[%s972 + $0x50] sm:$0xf]
      %v994 = vld [vmem:[%s972 + $0x54] sm:$0xf]
      %v995 = vld [vmem:[%s972 + $0x58] sm:$0xf]
      %v996 = vld [vmem:[%s972 + $0x5c] sm:$0xf]
      %v997 = vld [vmem:[%s972 + $0x60] sm:$0xf]
      %v998 = vld [vmem:[%s972 + $0x64] sm:$0xf]
      %v999 = vld [vmem:[%s972 + $0x68] sm:$0xf]
      %v1000 = vld [vmem:[%s972 + $0x6c] sm:$0xf]
      %v1001 = vld [vmem:[%s972 + $0x70] sm:$0xf]
      %v1002 = vld [vmem:[%s972 + $0x74] sm:$0xf]
      %v1003 = vld [vmem:[%s972 + $0x78] sm:$0xf]
      %v1004 = vld [vmem:[%s972 + $0x7c] sm:$0xf]
      %v1005 = vld [vmem:[%s972 + $0x80] sm:$0xf]
      %v1006 = vld [vmem:[%s972 + $0x84] sm:$0xf]
      %v1007 = vld [vmem:[%s972 + $0x88] sm:$0xf]
      %v1008 = vld [vmem:[%s972 + $0x8c] sm:$0xf]
      %v1045 = vunpack.c.l.b16 %v973
      %v1046 = vunpack.c.l.b16 %v974
      %v1047 = vunpack.c.l.b16 %v975
      %v1048 = vunpack.c.l.b16 %v976
      %v1049 = vunpack.c.l.b16 %v977
      %v1050 = vunpack.c.l.b16 %v978
      %v1051 = vunpack.c.l.b16 %v979
      %v1052 = vunpack.c.l.b16 %v980
      %v1053 = vunpack.c.l.b16 %v981
      %v1054 = vunpack.c.l.b16 %v982
      %v1055 = vunpack.c.l.b16 %v983
      %v1056 = vunpack.c.l.b16 %v984
      %v1057 = vunpack.c.l.b16 %v985
      %v1058 = vunpack.c.l.b16 %v986
      %v1059 = vunpack.c.l.b16 %v987
      %v1060 = vunpack.c.l.b16 %v988
      %v1061 = vunpack.c.l.b16 %v989
      %v1062 = vunpack.c.l.b16 %v990
      %v1063 = vunpack.c.l.b16 %v991
      %v1064 = vunpack.c.l.b16 %v992
      %v1065 = vunpack.c.l.b16 %v993
      %v1066 = vunpack.c.l.b16 %v994
      %v1067 = vunpack.c.l.b16 %v995
      %v1068 = vunpack.c.l.b16 %v996
      %v1069 = vunpack.c.l.b16 %v997
      %v1070 = vunpack.c.l.b16 %v998
      %v1071 = vunpack.c.l.b16 %v999
      %v1072 = vunpack.c.l.b16 %v1000
      %v1073 = vunpack.c.l.b16 %v1001
      %v1074 = vunpack.c.l.b16 %v1002
      %v1075 = vunpack.c.l.b16 %v1003
      %v1076 = vunpack.c.l.b16 %v1004
      %v1077 = vunpack.c.l.b16 %v1005
      %v1078 = vunpack.c.l.b16 %v1006
      %v1079 = vunpack.c.l.b16 %v1007
      %v1080 = vunpack.c.l.b16 %v1008
      %v1081 = vpack.c.b16 %v1046, %v1045
      %v1082 = vpack.c.b16 %v1048, %v1047
      %v1083 = vpack.c.b16 %v1050, %v1049
      %v1084 = vpack.c.b16 %v1052, %v1051
      %v1085 = vpack.c.b16 %v1054, %v1053
      %v1086 = vpack.c.b16 %v1056, %v1055
      %v1087 = vpack.c.b16 %v1058, %v1057
      %v1088 = vpack.c.b16 %v1060, %v1059
      %v1089 = vpack.c.b16 %v1062, %v1061
      %v1090 = vpack.c.b16 %v1064, %v1063
      %v1091 = vpack.c.b16 %v1066, %v1065
      %v1092 = vpack.c.b16 %v1068, %v1067
      %v1093 = vpack.c.b16 %v1070, %v1069
      %v1094 = vpack.c.b16 %v1072, %v1071
      %v1095 = vpack.c.b16 %v1074, %v1073
      %v1096 = vpack.c.b16 %v1076, %v1075
      %v1097 = vpack.c.b16 %v1078, %v1077
      %v1098 = vpack.c.b16 %v1080, %v1079
      %1117 = vmatpush.bf16.msra.mxu0 %v1088
      %1118 = vmatpush.bf16.msra.mxu0 %v1087
      %1119 = vmatpush.bf16.msra.mxu0 %v1086
      %1120 = vmatpush.bf16.msra.mxu0 %v1085
      %1121 = vmatpush.bf16.msra.mxu0 %v1084
      %1122 = vmatpush.bf16.msra.mxu0 %v1083
      %1123 = vmatpush.bf16.msra.mxu0 %v1082
      %1124 = vmatpush.bf16.msra.mxu0 %v1081
      %1125 = vmatmul.bf16.gmra.mxu0 %v386
      %v1126 = vpop.f32.mrf.mxu0
      %v1127 = vadd.f32 %v349, %v1126
      %v1128 = vpop.f32.mrf.mxu0
      %v1129 = vadd.f32 %v354, %v1128
      %1130 = vmatmul.bf16.gmra.mxu0 %v389
      %v1131 = vpop.f32.mrf.mxu0
      %v1132 = vadd.f32 %v359, %v1131
      %v1133 = vpop.f32.mrf.mxu0
      %v1134 = vadd.f32 %v364, %v1133
      %1135 = vdwg.mxu0
      %1136 = vmatpush.bf16.msra.mxu0 %v1096
      %1137 = vmatpush.bf16.msra.mxu0 %v1095
      %1138 = vmatpush.bf16.msra.mxu0 %v1094
      %1139 = vmatpush.bf16.msra.mxu0 %v1093
      %1140 = vmatpush.bf16.msra.mxu0 %v1092
      %1141 = vmatpush.bf16.msra.mxu0 %v1091
      %1142 = vmatpush.bf16.msra.mxu0 %v1090
      %1143 = vmatpush.bf16.msra.mxu0 %v1089
      %1144 = vmatmul.bf16.gmra.mxu0 %v387
      %v1145 = vpop.f32.mrf.mxu0
      %v1146 = vadd.f32 %v1127, %v1145
      %v1147 = vpop.f32.mrf.mxu0
      %v1148 = vadd.f32 %v1129, %v1147
      %1149 = vmatmul.bf16.gmra.mxu0 %v390
      %v1150 = vpop.f32.mrf.mxu0
      %v1151 = vadd.f32 %v1132, %v1150
      %v1152 = vpop.f32.mrf.mxu0
      %v1153 = vadd.f32 %v1134, %v1152
      %1154 = vdwg.mxu0
      %1155 = vmatpush.bf16.msra.mxu0 0
      %1156 = vmatpush.bf16.msra.mxu0 0
      %1157 = vmatpush.bf16.msra.mxu0 0
      %1158 = vmatpush.bf16.msra.mxu0 0
      %1159 = vmatpush.bf16.msra.mxu0 0
      %1160 = vmatpush.bf16.msra.mxu0 0
      %1161 = vmatpush.bf16.msra.mxu0 %v1098
      %1162 = vmatpush.bf16.msra.mxu0 %v1097
      %1163 = vmatmul.bf16.gmra.mxu0 %v506
      %v1164 = vpop.f32.mrf.mxu0
      %v1165 = vadd.f32 %v1146, %v1164
      %v1166 = vpop.f32.mrf.mxu0
      %v1167 = vadd.f32 %v1148, %v1166
      %1168 = vmatmul.bf16.gmra.mxu0 %v509
      %v1169 = vpop.f32.mrf.mxu0
      %v1170 = vadd.f32 %v1151, %v1169
      %v1171 = vpop.f32.mrf.mxu0
      %v1172 = vadd.f32 %v1153, %v1171
      %1173 = vdwg.mxu0
      %v1174 = vadd.f32 %v559, %v761
      %v1175 = vadd.f32 %v561, %v763
      %v1176 = vadd.f32 %v564, %v766
      %v1177 = vadd.f32 %v566, %v768
      %v1178 = vadd.f32 %v1174, %v963
      %v1179 = vadd.f32 %v1175, %v965
      %v1180 = vadd.f32 %v1176, %v968
      %v1181 = vadd.f32 %v1177, %v970
      %v1182 = vadd.f32 %v1178, %v1165
      %v1183 = vadd.f32 %v1179, %v1167
      %v1184 = vadd.f32 %v1180, %v1170
      %v1185 = vadd.f32 %v1181, %v1172
      %v1186 = vsel %vm504, %v1182, 0.0
      %1187 = vadd.xlane.f32.xlu0 %v1186
      %v1188 = vpop.xlane.xlu0 %1187
      %v1189 = vsel %vm504, %v1183, 0.0
      %1190 = vadd.xlane.f32.xlu0 %v1189
      %v1191 = vpop.xlane.xlu0 %1190
      %v1192 = vsel %vm504, %v1184, 0.0
      %1193 = vadd.xlane.f32.xlu0 %v1192
      %v1194 = vpop.xlane.xlu0 %1193
      %v1195 = vsel %vm504, %v1185, 0.0
      %1196 = vadd.xlane.f32.xlu0 %v1195
      %v1197 = vpop.xlane.xlu0 %1196
      %v1198 = vmul.f32 %v1188, 0.0078125
      %v1199 = vmul.f32 %v1191, 0.0078125
      %v1200 = vmul.f32 %v1194, 0.0078125
      %v1201 = vmul.f32 %v1197, 0.0078125
      %v1202 = vsub.f32 %v559, %v1198
      %v1203 = vsub.f32 %v561, %v1199
      %v1204 = vsub.f32 %v564, %v1200
      %v1205 = vsub.f32 %v566, %v1201
      %v1206 = vmul.f32 %v1202, %v1202
      %v1207 = vmul.f32 %v1203, %v1203
      %v1208 = vmul.f32 %v1204, %v1204
      %v1209 = vmul.f32 %v1205, %v1205
      %v1210 = vsel %vm504, %v1206, 0.0
      %1211 = vadd.xlane.f32.xlu0 %v1210
      %v1212 = vpop.xlane.xlu0 %1211
      %v1213 = vsel %vm504, %v1207, 0.0
      %1214 = vadd.xlane.f32.xlu0 %v1213
      %v1215 = vpop.xlane.xlu0 %1214
      %v1216 = vsel %vm504, %v1208, 0.0
      %1217 = vadd.xlane.f32.xlu0 %v1216
      %v1218 = vpop.xlane.xlu0 %1217
      %v1219 = vsel %vm504, %v1209, 0.0
      %1220 = vadd.xlane.f32.xlu0 %v1219
      %v1221 = vpop.xlane.xlu0 %1220
      %v1222 = vsub.f32 %v761, %v1198
      %v1223 = vsub.f32 %v763, %v1199
      %v1224 = vsub.f32 %v766, %v1200
      %v1225 = vsub.f32 %v768, %v1201
      %v1226 = vmul.f32 %v1222, %v1222
      %v1227 = vmul.f32 %v1223, %v1223
      %v1228 = vmul.f32 %v1224, %v1224
      %v1229 = vmul.f32 %v1225, %v1225
      %v1230 = vsel %vm504, %v1226, 0.0
      %1231 = vadd.xlane.f32.xlu0 %v1230
      %v1232 = vpop.xlane.xlu0 %1231
      %v1233 = vsel %vm504, %v1227, 0.0
      %1234 = vadd.xlane.f32.xlu0 %v1233
      %v1235 = vpop.xlane.xlu0 %1234
      %v1236 = vsel %vm504, %v1228, 0.0
      %1237 = vadd.xlane.f32.xlu0 %v1236
      %v1238 = vpop.xlane.xlu0 %1237
      %v1239 = vsel %vm504, %v1229, 0.0
      %1240 = vadd.xlane.f32.xlu0 %v1239
      %v1241 = vpop.xlane.xlu0 %1240
      %v1242 = vadd.f32 %v1212, %v1232
      %v1243 = vadd.f32 %v1215, %v1235
      %v1244 = vadd.f32 %v1218, %v1238
      %v1245 = vadd.f32 %v1221, %v1241
      %v1246 = vsub.f32 %v963, %v1198
      %v1247 = vsub.f32 %v965, %v1199
      %v1248 = vsub.f32 %v968, %v1200
      %v1249 = vsub.f32 %v970, %v1201
      %v1250 = vmul.f32 %v1246, %v1246
      %v1251 = vmul.f32 %v1247, %v1247
      %v1252 = vmul.f32 %v1248, %v1248
      %v1253 = vmul.f32 %v1249, %v1249
      %v1254 = vsel %vm504, %v1250, 0.0
      %1255 = vadd.xlane.f32.xlu0 %v1254
      %v1256 = vpop.xlane.xlu0 %1255
      %v1257 = vsel %vm504, %v1251, 0.0
      %1258 = vadd.xlane.f32.xlu0 %v1257
      %v1259 = vpop.xlane.xlu0 %1258
      %v1260 = vsel %vm504, %v1252, 0.0
      %1261 = vadd.xlane.f32.xlu0 %v1260
      %v1262 = vpop.xlane.xlu0 %1261
      %v1263 = vsel %vm504, %v1253, 0.0
      %1264 = vadd.xlane.f32.xlu0 %v1263
      %v1265 = vpop.xlane.xlu0 %1264
      %v1266 = vadd.f32 %v1242, %v1256
      %v1267 = vadd.f32 %v1243, %v1259
      %v1268 = vadd.f32 %v1244, %v1262
      %v1269 = vadd.f32 %v1245, %v1265
      %v1270 = vsub.f32 %v1165, %v1198
      %v1271 = vsub.f32 %v1167, %v1199
      %v1272 = vsub.f32 %v1170, %v1200
      %v1273 = vsub.f32 %v1172, %v1201
      %v1274 = vmul.f32 %v1270, %v1270
      %v1275 = vmul.f32 %v1271, %v1271
      %v1276 = vmul.f32 %v1272, %v1272
      %v1277 = vmul.f32 %v1273, %v1273
      %v1278 = vsel %vm504, %v1274, 0.0
      %1279 = vadd.xlane.f32.xlu0 %v1278
      %v1280 = vpop.xlane.xlu0 %1279
      %v1281 = vsel %vm504, %v1275, 0.0
      %1282 = vadd.xlane.f32.xlu0 %v1281
      %v1283 = vpop.xlane.xlu0 %1282
      %v1284 = vsel %vm504, %v1276, 0.0
      %1285 = vadd.xlane.f32.xlu0 %v1284
      %v1286 = vpop.xlane.xlu0 %1285
      %v1287 = vsel %vm504, %v1277, 0.0
      %1288 = vadd.xlane.f32.xlu0 %v1287
      %v1289 = vpop.xlane.xlu0 %1288
      %v1290 = vadd.f32 %v1266, %v1280
      %v1291 = vadd.f32 %v1267, %v1283
      %v1292 = vadd.f32 %v1268, %v1286
      %v1293 = vadd.f32 %v1269, %v1289
      %v1294 = vmul.f32 %v1290, 0.0078125
      %v1295 = vmul.f32 %v1291, 0.0078125
      %v1296 = vmul.f32 %v1292, 0.0078125
      %v1297 = vmul.f32 %v1293, 0.0078125
      %v1298 = vld [vmem:[%s283] sm:$0xff]
      %v1299 = vld [vmem:[%s283 + $0x8] sm:$0xff]
      %v1300 = vld [vmem:[%s283 + $0x10] sm:$0xff]
      %v1301 = vld [vmem:[%s283 + $0x18] sm:$0xff]
      %v1302 = vadd.f32 %v1294, 1e-05
      %v1303 = vadd.f32 %v1295, 1e-05
      %v1304 = vadd.f32 %v1296, 1e-05
      %v1305 = vadd.f32 %v1297, 1e-05
      %v1306 = vrsqrt.pop %v1302
      %v1307 = vmul.f32 %v1306, %v1302
      %v1308 = vmul.f32 %v1307, %v1306
      %v1309 = vmul.f32 0.5, %v1308
      %v1310 = vsub.f32 1.5, %v1309
      %v1311 = vmul.f32 %v1306, %v1310
      %vm1312 = vweird.f32 %v1302
      %vm1313 = vweird.f32 %v1306
      %vm1314 = vmor %vm1312, %vm1313
      %v1315 = vsel %vm1314, %v1306, %v1311
      %v1316 = vrsqrt.pop %v1303
      %v1317 = vmul.f32 %v1316, %v1303
      %v1318 = vmul.f32 %v1317, %v1316
      %v1319 = vmul.f32 0.5, %v1318
      %v1320 = vsub.f32 1.5, %v1319
      %v1321 = vmul.f32 %v1316, %v1320
      %vm1322 = vweird.f32 %v1303
      %vm1323 = vweird.f32 %v1316
      %vm1324 = vmor %vm1322, %vm1323
      %v1325 = vsel %vm1324, %v1316, %v1321
      %v1326 = vrsqrt.pop %v1304
      %v1327 = vmul.f32 %v1326, %v1304
      %v1328 = vmul.f32 %v1327, %v1326
      %v1329 = vmul.f32 0.5, %v1328
      %v1330 = vsub.f32 1.5, %v1329
      %v1331 = vmul.f32 %v1326, %v1330
      %vm1332 = vweird.f32 %v1304
      %vm1333 = vweird.f32 %v1326
      %vm1334 = vmor %vm1332, %vm1333
      %v1335 = vsel %vm1334, %v1326, %v1331
      %v1336 = vrsqrt.pop %v1305
      %v1337 = vmul.f32 %v1336, %v1305
      %v1338 = vmul.f32 %v1337, %v1336
      %v1339 = vmul.f32 0.5, %v1338
      %v1340 = vsub.f32 1.5, %v1339
      %v1341 = vmul.f32 %v1336, %v1340
      %vm1342 = vweird.f32 %v1305
      %vm1343 = vweird.f32 %v1336
      %vm1344 = vmor %vm1342, %vm1343
      %v1345 = vsel %vm1344, %v1336, %v1341
      %v1346 = vmul.f32 %v1298, %v1315
      %v1347 = vmul.f32 %v1299, %v1325
      %v1348 = vmul.f32 %v1300, %v1335
      %v1349 = vmul.f32 %v1301, %v1345
      %1351 = vset.pattern.permute.xlu0 0
      %1352 = vperm.xlu0 %1351, %v1346
      %v1353 = vpop.permute.xlu0 %1352
      %1356 = vset.pattern.permute.xlu0 0
      %1357 = vperm.xlu0 %1356, %v1347
      %v1358 = vpop.permute.xlu0 %1357
      %1361 = vset.pattern.permute.xlu0 0
      %1362 = vperm.xlu0 %1361, %v1348
      %v1363 = vpop.permute.xlu0 %1362
      %1366 = vset.pattern.permute.xlu0 0
      %1367 = vperm.xlu0 %1366, %v1349
      %v1368 = vpop.permute.xlu0 %1367
      %v1370 = vmul.f32 %v1202, %v1353
      %v1371 = vmul.f32 %v1203, %v1358
      %v1372 = vmul.f32 %v1204, %v1363
      %v1373 = vmul.f32 %v1205, %v1368
      %v1374 = vld [vmem:[%s289] sm:$0xff]
      %v1375 = vld [vmem:[%s289 + $0x8] sm:$0xff]
      %v1376 = vld [vmem:[%s289 + $0x10] sm:$0xff]
      %v1377 = vld [vmem:[%s289 + $0x18] sm:$0xff]
      %1379 = vset.pattern.permute.xlu0 0
      %1380 = vperm.xlu0 %1379, %v1374
      %v1381 = vpop.permute.xlu0 %1380
      %1384 = vset.pattern.permute.xlu0 0
      %1385 = vperm.xlu0 %1384, %v1375
      %v1386 = vpop.permute.xlu0 %1385
      %1389 = vset.pattern.permute.xlu0 0
      %1390 = vperm.xlu0 %1389, %v1376
      %v1391 = vpop.permute.xlu0 %1390
      %1394 = vset.pattern.permute.xlu0 0
      %1395 = vperm.xlu0 %1394, %v1377
      %v1396 = vpop.permute.xlu0 %1395
      %v1398 = vadd.f32 %v1370, %v1381
      %v1399 = vadd.f32 %v1371, %v1386
      %v1400 = vadd.f32 %v1372, %v1391
      %v1401 = vadd.f32 %v1373, %v1396
      %v1402 = vmax.f32 %v1398, 0.0
      %v1403 = vmax.f32 %v1399, 0.0
      %v1404 = vmax.f32 %v1400, 0.0
      %v1405 = vmax.f32 %v1401, 0.0
      %v1406 = vmul.f32 %v1222, %v1353
      %v1407 = vmul.f32 %v1223, %v1358
      %v1408 = vmul.f32 %v1224, %v1363
      %v1409 = vmul.f32 %v1225, %v1368
      %v1410 = vadd.f32 %v1406, %v1381
      %v1411 = vadd.f32 %v1407, %v1386
      %v1412 = vadd.f32 %v1408, %v1391
      %v1413 = vadd.f32 %v1409, %v1396
      %v1414 = vmax.f32 %v1410, 0.0
      %v1415 = vmax.f32 %v1411, 0.0
      %v1416 = vmax.f32 %v1412, 0.0
      %v1417 = vmax.f32 %v1413, 0.0
      %v1418 = vmax.f32 %v1402, %v1414
      %v1419 = vmax.f32 %v1403, %v1415
      %v1420 = vmax.f32 %v1404, %v1416
      %v1421 = vmax.f32 %v1405, %v1417
      %v1422 = vmul.f32 %v1246, %v1353
      %v1423 = vmul.f32 %v1247, %v1358
      %v1424 = vmul.f32 %v1248, %v1363
      %v1425 = vmul.f32 %v1249, %v1368
      %v1426 = vadd.f32 %v1422, %v1381
      %v1427 = vadd.f32 %v1423, %v1386
      %v1428 = vadd.f32 %v1424, %v1391
      %v1429 = vadd.f32 %v1425, %v1396
      %v1430 = vmax.f32 %v1426, 0.0
      %v1431 = vmax.f32 %v1427, 0.0
      %v1432 = vmax.f32 %v1428, 0.0
      %v1433 = vmax.f32 %v1429, 0.0
      %v1434 = vmax.f32 %v1418, %v1430
      %v1435 = vmax.f32 %v1419, %v1431
      %v1436 = vmax.f32 %v1420, %v1432
      %v1437 = vmax.f32 %v1421, %v1433
      %v1438 = vmul.f32 %v1270, %v1353
      %v1439 = vmul.f32 %v1271, %v1358
      %v1440 = vmul.f32 %v1272, %v1363
      %v1441 = vmul.f32 %v1273, %v1368
      %v1442 = vadd.f32 %v1438, %v1381
      %v1443 = vadd.f32 %v1439, %v1386
      %v1444 = vadd.f32 %v1440, %v1391
      %v1445 = vadd.f32 %v1441, %v1396
      %v1446 = vmax.f32 %v1442, 0.0
      %v1447 = vmax.f32 %v1443, 0.0
      %v1448 = vmax.f32 %v1444, 0.0
      %v1449 = vmax.f32 %v1445, 0.0
      %v1450 = vmax.f32 %v1434, %v1446
      %v1451 = vmax.f32 %v1435, %v1447
      %v1452 = vmax.f32 %v1436, %v1448
      %v1453 = vmax.f32 %v1437, %v1449
      %v1454 = vpack.c.bf16 %v1450, %v1450
      %v1455 = vpack.c.bf16 %v1451, %v1451
      %v1456 = vpack.c.bf16 %v1452, %v1452
      %v1457 = vpack.c.bf16 %v1453, %v1453
      %vm1458 = vcmask 257024
      %1459 = vst.msk [vmem:[%s295] sm:$0xf] %vm1458, %v1454
      %1460 = vst.msk [vmem:[%s295 + $0x4] sm:$0xf] %vm1458, %v1455
      %1461 = vst.msk [vmem:[%s295 + $0x8] sm:$0xf] %vm1458, %v1456
      %1462 = vst.msk [vmem:[%s295 + $0xc] sm:$0xf] %vm1458, %v1457
      %s1463 = smul.u32 4, %s16
      %p1464 = scmp.lt.s32.totalorder %s1463, 7
      %s1465 = scalar_select %p1464, %s1463, 7
      %s1466 = smul.addr %s1465, 4
      %s1467 = scalar_lea.vmem %s5, %s1466
      // Predicated region
      $region41: #{spatial_transformer_forward.6} parent=39 // pred_check
        %p1468 = pneg %p159
      $region42: #{spatial_transformer_forward.6} parent=39 // pred_check_branch
        %1470 = sbr.rel (%p1468) target = $region44
      $region43: #{spatial_transformer_forward.6} parent=39 // pred_region
        %s1471 = smul.u32 4, %s16
      $region44: #{spatial_transformer_forward.6} parent=39 // pred_fallthru
        _
    $region40: #{spatial_transformer_forward.6} parent=5 // pred_fallthru
      _
    %p1472 = scmp.le.s32.totalorder 2, %s11
    // Predicated region
    $region45: #{spatial_transformer_forward.6} parent=5 // pred_check
      %p1473 = pneg %p1472
    $region46: #{spatial_transformer_forward.6} parent=5 // pred_check_branch
      %1475 = sbr.rel (%p1473) target = $region48
    $region47: #{spatial_transformer_forward.6} parent=5 // pred_region
      %s1476 = ssub.s32 %s11, 2
      // Predicated region
      $region49: #{spatial_transformer_forward.6} parent=47 // pred_check
        %p1477 = pneg %p165
      $region50: #{spatial_transformer_forward.6} parent=47 // pred_check_branch
        %1479 = sbr.rel (%p1477) target = $region52
      $region51: #{spatial_transformer_forward.6} parent=47 // pred_region
        %s1480 = smul.u32 4, %s17
        %p1481 = scmp.lt.s32.totalorder %s1480, 7
        %s1482 = scalar_select %p1481, %s1480, 7
        %s1483 = smul.addr %s1482, 4
        %s1484 = scalar_lea.vmem %s5, %s1483
      $region52: #{spatial_transformer_forward.6} parent=47 // pred_fallthru
        _
    $region48: #{spatial_transformer_forward.6} parent=5 // pred_fallthru
      _
  $region6: #{spatial_transformer_forward.6} parent=0 // loop_footer
    %s15 = sadd.s32 1, %s11
  $region7: #{spatial_transformer_forward.6} parent=0 // loop_footer_branch
    %10 = sbr.rel target = $region3
  $region8: #{spatial_transformer_forward.6} parent=0 // loop_exit
    _

// kernel: spatial_transformer_forward.9
$region0: #{spatial_transformer_forward.9}
  #allocation0 [shape = 'u32[]', space=smem, size = 0x4, offset = 0x4, fixed_abs, tag = 'smem constant byte address 0x4 - core index']
  #allocation1 [shape = 'u32[72,128]{1,0:T(1,128)}', space=vmem, size = 0x9000, scoped, tag = 'internal scratch']
  %s0 = inlined_call_operand.vmem [shape: f32[2,6], index: 0, kind: input, shape index: {}]
  %s1 = inlined_call_operand.vmem [shape: bf16[2,48,16], index: 1, kind: input, shape index: {}]
  %s2 = inlined_call_operand.vmem [shape: f32[2,3,256], index: 2, kind: output, shape index: {}]
  %s3 = sld [smem:[#allocation0]]
  $region45: #{spatial_transformer_forward.9} parent=0
    _
  %s5 = ssub.s32 1, %s3
  %s6 = scalar_select 0, %s5, %s3
  $region1: #{spatial_transformer_forward.9} parent=0
    #allocation2 [shape = 'u8[1024]{0}', space=smem, size = 0x400, scoped, tag = 'input window, operand 0, single buffered']
    #allocation3 [shape = 's32[2]{0}', space=sflag, size = 0x8, scoped, tag = 'scoped memory for spatial_transformer_forward.9']
    %7 = vsyncpa [#allocation3], 0
    loop: start=0, step=1, limit=4
    $region2: #{spatial_transformer_forward.9} parent=1 // loop_pre_header
      _
    $region3: #{spatial_transformer_forward.9} parent=1 // loop_header
      %s9 = sphi 0, %s13
      %p10 = scmp.ge.s32.totalorder %s9, 4
      %s16 = sphi 0, %s28
      %s17 = sphi 0, %s24
      %s18 = sphi 0, %s16
      %s19 = sphi 0, %s17
      %s20 = sphi 0, %s18
      %s21 = sphi 0, %s19
      %s29 = sphi 0, %s29
      %s31 = sphi 0, %s29
      %s32 = sphi 0, %s31
      %s46 = sphi 0, %s32
      %s52 = sphi 0, %s54
      %s55 = sphi 0, %s52
      %s56 = sphi 0, %s55
      %s72 = sphi 0, %s56
      %s80 = sphi 0, %s82
      %s83 = sphi 0, %s80
      %s84 = sphi 0, %s83
      %s100 = sphi 0, %s84
    $region4: #{spatial_transformer_forward.9} parent=1 // loop_header_branch
      %12 = sbr.rel (%p10) target = $region8
    $region5: #{spatial_transformer_forward.9} parent=1 // loop_body
      %s14 = ssub.s32 %s9, 1
      %s15 = ssub.s32 %s9, 2
      %s22 = sadd.s32 1, %s17
      %p23 = scmp.ge.s32.totalorder %s22, 1
      %s24 = scalar_select %p23, 0, %s22
      %s25 = sadd.s32 1, %s16
      %s26 = scalar_select %p23, %s25, %s16
      %p27 = scmp.ge.s32.totalorder %s26, 2
      %s28 = scalar_select %p27, 0, %s26
      %s30 = sadd.s32 %s29, 1
      %p33 = scmp.eq.s32.totalorder %s9, 1
      %p34 = scmp.ne.s32.totalorder %s29, %s31
      %p35 = scmp.eq.s32.totalorder %s9, 0
      %p36 = por %p34, %p35
      %p37 = scmp.ne.s32.totalorder %s29, %s31
      %p38 = scmp.eq.s32.totalorder %s14, 1
      %p39 = por %p37, %p38
      %p40 = scmp.ne.s32.totalorder %s31, %s32
      %p41 = scmp.eq.s32.totalorder %s14, 0
      %p42 = por %p40, %p41
      %p43 = scmp.ne.s32.totalorder %s31, %s32
      %p44 = scmp.eq.s32.totalorder %s15, 1
      %p45 = por %p43, %p44
      %p47 = scmp.ne.s32.totalorder %s32, %s46
      %p48 = scmp.eq.s32.totalorder %s15, 0
      %p49 = por %p47, %p48
      %s50 = ssub.s32 %s16, %s28
      %p51 = scmp.eq.s32.totalorder %s50, 0
      %s53 = sadd.s32 %s52, 1
      %s54 = scalar_select %p51, %s52, %s53
      %p57 = pneg %p51
      %p58 = scmp.eq.s32.totalorder %s9, 1
      %p59 = por %p57, %p58
      %p60 = scmp.ne.s32.totalorder %s52, %s55
      %p61 = scmp.eq.s32.totalorder %s9, 0
      %p62 = por %p60, %p61
      %p63 = scmp.ne.s32.totalorder %s52, %s55
      %p64 = scmp.eq.s32.totalorder %s14, 1
      %p65 = por %p63, %p64
      %p66 = scmp.ne.s32.totalorder %s55, %s56
      %p67 = scmp.eq.s32.totalorder %s14, 0
      %p68 = por %p66, %p67
      %p69 = scmp.ne.s32.totalorder %s55, %s56
      %p70 = scmp.eq.s32.totalorder %s15, 1
      %p71 = por %p69, %p70
      %p73 = scmp.ne.s32.totalorder %s56, %s72
      %p74 = scmp.eq.s32.totalorder %s15, 0
      %p75 = por %p73, %p74
      %s76 = ssub.s32 %s16, %s28
      %s77 = ssub.s32 %s17, %s24
      %s78 = sor.u32 %s76, %s77
      %p79 = scmp.eq.s32.totalorder %s78, 0
      %s81 = sadd.s32 %s80, 1
      %s82 = scalar_select %p79, %s80, %s81
      %p85 = pneg %p79
      %p86 = scmp.eq.s32.totalorder %s9, 1
      %p87 = por %p85, %p86
      %p88 = scmp.ne.s32.totalorder %s80, %s83
      %p89 = scmp.eq.s32.totalorder %s9, 0
      %p90 = por %p88, %p89
      %p91 = scmp.ne.s32.totalorder %s80, %s83
      %p92 = scmp.eq.s32.totalorder %s14, 1
      %p93 = por %p91, %p92
      %p94 = scmp.ne.s32.totalorder %s83, %s84
      %p95 = scmp.eq.s32.totalorder %s14, 0
      %p96 = por %p94, %p95
      %p97 = scmp.ne.s32.totalorder %s83, %s84
      %p98 = scmp.eq.s32.totalorder %s15, 1
      %p99 = por %p97, %p98
      %p101 = scmp.ne.s32.totalorder %s84, %s100
      %p102 = scmp.eq.s32.totalorder %s15, 0
      %p103 = por %p101, %p102
      %p104 = scmp.le.s32.totalorder 1, %s9
      %p105 = scmp.lt.s32.totalorder %s9, 3
      %p106 = pnand %p104, %p105
      %p107 = pneg %p106
      // Predicated region
      $region9: #{spatial_transformer_forward.9} parent=5 // pred_check
        _
      $region10: #{spatial_transformer_forward.9} parent=5 // pred_check_branch
        %109 = sbr.rel (%p106) target = $region12
      $region11: #{spatial_transformer_forward.9} parent=5 // pred_region
        %s110 = ssub.s32 %s9, 1
        // Predicated region
        $region13: #{spatial_transformer_forward.9} parent=11 // pred_check
          %p111 = pneg %p42
        $region14: #{spatial_transformer_forward.9} parent=11 // pred_check_branch
          %113 = sbr.rel (%p111) target = $region16
        $region15: #{spatial_transformer_forward.9} parent=11 // pred_region
          %115 = vsyncadd [#allocation3], 0
          %s117 = sshll.u32 %s0, 4
          %s118 = int_to_ptr.vmem [resolvable:$true] %s117
          %120 = dma.vmem_to_smem %s118, 32, [#allocation2], [#allocation3]
        $region16: #{spatial_transformer_forward.9} parent=11 // pred_fallthru
          _
      $region12: #{spatial_transformer_forward.9} parent=5 // pred_fallthru
        _
      %p121 = scmp.lt.s32.totalorder %s9, 2
      // Predicated region
      $region17: #{spatial_transformer_forward.9} parent=5 // pred_check
        %p122 = pneg %p121
      $region18: #{spatial_transformer_forward.9} parent=5 // pred_check_branch
        %124 = sbr.rel (%p122) target = $region20
      $region19: #{spatial_transformer_forward.9} parent=5 // pred_region
        // Predicated region
        $region21: #{spatial_transformer_forward.9} parent=19 // pred_check
          %p125 = pneg %p62
        $region22: #{spatial_transformer_forward.9} parent=19 // pred_check_branch
          %127 = sbr.rel (%p125) target = $region24
        $region23: #{spatial_transformer_forward.9} parent=19 // pred_region
          %p128 = scmp.lt.s32.totalorder %s16, 1
          %s129 = scalar_select %p128, %s16, 1
          %s130 = smul.addr %s129, 6
          %s131 = smul.addr %s130, 4
          %s132 = scalar_lea.vmem %s1, %s131
        $region24: #{spatial_transformer_forward.9} parent=19 // pred_fallthru
          _
      $region20: #{spatial_transformer_forward.9} parent=5 // pred_fallthru
        _
      %p133 = scmp.le.s32.totalorder 1, %s9
      %p134 = scmp.lt.s32.totalorder %s9, 3
      %p135 = pnand %p133, %p134
      %p136 = pneg %p135
      // Predicated region
      $region25: #{spatial_transformer_forward.9} parent=5 // pred_check
        _
      $region26: #{spatial_transformer_forward.9} parent=5 // pred_check_branch
        %138 = sbr.rel (%p135) target = $region28
      $region27: #{spatial_transformer_forward.9} parent=5 // pred_region
        %s139 = ssub.s32 %s9, 1
        // Predicated region
        $region29: #{spatial_transformer_forward.9} parent=27 // pred_check
          %p140 = pneg %p42
        $region30: #{spatial_transformer_forward.9} parent=27 // pred_check_branch
          %142 = sbr.rel (%p140) target = $region32
        $region31: #{spatial_transformer_forward.9} parent=27 // pred_region
          %144 = dma.done [#allocation3], 32
        $region32: #{spatial_transformer_forward.9} parent=27 // pred_fallthru
          _
        %145 = sfence
        %p146 = pneg %p42
        %p147 = pneg %p39
        %p148 = scmp.lt.s32.totalorder %s18, 1
        %s149 = scalar_select %p148, %s18, 1
        %s150 = smul.addr %s149, 6
        %s151 = smul.addr %s150, 4
        %s152 = scalar_lea.vmem %s1, %s151
        %p153 = pneg %p68
        %p154 = pneg %p65
        %p155 = pneg %p96
        %p156 = pneg %p93
        %s157 = smul.u32 2, %s19
        %p158 = scmp.lt.s32.totalorder %s18, 1
        %s159 = scalar_select %p158, %s18, 1
        %p160 = scmp.lt.s32.totalorder %s157, 1
        %s161 = scalar_select %p160, %s157, 1
        %s162 = smul.addr %s159, 2
        %s163 = sadd.s32 %s161, %s162
        %s164 = smul.addr %s163, 4
        %s165 = scalar_lea.vmem %s2, %s164
        %p166 = scmp.lt.s32.totalorder %s18, 1
        %s167 = scalar_select %p166, %s18, 1
        %s168 = smul.addr %s167, 6
        %s169 = smul.addr %s168, 4
        %s170 = scalar_lea.vmem %s1, %s169
        %s171 = smul.u32 2, %s19
        %p172 = scmp.lt.s32.totalorder %s18, 1
        %s173 = scalar_select %p172, %s18, 1
        %p174 = scmp.lt.s32.totalorder %s171, 1
        %s175 = scalar_select %p174, %s171, 1
        %s176 = smul.addr %s173, 2
        %s177 = sadd.s32 %s175, %s176
        %s178 = smul.addr %s177, 4
        %s179 = scalar_lea.vmem %s2, %s178
        %s180 = smul.u32 2, %s19
        %v182 = vlaneseq
        %v183 = vand.u32 %v182, 127
        %v184 = vadd.s32 %v183, 128
        %s185 = smul.u32 %s19, 256
        %v186 = vstv %s185
        %v187 = vadd.s32 %v183, %v186
        %v188 = vadd.s32 %v184, %v186
        %v189 = vcvt.s32.f32 %v187
        %v190 = vcvt.s32.f32 %v188
        %v191 = vrcp.pop 16.0
        %v192 = vmul.f32 16.0, %v191
        %v193 = vsub.f32 1.0, %v192
        %v194 = vmul.f32 %v191, %v193
        %v195 = vadd.f32 %v191, %v194
        %vm196 = vweird.f32 %v191
        %v197 = vsel %vm196, %v191, %v195
        %v198 = vmul.f32 %v189, %v197
        %v199 = vmul.f32 %v190, %v197
        %v200 = vfloor.f32 %v198
        %v201 = vfloor.f32 %v199
        %v202 = vmul.f32 %v200, 16.0
        %v203 = vmul.f32 %v201, 16.0
        %v204 = vsub.f32 %v189, %v202
        %v205 = vsub.f32 %v190, %v203
        %v206 = vmul.f32 %v204, 2.0
        %v207 = vmul.f32 %v205, 2.0
        %v208 = vadd.f32 %v206, 1.0
        %v209 = vadd.f32 %v207, 1.0
        %v210 = vmul.f32 %v208, %v197
        %v211 = vmul.f32 %v209, %v197
        %v212 = vsub.f32 %v210, 1.0
        %v213 = vsub.f32 %v211, 1.0
        %v214 = vmul.f32 %v200, 2.0
        %v215 = vmul.f32 %v201, 2.0
        %v216 = vadd.f32 %v214, 1.0
        %v217 = vadd.f32 %v215, 1.0
        %v218 = vmul.f32 %v216, %v197
        %v219 = vmul.f32 %v217, %v197
        %v220 = vsub.f32 %v218, 1.0
        %v221 = vsub.f32 %v219, 1.0
        %s222 = smul.u32 %s18, 128
        %s223 = sld [smem:[#allocation2 + %s222]]
        %s224 = sadd.s32 %s222, 1
        %s225 = sld [smem:[#allocation2 + %s224]]
        %s226 = sadd.s32 %s222, 2
        %s227 = sld [smem:[#allocation2 + %s226]]
        %s228 = sadd.s32 %s222, 3
        %s229 = sld [smem:[#allocation2 + %s228]]
        %s230 = sadd.s32 %s222, 4
        %s231 = sld [smem:[#allocation2 + %s230]]
        %s232 = sadd.s32 %s222, 5
        %s233 = sld [smem:[#allocation2 + %s232]]
        %v234 = vstv %s223
        %v235 = vmul.f32 %v234, %v212
        %v236 = vmul.f32 %v234, %v213
        %v237 = vstv %s225
        %v238 = vmul.f32 %v237, %v220
        %v239 = vmul.f32 %v237, %v221
        %v240 = vadd.f32 %v235, %v238
        %v241 = vadd.f32 %v236, %v239
        %v242 = vstv %s227
        %v243 = vadd.f32 %v240, %v242
        %v244 = vadd.f32 %v241, %v242
        %v245 = vstv %s229
        %v246 = vmul.f32 %v245, %v212
        %v247 = vmul.f32 %v245, %v213
        %v248 = vstv %s231
        %v249 = vmul.f32 %v248, %v220
        %v250 = vmul.f32 %v248, %v221
        %v251 = vadd.f32 %v246, %v249
        %v252 = vadd.f32 %v247, %v250
        %v253 = vstv %s233
        %v254 = vadd.f32 %v251, %v253
        %v255 = vadd.f32 %v252, %v253
        %v256 = vadd.f32 %v243, 1.0
        %v257 = vadd.f32 %v244, 1.0
        %v258 = vmul.f32 %v256, 16.0
        %v259 = vmul.f32 %v257, 16.0
        %v260 = vsub.f32 %v258, 1.0
        %v261 = vsub.f32 %v259, 1.0
        %v262 = vmul.f32 %v260, 0.5
        %v263 = vmul.f32 %v261, 0.5
        %v264 = vadd.f32 %v254, 1.0
        %v265 = vadd.f32 %v255, 1.0
        %v266 = vmul.f32 %v264, 16.0
        %v267 = vmul.f32 %v265, 16.0
        %v268 = vsub.f32 %v266, 1.0
        %v269 = vsub.f32 %v267, 1.0
        %v270 = vmul.f32 %v268, 0.5
        %v271 = vmul.f32 %v269, 0.5
        %v272 = vlaneseq
        %v273 = vshrl.u32 %v272, 7
        %v274 = vadd.s32 %v273, 8
        %v275 = vcvt.s32.f32 %v273
        %v276 = vcvt.s32.f32 %v274
        %v277 = vsub.f32 %v262, %v275
        %v278 = vsub.f32 %v263, %v275
        %v279 = vsub.f32 %v262, %v276
        %v280 = vsub.f32 %v263, %v276
        %v281 = vand.u32 2147483647, %v277
        %v282 = vand.u32 2147483647, %v278
        %v283 = vand.u32 2147483647, %v279
        %v284 = vand.u32 2147483647, %v280
        %v285 = vsub.f32 1.0, %v281
        %v286 = vsub.f32 1.0, %v282
        %v287 = vsub.f32 1.0, %v283
        %v288 = vsub.f32 1.0, %v284
        %v289 = vmax.f32 %v285, 0.0
        %v290 = vmax.f32 %v286, 0.0
        %v291 = vmax.f32 %v287, 0.0
        %v292 = vmax.f32 %v288, 0.0
        %v293 = vpack.c.bf16 %v291, %v289
        %v294 = vpack.c.bf16 %v292, %v290
        %v295 = vadd.s32 %v273, 16
        %v296 = vadd.s32 %v273, 24
        %v297 = vadd.s32 %v273, 32
        %v298 = vadd.s32 %v273, 40
        %v299 = vcvt.s32.f32 %v295
        %v300 = vcvt.s32.f32 %v296
        %v301 = vcvt.s32.f32 %v297
        %v302 = vcvt.s32.f32 %v298
        %v303 = vmul.f32 %v275, %v197
        %v304 = vmul.f32 %v276, %v197
        %v305 = vmul.f32 %v299, %v197
        %v306 = vmul.f32 %v300, %v197
        %v307 = vmul.f32 %v301, %v197
        %v308 = vmul.f32 %v302, %v197
        %v309 = vfloor.f32 %v303
        %v310 = vfloor.f32 %v304
        %v311 = vfloor.f32 %v305
        %v312 = vfloor.f32 %v306
        %v313 = vfloor.f32 %v307
        %v314 = vfloor.f32 %v308
        %v315 = vmul.f32 %v309, 16.0
        %v316 = vmul.f32 %v310, 16.0
        %v317 = vmul.f32 %v311, 16.0
        %v318 = vmul.f32 %v312, 16.0
        %v319 = vmul.f32 %v313, 16.0
        %v320 = vmul.f32 %v314, 16.0
        %v321 = vsub.f32 %v275, %v315
        %v322 = vsub.f32 %v276, %v316
        %v323 = vsub.f32 %v299, %v317
        %v324 = vsub.f32 %v300, %v318
        %v325 = vsub.f32 %v301, %v319
        %v326 = vsub.f32 %v302, %v320
        %v327 = vsub.f32 %v270, %v321
        %v328 = vsub.f32 %v271, %v321
        %v329 = vsub.f32 %v270, %v322
        %v330 = vsub.f32 %v271, %v322
        %v331 = vsub.f32 %v270, %v323
        %v332 = vsub.f32 %v271, %v323
        %v333 = vsub.f32 %v270, %v324
        %v334 = vsub.f32 %v271, %v324
        %v335 = vsub.f32 %v270, %v325
        %v336 = vsub.f32 %v271, %v325
        %v337 = vsub.f32 %v270, %v326
        %v338 = vsub.f32 %v271, %v326
        %v339 = vand.u32 2147483647, %v327
        %v340 = vand.u32 2147483647, %v328
        %v341 = vand.u32 2147483647, %v329
        %v342 = vand.u32 2147483647, %v330
        %v343 = vand.u32 2147483647, %v331
        %v344 = vand.u32 2147483647, %v332
        %v345 = vand.u32 2147483647, %v333
        %v346 = vand.u32 2147483647, %v334
        %v347 = vand.u32 2147483647, %v335
        %v348 = vand.u32 2147483647, %v336
        %v349 = vand.u32 2147483647, %v337
        %v350 = vand.u32 2147483647, %v338
        %v351 = vsub.f32 1.0, %v339
        %v352 = vsub.f32 1.0, %v340
        %v353 = vsub.f32 1.0, %v341
        %v354 = vsub.f32 1.0, %v342
        %v355 = vsub.f32 1.0, %v343
        %v356 = vsub.f32 1.0, %v344
        %v357 = vsub.f32 1.0, %v345
        %v358 = vsub.f32 1.0, %v346
        %v359 = vsub.f32 1.0, %v347
        %v360 = vsub.f32 1.0, %v348
        %v361 = vsub.f32 1.0, %v349
        %v362 = vsub.f32 1.0, %v350
        %v363 = vmax.f32 %v351, 0.0
        %v364 = vmax.f32 %v352, 0.0
        %v365 = vmax.f32 %v353, 0.0
        %v366 = vmax.f32 %v354, 0.0
        %v367 = vmax.f32 %v355, 0.0
        %v368 = vmax.f32 %v356, 0.0
        %v369 = vmax.f32 %v357, 0.0
        %v370 = vmax.f32 %v358, 0.0
        %v371 = vmax.f32 %v359, 0.0
        %v372 = vmax.f32 %v360, 0.0
        %v373 = vmax.f32 %v361, 0.0
        %v374 = vmax.f32 %v362, 0.0
        %v375 = vld [vmem:[%s170] sm:$0xf]
        %v376 = vld [vmem:[%s170 + $0x4] sm:$0xf]
        %v377 = vld [vmem:[%s170 + $0x8] sm:$0xf]
        %v378 = vld [vmem:[%s170 + $0xc] sm:$0xf]
        %v379 = vld [vmem:[%s170 + $0x10] sm:$0xf]
        %v380 = vld [vmem:[%s170 + $0x14] sm:$0xf]
        %v387 = vunpack.c.l.b16 %v375
        %v388 = vunpack.c.l.b16 %v376
        %v389 = vunpack.c.l.b16 %v377
        %v390 = vunpack.c.l.b16 %v378
        %v391 = vunpack.c.l.b16 %v379
        %v392 = vunpack.c.l.b16 %v380
        %v393 = vpack.c.b16 %v388, %v387
        %v394 = vpack.c.b16 %v390, %v389
        %v395 = vpack.c.b16 %v392, %v391
        %vm396 = vcmask 130048
        %v398 = vsel %vm396, %v393, 0
        %v401 = vsel %vm396, %v394, 0
        %v404 = vsel %vm396, %v395, 0
        %406 = vmatpush.bf16.msra.mxu0 0
        %407 = vmatpush.bf16.msra.mxu0 0
        %408 = vmatpush.bf16.msra.mxu0 0
        %409 = vmatpush.bf16.msra.mxu0 0
        %410 = vmatpush.bf16.msra.mxu0 0
        %411 = vmatpush.bf16.msra.mxu0 0
        %412 = vmatpush.bf16.msra.mxu0 0
        %413 = vmatpush.bf16.msra.mxu0 %v293
        %414 = vmatmul.bf16.gmra.mxu0 %v398
        %v415 = vpop.f32.mrf.mxu0
        %v416 = vadd.f32 0.0, %v415
        %v417 = vpop.f32.mrf.mxu0
        %v418 = vadd.f32 0.0, %v417
        %419 = vmatmul.bf16.gmra.mxu0 %v401
        %v420 = vpop.f32.mrf.mxu0
        %v421 = vadd.f32 0.0, %v420
        %v422 = vpop.f32.mrf.mxu0
        %v423 = vadd.f32 0.0, %v422
        %424 = vmatmul.bf16.gmra.mxu0 %v404
        %v425 = vpop.f32.mrf.mxu0
        %v426 = vadd.f32 0.0, %v425
        %v427 = vpop.f32.mrf.mxu0
        %v428 = vadd.f32 0.0, %v427
        %429 = vdwg.mxu0
        %430 = vmatpush.bf16.msra.mxu0 0
        %431 = vmatpush.bf16.msra.mxu0 0
        %432 = vmatpush.bf16.msra.mxu0 0
        %433 = vmatpush.bf16.msra.mxu0 0
        %434 = vmatpush.bf16.msra.mxu0 0
        %435 = vmatpush.bf16.msra.mxu0 0
        %436 = vmatpush.bf16.msra.mxu0 0
        %437 = vmatpush.bf16.msra.mxu0 %v294
        %438 = vmatmul.bf16.gmra.mxu0 %v398
        %v439 = vpop.f32.mrf.mxu0
        %v440 = vadd.f32 0.0, %v439
        %v441 = vpop.f32.mrf.mxu0
        %v442 = vadd.f32 0.0, %v441
        %443 = vmatmul.bf16.gmra.mxu0 %v401
        %v444 = vpop.f32.mrf.mxu0
        %v445 = vadd.f32 0.0, %v444
        %v446 = vpop.f32.mrf.mxu0
        %v447 = vadd.f32 0.0, %v446
        %448 = vmatmul.bf16.gmra.mxu0 %v404
        %v449 = vpop.f32.mrf.mxu0
        %v450 = vadd.f32 0.0, %v449
        %v451 = vpop.f32.mrf.mxu0
        %v452 = vadd.f32 0.0, %v451
        %453 = vdwg.mxu0
        %v454 = vmul.f32 %v416, %v363
        %v455 = vmul.f32 %v440, %v364
        %v456 = vmul.f32 %v418, %v365
        %v457 = vmul.f32 %v442, %v366
        %v458 = vmul.f32 %v421, %v367
        %v459 = vmul.f32 %v445, %v368
        %v460 = vmul.f32 %v423, %v369
        %v461 = vmul.f32 %v447, %v370
        %v462 = vmul.f32 %v426, %v371
        %v463 = vmul.f32 %v450, %v372
        %v464 = vmul.f32 %v428, %v373
        %v465 = vmul.f32 %v452, %v374
        %v466 = vmul.u32 %v273, 16
        %vm467 = vcmp.ge.s32.totalorder %v183, %v466
        %v468 = vadd.s32 %v273, 1
        %v469 = vmul.u32 %v468, 16
        %vm470 = vcmp.lt.s32.totalorder %v183, %v469
        %vm471 = vmand %vm467, %vm470
        %v472 = vsel %vm471, 1.0, 0.0
        %vm473 = vcmask 392192
        %v475 = vsel %vm473, %v472, 0
        %477 = vmatpush.msra.mxu0 0.0
        %478 = vmatpush.msra.mxu0 0.0
        %479 = vmatpush.msra.mxu0 0.0
        %480 = vmatpush.msra.mxu0 0.0
        %481 = vmatpush.msra.mxu0 0.0
        %482 = vmatpush.msra.mxu0 0.0
        %483 = vmatpush.msra.mxu0 0.0
        %484 = vmatpush.msra.mxu0 0.0
        %485 = vmatpush.msra.mxu0 0.0
        %486 = vmatpush.msra.mxu0 0.0
        %487 = vmatpush.msra.mxu0 %v464
        %488 = vmatpush.msra.mxu0 %v462
        %489 = vmatpush.msra.mxu0 %v460
        %490 = vmatpush.msra.mxu0 %v458
        %491 = vmatpush.msra.mxu0 %v456
        %492 = vmatpush.msra.mxu0 %v454
        %493 = vmatmul.f32.gmra.mxu0 %v475
        %v494 = vpop.f32.mrf.mxu0
        %v495 = vadd.f32 0.0, %v494
        %496 = vdwg.mxu0
        %497 = vmatpush.msra.mxu0 0.0
        %498 = vmatpush.msra.mxu0 0.0
        %499 = vmatpush.msra.mxu0 0.0
        %500 = vmatpush.msra.mxu0 0.0
        %501 = vmatpush.msra.mxu0 0.0
        %502 = vmatpush.msra.mxu0 0.0
        %503 = vmatpush.msra.mxu0 0.0
        %504 = vmatpush.msra.mxu0 0.0
        %505 = vmatpush.msra.mxu0 0.0
        %506 = vmatpush.msra.mxu0 0.0
        %507 = vmatpush.msra.mxu0 %v465
        %508 = vmatpush.msra.mxu0 %v463
        %509 = vmatpush.msra.mxu0 %v461
        %510 = vmatpush.msra.mxu0 %v459
        %511 = vmatpush.msra.mxu0 %v457
        %512 = vmatpush.msra.mxu0 %v455
        %513 = vmatmul.f32.gmra.mxu0 %v475
        %v514 = vpop.f32.mrf.mxu0
        %v515 = vadd.f32 0.0, %v514
        %516 = vdwg.mxu0
        %v519 = vrot.slane %v515, 4
        %vm520 = vcmask 1043456
        %v521 = vsel %vm520, %v495, %v519
        %523 = vst [vmem:[%s179] sm:$0x77] %v521
        %s524 = smul.u32 2, %s19
        %p525 = scmp.lt.s32.totalorder %s18, 1
        %s526 = scalar_select %p525, %s18, 1
        %p527 = scmp.lt.s32.totalorder %s524, 1
        %s528 = scalar_select %p527, %s524, 1
        %s529 = smul.addr %s526, 2
        %s530 = sadd.s32 %s528, %s529
        %s531 = smul.addr %s530, 4
        %s532 = scalar_lea.vmem %s2, %s531
        // Predicated region
        $region33: #{spatial_transformer_forward.9} parent=27 // pred_check
          %p533 = pneg %p93
        $region34: #{spatial_transformer_forward.9} parent=27 // pred_check_branch
          %535 = sbr.rel (%p533) target = $region36
        $region35: #{spatial_transformer_forward.9} parent=27 // pred_region
          %s536 = smul.u32 2, %s19
        $region36: #{spatial_transformer_forward.9} parent=27 // pred_fallthru
          _
      $region28: #{spatial_transformer_forward.9} parent=5 // pred_fallthru
        _
      %p537 = scmp.le.s32.totalorder 2, %s9
      // Predicated region
      $region37: #{spatial_transformer_forward.9} parent=5 // pred_check
        %p538 = pneg %p537
      $region38: #{spatial_transformer_forward.9} parent=5 // pred_check_branch
        %540 = sbr.rel (%p538) target = $region40
      $region39: #{spatial_transformer_forward.9} parent=5 // pred_region
        %s541 = ssub.s32 %s9, 2
        // Predicated region
        $region41: #{spatial_transformer_forward.9} parent=39 // pred_check
          %p542 = pneg %p99
        $region42: #{spatial_transformer_forward.9} parent=39 // pred_check_branch
          %544 = sbr.rel (%p542) target = $region44
        $region43: #{spatial_transformer_forward.9} parent=39 // pred_region
          %s545 = smul.u32 2, %s21
          %p546 = scmp.lt.s32.totalorder %s20, 1
          %s547 = scalar_select %p546, %s20, 1
          %p548 = scmp.lt.s32.totalorder %s545, 1
          %s549 = scalar_select %p548, %s545, 1
          %s550 = smul.addr %s547, 2
          %s551 = sadd.s32 %s549, %s550
          %s552 = smul.addr %s551, 4
          %s553 = scalar_lea.vmem %s2, %s552
        $region44: #{spatial_transformer_forward.9} parent=39 // pred_fallthru
          _
      $region40: #{spatial_transformer_forward.9} parent=5 // pred_fallthru
        _
    $region6: #{spatial_transformer_forward.9} parent=1 // loop_footer
      %s13 = sadd.s32 1, %s9
    $region7: #{spatial_transformer_forward.9} parent=1 // loop_footer_branch
      %8 = sbr.rel target = $region3
    $region8: #{spatial_transformer_forward.9} parent=1 // loop_exit
      _
    %554 = vsyncpa [#allocation3], 1
    %s555 = scalar_lea.sflag [#allocation3], 1
    %556 = vsyncpa %s555, 1

// kernel: spatial_transformer_forward.7
$region0: #{spatial_transformer_forward.7}
  #allocation0 [shape = 'u32[]', space=smem, size = 0x4, offset = 0x4, fixed_abs, tag = 'smem constant byte address 0x4 - core index']
  #allocation1 [shape = 'u32[72,128]{1,0:T(1,128)}', space=vmem, size = 0x9000, scoped, tag = 'internal scratch']
  %s0 = inlined_call_operand.vmem [shape: bf16[4,576,8], index: 0, kind: input, shape index: {}]
  %s1 = inlined_call_operand.vmem [shape: bf16[128,576], index: 1, kind: input, shape index: {}]
  %s2 = inlined_call_operand.vmem [shape: f32[128,1], index: 2, kind: input, shape index: {}]
  %s3 = inlined_call_operand.vmem [shape: f32[128,1], index: 3, kind: input, shape index: {}]
  %s4 = inlined_call_operand.vmem [shape: f32[128,1], index: 4, kind: input, shape index: {}]
  %s5 = inlined_call_operand.vmem [shape: bf16[128,8], index: 5, kind: output, shape index: {}]
  %s6 = sld [smem:[#allocation0]]
  $region53: #{spatial_transformer_forward.7} parent=0
    _
  %s8 = ssub.s32 1, %s6
  %s9 = scalar_select 0, %s8, %s6
  loop: start=0, step=1, limit=4
  $region2: #{spatial_transformer_forward.7} parent=0 // loop_pre_header
    _
  $region3: #{spatial_transformer_forward.7} parent=0 // loop_header
    %s11 = sphi 0, %s15
    %p12 = scmp.ge.s32.totalorder %s11, 4
    %s19 = sphi 0, %s19
    %s21 = sphi 0, %s19
    %s22 = sphi 0, %s21
    %s36 = sphi 0, %s22
    %s42 = sphi 0, %s44
    %s45 = sphi 0, %s42
    %s46 = sphi 0, %s45
    %s62 = sphi 0, %s46
    %s68 = sphi 0, %s70
    %s71 = sphi 0, %s68
    %s72 = sphi 0, %s71
    %s88 = sphi 0, %s72
    %s94 = sphi 0, %s96
    %s97 = sphi 0, %s94
    %s98 = sphi 0, %s97
    %s114 = sphi 0, %s98
    %s120 = sphi 0, %s122
    %s123 = sphi 0, %s120
    %s124 = sphi 0, %s123
    %s140 = sphi 0, %s124
    %s146 = sphi 0, %s148
    %s149 = sphi 0, %s146
    %s150 = sphi 0, %s149
    %s166 = sphi 0, %s150
  $region4: #{spatial_transformer_forward.7} parent=0 // loop_header_branch
    %14 = sbr.rel (%p12) target = $region8
  $region5: #{spatial_transformer_forward.7} parent=0 // loop_body
    %s16 = ssub.s32 %s11, 1
    %s17 = ssub.s32 %s11, 2
    %s18 = sadd.s32 %s11, 1
    %s20 = sadd.s32 %s19, 1
    %p23 = scmp.eq.s32.totalorder %s11, 1
    %p24 = scmp.ne.s32.totalorder %s19, %s21
    %p25 = scmp.eq.s32.totalorder %s11, 0
    %p26 = por %p24, %p25
    %p27 = scmp.ne.s32.totalorder %s19, %s21
    %p28 = scmp.eq.s32.totalorder %s16, 1
    %p29 = por %p27, %p28
    %p30 = scmp.ne.s32.totalorder %s21, %s22
    %p31 = scmp.eq.s32.totalorder %s16, 0
    %p32 = por %p30, %p31
    %p33 = scmp.ne.s32.totalorder %s21, %s22
    %p34 = scmp.eq.s32.totalorder %s17, 1
    %p35 = por %p33, %p34
    %p37 = scmp.ne.s32.totalorder %s22, %s36
    %p38 = scmp.eq.s32.totalorder %s17, 0
    %p39 = por %p37, %p38
    %s40 = ssub.s32 %s11, %s18
    %p41 = scmp.eq.s32.totalorder %s40, 0
    %s43 = sadd.s32 %s42, 1
    %s44 = scalar_select %p41, %s42, %s43
    %p47 = pneg %p41
    %p48 = scmp.eq.s32.totalorder %s11, 1
    %p49 = por %p47, %p48
    %p50 = scmp.ne.s32.totalorder %s42, %s45
    %p51 = scmp.eq.s32.totalorder %s11, 0
    %p52 = por %p50, %p51
    %p53 = scmp.ne.s32.totalorder %s42, %s45
    %p54 = scmp.eq.s32.totalorder %s16, 1
    %p55 = por %p53, %p54
    %p56 = scmp.ne.s32.totalorder %s45, %s46
    %p57 = scmp.eq.s32.totalorder %s16, 0
    %p58 = por %p56, %p57
    %p59 = scmp.ne.s32.totalorder %s45, %s46
    %p60 = scmp.eq.s32.totalorder %s17, 1
    %p61 = por %p59, %p60
    %p63 = scmp.ne.s32.totalorder %s46, %s62
    %p64 = scmp.eq.s32.totalorder %s17, 0
    %p65 = por %p63, %p64
    %s66 = ssub.s32 %s11, %s18
    %p67 = scmp.eq.s32.totalorder %s66, 0
    %s69 = sadd.s32 %s68, 1
    %s70 = scalar_select %p67, %s68, %s69
    %p73 = pneg %p67
    %p74 = scmp.eq.s32.totalorder %s11, 1
    %p75 = por %p73, %p74
    %p76 = scmp.ne.s32.totalorder %s68, %s71
    %p77 = scmp.eq.s32.totalorder %s11, 0
    %p78 = por %p76, %p77
    %p79 = scmp.ne.s32.totalorder %s68, %s71
    %p80 = scmp.eq.s32.totalorder %s16, 1
    %p81 = por %p79, %p80
    %p82 = scmp.ne.s32.totalorder %s71, %s72
    %p83 = scmp.eq.s32.totalorder %s16, 0
    %p84 = por %p82, %p83
    %p85 = scmp.ne.s32.totalorder %s71, %s72
    %p86 = scmp.eq.s32.totalorder %s17, 1
    %p87 = por %p85, %p86
    %p89 = scmp.ne.s32.totalorder %s72, %s88
    %p90 = scmp.eq.s32.totalorder %s17, 0
    %p91 = por %p89, %p90
    %s92 = ssub.s32 %s11, %s18
    %p93 = scmp.eq.s32.totalorder %s92, 0
    %s95 = sadd.s32 %s94, 1
    %s96 = scalar_select %p93, %s94, %s95
    %p99 = pneg %p93
    %p100 = scmp.eq.s32.totalorder %s11, 1
    %p101 = por %p99, %p100
    %p102 = scmp.ne.s32.totalorder %s94, %s97
    %p103 = scmp.eq.s32.totalorder %s11, 0
    %p104 = por %p102, %p103
    %p105 = scmp.ne.s32.totalorder %s94, %s97
    %p106 = scmp.eq.s32.totalorder %s16, 1
    %p107 = por %p105, %p106
    %p108 = scmp.ne.s32.totalorder %s97, %s98
    %p109 = scmp.eq.s32.totalorder %s16, 0
    %p110 = por %p108, %p109
    %p111 = scmp.ne.s32.totalorder %s97, %s98
    %p112 = scmp.eq.s32.totalorder %s17, 1
    %p113 = por %p111, %p112
    %p115 = scmp.ne.s32.totalorder %s98, %s114
    %p116 = scmp.eq.s32.totalorder %s17, 0
    %p117 = por %p115, %p116
    %s118 = ssub.s32 %s11, %s18
    %p119 = scmp.eq.s32.totalorder %s118, 0
    %s121 = sadd.s32 %s120, 1
    %s122 = scalar_select %p119, %s120, %s121
    %p125 = pneg %p119
    %p126 = scmp.eq.s32.totalorder %s11, 1
    %p127 = por %p125, %p126
    %p128 = scmp.ne.s32.totalorder %s120, %s123
    %p129 = scmp.eq.s32.totalorder %s11, 0
    %p130 = por %p128, %p129
    %p131 = scmp.ne.s32.totalorder %s120, %s123
    %p132 = scmp.eq.s32.totalorder %s16, 1
    %p133 = por %p131, %p132
    %p134 = scmp.ne.s32.totalorder %s123, %s124
    %p135 = scmp.eq.s32.totalorder %s16, 0
    %p136 = por %p134, %p135
    %p137 = scmp.ne.s32.totalorder %s123, %s124
    %p138 = scmp.eq.s32.totalorder %s17, 1
    %p139 = por %p137, %p138
    %p141 = scmp.ne.s32.totalorder %s124, %s140
    %p142 = scmp.eq.s32.totalorder %s17, 0
    %p143 = por %p141, %p142
    %s144 = ssub.s32 %s11, %s18
    %p145 = scmp.eq.s32.totalorder %s144, 0
    %s147 = sadd.s32 %s146, 1
    %s148 = scalar_select %p145, %s146, %s147
    %p151 = pneg %p145
    %p152 = scmp.eq.s32.totalorder %s11, 1
    %p153 = por %p151, %p152
    %p154 = scmp.ne.s32.totalorder %s146, %s149
    %p155 = scmp.eq.s32.totalorder %s11, 0
    %p156 = por %p154, %p155
    %p157 = scmp.ne.s32.totalorder %s146, %s149
    %p158 = scmp.eq.s32.totalorder %s16, 1
    %p159 = por %p157, %p158
    %p160 = scmp.ne.s32.totalorder %s149, %s150
    %p161 = scmp.eq.s32.totalorder %s16, 0
    %p162 = por %p160, %p161
    %p163 = scmp.ne.s32.totalorder %s149, %s150
    %p164 = scmp.eq.s32.totalorder %s17, 1
    %p165 = por %p163, %p164
    %p167 = scmp.ne.s32.totalorder %s150, %s166
    %p168 = scmp.eq.s32.totalorder %s17, 0
    %p169 = por %p167, %p168
    %p170 = scmp.le.s32.totalorder 1, %s11
    %p171 = scmp.lt.s32.totalorder %s11, 3
    %p172 = pnand %p170, %p171
    %p173 = pneg %p172
    // Predicated region
    $region9: #{spatial_transformer_forward.7} parent=5 // pred_check
      _
    $region10: #{spatial_transformer_forward.7} parent=5 // pred_check_branch
      %175 = sbr.rel (%p172) target = $region12
    $region11: #{spatial_transformer_forward.7} parent=5 // pred_region
      %s176 = ssub.s32 %s11, 1
      // Predicated region
      $region13: #{spatial_transformer_forward.7} parent=11 // pred_check
        %p177 = pneg %p32
      $region14: #{spatial_transformer_forward.7} parent=11 // pred_check_branch
        %179 = sbr.rel (%p177) target = $region16
      $region15: #{spatial_transformer_forward.7} parent=11 // pred_region
        _
      $region16: #{spatial_transformer_forward.7} parent=11 // pred_fallthru
        _
    $region12: #{spatial_transformer_forward.7} parent=5 // pred_fallthru
      _
    %p180 = scmp.lt.s32.totalorder %s11, 2
    // Predicated region
    $region17: #{spatial_transformer_forward.7} parent=5 // pred_check
      %p181 = pneg %p180
    $region18: #{spatial_transformer_forward.7} parent=5 // pred_check_branch
      %183 = sbr.rel (%p181) target = $region20
    $region19: #{spatial_transformer_forward.7} parent=5 // pred_region
      // Predicated region
      $region21: #{spatial_transformer_forward.7} parent=19 // pred_check
        %p184 = pneg %p52
      $region22: #{spatial_transformer_forward.7} parent=19 // pred_check_branch
        %186 = sbr.rel (%p184) target = $region24
      $region23: #{spatial_transformer_forward.7} parent=19 // pred_region
        %s187 = smul.u32 8, %s11
        %p188 = scmp.lt.s32.totalorder %s187, 15
        %s189 = scalar_select %p188, %s187, 15
        %s190 = smul.addr %s189, 5
        %s191 = smul.addr %s190, 4
        %s192 = scalar_lea.vmem %s1, %s191
        %s193 = smul.u32 8, %s11
      $region24: #{spatial_transformer_forward.7} parent=19 // pred_fallthru
        _
      // Predicated region
      $region25: #{spatial_transformer_forward.7} parent=19 // pred_check
        %p194 = pneg %p78
      $region26: #{spatial_transformer_forward.7} parent=19 // pred_check_branch
        %196 = sbr.rel (%p194) target = $region28
      $region27: #{spatial_transformer_forward.7} parent=19 // pred_region
        %s197 = smul.u32 8, %s11
        %p198 = scmp.lt.s32.totalorder %s197, 15
        %s199 = scalar_select %p198, %s197, 15
        %s200 = smul.addr %s199, 8
        %s201 = scalar_lea.vmem %s2, %s200
        %s202 = smul.u32 8, %s11
      $region28: #{spatial_transformer_forward.7} parent=19 // pred_fallthru
        _
      // Predicated region
      $region29: #{spatial_transformer_forward.7} parent=19 // pred_check
        %p203 = pneg %p104
      $region30: #{spatial_transformer_forward.7} parent=19 // pred_check_branch
        %205 = sbr.rel (%p203) target = $region32
      $region31: #{spatial_transformer_forward.7} parent=19 // pred_region
        %s206 = smul.u32 8, %s11
        %p207 = scmp.lt.s32.totalorder %s206, 15
        %s208 = scalar_select %p207, %s206, 15
        %s209 = smul.addr %s208, 8
        %s210 = scalar_lea.vmem %s3, %s209
        %s211 = smul.u32 8, %s11
      $region32: #{spatial_transformer_forward.7} parent=19 // pred_fallthru
        _
      // Predicated region
      $region33: #{spatial_transformer_forward.7} parent=19 // pred_check
        %p212 = pneg %p130
      $region34: #{spatial_transformer_forward.7} parent=19 // pred_check_branch
        %214 = sbr.rel (%p212) target = $region36
      $region35: #{spatial_transformer_forward.7} parent=19 // pred_region
        %s215 = smul.u32 8, %s11
        %p216 = scmp.lt.s32.totalorder %s215, 15
        %s217 = scalar_select %p216, %s215, 15
        %s218 = smul.addr %s217, 8
        %s219 = scalar_lea.vmem %s4, %s218
        %s220 = smul.u32 8, %s11
      $region36: #{spatial_transformer_forward.7} parent=19 // pred_fallthru
        _
    $region20: #{spatial_transformer_forward.7} parent=5 // pred_fallthru
      _
    %p221 = scmp.le.s32.totalorder 1, %s11
    %p222 = scmp.lt.s32.totalorder %s11, 3
    %p223 = pnand %p221, %p222
    %p224 = pneg %p223
    // Predicated region
    $region37: #{spatial_transformer_forward.7} parent=5 // pred_check
      _
    $region38: #{spatial_transformer_forward.7} parent=5 // pred_check_branch
      %226 = sbr.rel (%p223) target = $region40
    $region39: #{spatial_transformer_forward.7} parent=5 // pred_region
      %s227 = ssub.s32 %s11, 1
      %p228 = pneg %p32
      %p229 = pneg %p29
      %s230 = smul.u32 8, %s16
      %p231 = scmp.lt.s32.totalorder %s230, 15
      %s232 = scalar_select %p231, %s230, 15
      %s233 = smul.addr %s232, 5
      %s234 = smul.addr %s233, 4
      %s235 = scalar_lea.vmem %s1, %s234
      %p236 = pneg %p58
      %p237 = pneg %p55
      %s238 = smul.u32 8, %s16
      %p239 = scmp.lt.s32.totalorder %s238, 15
      %s240 = scalar_select %p239, %s238, 15
      %s241 = smul.addr %s240, 8
      %s242 = scalar_lea.vmem %s2, %s241
      %p243 = pneg %p84
      %p244 = pneg %p81
      %s245 = smul.u32 8, %s16
      %p246 = scmp.lt.s32.totalorder %s245, 15
      %s247 = scalar_select %p246, %s245, 15
      %s248 = smul.addr %s247, 8
      %s249 = scalar_lea.vmem %s3, %s248
      %p250 = pneg %p110
      %p251 = pneg %p107
      %s252 = smul.u32 8, %s16
      %p253 = scmp.lt.s32.totalorder %s252, 15
      %s254 = scalar_select %p253, %s252, 15
      %s255 = smul.addr %s254, 8
      %s256 = scalar_lea.vmem %s4, %s255
      %p257 = pneg %p136
      %p258 = pneg %p133
      %p259 = pneg %p162
      %p260 = pneg %p159
      %s261 = smul.u32 8, %s16
      %p262 = scmp.lt.s32.totalorder %s261, 15
      %s263 = scalar_select %p262, %s261, 15
      %s264 = smul.addr %s263, 4
      %s265 = scalar_lea.vmem %s5, %s264
      %s266 = smul.u32 8, %s16
      %p267 = scmp.lt.s32.totalorder %s266, 15
      %s268 = scalar_select %p267, %s266, 15
      %s269 = smul.addr %s268, 5
      %s270 = smul.addr %s269, 4
      %s271 = scalar_lea.vmem %s1, %s270
      %s272 = smul.u32 8, %s16
      %s273 = smul.u32 8, %s16
      %p274 = scmp.lt.s32.totalorder %s273, 15
      %s275 = scalar_select %p274, %s273, 15
      %s276 = smul.addr %s275, 8
      %s277 = scalar_lea.vmem %s2, %s276
      %s278 = smul.u32 8, %s16
      %s279 = smul.u32 8, %s16
      %p280 = scmp.lt.s32.totalorder %s279, 15
      %s281 = scalar_select %p280, %s279, 15
      %s282 = smul.addr %s281, 8
      %s283 = scalar_lea.vmem %s3, %s282
      %s284 = smul.u32 8, %s16
      %s285 = smul.u32 8, %s16
      %p286 = scmp.lt.s32.totalorder %s285, 15
      %s287 = scalar_select %p286, %s285, 15
      %s288 = smul.addr %s287, 8
      %s289 = scalar_lea.vmem %s4, %s288
      %s290 = smul.u32 8, %s16
      %s291 = smul.u32 8, %s16
      %p292 = scmp.lt.s32.totalorder %s291, 15
      %s293 = scalar_select %p292, %s291, 15
      %s294 = smul.addr %s293, 4
      %s295 = scalar_lea.vmem %s5, %s294
      %s296 = smul.u32 8, %s16
      %v298 = vld [vmem:[%s271] sm:$0xff]
      %v299 = vld [vmem:[%s271 + $0x8] sm:$0xff]
      %v300 = vld [vmem:[%s271 + $0x10] sm:$0xf]
      %v301 = vld [vmem:[%s271 + $0x14] sm:$0xff]
      %v302 = vld [vmem:[%s271 + $0x1c] sm:$0xff]
      %v303 = vld [vmem:[%s271 + $0x24] sm:$0xf]
      %v304 = vld [vmem:[%s271 + $0x28] sm:$0xff]
      %v305 = vld [vmem:[%s271 + $0x30] sm:$0xff]
      %v306 = vld [vmem:[%s271 + $0x38] sm:$0xf]
      %v307 = vld [vmem:[%s271 + $0x3c] sm:$0xff]
      %v308 = vld [vmem:[%s271 + $0x44] sm:$0xff]
      %v309 = vld [vmem:[%s271 + $0x4c] sm:$0xf]
      %v310 = vld [vmem:[%s271 + $0x50] sm:$0xff]
      %v311 = vld [vmem:[%s271 + $0x58] sm:$0xff]
      %v312 = vld [vmem:[%s271 + $0x60] sm:$0xf]
      %v313 = vld [vmem:[%s271 + $0x64] sm:$0xff]
      %v314 = vld [vmem:[%s271 + $0x6c] sm:$0xff]
      %v315 = vld [vmem:[%s271 + $0x74] sm:$0xf]
      %v316 = vld [vmem:[%s271 + $0x78] sm:$0xff]
      %v317 = vld [vmem:[%s271 + $0x80] sm:$0xff]
      %v318 = vld [vmem:[%s271 + $0x88] sm:$0xf]
      %v319 = vld [vmem:[%s271 + $0x8c] sm:$0xff]
      %v320 = vld [vmem:[%s271 + $0x94] sm:$0xff]
      %v321 = vld [vmem:[%s271 + $0x9c] sm:$0xf]
      %v322 = vld [vmem:[%s0] sm:$0xf]
      %v323 = vld [vmem:[%s0 + $0x4] sm:$0xf]
      %v324 = vld [vmem:[%s0 + $0x8] sm:$0xf]
      %v325 = vld [vmem:[%s0 + $0xc] sm:$0xf]
      %v326 = vld [vmem:[%s0 + $0x10] sm:$0xf]
      %v327 = vld [vmem:[%s0 + $0x14] sm:$0xf]
      %v328 = vld [vmem:[%s0 + $0x18] sm:$0xf]
      %v329 = vld [vmem:[%s0 + $0x1c] sm:$0xf]
      %v330 = vld [vmem:[%s0 + $0x20] sm:$0xf]
      %v331 = vld [vmem:[%s0 + $0x24] sm:$0xf]
      %v332 = vld [vmem:[%s0 + $0x28] sm:$0xf]
      %v333 = vld [vmem:[%s0 + $0x2c] sm:$0xf]
      %v334 = vld [vmem:[%s0 + $0x30] sm:$0xf]
      %v335 = vld [vmem:[%s0 + $0x34] sm:$0xf]
      %v336 = vld [vmem:[%s0 + $0x38] sm:$0xf]
      %v337 = vld [vmem:[%s0 + $0x3c] sm:$0xf]
      %v338 = vld [vmem:[%s0 + $0x40] sm:$0xf]
      %v339 = vld [vmem:[%s0 + $0x44] sm:$0xf]
      %v340 = vld [vmem:[%s0 + $0x48] sm:$0xf]
      %v341 = vld [vmem:[%s0 + $0x4c] sm:$0xf]
      %v342 = vld [vmem:[%s0 + $0x50] sm:$0xf]
      %v343 = vld [vmem:[%s0 + $0x54] sm:$0xf]
      %v344 = vld [vmem:[%s0 + $0x58] sm:$0xf]
      %v345 = vld [vmem:[%s0 + $0x5c] sm:$0xf]
      %v346 = vld [vmem:[%s0 + $0x60] sm:$0xf]
      %v347 = vld [vmem:[%s0 + $0x64] sm:$0xf]
      %v348 = vld [vmem:[%s0 + $0x68] sm:$0xf]
      %v349 = vld [vmem:[%s0 + $0x6c] sm:$0xf]
      %v350 = vld [vmem:[%s0 + $0x70] sm:$0xf]
      %v351 = vld [vmem:[%s0 + $0x74] sm:$0xf]
      %v352 = vld [vmem:[%s0 + $0x78] sm:$0xf]
      %v353 = vld [vmem:[%s0 + $0x7c] sm:$0xf]
      %v354 = vld [vmem:[%s0 + $0x80] sm:$0xf]
      %v355 = vld [vmem:[%s0 + $0x84] sm:$0xf]
      %v356 = vld [vmem:[%s0 + $0x88] sm:$0xf]
      %v357 = vld [vmem:[%s0 + $0x8c] sm:$0xf]
      %v358 = vld [vmem:[%s0 + $0x90] sm:$0xf]
      %v359 = vld [vmem:[%s0 + $0x94] sm:$0xf]
      %v360 = vld [vmem:[%s0 + $0x98] sm:$0xf]
      %v361 = vld [vmem:[%s0 + $0x9c] sm:$0xf]
      %v362 = vld [vmem:[%s0 + $0xa0] sm:$0xf]
      %v363 = vld [vmem:[%s0 + $0xa4] sm:$0xf]
      %v364 = vld [vmem:[%s0 + $0xa8] sm:$0xf]
      %v365 = vld [vmem:[%s0 + $0xac] sm:$0xf]
      %v366 = vld [vmem:[%s0 + $0xb0] sm:$0xf]
      %v367 = vld [vmem:[%s0 + $0xb4] sm:$0xf]
      %v368 = vld [vmem:[%s0 + $0xb8] sm:$0xf]
      %v369 = vld [vmem:[%s0 + $0xbc] sm:$0xf]
      %v370 = vld [vmem:[%s0 + $0xc0] sm:$0xf]
      %v371 = vld [vmem:[%s0 + $0xc4] sm:$0xf]
      %v372 = vld [vmem:[%s0 + $0xc8] sm:$0xf]
      %v373 = vld [vmem:[%s0 + $0xcc] sm:$0xf]
      %v374 = vld [vmem:[%s0 + $0xd0] sm:$0xf]
      %v375 = vld [vmem:[%s0 + $0xd4] sm:$0xf]
      %v376 = vld [vmem:[%s0 + $0xd8] sm:$0xf]
      %v377 = vld [vmem:[%s0 + $0xdc] sm:$0xf]
      %v378 = vld [vmem:[%s0 + $0xe0] sm:$0xf]
      %v379 = vld [vmem:[%s0 + $0xe4] sm:$0xf]
      %v380 = vld [vmem:[%s0 + $0xe8] sm:$0xf]
      %v381 = vld [vmem:[%s0 + $0xec] sm:$0xf]
      %v382 = vld [vmem:[%s0 + $0xf0] sm:$0xf]
      %v383 = vld [vmem:[%s0 + $0xf4] sm:$0xf]
      %v384 = vld [vmem:[%s0 + $0xf8] sm:$0xf]
      %v385 = vld [vmem:[%s0 + $0xfc] sm:$0xf]
      %v386 = vld [vmem:[%s0 + $0x100] sm:$0xf]
      %v387 = vld [vmem:[%s0 + $0x104] sm:$0xf]
      %v388 = vld [vmem:[%s0 + $0x108] sm:$0xf]
      %v389 = vld [vmem:[%s0 + $0x10c] sm:$0xf]
      %v390 = vld [vmem:[%s0 + $0x110] sm:$0xf]
      %v391 = vld [vmem:[%s0 + $0x114] sm:$0xf]
      %v392 = vld [vmem:[%s0 + $0x118] sm:$0xf]
      %v393 = vld [vmem:[%s0 + $0x11c] sm:$0xf]
      %v394 = vld [vmem:[%s277] sm:$0xff]
      %v395 = vld [vmem:[%s277 + $0x8] sm:$0xff]
      %v396 = vld [vmem:[%s277 + $0x10] sm:$0xff]
      %v397 = vld [vmem:[%s277 + $0x18] sm:$0xff]
      %v398 = vld [vmem:[%s277 + $0x20] sm:$0xff]
      %v399 = vld [vmem:[%s277 + $0x28] sm:$0xff]
      %v400 = vld [vmem:[%s277 + $0x30] sm:$0xff]
      %v401 = vld [vmem:[%s277 + $0x38] sm:$0xff]
      %403 = vset.pattern.permute.xlu0 0
      %404 = vperm.xlu0 %403, %v394
      %v405 = vpop.permute.xlu0 %404
      %408 = vset.pattern.permute.xlu0 0
      %409 = vperm.xlu0 %408, %v395
      %v410 = vpop.permute.xlu0 %409
      %413 = vset.pattern.permute.xlu0 0
      %414 = vperm.xlu0 %413, %v396
      %v415 = vpop.permute.xlu0 %414
      %418 = vset.pattern.permute.xlu0 0
      %419 = vperm.xlu0 %418, %v397
      %v420 = vpop.permute.xlu0 %419
      %423 = vset.pattern.permute.xlu0 0
      %424 = vperm.xlu0 %423, %v398
      %v425 = vpop.permute.xlu0 %424
      %428 = vset.pattern.permute.xlu0 0
      %429 = vperm.xlu0 %428, %v399
      %v430 = vpop.permute.xlu0 %429
      %433 = vset.pattern.permute.xlu0 0
      %434 = vperm.xlu0 %433, %v400
      %v435 = vpop.permute.xlu0 %434
      %438 = vset.pattern.permute.xlu0 0
      %439 = vperm.xlu0 %438, %v401
      %v440 = vpop.permute.xlu0 %439
      %v466 = vunpack.c.l.b16 %v298
      %v467 = vunpack.c.h.b16 %v298
      %v468 = vunpack.c.l.b16 %v299
      %v469 = vunpack.c.h.b16 %v299
      %v470 = vunpack.c.l.b16 %v300
      %v471 = vunpack.c.l.b16 %v301
      %v472 = vunpack.c.h.b16 %v301
      %v473 = vunpack.c.l.b16 %v302
      %v474 = vunpack.c.h.b16 %v302
      %v475 = vunpack.c.l.b16 %v303
      %v476 = vunpack.c.l.b16 %v304
      %v477 = vunpack.c.h.b16 %v304
      %v478 = vunpack.c.l.b16 %v305
      %v479 = vunpack.c.h.b16 %v305
      %v480 = vunpack.c.l.b16 %v306
      %v481 = vunpack.c.l.b16 %v307
      %v482 = vunpack.c.h.b16 %v307
      %v483 = vunpack.c.l.b16 %v308
      %v484 = vunpack.c.h.b16 %v308
      %v485 = vunpack.c.l.b16 %v309
      %v486 = vunpack.c.l.b16 %v310
      %v487 = vunpack.c.h.b16 %v310
      %v488 = vunpack.c.l.b16 %v311
      %v489 = vunpack.c.h.b16 %v311
      %v490 = vunpack.c.l.b16 %v312
      %v491 = vunpack.c.l.b16 %v313
      %v492 = vunpack.c.h.b16 %v313
      %v493 = vunpack.c.l.b16 %v314
      %v494 = vunpack.c.h.b16 %v314
      %v495 = vunpack.c.l.b16 %v315
      %v496 = vunpack.c.l.b16 %v316
      %v497 = vunpack.c.h.b16 %v316
      %v498 = vunpack.c.l.b16 %v317
      %v499 = vunpack.c.h.b16 %v317
      %v500 = vunpack.c.l.b16 %v318
      %v501 = vunpack.c.l.b16 %v319
      %v502 = vunpack.c.h.b16 %v319
      %v503 = vunpack.c.l.b16 %v320
      %v504 = vunpack.c.h.b16 %v320
      %v505 = vunpack.c.l.b16 %v321
      %v506 = vpack.c.b16 %v471, %v466
      %v507 = vpack.c.b16 %v472, %v467
      %v508 = vpack.c.b16 %v473, %v468
      %v509 = vpack.c.b16 %v474, %v469
      %v510 = vpack.c.b16 %v475, %v470
      %v511 = vpack.c.b16 %v481, %v476
      %v512 = vpack.c.b16 %v482, %v477
      %v513 = vpack.c.b16 %v483, %v478
      %v514 = vpack.c.b16 %v484, %v479
      %v515 = vpack.c.b16 %v485, %v480
      %v516 = vpack.c.b16 %v491, %v486
      %v517 = vpack.c.b16 %v492, %v487
      %v518 = vpack.c.b16 %v493, %v488
      %v519 = vpack.c.b16 %v494, %v489
      %v520 = vpack.c.b16 %v495, %v490
      %v521 = vpack.c.b16 %v501, %v496
      %v522 = vpack.c.b16 %v502, %v497
      %v523 = vpack.c.b16 %v503, %v498
      %v524 = vpack.c.b16 %v504, %v499
      %v525 = vpack.c.b16 %v505, %v500
      %v614 = vunpack.c.l.b16 %v322
      %v615 = vunpack.c.l.b16 %v323
      %v616 = vunpack.c.l.b16 %v324
      %v617 = vunpack.c.l.b16 %v325
      %v618 = vunpack.c.l.b16 %v326
      %v619 = vunpack.c.l.b16 %v327
      %v620 = vunpack.c.l.b16 %v328
      %v621 = vunpack.c.l.b16 %v329
      %v622 = vunpack.c.l.b16 %v330
      %v623 = vunpack.c.l.b16 %v331
      %v624 = vunpack.c.l.b16 %v332
      %v625 = vunpack.c.l.b16 %v333
      %v626 = vunpack.c.l.b16 %v334
      %v627 = vunpack.c.l.b16 %v335
      %v628 = vunpack.c.l.b16 %v336
      %v629 = vunpack.c.l.b16 %v337
      %v630 = vunpack.c.l.b16 %v338
      %v631 = vunpack.c.l.b16 %v339
      %v632 = vunpack.c.l.b16 %v340
      %v633 = vunpack.c.l.b16 %v341
      %v634 = vunpack.c.l.b16 %v342
      %v635 = vunpack.c.l.b16 %v343
      %v636 = vunpack.c.l.b16 %v344
      %v637 = vunpack.c.l.b16 %v345
      %v638 = vunpack.c.l.b16 %v346
      %v639 = vunpack.c.l.b16 %v347
      %v640 = vunpack.c.l.b16 %v348
      %v641 = vunpack.c.l.b16 %v349
      %v642 = vunpack.c.l.b16 %v350
      %v643 = vunpack.c.l.b16 %v351
      %v644 = vunpack.c.l.b16 %v352
      %v645 = vunpack.c.l.b16 %v353
      %v646 = vunpack.c.l.b16 %v354
      %v647 = vunpack.c.l.b16 %v355
      %v648 = vunpack.c.l.b16 %v356
      %v649 = vunpack.c.l.b16 %v357
      %v650 = vunpack.c.l.b16 %v358
      %v651 = vunpack.c.l.b16 %v359
      %v652 = vunpack.c.l.b16 %v360
      %v653 = vunpack.c.l.b16 %v361
      %v654 = vunpack.c.l.b16 %v362
      %v655 = vunpack.c.l.b16 %v363
      %v656 = vunpack.c.l.b16 %v364
      %v657 = vunpack.c.l.b16 %v365
      %v658 = vunpack.c.l.b16 %v366
      %v659 = vunpack.c.l.b16 %v367
      %v660 = vunpack.c.l.b16 %v368
      %v661 = vunpack.c.l.b16 %v369
      %v662 = vunpack.c.l.b16 %v370
      %v663 = vunpack.c.l.b16 %v371
      %v664 = vunpack.c.l.b16 %v372
      %v665 = vunpack.c.l.b16 %v373
      %v666 = vunpack.c.l.b16 %v374
      %v667 = vunpack.c.l.b16 %v375
      %v668 = vunpack.c.l.b16 %v376
      %v669 = vunpack.c.l.b16 %v377
      %v670 = vunpack.c.l.b16 %v378
      %v671 = vunpack.c.l.b16 %v379
      %v672 = vunpack.c.l.b16 %v380
      %v673 = vunpack.c.l.b16 %v381
      %v674 = vunpack.c.l.b16 %v382
      %v675 = vunpack.c.l.b16 %v383
      %v676 = vunpack.c.l.b16 %v384
      %v677 = vunpack.c.l.b16 %v385
      %v678 = vunpack.c.l.b16 %v386
      %v679 = vunpack.c.l.b16 %v387
      %v680 = vunpack.c.l.b16 %v388
      %v681 = vunpack.c.l.b16 %v389
      %v682 = vunpack.c.l.b16 %v390
      %v683 = vunpack.c.l.b16 %v391
      %v684 = vunpack.c.l.b16 %v392
      %v685 = vunpack.c.l.b16 %v393
      %v686 = vpack.c.b16 %v615, %v614
      %v687 = vpack.c.b16 %v617, %v616
      %v688 = vpack.c.b16 %v619, %v618
      %v689 = vpack.c.b16 %v621, %v620
      %v690 = vpack.c.b16 %v623, %v622
      %v691 = vpack.c.b16 %v625, %v624
      %v692 = vpack.c.b16 %v627, %v626
      %v693 = vpack.c.b16 %v629, %v628
      %v694 = vpack.c.b16 %v631, %v630
      %v695 = vpack.c.b16 %v633, %v632
      %v696 = vpack.c.b16 %v635, %v634
      %v697 = vpack.c.b16 %v637, %v636
      %v698 = vpack.c.b16 %v639, %v638
      %v699 = vpack.c.b16 %v641, %v640
      %v700 = vpack.c.b16 %v643, %v642
      %v701 = vpack.c.b16 %v645, %v644
      %v702 = vpack.c.b16 %v647, %v646
      %v703 = vpack.c.b16 %v649, %v648
      %v704 = vpack.c.b16 %v651, %v650
      %v705 = vpack.c.b16 %v653, %v652
      %v706 = vpack.c.b16 %v655, %v654
      %v707 = vpack.c.b16 %v657, %v656
      %v708 = vpack.c.b16 %v659, %v658
      %v709 = vpack.c.b16 %v661, %v660
      %v710 = vpack.c.b16 %v663, %v662
      %v711 = vpack.c.b16 %v665, %v664
      %v712 = vpack.c.b16 %v667, %v666
      %v713 = vpack.c.b16 %v669, %v668
      %v714 = vpack.c.b16 %v671, %v670
      %v715 = vpack.c.b16 %v673, %v672
      %v716 = vpack.c.b16 %v675, %v674
      %v717 = vpack.c.b16 %v677, %v676
      %v718 = vpack.c.b16 %v679, %v678
      %v719 = vpack.c.b16 %v681, %v680
      %v720 = vpack.c.b16 %v683, %v682
      %v721 = vpack.c.b16 %v685, %v684
      %vm758 = vcmask 523264
      %v760 = vsel %vm758, %v510, 0
      %v763 = vsel %vm758, %v515, 0
      %v766 = vsel %vm758, %v520, 0
      %v769 = vsel %vm758, %v525, 0
      %771 = vmatpush.bf16.msra.mxu0 %v693
      %772 = vmatpush.bf16.msra.mxu0 %v692
      %773 = vmatpush.bf16.msra.mxu0 %v691
      %774 = vmatpush.bf16.msra.mxu0 %v690
      %775 = vmatpush.bf16.msra.mxu0 %v689
      %776 = vmatpush.bf16.msra.mxu0 %v688
      %777 = vmatpush.bf16.msra.mxu0 %v687
      %778 = vmatpush.bf16.msra.mxu0 %v686
      %779 = vmatmul.bf16.gmra.mxu0 %v506
      %v780 = vpop.f32.mrf.mxu0
      %v781 = vadd.f32 %v405, %v780
      %v782 = vpop.f32.mrf.mxu0
      %v783 = vadd.f32 %v410, %v782
      %784 = vmatmul.bf16.gmra.mxu0 %v511
      %v785 = vpop.f32.mrf.mxu0
      %v786 = vadd.f32 %v415, %v785
      %v787 = vpop.f32.mrf.mxu0
      %v788 = vadd.f32 %v420, %v787
      %789 = vmatmul.bf16.gmra.mxu0 %v516
      %v790 = vpop.f32.mrf.mxu0
      %v791 = vadd.f32 %v425, %v790
      %v792 = vpop.f32.mrf.mxu0
      %v793 = vadd.f32 %v430, %v792
      %794 = vmatmul.bf16.gmra.mxu0 %v521
      %v795 = vpop.f32.mrf.mxu0
      %v796 = vadd.f32 %v435, %v795
      %v797 = vpop.f32.mrf.mxu0
      %v798 = vadd.f32 %v440, %v797
      %799 = vdwg.mxu0
      %800 = vmatpush.bf16.msra.mxu0 %v701
      %801 = vmatpush.bf16.msra.mxu0 %v700
      %802 = vmatpush.bf16.msra.mxu0 %v699
      %803 = vmatpush.bf16.msra.mxu0 %v698
      %804 = vmatpush.bf16.msra.mxu0 %v697
      %805 = vmatpush.bf16.msra.mxu0 %v696
      %806 = vmatpush.bf16.msra.mxu0 %v695
      %807 = vmatpush.bf16.msra.mxu0 %v694
      %808 = vmatmul.bf16.gmra.mxu0 %v507
      %v809 = vpop.f32.mrf.mxu0
      %v810 = vadd.f32 %v781, %v809
      %v811 = vpop.f32.mrf.mxu0
      %v812 = vadd.f32 %v783, %v811
      %813 = vmatmul.bf16.gmra.mxu0 %v512
      %v814 = vpop.f32.mrf.mxu0
      %v815 = vadd.f32 %v786, %v814
      %v816 = vpop.f32.mrf.mxu0
      %v817 = vadd.f32 %v788, %v816
      %818 = vmatmul.bf16.gmra.mxu0 %v517
      %v819 = vpop.f32.mrf.mxu0
      %v820 = vadd.f32 %v791, %v819
      %v821 = vpop.f32.mrf.mxu0
      %v822 = vadd.f32 %v793, %v821
      %823 = vmatmul.bf16.gmra.mxu0 %v522
      %v824 = vpop.f32.mrf.mxu0
      %v825 = vadd.f32 %v796, %v824
      %v826 = vpop.f32.mrf.mxu0
      %v827 = vadd.f32 %v798, %v826
      %828 = vdwg.mxu0
      %829 = vmatpush.bf16.msra.mxu0 %v709
      %830 = vmatpush.bf16.msra.mxu0 %v708
      %831 = vmatpush.bf16.msra.mxu0 %v707
      %832 = vmatpush.bf16.msra.mxu0 %v706
      %833 = vmatpush.bf16.msra.mxu0 %v705
      %834 = vmatpush.bf16.msra.mxu0 %v704
      %835 = vmatpush.bf16.msra.mxu0 %v703
      %836 = vmatpush.bf16.msra.mxu0 %v702
      %837 = vmatmul.bf16.gmra.mxu0 %v508
      %v838 = vpop.f32.mrf.mxu0
      %v839 = vadd.f32 %v810, %v838
      %v840 = vpop.f32.mrf.mxu0
      %v841 = vadd.f32 %v812, %v840
      %842 = vmatmul.bf16.gmra.mxu0 %v513
      %v843 = vpop.f32.mrf.mxu0
      %v844 = vadd.f32 %v815, %v843
      %v845 = vpop.f32.mrf.mxu0
      %v846 = vadd.f32 %v817, %v845
      %847 = vmatmul.bf16.gmra.mxu0 %v518
      %v848 = vpop.f32.mrf.mxu0
      %v849 = vadd.f32 %v820, %v848
      %v850 = vpop.f32.mrf.mxu0
      %v851 = vadd.f32 %v822, %v850
      %852 = vmatmul.bf16.gmra.mxu0 %v523
      %v853 = vpop.f32.mrf.mxu0
      %v854 = vadd.f32 %v825, %v853
      %v855 = vpop.f32.mrf.mxu0
      %v856 = vadd.f32 %v827, %v855
      %857 = vdwg.mxu0
      %858 = vmatpush.bf16.msra.mxu0 %v717
      %859 = vmatpush.bf16.msra.mxu0 %v716
      %860 = vmatpush.bf16.msra.mxu0 %v715
      %861 = vmatpush.bf16.msra.mxu0 %v714
      %862 = vmatpush.bf16.msra.mxu0 %v713
      %863 = vmatpush.bf16.msra.mxu0 %v712
      %864 = vmatpush.bf16.msra.mxu0 %v711
      %865 = vmatpush.bf16.msra.mxu0 %v710
      %866 = vmatmul.bf16.gmra.mxu0 %v509
      %v867 = vpop.f32.mrf.mxu0
      %v868 = vadd.f32 %v839, %v867
      %v869 = vpop.f32.mrf.mxu0
      %v870 = vadd.f32 %v841, %v869
      %871 = vmatmul.bf16.gmra.mxu0 %v514
      %v872 = vpop.f32.mrf.mxu0
      %v873 = vadd.f32 %v844, %v872
      %v874 = vpop.f32.mrf.mxu0
      %v875 = vadd.f32 %v846, %v874
      %876 = vmatmul.bf16.gmra.mxu0 %v519
      %v877 = vpop.f32.mrf.mxu0
      %v878 = vadd.f32 %v849, %v877
      %v879 = vpop.f32.mrf.mxu0
      %v880 = vadd.f32 %v851, %v879
      %881 = vmatmul.bf16.gmra.mxu0 %v524
      %v882 = vpop.f32.mrf.mxu0
      %v883 = vadd.f32 %v854, %v882
      %v884 = vpop.f32.mrf.mxu0
      %v885 = vadd.f32 %v856, %v884
      %886 = vdwg.mxu0
      %887 = vmatpush.bf16.msra.mxu0 0
      %888 = vmatpush.bf16.msra.mxu0 0
      %889 = vmatpush.bf16.msra.mxu0 0
      %890 = vmatpush.bf16.msra.mxu0 0
      %891 = vmatpush.bf16.msra.mxu0 %v721
      %892 = vmatpush.bf16.msra.mxu0 %v720
      %893 = vmatpush.bf16.msra.mxu0 %v719
      %894 = vmatpush.bf16.msra.mxu0 %v718
      %895 = vmatmul.bf16.gmra.mxu0 %v760
      %v896 = vpop.f32.mrf.mxu0
      %v897 = vadd.f32 %v868, %v896
      %v898 = vpop.f32.mrf.mxu0
      %v899 = vadd.f32 %v870, %v898
      %900 = vmatmul.bf16.gmra.mxu0 %v763
      %v901 = vpop.f32.mrf.mxu0
      %v902 = vadd.f32 %v873, %v901
      %v903 = vpop.f32.mrf.mxu0
      %v904 = vadd.f32 %v875, %v903
      %905 = vmatmul.bf16.gmra.mxu0 %v766
      %v906 = vpop.f32.mrf.mxu0
      %v907 = vadd.f32 %v878, %v906
      %v908 = vpop.f32.mrf.mxu0
      %v909 = vadd.f32 %v880, %v908
      %910 = vmatmul.bf16.gmra.mxu0 %v769
      %v911 = vpop.f32.mrf.mxu0
      %v912 = vadd.f32 %v883, %v911
      %v913 = vpop.f32.mrf.mxu0
      %v914 = vadd.f32 %v885, %v913
      %915 = vdwg.mxu0
      %s916 = scalar_lea.vmem %s0, 288
      %v917 = vld [vmem:[%s916] sm:$0xf]
      %v918 = vld [vmem:[%s916 + $0x4] sm:$0xf]
      %v919 = vld [vmem:[%s916 + $0x8] sm:$0xf]
      %v920 = vld [vmem:[%s916 + $0xc] sm:$0xf]
      %v921 = vld [vmem:[%s916 + $0x10] sm:$0xf]
      %v922 = vld [vmem:[%s916 + $0x14] sm:$0xf]
      %v923 = vld [vmem:[%s916 + $0x18] sm:$0xf]
      %v924 = vld [vmem:[%s916 + $0x1c] sm:$0xf]
      %v925 = vld [vmem:[%s916 + $0x20] sm:$0xf]
      %v926 = vld [vmem:[%s916 + $0x24] sm:$0xf]
      %v927 = vld [vmem:[%s916 + $0x28] sm:$0xf]
      %v928 = vld [vmem:[%s916 + $0x2c] sm:$0xf]
      %v929 = vld [vmem:[%s916 + $0x30] sm:$0xf]
      %v930 = vld [vmem:[%s916 + $0x34] sm:$0xf]
      %v931 = vld [vmem:[%s916 + $0x38] sm:$0xf]
      %v932 = vld [vmem:[%s916 + $0x3c] sm:$0xf]
      %v933 = vld [vmem:[%s916 + $0x40] sm:$0xf]
      %v934 = vld [vmem:[%s916 + $0x44] sm:$0xf]
      %v935 = vld [vmem:[%s916 + $0x48] sm:$0xf]
      %v936 = vld [vmem:[%s916 + $0x4c] sm:$0xf]
      %v937 = vld [vmem:[%s916 + $0x50] sm:$0xf]
      %v938 = vld [vmem:[%s916 + $0x54] sm:$0xf]
      %v939 = vld [vmem:[%s916 + $0x58] sm:$0xf]
      %v940 = vld [vmem:[%s916 + $0x5c] sm:$0xf]
      %v941 = vld [vmem:[%s916 + $0x60] sm:$0xf]
      %v942 = vld [vmem:[%s916 + $0x64] sm:$0xf]
      %v943 = vld [vmem:[%s916 + $0x68] sm:$0xf]
      %v944 = vld [vmem:[%s916 + $0x6c] sm:$0xf]
      %v945 = vld [vmem:[%s916 + $0x70] sm:$0xf]
      %v946 = vld [vmem:[%s916 + $0x74] sm:$0xf]
      %v947 = vld [vmem:[%s916 + $0x78] sm:$0xf]
      %v948 = vld [vmem:[%s916 + $0x7c] sm:$0xf]
      %v949 = vld [vmem:[%s916 + $0x80] sm:$0xf]
      %v950 = vld [vmem:[%s916 + $0x84] sm:$0xf]
      %v951 = vld [vmem:[%s916 + $0x88] sm:$0xf]
      %v952 = vld [vmem:[%s916 + $0x8c] sm:$0xf]
      %v953 = vld [vmem:[%s916 + $0x90] sm:$0xf]
      %v954 = vld [vmem:[%s916 + $0x94] sm:$0xf]
      %v955 = vld [vmem:[%s916 + $0x98] sm:$0xf]
      %v956 = vld [vmem:[%s916 + $0x9c] sm:$0xf]
      %v957 = vld [vmem:[%s916 + $0xa0] sm:$0xf]
      %v958 = vld [vmem:[%s916 + $0xa4] sm:$0xf]
      %v959 = vld [vmem:[%s916 + $0xa8] sm:$0xf]
      %v960 = vld [vmem:[%s916 + $0xac] sm:$0xf]
      %v961 = vld [vmem:[%s916 + $0xb0] sm:$0xf]
      %v962 = vld [vmem:[%s916 + $0xb4] sm:$0xf]
      %v963 = vld [vmem:[%s916 + $0xb8] sm:$0xf]
      %v964 = vld [vmem:[%s916 + $0xbc] sm:$0xf]
      %v965 = vld [vmem:[%s916 + $0xc0] sm:$0xf]
      %v966 = vld [vmem:[%s916 + $0xc4] sm:$0xf]
      %v967 = vld [vmem:[%s916 + $0xc8] sm:$0xf]
      %v968 = vld [vmem:[%s916 + $0xcc] sm:$0xf]
      %v969 = vld [vmem:[%s916 + $0xd0] sm:$0xf]
      %v970 = vld [vmem:[%s916 + $0xd4] sm:$0xf]
      %v971 = vld [vmem:[%s916 + $0xd8] sm:$0xf]
      %v972 = vld [vmem:[%s916 + $0xdc] sm:$0xf]
      %v973 = vld [vmem:[%s916 + $0xe0] sm:$0xf]
      %v974 = vld [vmem:[%s916 + $0xe4] sm:$0xf]
      %v975 = vld [vmem:[%s916 + $0xe8] sm:$0xf]
      %v976 = vld [vmem:[%s916 + $0xec] sm:$0xf]
      %v977 = vld [vmem:[%s916 + $0xf0] sm:$0xf]
      %v978 = vld [vmem:[%s916 + $0xf4] sm:$0xf]
      %v979 = vld [vmem:[%s916 + $0xf8] sm:$0xf]
      %v980 = vld [vmem:[%s916 + $0xfc] sm:$0xf]
      %v981 = vld [vmem:[%s916 + $0x100] sm:$0xf]
      %v982 = vld [vmem:[%s916 + $0x104] sm:$0xf]
      %v983 = vld [vmem:[%s916 + $0x108] sm:$0xf]
      %v984 = vld [vmem:[%s916 + $0x10c] sm:$0xf]
      %v985 = vld [vmem:[%s916 + $0x110] sm:$0xf]
      %v986 = vld [vmem:[%s916 + $0x114] sm:$0xf]
      %v987 = vld [vmem:[%s916 + $0x118] sm:$0xf]
      %v988 = vld [vmem:[%s916 + $0x11c] sm:$0xf]
      %v1061 = vunpack.c.l.b16 %v917
      %v1062 = vunpack.c.l.b16 %v918
      %v1063 = vunpack.c.l.b16 %v919
      %v1064 = vunpack.c.l.b16 %v920
      %v1065 = vunpack.c.l.b16 %v921
      %v1066 = vunpack.c.l.b16 %v922
      %v1067 = vunpack.c.l.b16 %v923
      %v1068 = vunpack.c.l.b16 %v924
      %v1069 = vunpack.c.l.b16 %v925
      %v1070 = vunpack.c.l.b16 %v926
      %v1071 = vunpack.c.l.b16 %v927
      %v1072 = vunpack.c.l.b16 %v928
      %v1073 = vunpack.c.l.b16 %v929
      %v1074 = vunpack.c.l.b16 %v930
      %v1075 = vunpack.c.l.b16 %v931
      %v1076 = vunpack.c.l.b16 %v932
      %v1077 = vunpack.c.l.b16 %v933
      %v1078 = vunpack.c.l.b16 %v934
      %v1079 = vunpack.c.l.b16 %v935
      %v1080 = vunpack.c.l.b16 %v936
      %v1081 = vunpack.c.l.b16 %v937
      %v1082 = vunpack.c.l.b16 %v938
      %v1083 = vunpack.c.l.b16 %v939
      %v1084 = vunpack.c.l.b16 %v940
      %v1085 = vunpack.c.l.b16 %v941
      %v1086 = vunpack.c.l.b16 %v942
      %v1087 = vunpack.c.l.b16 %v943
      %v1088 = vunpack.c.l.b16 %v944
      %v1089 = vunpack.c.l.b16 %v945
      %v1090 = vunpack.c.l.b16 %v946
      %v1091 = vunpack.c.l.b16 %v947
      %v1092 = vunpack.c.l.b16 %v948
      %v1093 = vunpack.c.l.b16 %v949
      %v1094 = vunpack.c.l.b16 %v950
      %v1095 = vunpack.c.l.b16 %v951
      %v1096 = vunpack.c.l.b16 %v952
      %v1097 = vunpack.c.l.b16 %v953
      %v1098 = vunpack.c.l.b16 %v954
      %v1099 = vunpack.c.l.b16 %v955
      %v1100 = vunpack.c.l.b16 %v956
      %v1101 = vunpack.c.l.b16 %v957
      %v1102 = vunpack.c.l.b16 %v958
      %v1103 = vunpack.c.l.b16 %v959
      %v1104 = vunpack.c.l.b16 %v960
      %v1105 = vunpack.c.l.b16 %v961
      %v1106 = vunpack.c.l.b16 %v962
      %v1107 = vunpack.c.l.b16 %v963
      %v1108 = vunpack.c.l.b16 %v964
      %v1109 = vunpack.c.l.b16 %v965
      %v1110 = vunpack.c.l.b16 %v966
      %v1111 = vunpack.c.l.b16 %v967
      %v1112 = vunpack.c.l.b16 %v968
      %v1113 = vunpack.c.l.b16 %v969
      %v1114 = vunpack.c.l.b16 %v970
      %v1115 = vunpack.c.l.b16 %v971
      %v1116 = vunpack.c.l.b16 %v972
      %v1117 = vunpack.c.l.b16 %v973
      %v1118 = vunpack.c.l.b16 %v974
      %v1119 = vunpack.c.l.b16 %v975
      %v1120 = vunpack.c.l.b16 %v976
      %v1121 = vunpack.c.l.b16 %v977
      %v1122 = vunpack.c.l.b16 %v978
      %v1123 = vunpack.c.l.b16 %v979
      %v1124 = vunpack.c.l.b16 %v980
      %v1125 = vunpack.c.l.b16 %v981
      %v1126 = vunpack.c.l.b16 %v982
      %v1127 = vunpack.c.l.b16 %v983
      %v1128 = vunpack.c.l.b16 %v984
      %v1129 = vunpack.c.l.b16 %v985
      %v1130 = vunpack.c.l.b16 %v986
      %v1131 = vunpack.c.l.b16 %v987
      %v1132 = vunpack.c.l.b16 %v988
      %v1133 = vpack.c.b16 %v1062, %v1061
      %v1134 = vpack.c.b16 %v1064, %v1063
      %v1135 = vpack.c.b16 %v1066, %v1065
      %v1136 = vpack.c.b16 %v1068, %v1067
      %v1137 = vpack.c.b16 %v1070, %v1069
      %v1138 = vpack.c.b16 %v1072, %v1071
      %v1139 = vpack.c.b16 %v1074, %v1073
      %v1140 = vpack.c.b16 %v1076, %v1075
      %v1141 = vpack.c.b16 %v1078, %v1077
      %v1142 = vpack.c.b16 %v1080, %v1079
      %v1143 = vpack.c.b16 %v1082, %v1081
      %v1144 = vpack.c.b16 %v1084, %v1083
      %v1145 = vpack.c.b16 %v1086, %v1085
      %v1146 = vpack.c.b16 %v1088, %v1087
      %v1147 = vpack.c.b16 %v1090, %v1089
      %v1148 = vpack.c.b16 %v1092, %v1091
      %v1149 = vpack.c.b16 %v1094, %v1093
      %v1150 = vpack.c.b16 %v1096, %v1095
      %v1151 = vpack.c.b16 %v1098, %v1097
      %v1152 = vpack.c.b16 %v1100, %v1099
      %v1153 = vpack.c.b16 %v1102, %v1101
      %v1154 = vpack.c.b16 %v1104, %v1103
      %v1155 = vpack.c.b16 %v1106, %v1105
      %v1156 = vpack.c.b16 %v1108, %v1107
      %v1157 = vpack.c.b16 %v1110, %v1109
      %v1158 = vpack.c.b16 %v1112, %v1111
      %v1159 = vpack.c.b16 %v1114, %v1113
      %v1160 = vpack.c.b16 %v1116, %v1115
      %v1161 = vpack.c.b16 %v1118, %v1117
      %v1162 = vpack.c.b16 %v1120, %v1119
      %v1163 = vpack.c.b16 %v1122, %v1121
      %v1164 = vpack.c.b16 %v1124, %v1123
      %v1165 = vpack.c.b16 %v1126, %v1125
      %v1166 = vpack.c.b16 %v1128, %v1127
      %v1167 = vpack.c.b16 %v1130, %v1129
      %v1168 = vpack.c.b16 %v1132, %v1131
      %1205 = vmatpush.bf16.msra.mxu0 %v1140
      %1206 = vmatpush.bf16.msra.mxu0 %v1139
      %1207 = vmatpush.bf16.msra.mxu0 %v1138
      %1208 = vmatpush.bf16.msra.mxu0 %v1137
      %1209 = vmatpush.bf16.msra.mxu0 %v1136
      %1210 = vmatpush.bf16.msra.mxu0 %v1135
      %1211 = vmatpush.bf16.msra.mxu0 %v1134
      %1212 = vmatpush.bf16.msra.mxu0 %v1133
      %1213 = vmatmul.bf16.gmra.mxu0 %v506
      %v1214 = vpop.f32.mrf.mxu0
      %v1215 = vadd.f32 %v405, %v1214
      %v1216 = vpop.f32.mrf.mxu0
      %v1217 = vadd.f32 %v410, %v1216
      %1218 = vmatmul.bf16.gmra.mxu0 %v511
      %v1219 = vpop.f32.mrf.mxu0
      %v1220 = vadd.f32 %v415, %v1219
      %v1221 = vpop.f32.mrf.mxu0
      %v1222 = vadd.f32 %v420, %v1221
      %1223 = vmatmul.bf16.gmra.mxu0 %v516
      %v1224 = vpop.f32.mrf.mxu0
      %v1225 = vadd.f32 %v425, %v1224
      %v1226 = vpop.f32.mrf.mxu0
      %v1227 = vadd.f32 %v430, %v1226
      %1228 = vmatmul.bf16.gmra.mxu0 %v521
      %v1229 = vpop.f32.mrf.mxu0
      %v1230 = vadd.f32 %v435, %v1229
      %v1231 = vpop.f32.mrf.mxu0
      %v1232 = vadd.f32 %v440, %v1231
      %1233 = vdwg.mxu0
      %1234 = vmatpush.bf16.msra.mxu0 %v1148
      %1235 = vmatpush.bf16.msra.mxu0 %v1147
      %1236 = vmatpush.bf16.msra.mxu0 %v1146
      %1237 = vmatpush.bf16.msra.mxu0 %v1145
      %1238 = vmatpush.bf16.msra.mxu0 %v1144
      %1239 = vmatpush.bf16.msra.mxu0 %v1143
      %1240 = vmatpush.bf16.msra.mxu0 %v1142
      %1241 = vmatpush.bf16.msra.mxu0 %v1141
      %1242 = vmatmul.bf16.gmra.mxu0 %v507
      %v1243 = vpop.f32.mrf.mxu0
      %v1244 = vadd.f32 %v1215, %v1243
      %v1245 = vpop.f32.mrf.mxu0
      %v1246 = vadd.f32 %v1217, %v1245
      %1247 = vmatmul.bf16.gmra.mxu0 %v512
      %v1248 = vpop.f32.mrf.mxu0
      %v1249 = vadd.f32 %v1220, %v1248
      %v1250 = vpop.f32.mrf.mxu0
      %v1251 = vadd.f32 %v1222, %v1250
      %1252 = vmatmul.bf16.gmra.mxu0 %v517
      %v1253 = vpop.f32.mrf.mxu0
      %v1254 = vadd.f32 %v1225, %v1253
      %v1255 = vpop.f32.mrf.mxu0
      %v1256 = vadd.f32 %v1227, %v1255
      %1257 = vmatmul.bf16.gmra.mxu0 %v522
      %v1258 = vpop.f32.mrf.mxu0
      %v1259 = vadd.f32 %v1230, %v1258
      %v1260 = vpop.f32.mrf.mxu0
      %v1261 = vadd.f32 %v1232, %v1260
      %1262 = vdwg.mxu0
      %1263 = vmatpush.bf16.msra.mxu0 %v1156
      %1264 = vmatpush.bf16.msra.mxu0 %v1155
      %1265 = vmatpush.bf16.msra.mxu0 %v1154
      %1266 = vmatpush.bf16.msra.mxu0 %v1153
      %1267 = vmatpush.bf16.msra.mxu0 %v1152
      %1268 = vmatpush.bf16.msra.mxu0 %v1151
      %1269 = vmatpush.bf16.msra.mxu0 %v1150
      %1270 = vmatpush.bf16.msra.mxu0 %v1149
      %1271 = vmatmul.bf16.gmra.mxu0 %v508
      %v1272 = vpop.f32.mrf.mxu0
      %v1273 = vadd.f32 %v1244, %v1272
      %v1274 = vpop.f32.mrf.mxu0
      %v1275 = vadd.f32 %v1246, %v1274
      %1276 = vmatmul.bf16.gmra.mxu0 %v513
      %v1277 = vpop.f32.mrf.mxu0
      %v1278 = vadd.f32 %v1249, %v1277
      %v1279 = vpop.f32.mrf.mxu0
      %v1280 = vadd.f32 %v1251, %v1279
      %1281 = vmatmul.bf16.gmra.mxu0 %v518
      %v1282 = vpop.f32.mrf.mxu0
      %v1283 = vadd.f32 %v1254, %v1282
      %v1284 = vpop.f32.mrf.mxu0
      %v1285 = vadd.f32 %v1256, %v1284
      %1286 = vmatmul.bf16.gmra.mxu0 %v523
      %v1287 = vpop.f32.mrf.mxu0
      %v1288 = vadd.f32 %v1259, %v1287
      %v1289 = vpop.f32.mrf.mxu0
      %v1290 = vadd.f32 %v1261, %v1289
      %1291 = vdwg.mxu0
      %1292 = vmatpush.bf16.msra.mxu0 %v1164
      %1293 = vmatpush.bf16.msra.mxu0 %v1163
      %1294 = vmatpush.bf16.msra.mxu0 %v1162
      %1295 = vmatpush.bf16.msra.mxu0 %v1161
      %1296 = vmatpush.bf16.msra.mxu0 %v1160
      %1297 = vmatpush.bf16.msra.mxu0 %v1159
      %1298 = vmatpush.bf16.msra.mxu0 %v1158
      %1299 = vmatpush.bf16.msra.mxu0 %v1157
      %1300 = vmatmul.bf16.gmra.mxu0 %v509
      %v1301 = vpop.f32.mrf.mxu0
      %v1302 = vadd.f32 %v1273, %v1301
      %v1303 = vpop.f32.mrf.mxu0
      %v1304 = vadd.f32 %v1275, %v1303
      %1305 = vmatmul.bf16.gmra.mxu0 %v514
      %v1306 = vpop.f32.mrf.mxu0
      %v1307 = vadd.f32 %v1278, %v1306
      %v1308 = vpop.f32.mrf.mxu0
      %v1309 = vadd.f32 %v1280, %v1308
      %1310 = vmatmul.bf16.gmra.mxu0 %v519
      %v1311 = vpop.f32.mrf.mxu0
      %v1312 = vadd.f32 %v1283, %v1311
      %v1313 = vpop.f32.mrf.mxu0
      %v1314 = vadd.f32 %v1285, %v1313
      %1315 = vmatmul.bf16.gmra.mxu0 %v524
      %v1316 = vpop.f32.mrf.mxu0
      %v1317 = vadd.f32 %v1288, %v1316
      %v1318 = vpop.f32.mrf.mxu0
      %v1319 = vadd.f32 %v1290, %v1318
      %1320 = vdwg.mxu0
      %1321 = vmatpush.bf16.msra.mxu0 0
      %1322 = vmatpush.bf16.msra.mxu0 0
      %1323 = vmatpush.bf16.msra.mxu0 0
      %1324 = vmatpush.bf16.msra.mxu0 0
      %1325 = vmatpush.bf16.msra.mxu0 %v1168
      %1326 = vmatpush.bf16.msra.mxu0 %v1167
      %1327 = vmatpush.bf16.msra.mxu0 %v1166
      %1328 = vmatpush.bf16.msra.mxu0 %v1165
      %1329 = vmatmul.bf16.gmra.mxu0 %v760
      %v1330 = vpop.f32.mrf.mxu0
      %v1331 = vadd.f32 %v1302, %v1330
      %v1332 = vpop.f32.mrf.mxu0
      %v1333 = vadd.f32 %v1304, %v1332
      %1334 = vmatmul.bf16.gmra.mxu0 %v763
      %v1335 = vpop.f32.mrf.mxu0
      %v1336 = vadd.f32 %v1307, %v1335
      %v1337 = vpop.f32.mrf.mxu0
      %v1338 = vadd.f32 %v1309, %v1337
      %1339 = vmatmul.bf16.gmra.mxu0 %v766
      %v1340 = vpop.f32.mrf.mxu0
      %v1341 = vadd.f32 %v1312, %v1340
      %v1342 = vpop.f32.mrf.mxu0
      %v1343 = vadd.f32 %v1314, %v1342
      %1344 = vmatmul.bf16.gmra.mxu0 %v769
      %v1345 = vpop.f32.mrf.mxu0
      %v1346 = vadd.f32 %v1317, %v1345
      %v1347 = vpop.f32.mrf.mxu0
      %v1348 = vadd.f32 %v1319, %v1347
      %1349 = vdwg.mxu0
      %s1350 = scalar_lea.vmem %s0, 576
      %v1351 = vld [vmem:[%s1350] sm:$0xf]
      %v1352 = vld [vmem:[%s1350 + $0x4] sm:$0xf]
      %v1353 = vld [vmem:[%s1350 + $0x8] sm:$0xf]
      %v1354 = vld [vmem:[%s1350 + $0xc] sm:$0xf]
      %v1355 = vld [vmem:[%s1350 + $0x10] sm:$0xf]
      %v1356 = vld [vmem:[%s1350 + $0x14] sm:$0xf]
      %v1357 = vld [vmem:[%s1350 + $0x18] sm:$0xf]
      %v1358 = vld [vmem:[%s1350 + $0x1c] sm:$0xf]
      %v1359 = vld [vmem:[%s1350 + $0x20] sm:$0xf]
      %v1360 = vld [vmem:[%s1350 + $0x24] sm:$0xf]
      %v1361 = vld [vmem:[%s1350 + $0x28] sm:$0xf]
      %v1362 = vld [vmem:[%s1350 + $0x2c] sm:$0xf]
      %v1363 = vld [vmem:[%s1350 + $0x30] sm:$0xf]
      %v1364 = vld [vmem:[%s1350 + $0x34] sm:$0xf]
      %v1365 = vld [vmem:[%s1350 + $0x38] sm:$0xf]
      %v1366 = vld [vmem:[%s1350 + $0x3c] sm:$0xf]
      %v1367 = vld [vmem:[%s1350 + $0x40] sm:$0xf]
      %v1368 = vld [vmem:[%s1350 + $0x44] sm:$0xf]
      %v1369 = vld [vmem:[%s1350 + $0x48] sm:$0xf]
      %v1370 = vld [vmem:[%s1350 + $0x4c] sm:$0xf]
      %v1371 = vld [vmem:[%s1350 + $0x50] sm:$0xf]
      %v1372 = vld [vmem:[%s1350 + $0x54] sm:$0xf]
      %v1373 = vld [vmem:[%s1350 + $0x58] sm:$0xf]
      %v1374 = vld [vmem:[%s1350 + $0x5c] sm:$0xf]
      %v1375 = vld [vmem:[%s1350 + $0x60] sm:$0xf]
      %v1376 = vld [vmem:[%s1350 + $0x64] sm:$0xf]
      %v1377 = vld [vmem:[%s1350 + $0x68] sm:$0xf]
      %v1378 = vld [vmem:[%s1350 + $0x6c] sm:$0xf]
      %v1379 = vld [vmem:[%s1350 + $0x70] sm:$0xf]
      %v1380 = vld [vmem:[%s1350 + $0x74] sm:$0xf]
      %v1381 = vld [vmem:[%s1350 + $0x78] sm:$0xf]
      %v1382 = vld [vmem:[%s1350 + $0x7c] sm:$0xf]
      %v1383 = vld [vmem:[%s1350 + $0x80] sm:$0xf]
      %v1384 = vld [vmem:[%s1350 + $0x84] sm:$0xf]
      %v1385 = vld [vmem:[%s1350 + $0x88] sm:$0xf]
      %v1386 = vld [vmem:[%s1350 + $0x8c] sm:$0xf]
      %v1387 = vld [vmem:[%s1350 + $0x90] sm:$0xf]
      %v1388 = vld [vmem:[%s1350 + $0x94] sm:$0xf]
      %v1389 = vld [vmem:[%s1350 + $0x98] sm:$0xf]
      %v1390 = vld [vmem:[%s1350 + $0x9c] sm:$0xf]
      %v1391 = vld [vmem:[%s1350 + $0xa0] sm:$0xf]
      %v1392 = vld [vmem:[%s1350 + $0xa4] sm:$0xf]
      %v1393 = vld [vmem:[%s1350 + $0xa8] sm:$0xf]
      %v1394 = vld [vmem:[%s1350 + $0xac] sm:$0xf]
      %v1395 = vld [vmem:[%s1350 + $0xb0] sm:$0xf]
      %v1396 = vld [vmem:[%s1350 + $0xb4] sm:$0xf]
      %v1397 = vld [vmem:[%s1350 + $0xb8] sm:$0xf]
      %v1398 = vld [vmem:[%s1350 + $0xbc] sm:$0xf]
      %v1399 = vld [vmem:[%s1350 + $0xc0] sm:$0xf]
      %v1400 = vld [vmem:[%s1350 + $0xc4] sm:$0xf]
      %v1401 = vld [vmem:[%s1350 + $0xc8] sm:$0xf]
      %v1402 = vld [vmem:[%s1350 + $0xcc] sm:$0xf]
      %v1403 = vld [vmem:[%s1350 + $0xd0] sm:$0xf]
      %v1404 = vld [vmem:[%s1350 + $0xd4] sm:$0xf]
      %v1405 = vld [vmem:[%s1350 + $0xd8] sm:$0xf]
      %v1406 = vld [vmem:[%s1350 + $0xdc] sm:$0xf]
      %v1407 = vld [vmem:[%s1350 + $0xe0] sm:$0xf]
      %v1408 = vld [vmem:[%s1350 + $0xe4] sm:$0xf]
      %v1409 = vld [vmem:[%s1350 + $0xe8] sm:$0xf]
      %v1410 = vld [vmem:[%s1350 + $0xec] sm:$0xf]
      %v1411 = vld [vmem:[%s1350 + $0xf0] sm:$0xf]
      %v1412 = vld [vmem:[%s1350 + $0xf4] sm:$0xf]
      %v1413 = vld [vmem:[%s1350 + $0xf8] sm:$0xf]
      %v1414 = vld [vmem:[%s1350 + $0xfc] sm:$0xf]
      %v1415 = vld [vmem:[%s1350 + $0x100] sm:$0xf]
      %v1416 = vld [vmem:[%s1350 + $0x104] sm:$0xf]
      %v1417 = vld [vmem:[%s1350 + $0x108] sm:$0xf]
      %v1418 = vld [vmem:[%s1350 + $0x10c] sm:$0xf]
      %v1419 = vld [vmem:[%s1350 + $0x110] sm:$0xf]
      %v1420 = vld [vmem:[%s1350 + $0x114] sm:$0xf]
      %v1421 = vld [vmem:[%s1350 + $0x118] sm:$0xf]
      %v1422 = vld [vmem:[%s1350 + $0x11c] sm:$0xf]
      %v1495 = vunpack.c.l.b16 %v1351
      %v1496 = vunpack.c.l.b16 %v1352
      %v1497 = vunpack.c.l.b16 %v1353
      %v1498 = vunpack.c.l.b16 %v1354
      %v1499 = vunpack.c.l.b16 %v1355
      %v1500 = vunpack.c.l.b16 %v1356
      %v1501 = vunpack.c.l.b16 %v1357
      %v1502 = vunpack.c.l.b16 %v1358
      %v1503 = vunpack.c.l.b16 %v1359
      %v1504 = vunpack.c.l.b16 %v1360
      %v1505 = vunpack.c.l.b16 %v1361
      %v1506 = vunpack.c.l.b16 %v1362
      %v1507 = vunpack.c.l.b16 %v1363
      %v1508 = vunpack.c.l.b16 %v1364
      %v1509 = vunpack.c.l.b16 %v1365
      %v1510 = vunpack.c.l.b16 %v1366
      %v1511 = vunpack.c.l.b16 %v1367
      %v1512 = vunpack.c.l.b16 %v1368
      %v1513 = vunpack.c.l.b16 %v1369
      %v1514 = vunpack.c.l.b16 %v1370
      %v1515 = vunpack.c.l.b16 %v1371
      %v1516 = vunpack.c.l.b16 %v1372
      %v1517 = vunpack.c.l.b16 %v1373
      %v1518 = vunpack.c.l.b16 %v1374
      %v1519 = vunpack.c.l.b16 %v1375
      %v1520 = vunpack.c.l.b16 %v1376
      %v1521 = vunpack.c.l.b16 %v1377
      %v1522 = vunpack.c.l.b16 %v1378
      %v1523 = vunpack.c.l.b16 %v1379
      %v1524 = vunpack.c.l.b16 %v1380
      %v1525 = vunpack.c.l.b16 %v1381
      %v1526 = vunpack.c.l.b16 %v1382
      %v1527 = vunpack.c.l.b16 %v1383
      %v1528 = vunpack.c.l.b16 %v1384
      %v1529 = vunpack.c.l.b16 %v1385
      %v1530 = vunpack.c.l.b16 %v1386
      %v1531 = vunpack.c.l.b16 %v1387
      %v1532 = vunpack.c.l.b16 %v1388
      %v1533 = vunpack.c.l.b16 %v1389
      %v1534 = vunpack.c.l.b16 %v1390
      %v1535 = vunpack.c.l.b16 %v1391
      %v1536 = vunpack.c.l.b16 %v1392
      %v1537 = vunpack.c.l.b16 %v1393
      %v1538 = vunpack.c.l.b16 %v1394
      %v1539 = vunpack.c.l.b16 %v1395
      %v1540 = vunpack.c.l.b16 %v1396
      %v1541 = vunpack.c.l.b16 %v1397
      %v1542 = vunpack.c.l.b16 %v1398
      %v1543 = vunpack.c.l.b16 %v1399
      %v1544 = vunpack.c.l.b16 %v1400
      %v1545 = vunpack.c.l.b16 %v1401
      %v1546 = vunpack.c.l.b16 %v1402
      %v1547 = vunpack.c.l.b16 %v1403
      %v1548 = vunpack.c.l.b16 %v1404
      %v1549 = vunpack.c.l.b16 %v1405
      %v1550 = vunpack.c.l.b16 %v1406
      %v1551 = vunpack.c.l.b16 %v1407
      %v1552 = vunpack.c.l.b16 %v1408
      %v1553 = vunpack.c.l.b16 %v1409
      %v1554 = vunpack.c.l.b16 %v1410
      %v1555 = vunpack.c.l.b16 %v1411
      %v1556 = vunpack.c.l.b16 %v1412
      %v1557 = vunpack.c.l.b16 %v1413
      %v1558 = vunpack.c.l.b16 %v1414
      %v1559 = vunpack.c.l.b16 %v1415
      %v1560 = vunpack.c.l.b16 %v1416
      %v1561 = vunpack.c.l.b16 %v1417
      %v1562 = vunpack.c.l.b16 %v1418
      %v1563 = vunpack.c.l.b16 %v1419
      %v1564 = vunpack.c.l.b16 %v1420
      %v1565 = vunpack.c.l.b16 %v1421
      %v1566 = vunpack.c.l.b16 %v1422
      %v1567 = vpack.c.b16 %v1496, %v1495
      %v1568 = vpack.c.b16 %v1498, %v1497
      %v1569 = vpack.c.b16 %v1500, %v1499
      %v1570 = vpack.c.b16 %v1502, %v1501
      %v1571 = vpack.c.b16 %v1504, %v1503
      %v1572 = vpack.c.b16 %v1506, %v1505
      %v1573 = vpack.c.b16 %v1508, %v1507
      %v1574 = vpack.c.b16 %v1510, %v1509
      %v1575 = vpack.c.b16 %v1512, %v1511
      %v1576 = vpack.c.b16 %v1514, %v1513
      %v1577 = vpack.c.b16 %v1516, %v1515
      %v1578 = vpack.c.b16 %v1518, %v1517
      %v1579 = vpack.c.b16 %v1520, %v1519
      %v1580 = vpack.c.b16 %v1522, %v1521
      %v1581 = vpack.c.b16 %v1524, %v1523
      %v1582 = vpack.c.b16 %v1526, %v1525
      %v1583 = vpack.c.b16 %v1528, %v1527
      %v1584 = vpack.c.b16 %v1530, %v1529
      %v1585 = vpack.c.b16 %v1532, %v1531
      %v1586 = vpack.c.b16 %v1534, %v1533
      %v1587 = vpack.c.b16 %v1536, %v1535
      %v1588 = vpack.c.b16 %v1538, %v1537
      %v1589 = vpack.c.b16 %v1540, %v1539
      %v1590 = vpack.c.b16 %v1542, %v1541
      %v1591 = vpack.c.b16 %v1544, %v1543
      %v1592 = vpack.c.b16 %v1546, %v1545
      %v1593 = vpack.c.b16 %v1548, %v1547
      %v1594 = vpack.c.b16 %v1550, %v1549
      %v1595 = vpack.c.b16 %v1552, %v1551
      %v1596 = vpack.c.b16 %v1554, %v1553
      %v1597 = vpack.c.b16 %v1556, %v1555
      %v1598 = vpack.c.b16 %v1558, %v1557
      %v1599 = vpack.c.b16 %v1560, %v1559
      %v1600 = vpack.c.b16 %v1562, %v1561
      %v1601 = vpack.c.b16 %v1564, %v1563
      %v1602 = vpack.c.b16 %v1566, %v1565
      %1639 = vmatpush.bf16.msra.mxu0 %v1574
      %1640 = vmatpush.bf16.msra.mxu0 %v1573
      %1641 = vmatpush.bf16.msra.mxu0 %v1572
      %1642 = vmatpush.bf16.msra.mxu0 %v1571
      %1643 = vmatpush.bf16.msra.mxu0 %v1570
      %1644 = vmatpush.bf16.msra.mxu0 %v1569
      %1645 = vmatpush.bf16.msra.mxu0 %v1568
      %1646 = vmatpush.bf16.msra.mxu0 %v1567
      %1647 = vmatmul.bf16.gmra.mxu0 %v506
      %v1648 = vpop.f32.mrf.mxu0
      %v1649 = vadd.f32 %v405, %v1648
      %v1650 = vpop.f32.mrf.mxu0
      %v1651 = vadd.f32 %v410, %v1650
      %1652 = vmatmul.bf16.gmra.mxu0 %v511
      %v1653 = vpop.f32.mrf.mxu0
      %v1654 = vadd.f32 %v415, %v1653
      %v1655 = vpop.f32.mrf.mxu0
      %v1656 = vadd.f32 %v420, %v1655
      %1657 = vmatmul.bf16.gmra.mxu0 %v516
      %v1658 = vpop.f32.mrf.mxu0
      %v1659 = vadd.f32 %v425, %v1658
      %v1660 = vpop.f32.mrf.mxu0
      %v1661 = vadd.f32 %v430, %v1660
      %1662 = vmatmul.bf16.gmra.mxu0 %v521
      %v1663 = vpop.f32.mrf.mxu0
      %v1664 = vadd.f32 %v435, %v1663
      %v1665 = vpop.f32.mrf.mxu0
      %v1666 = vadd.f32 %v440, %v1665
      %1667 = vdwg.mxu0
      %1668 = vmatpush.bf16.msra.mxu0 %v1582
      %1669 = vmatpush.bf16.msra.mxu0 %v1581
      %1670 = vmatpush.bf16.msra.mxu0 %v1580
      %1671 = vmatpush.bf16.msra.mxu0 %v1579
      %1672 = vmatpush.bf16.msra.mxu0 %v1578
      %1673 = vmatpush.bf16.msra.mxu0 %v1577
      %1674 = vmatpush.bf16.msra.mxu0 %v1576
      %1675 = vmatpush.bf16.msra.mxu0 %v1575
      %1676 = vmatmul.bf16.gmra.mxu0 %v507
      %v1677 = vpop.f32.mrf.mxu0
      %v1678 = vadd.f32 %v1649, %v1677
      %v1679 = vpop.f32.mrf.mxu0
      %v1680 = vadd.f32 %v1651, %v1679
      %1681 = vmatmul.bf16.gmra.mxu0 %v512
      %v1682 = vpop.f32.mrf.mxu0
      %v1683 = vadd.f32 %v1654, %v1682
      %v1684 = vpop.f32.mrf.mxu0
      %v1685 = vadd.f32 %v1656, %v1684
      %1686 = vmatmul.bf16.gmra.mxu0 %v517
      %v1687 = vpop.f32.mrf.mxu0
      %v1688 = vadd.f32 %v1659, %v1687
      %v1689 = vpop.f32.mrf.mxu0
      %v1690 = vadd.f32 %v1661, %v1689
      %1691 = vmatmul.bf16.gmra.mxu0 %v522
      %v1692 = vpop.f32.mrf.mxu0
      %v1693 = vadd.f32 %v1664, %v1692
      %v1694 = vpop.f32.mrf.mxu0
      %v1695 = vadd.f32 %v1666, %v1694
      %1696 = vdwg.mxu0
      %1697 = vmatpush.bf16.msra.mxu0 %v1590
      %1698 = vmatpush.bf16.msra.mxu0 %v1589
      %1699 = vmatpush.bf16.msra.mxu0 %v1588
      %1700 = vmatpush.bf16.msra.mxu0 %v1587
      %1701 = vmatpush.bf16.msra.mxu0 %v1586
      %1702 = vmatpush.bf16.msra.mxu0 %v1585
      %1703 = vmatpush.bf16.msra.mxu0 %v1584
      %1704 = vmatpush.bf16.msra.mxu0 %v1583
      %1705 = vmatmul.bf16.gmra.mxu0 %v508
      %v1706 = vpop.f32.mrf.mxu0
      %v1707 = vadd.f32 %v1678, %v1706
      %v1708 = vpop.f32.mrf.mxu0
      %v1709 = vadd.f32 %v1680, %v1708
      %1710 = vmatmul.bf16.gmra.mxu0 %v513
      %v1711 = vpop.f32.mrf.mxu0
      %v1712 = vadd.f32 %v1683, %v1711
      %v1713 = vpop.f32.mrf.mxu0
      %v1714 = vadd.f32 %v1685, %v1713
      %1715 = vmatmul.bf16.gmra.mxu0 %v518
      %v1716 = vpop.f32.mrf.mxu0
      %v1717 = vadd.f32 %v1688, %v1716
      %v1718 = vpop.f32.mrf.mxu0
      %v1719 = vadd.f32 %v1690, %v1718
      %1720 = vmatmul.bf16.gmra.mxu0 %v523
      %v1721 = vpop.f32.mrf.mxu0
      %v1722 = vadd.f32 %v1693, %v1721
      %v1723 = vpop.f32.mrf.mxu0
      %v1724 = vadd.f32 %v1695, %v1723
      %1725 = vdwg.mxu0
      %1726 = vmatpush.bf16.msra.mxu0 %v1598
      %1727 = vmatpush.bf16.msra.mxu0 %v1597
      %1728 = vmatpush.bf16.msra.mxu0 %v1596
      %1729 = vmatpush.bf16.msra.mxu0 %v1595
      %1730 = vmatpush.bf16.msra.mxu0 %v1594
      %1731 = vmatpush.bf16.msra.mxu0 %v1593
      %1732 = vmatpush.bf16.msra.mxu0 %v1592
      %1733 = vmatpush.bf16.msra.mxu0 %v1591
      %1734 = vmatmul.bf16.gmra.mxu0 %v509
      %v1735 = vpop.f32.mrf.mxu0
      %v1736 = vadd.f32 %v1707, %v1735
      %v1737 = vpop.f32.mrf.mxu0
      %v1738 = vadd.f32 %v1709, %v1737
      %1739 = vmatmul.bf16.gmra.mxu0 %v514
      %v1740 = vpop.f32.mrf.mxu0
      %v1741 = vadd.f32 %v1712, %v1740
      %v1742 = vpop.f32.mrf.mxu0
      %v1743 = vadd.f32 %v1714, %v1742
      %1744 = vmatmul.bf16.gmra.mxu0 %v519
      %v1745 = vpop.f32.mrf.mxu0
      %v1746 = vadd.f32 %v1717, %v1745
      %v1747 = vpop.f32.mrf.mxu0
      %v1748 = vadd.f32 %v1719, %v1747
      %1749 = vmatmul.bf16.gmra.mxu0 %v524
      %v1750 = vpop.f32.mrf.mxu0
      %v1751 = vadd.f32 %v1722, %v1750
      %v1752 = vpop.f32.mrf.mxu0
      %v1753 = vadd.f32 %v1724, %v1752
      %1754 = vdwg.mxu0
      %1755 = vmatpush.bf16.msra.mxu0 0
      %1756 = vmatpush.bf16.msra.mxu0 0
      %1757 = vmatpush.bf16.msra.mxu0 0
      %1758 = vmatpush.bf16.msra.mxu0 0
      %1759 = vmatpush.bf16.msra.mxu0 %v1602
      %1760 = vmatpush.bf16.msra.mxu0 %v1601
      %1761 = vmatpush.bf16.msra.mxu0 %v1600
      %1762 = vmatpush.bf16.msra.mxu0 %v1599
      %1763 = vmatmul.bf16.gmra.mxu0 %v760
      %v1764 = vpop.f32.mrf.mxu0
      %v1765 = vadd.f32 %v1736, %v1764
      %v1766 = vpop.f32.mrf.mxu0
      %v1767 = vadd.f32 %v1738, %v1766
      %1768 = vmatmul.bf16.gmra.mxu0 %v763
      %v1769 = vpop.f32.mrf.mxu0
      %v1770 = vadd.f32 %v1741, %v1769
      %v1771 = vpop.f32.mrf.mxu0
      %v1772 = vadd.f32 %v1743, %v1771
      %1773 = vmatmul.bf16.gmra.mxu0 %v766
      %v1774 = vpop.f32.mrf.mxu0
      %v1775 = vadd.f32 %v1746, %v1774
      %v1776 = vpop.f32.mrf.mxu0
      %v1777 = vadd.f32 %v1748, %v1776
      %1778 = vmatmul.bf16.gmra.mxu0 %v769
      %v1779 = vpop.f32.mrf.mxu0
      %v1780 = vadd.f32 %v1751, %v1779
      %v1781 = vpop.f32.mrf.mxu0
      %v1782 = vadd.f32 %v1753, %v1781
      %1783 = vdwg.mxu0
      %s1784 = scalar_lea.vmem %s0, 864
      %v1785 = vld [vmem:[%s1784] sm:$0xf]
      %v1786 = vld [vmem:[%s1784 + $0x4] sm:$0xf]
      %v1787 = vld [vmem:[%s1784 + $0x8] sm:$0xf]
      %v1788 = vld [vmem:[%s1784 + $0xc] sm:$0xf]
      %v1789 = vld [vmem:[%s1784 + $0x10] sm:$0xf]
      %v1790 = vld [vmem:[%s1784 + $0x14] sm:$0xf]
      %v1791 = vld [vmem:[%s1784 + $0x18] sm:$0xf]
      %v1792 = vld [vmem:[%s1784 + $0x1c] sm:$0xf]
      %v1793 = vld [vmem:[%s1784 + $0x20] sm:$0xf]
      %v1794 = vld [vmem:[%s1784 + $0x24] sm:$0xf]
      %v1795 = vld [vmem:[%s1784 + $0x28] sm:$0xf]
      %v1796 = vld [vmem:[%s1784 + $0x2c] sm:$0xf]
      %v1797 = vld [vmem:[%s1784 + $0x30] sm:$0xf]
      %v1798 = vld [vmem:[%s1784 + $0x34] sm:$0xf]
      %v1799 = vld [vmem:[%s1784 + $0x38] sm:$0xf]
      %v1800 = vld [vmem:[%s1784 + $0x3c] sm:$0xf]
      %v1801 = vld [vmem:[%s1784 + $0x40] sm:$0xf]
      %v1802 = vld [vmem:[%s1784 + $0x44] sm:$0xf]
      %v1803 = vld [vmem:[%s1784 + $0x48] sm:$0xf]
      %v1804 = vld [vmem:[%s1784 + $0x4c] sm:$0xf]
      %v1805 = vld [vmem:[%s1784 + $0x50] sm:$0xf]
      %v1806 = vld [vmem:[%s1784 + $0x54] sm:$0xf]
      %v1807 = vld [vmem:[%s1784 + $0x58] sm:$0xf]
      %v1808 = vld [vmem:[%s1784 + $0x5c] sm:$0xf]
      %v1809 = vld [vmem:[%s1784 + $0x60] sm:$0xf]
      %v1810 = vld [vmem:[%s1784 + $0x64] sm:$0xf]
      %v1811 = vld [vmem:[%s1784 + $0x68] sm:$0xf]
      %v1812 = vld [vmem:[%s1784 + $0x6c] sm:$0xf]
      %v1813 = vld [vmem:[%s1784 + $0x70] sm:$0xf]
      %v1814 = vld [vmem:[%s1784 + $0x74] sm:$0xf]
      %v1815 = vld [vmem:[%s1784 + $0x78] sm:$0xf]
      %v1816 = vld [vmem:[%s1784 + $0x7c] sm:$0xf]
      %v1817 = vld [vmem:[%s1784 + $0x80] sm:$0xf]
      %v1818 = vld [vmem:[%s1784 + $0x84] sm:$0xf]
      %v1819 = vld [vmem:[%s1784 + $0x88] sm:$0xf]
      %v1820 = vld [vmem:[%s1784 + $0x8c] sm:$0xf]
      %v1821 = vld [vmem:[%s1784 + $0x90] sm:$0xf]
      %v1822 = vld [vmem:[%s1784 + $0x94] sm:$0xf]
      %v1823 = vld [vmem:[%s1784 + $0x98] sm:$0xf]
      %v1824 = vld [vmem:[%s1784 + $0x9c] sm:$0xf]
      %v1825 = vld [vmem:[%s1784 + $0xa0] sm:$0xf]
      %v1826 = vld [vmem:[%s1784 + $0xa4] sm:$0xf]
      %v1827 = vld [vmem:[%s1784 + $0xa8] sm:$0xf]
      %v1828 = vld [vmem:[%s1784 + $0xac] sm:$0xf]
      %v1829 = vld [vmem:[%s1784 + $0xb0] sm:$0xf]
      %v1830 = vld [vmem:[%s1784 + $0xb4] sm:$0xf]
      %v1831 = vld [vmem:[%s1784 + $0xb8] sm:$0xf]
      %v1832 = vld [vmem:[%s1784 + $0xbc] sm:$0xf]
      %v1833 = vld [vmem:[%s1784 + $0xc0] sm:$0xf]
      %v1834 = vld [vmem:[%s1784 + $0xc4] sm:$0xf]
      %v1835 = vld [vmem:[%s1784 + $0xc8] sm:$0xf]
      %v1836 = vld [vmem:[%s1784 + $0xcc] sm:$0xf]
      %v1837 = vld [vmem:[%s1784 + $0xd0] sm:$0xf]
      %v1838 = vld [vmem:[%s1784 + $0xd4] sm:$0xf]
      %v1839 = vld [vmem:[%s1784 + $0xd8] sm:$0xf]
      %v1840 = vld [vmem:[%s1784 + $0xdc] sm:$0xf]
      %v1841 = vld [vmem:[%s1784 + $0xe0] sm:$0xf]
      %v1842 = vld [vmem:[%s1784 + $0xe4] sm:$0xf]
      %v1843 = vld [vmem:[%s1784 + $0xe8] sm:$0xf]
      %v1844 = vld [vmem:[%s1784 + $0xec] sm:$0xf]
      %v1845 = vld [vmem:[%s1784 + $0xf0] sm:$0xf]
      %v1846 = vld [vmem:[%s1784 + $0xf4] sm:$0xf]
      %v1847 = vld [vmem:[%s1784 + $0xf8] sm:$0xf]
      %v1848 = vld [vmem:[%s1784 + $0xfc] sm:$0xf]
      %v1849 = vld [vmem:[%s1784 + $0x100] sm:$0xf]
      %v1850 = vld [vmem:[%s1784 + $0x104] sm:$0xf]
      %v1851 = vld [vmem:[%s1784 + $0x108] sm:$0xf]
      %v1852 = vld [vmem:[%s1784 + $0x10c] sm:$0xf]
      %v1853 = vld [vmem:[%s1784 + $0x110] sm:$0xf]
      %v1854 = vld [vmem:[%s1784 + $0x114] sm:$0xf]
      %v1855 = vld [vmem:[%s1784 + $0x118] sm:$0xf]
      %v1856 = vld [vmem:[%s1784 + $0x11c] sm:$0xf]
      %v1929 = vunpack.c.l.b16 %v1785
      %v1930 = vunpack.c.l.b16 %v1786
      %v1931 = vunpack.c.l.b16 %v1787
      %v1932 = vunpack.c.l.b16 %v1788
      %v1933 = vunpack.c.l.b16 %v1789
      %v1934 = vunpack.c.l.b16 %v1790
      %v1935 = vunpack.c.l.b16 %v1791
      %v1936 = vunpack.c.l.b16 %v1792
      %v1937 = vunpack.c.l.b16 %v1793
      %v1938 = vunpack.c.l.b16 %v1794
      %v1939 = vunpack.c.l.b16 %v1795
      %v1940 = vunpack.c.l.b16 %v1796
      %v1941 = vunpack.c.l.b16 %v1797
      %v1942 = vunpack.c.l.b16 %v1798
      %v1943 = vunpack.c.l.b16 %v1799
      %v1944 = vunpack.c.l.b16 %v1800
      %v1945 = vunpack.c.l.b16 %v1801
      %v1946 = vunpack.c.l.b16 %v1802
      %v1947 = vunpack.c.l.b16 %v1803
      %v1948 = vunpack.c.l.b16 %v1804
      %v1949 = vunpack.c.l.b16 %v1805
      %v1950 = vunpack.c.l.b16 %v1806
      %v1951 = vunpack.c.l.b16 %v1807
      %v1952 = vunpack.c.l.b16 %v1808
      %v1953 = vunpack.c.l.b16 %v1809
      %v1954 = vunpack.c.l.b16 %v1810
      %v1955 = vunpack.c.l.b16 %v1811
      %v1956 = vunpack.c.l.b16 %v1812
      %v1957 = vunpack.c.l.b16 %v1813
      %v1958 = vunpack.c.l.b16 %v1814
      %v1959 = vunpack.c.l.b16 %v1815
      %v1960 = vunpack.c.l.b16 %v1816
      %v1961 = vunpack.c.l.b16 %v1817
      %v1962 = vunpack.c.l.b16 %v1818
      %v1963 = vunpack.c.l.b16 %v1819
      %v1964 = vunpack.c.l.b16 %v1820
      %v1965 = vunpack.c.l.b16 %v1821
      %v1966 = vunpack.c.l.b16 %v1822
      %v1967 = vunpack.c.l.b16 %v1823
      %v1968 = vunpack.c.l.b16 %v1824
      %v1969 = vunpack.c.l.b16 %v1825
      %v1970 = vunpack.c.l.b16 %v1826
      %v1971 = vunpack.c.l.b16 %v1827
      %v1972 = vunpack.c.l.b16 %v1828
      %v1973 = vunpack.c.l.b16 %v1829
      %v1974 = vunpack.c.l.b16 %v1830
      %v1975 = vunpack.c.l.b16 %v1831
      %v1976 = vunpack.c.l.b16 %v1832
      %v1977 = vunpack.c.l.b16 %v1833
      %v1978 = vunpack.c.l.b16 %v1834
      %v1979 = vunpack.c.l.b16 %v1835
      %v1980 = vunpack.c.l.b16 %v1836
      %v1981 = vunpack.c.l.b16 %v1837
      %v1982 = vunpack.c.l.b16 %v1838
      %v1983 = vunpack.c.l.b16 %v1839
      %v1984 = vunpack.c.l.b16 %v1840
      %v1985 = vunpack.c.l.b16 %v1841
      %v1986 = vunpack.c.l.b16 %v1842
      %v1987 = vunpack.c.l.b16 %v1843
      %v1988 = vunpack.c.l.b16 %v1844
      %v1989 = vunpack.c.l.b16 %v1845
      %v1990 = vunpack.c.l.b16 %v1846
      %v1991 = vunpack.c.l.b16 %v1847
      %v1992 = vunpack.c.l.b16 %v1848
      %v1993 = vunpack.c.l.b16 %v1849
      %v1994 = vunpack.c.l.b16 %v1850
      %v1995 = vunpack.c.l.b16 %v1851
      %v1996 = vunpack.c.l.b16 %v1852
      %v1997 = vunpack.c.l.b16 %v1853
      %v1998 = vunpack.c.l.b16 %v1854
      %v1999 = vunpack.c.l.b16 %v1855
      %v2000 = vunpack.c.l.b16 %v1856
      %v2001 = vpack.c.b16 %v1930, %v1929
      %v2002 = vpack.c.b16 %v1932, %v1931
      %v2003 = vpack.c.b16 %v1934, %v1933
      %v2004 = vpack.c.b16 %v1936, %v1935
      %v2005 = vpack.c.b16 %v1938, %v1937
      %v2006 = vpack.c.b16 %v1940, %v1939
      %v2007 = vpack.c.b16 %v1942, %v1941
      %v2008 = vpack.c.b16 %v1944, %v1943
      %v2009 = vpack.c.b16 %v1946, %v1945
      %v2010 = vpack.c.b16 %v1948, %v1947
      %v2011 = vpack.c.b16 %v1950, %v1949
      %v2012 = vpack.c.b16 %v1952, %v1951
      %v2013 = vpack.c.b16 %v1954, %v1953
      %v2014 = vpack.c.b16 %v1956, %v1955
      %v2015 = vpack.c.b16 %v1958, %v1957
      %v2016 = vpack.c.b16 %v1960, %v1959
      %v2017 = vpack.c.b16 %v1962, %v1961
      %v2018 = vpack.c.b16 %v1964, %v1963
      %v2019 = vpack.c.b16 %v1966, %v1965
      %v2020 = vpack.c.b16 %v1968, %v1967
      %v2021 = vpack.c.b16 %v1970, %v1969
      %v2022 = vpack.c.b16 %v1972, %v1971
      %v2023 = vpack.c.b16 %v1974, %v1973
      %v2024 = vpack.c.b16 %v1976, %v1975
      %v2025 = vpack.c.b16 %v1978, %v1977
      %v2026 = vpack.c.b16 %v1980, %v1979
      %v2027 = vpack.c.b16 %v1982, %v1981
      %v2028 = vpack.c.b16 %v1984, %v1983
      %v2029 = vpack.c.b16 %v1986, %v1985
      %v2030 = vpack.c.b16 %v1988, %v1987
      %v2031 = vpack.c.b16 %v1990, %v1989
      %v2032 = vpack.c.b16 %v1992, %v1991
      %v2033 = vpack.c.b16 %v1994, %v1993
      %v2034 = vpack.c.b16 %v1996, %v1995
      %v2035 = vpack.c.b16 %v1998, %v1997
      %v2036 = vpack.c.b16 %v2000, %v1999
      %2073 = vmatpush.bf16.msra.mxu0 %v2008
      %2074 = vmatpush.bf16.msra.mxu0 %v2007
      %2075 = vmatpush.bf16.msra.mxu0 %v2006
      %2076 = vmatpush.bf16.msra.mxu0 %v2005
      %2077 = vmatpush.bf16.msra.mxu0 %v2004
      %2078 = vmatpush.bf16.msra.mxu0 %v2003
      %2079 = vmatpush.bf16.msra.mxu0 %v2002
      %2080 = vmatpush.bf16.msra.mxu0 %v2001
      %2081 = vmatmul.bf16.gmra.mxu0 %v506
      %v2082 = vpop.f32.mrf.mxu0
      %v2083 = vadd.f32 %v405, %v2082
      %v2084 = vpop.f32.mrf.mxu0
      %v2085 = vadd.f32 %v410, %v2084
      %2086 = vmatmul.bf16.gmra.mxu0 %v511
      %v2087 = vpop.f32.mrf.mxu0
      %v2088 = vadd.f32 %v415, %v2087
      %v2089 = vpop.f32.mrf.mxu0
      %v2090 = vadd.f32 %v420, %v2089
      %2091 = vmatmul.bf16.gmra.mxu0 %v516
      %v2092 = vpop.f32.mrf.mxu0
      %v2093 = vadd.f32 %v425, %v2092
      %v2094 = vpop.f32.mrf.mxu0
      %v2095 = vadd.f32 %v430, %v2094
      %2096 = vmatmul.bf16.gmra.mxu0 %v521
      %v2097 = vpop.f32.mrf.mxu0
      %v2098 = vadd.f32 %v435, %v2097
      %v2099 = vpop.f32.mrf.mxu0
      %v2100 = vadd.f32 %v440, %v2099
      %2101 = vdwg.mxu0
      %2102 = vmatpush.bf16.msra.mxu0 %v2016
      %2103 = vmatpush.bf16.msra.mxu0 %v2015
      %2104 = vmatpush.bf16.msra.mxu0 %v2014
      %2105 = vmatpush.bf16.msra.mxu0 %v2013
      %2106 = vmatpush.bf16.msra.mxu0 %v2012
      %2107 = vmatpush.bf16.msra.mxu0 %v2011
      %2108 = vmatpush.bf16.msra.mxu0 %v2010
      %2109 = vmatpush.bf16.msra.mxu0 %v2009
      %2110 = vmatmul.bf16.gmra.mxu0 %v507
      %v2111 = vpop.f32.mrf.mxu0
      %v2112 = vadd.f32 %v2083, %v2111
      %v2113 = vpop.f32.mrf.mxu0
      %v2114 = vadd.f32 %v2085, %v2113
      %2115 = vmatmul.bf16.gmra.mxu0 %v512
      %v2116 = vpop.f32.mrf.mxu0
      %v2117 = vadd.f32 %v2088, %v2116
      %v2118 = vpop.f32.mrf.mxu0
      %v2119 = vadd.f32 %v2090, %v2118
      %2120 = vmatmul.bf16.gmra.mxu0 %v517
      %v2121 = vpop.f32.mrf.mxu0
      %v2122 = vadd.f32 %v2093, %v2121
      %v2123 = vpop.f32.mrf.mxu0
      %v2124 = vadd.f32 %v2095, %v2123
      %2125 = vmatmul.bf16.gmra.mxu0 %v522
      %v2126 = vpop.f32.mrf.mxu0
      %v2127 = vadd.f32 %v2098, %v2126
      %v2128 = vpop.f32.mrf.mxu0
      %v2129 = vadd.f32 %v2100, %v2128
      %2130 = vdwg.mxu0
      %2131 = vmatpush.bf16.msra.mxu0 %v2024
      %2132 = vmatpush.bf16.msra.mxu0 %v2023
      %2133 = vmatpush.bf16.msra.mxu0 %v2022
      %2134 = vmatpush.bf16.msra.mxu0 %v2021
      %2135 = vmatpush.bf16.msra.mxu0 %v2020
      %2136 = vmatpush.bf16.msra.mxu0 %v2019
      %2137 = vmatpush.bf16.msra.mxu0 %v2018
      %2138 = vmatpush.bf16.msra.mxu0 %v2017
      %2139 = vmatmul.bf16.gmra.mxu0 %v508
      %v2140 = vpop.f32.mrf.mxu0
      %v2141 = vadd.f32 %v2112, %v2140
      %v2142 = vpop.f32.mrf.mxu0
      %v2143 = vadd.f32 %v2114, %v2142
      %2144 = vmatmul.bf16.gmra.mxu0 %v513
      %v2145 = vpop.f32.mrf.mxu0
      %v2146 = vadd.f32 %v2117, %v2145
      %v2147 = vpop.f32.mrf.mxu0
      %v2148 = vadd.f32 %v2119, %v2147
      %2149 = vmatmul.bf16.gmra.mxu0 %v518
      %v2150 = vpop.f32.mrf.mxu0
      %v2151 = vadd.f32 %v2122, %v2150
      %v2152 = vpop.f32.mrf.mxu0
      %v2153 = vadd.f32 %v2124, %v2152
      %2154 = vmatmul.bf16.gmra.mxu0 %v523
      %v2155 = vpop.f32.mrf.mxu0
      %v2156 = vadd.f32 %v2127, %v2155
      %v2157 = vpop.f32.mrf.mxu0
      %v2158 = vadd.f32 %v2129, %v2157
      %2159 = vdwg.mxu0
      %2160 = vmatpush.bf16.msra.mxu0 %v2032
      %2161 = vmatpush.bf16.msra.mxu0 %v2031
      %2162 = vmatpush.bf16.msra.mxu0 %v2030
      %2163 = vmatpush.bf16.msra.mxu0 %v2029
      %2164 = vmatpush.bf16.msra.mxu0 %v2028
      %2165 = vmatpush.bf16.msra.mxu0 %v2027
      %2166 = vmatpush.bf16.msra.mxu0 %v2026
      %2167 = vmatpush.bf16.msra.mxu0 %v2025
      %2168 = vmatmul.bf16.gmra.mxu0 %v509
      %v2169 = vpop.f32.mrf.mxu0
      %v2170 = vadd.f32 %v2141, %v2169
      %v2171 = vpop.f32.mrf.mxu0
      %v2172 = vadd.f32 %v2143, %v2171
      %2173 = vmatmul.bf16.gmra.mxu0 %v514
      %v2174 = vpop.f32.mrf.mxu0
      %v2175 = vadd.f32 %v2146, %v2174
      %v2176 = vpop.f32.mrf.mxu0
      %v2177 = vadd.f32 %v2148, %v2176
      %2178 = vmatmul.bf16.gmra.mxu0 %v519
      %v2179 = vpop.f32.mrf.mxu0
      %v2180 = vadd.f32 %v2151, %v2179
      %v2181 = vpop.f32.mrf.mxu0
      %v2182 = vadd.f32 %v2153, %v2181
      %2183 = vmatmul.bf16.gmra.mxu0 %v524
      %v2184 = vpop.f32.mrf.mxu0
      %v2185 = vadd.f32 %v2156, %v2184
      %v2186 = vpop.f32.mrf.mxu0
      %v2187 = vadd.f32 %v2158, %v2186
      %2188 = vdwg.mxu0
      %2189 = vmatpush.bf16.msra.mxu0 0
      %2190 = vmatpush.bf16.msra.mxu0 0
      %2191 = vmatpush.bf16.msra.mxu0 0
      %2192 = vmatpush.bf16.msra.mxu0 0
      %2193 = vmatpush.bf16.msra.mxu0 %v2036
      %2194 = vmatpush.bf16.msra.mxu0 %v2035
      %2195 = vmatpush.bf16.msra.mxu0 %v2034
      %2196 = vmatpush.bf16.msra.mxu0 %v2033
      %2197 = vmatmul.bf16.gmra.mxu0 %v760
      %v2198 = vpop.f32.mrf.mxu0
      %v2199 = vadd.f32 %v2170, %v2198
      %v2200 = vpop.f32.mrf.mxu0
      %v2201 = vadd.f32 %v2172, %v2200
      %2202 = vmatmul.bf16.gmra.mxu0 %v763
      %v2203 = vpop.f32.mrf.mxu0
      %v2204 = vadd.f32 %v2175, %v2203
      %v2205 = vpop.f32.mrf.mxu0
      %v2206 = vadd.f32 %v2177, %v2205
      %2207 = vmatmul.bf16.gmra.mxu0 %v766
      %v2208 = vpop.f32.mrf.mxu0
      %v2209 = vadd.f32 %v2180, %v2208
      %v2210 = vpop.f32.mrf.mxu0
      %v2211 = vadd.f32 %v2182, %v2210
      %2212 = vmatmul.bf16.gmra.mxu0 %v769
      %v2213 = vpop.f32.mrf.mxu0
      %v2214 = vadd.f32 %v2185, %v2213
      %v2215 = vpop.f32.mrf.mxu0
      %v2216 = vadd.f32 %v2187, %v2215
      %2217 = vdwg.mxu0
      %v2218 = vadd.f32 %v897, %v1331
      %v2219 = vadd.f32 %v899, %v1333
      %v2220 = vadd.f32 %v902, %v1336
      %v2221 = vadd.f32 %v904, %v1338
      %v2222 = vadd.f32 %v907, %v1341
      %v2223 = vadd.f32 %v909, %v1343
      %v2224 = vadd.f32 %v912, %v1346
      %v2225 = vadd.f32 %v914, %v1348
      %v2226 = vadd.f32 %v2218, %v1765
      %v2227 = vadd.f32 %v2219, %v1767
      %v2228 = vadd.f32 %v2220, %v1770
      %v2229 = vadd.f32 %v2221, %v1772
      %v2230 = vadd.f32 %v2222, %v1775
      %v2231 = vadd.f32 %v2223, %v1777
      %v2232 = vadd.f32 %v2224, %v1780
      %v2233 = vadd.f32 %v2225, %v1782
      %v2234 = vadd.f32 %v2226, %v2199
      %v2235 = vadd.f32 %v2227, %v2201
      %v2236 = vadd.f32 %v2228, %v2204
      %v2237 = vadd.f32 %v2229, %v2206
      %v2238 = vadd.f32 %v2230, %v2209
      %v2239 = vadd.f32 %v2231, %v2211
      %v2240 = vadd.f32 %v2232, %v2214
      %v2241 = vadd.f32 %v2233, %v2216
      %vm2242 = vcmask 64512
      %v2243 = vsel %vm2242, %v2234, 0.0
      %2244 = vadd.xlane.f32.xlu0 %v2243
      %v2245 = vpop.xlane.xlu0 %2244
      %v2246 = vsel %vm2242, %v2235, 0.0
      %2247 = vadd.xlane.f32.xlu0 %v2246
      %v2248 = vpop.xlane.xlu0 %2247
      %v2249 = vsel %vm2242, %v2236, 0.0
      %2250 = vadd.xlane.f32.xlu0 %v2249
      %v2251 = vpop.xlane.xlu0 %2250
      %v2252 = vsel %vm2242, %v2237, 0.0
      %2253 = vadd.xlane.f32.xlu0 %v2252
      %v2254 = vpop.xlane.xlu0 %2253
      %v2255 = vsel %vm2242, %v2238, 0.0
      %2256 = vadd.xlane.f32.xlu0 %v2255
      %v2257 = vpop.xlane.xlu0 %2256
      %v2258 = vsel %vm2242, %v2239, 0.0
      %2259 = vadd.xlane.f32.xlu0 %v2258
      %v2260 = vpop.xlane.xlu0 %2259
      %v2261 = vsel %vm2242, %v2240, 0.0
      %2262 = vadd.xlane.f32.xlu0 %v2261
      %v2263 = vpop.xlane.xlu0 %2262
      %v2264 = vsel %vm2242, %v2241, 0.0
      %2265 = vadd.xlane.f32.xlu0 %v2264
      %v2266 = vpop.xlane.xlu0 %2265
      %v2267 = vmul.f32 %v2245, 0.03125
      %v2268 = vmul.f32 %v2248, 0.03125
      %v2269 = vmul.f32 %v2251, 0.03125
      %v2270 = vmul.f32 %v2254, 0.03125
      %v2271 = vmul.f32 %v2257, 0.03125
      %v2272 = vmul.f32 %v2260, 0.03125
      %v2273 = vmul.f32 %v2263, 0.03125
      %v2274 = vmul.f32 %v2266, 0.03125
      %v2275 = vsub.f32 %v897, %v2267
      %v2276 = vsub.f32 %v899, %v2268
      %v2277 = vsub.f32 %v902, %v2269
      %v2278 = vsub.f32 %v904, %v2270
      %v2279 = vsub.f32 %v907, %v2271
      %v2280 = vsub.f32 %v909, %v2272
      %v2281 = vsub.f32 %v912, %v2273
      %v2282 = vsub.f32 %v914, %v2274
      %v2283 = vmul.f32 %v2275, %v2275
      %v2284 = vmul.f32 %v2276, %v2276
      %v2285 = vmul.f32 %v2277, %v2277
      %v2286 = vmul.f32 %v2278, %v2278
      %v2287 = vmul.f32 %v2279, %v2279
      %v2288 = vmul.f32 %v2280, %v2280
      %v2289 = vmul.f32 %v2281, %v2281
      %v2290 = vmul.f32 %v2282, %v2282
      %v2291 = vsel %vm2242, %v2283, 0.0
      %2292 = vadd.xlane.f32.xlu0 %v2291
      %v2293 = vpop.xlane.xlu0 %2292
      %v2294 = vsel %vm2242, %v2284, 0.0
      %2295 = vadd.xlane.f32.xlu0 %v2294
      %v2296 = vpop.xlane.xlu0 %2295
      %v2297 = vsel %vm2242, %v2285, 0.0
      %2298 = vadd.xlane.f32.xlu0 %v2297
      %v2299 = vpop.xlane.xlu0 %2298
      %v2300 = vsel %vm2242, %v2286, 0.0
      %2301 = vadd.xlane.f32.xlu0 %v2300
      %v2302 = vpop.xlane.xlu0 %2301
      %v2303 = vsel %vm2242, %v2287, 0.0
      %2304 = vadd.xlane.f32.xlu0 %v2303
      %v2305 = vpop.xlane.xlu0 %2304
      %v2306 = vsel %vm2242, %v2288, 0.0
      %2307 = vadd.xlane.f32.xlu0 %v2306
      %v2308 = vpop.xlane.xlu0 %2307
      %v2309 = vsel %vm2242, %v2289, 0.0
      %2310 = vadd.xlane.f32.xlu0 %v2309
      %v2311 = vpop.xlane.xlu0 %2310
      %v2312 = vsel %vm2242, %v2290, 0.0
      %2313 = vadd.xlane.f32.xlu0 %v2312
      %v2314 = vpop.xlane.xlu0 %2313
      %v2315 = vsub.f32 %v1331, %v2267
      %v2316 = vsub.f32 %v1333, %v2268
      %v2317 = vsub.f32 %v1336, %v2269
      %v2318 = vsub.f32 %v1338, %v2270
      %v2319 = vsub.f32 %v1341, %v2271
      %v2320 = vsub.f32 %v1343, %v2272
      %v2321 = vsub.f32 %v1346, %v2273
      %v2322 = vsub.f32 %v1348, %v2274
      %v2323 = vmul.f32 %v2315, %v2315
      %v2324 = vmul.f32 %v2316, %v2316
      %v2325 = vmul.f32 %v2317, %v2317
      %v2326 = vmul.f32 %v2318, %v2318
      %v2327 = vmul.f32 %v2319, %v2319
      %v2328 = vmul.f32 %v2320, %v2320
      %v2329 = vmul.f32 %v2321, %v2321
      %v2330 = vmul.f32 %v2322, %v2322
      %v2331 = vsel %vm2242, %v2323, 0.0
      %2332 = vadd.xlane.f32.xlu0 %v2331
      %v2333 = vpop.xlane.xlu0 %2332
      %v2334 = vsel %vm2242, %v2324, 0.0
      %2335 = vadd.xlane.f32.xlu0 %v2334
      %v2336 = vpop.xlane.xlu0 %2335
      %v2337 = vsel %vm2242, %v2325, 0.0
      %2338 = vadd.xlane.f32.xlu0 %v2337
      %v2339 = vpop.xlane.xlu0 %2338
      %v2340 = vsel %vm2242, %v2326, 0.0
      %2341 = vadd.xlane.f32.xlu0 %v2340
      %v2342 = vpop.xlane.xlu0 %2341
      %v2343 = vsel %vm2242, %v2327, 0.0
      %2344 = vadd.xlane.f32.xlu0 %v2343
      %v2345 = vpop.xlane.xlu0 %2344
      %v2346 = vsel %vm2242, %v2328, 0.0
      %2347 = vadd.xlane.f32.xlu0 %v2346
      %v2348 = vpop.xlane.xlu0 %2347
      %v2349 = vsel %vm2242, %v2329, 0.0
      %2350 = vadd.xlane.f32.xlu0 %v2349
      %v2351 = vpop.xlane.xlu0 %2350
      %v2352 = vsel %vm2242, %v2330, 0.0
      %2353 = vadd.xlane.f32.xlu0 %v2352
      %v2354 = vpop.xlane.xlu0 %2353
      %v2355 = vadd.f32 %v2293, %v2333
      %v2356 = vadd.f32 %v2296, %v2336
      %v2357 = vadd.f32 %v2299, %v2339
      %v2358 = vadd.f32 %v2302, %v2342
      %v2359 = vadd.f32 %v2305, %v2345
      %v2360 = vadd.f32 %v2308, %v2348
      %v2361 = vadd.f32 %v2311, %v2351
      %v2362 = vadd.f32 %v2314, %v2354
      %v2363 = vsub.f32 %v1765, %v2267
      %v2364 = vsub.f32 %v1767, %v2268
      %v2365 = vsub.f32 %v1770, %v2269
      %v2366 = vsub.f32 %v1772, %v2270
      %v2367 = vsub.f32 %v1775, %v2271
      %v2368 = vsub.f32 %v1777, %v2272
      %v2369 = vsub.f32 %v1780, %v2273
      %v2370 = vsub.f32 %v1782, %v2274
      %v2371 = vmul.f32 %v2363, %v2363
      %v2372 = vmul.f32 %v2364, %v2364
      %v2373 = vmul.f32 %v2365, %v2365
      %v2374 = vmul.f32 %v2366, %v2366
      %v2375 = vmul.f32 %v2367, %v2367
      %v2376 = vmul.f32 %v2368, %v2368
      %v2377 = vmul.f32 %v2369, %v2369
      %v2378 = vmul.f32 %v2370, %v2370
      %v2379 = vsel %vm2242, %v2371, 0.0
      %2380 = vadd.xlane.f32.xlu0 %v2379
      %v2381 = vpop.xlane.xlu0 %2380
      %v2382 = vsel %vm2242, %v2372, 0.0
      %2383 = vadd.xlane.f32.xlu0 %v2382
      %v2384 = vpop.xlane.xlu0 %2383
      %v2385 = vsel %vm2242, %v2373, 0.0
      %2386 = vadd.xlane.f32.xlu0 %v2385
      %v2387 = vpop.xlane.xlu0 %2386
      %v2388 = vsel %vm2242, %v2374, 0.0
      %2389 = vadd.xlane.f32.xlu0 %v2388
      %v2390 = vpop.xlane.xlu0 %2389
      %v2391 = vsel %vm2242, %v2375, 0.0
      %2392 = vadd.xlane.f32.xlu0 %v2391
      %v2393 = vpop.xlane.xlu0 %2392
      %v2394 = vsel %vm2242, %v2376, 0.0
      %2395 = vadd.xlane.f32.xlu0 %v2394
      %v2396 = vpop.xlane.xlu0 %2395
      %v2397 = vsel %vm2242, %v2377, 0.0
      %2398 = vadd.xlane.f32.xlu0 %v2397
      %v2399 = vpop.xlane.xlu0 %2398
      %v2400 = vsel %vm2242, %v2378, 0.0
      %2401 = vadd.xlane.f32.xlu0 %v2400
      %v2402 = vpop.xlane.xlu0 %2401
      %v2403 = vadd.f32 %v2355, %v2381
      %v2404 = vadd.f32 %v2356, %v2384
      %v2405 = vadd.f32 %v2357, %v2387
      %v2406 = vadd.f32 %v2358, %v2390
      %v2407 = vadd.f32 %v2359, %v2393
      %v2408 = vadd.f32 %v2360, %v2396
      %v2409 = vadd.f32 %v2361, %v2399
      %v2410 = vadd.f32 %v2362, %v2402
      %v2411 = vsub.f32 %v2199, %v2267
      %v2412 = vsub.f32 %v2201, %v2268
      %v2413 = vsub.f32 %v2204, %v2269
      %v2414 = vsub.f32 %v2206, %v2270
      %v2415 = vsub.f32 %v2209, %v2271
      %v2416 = vsub.f32 %v2211, %v2272
      %v2417 = vsub.f32 %v2214, %v2273
      %v2418 = vsub.f32 %v2216, %v2274
      %v2419 = vmul.f32 %v2411, %v2411
      %v2420 = vmul.f32 %v2412, %v2412
      %v2421 = vmul.f32 %v2413, %v2413
      %v2422 = vmul.f32 %v2414, %v2414
      %v2423 = vmul.f32 %v2415, %v2415
      %v2424 = vmul.f32 %v2416, %v2416
      %v2425 = vmul.f32 %v2417, %v2417
      %v2426 = vmul.f32 %v2418, %v2418
      %v2427 = vsel %vm2242, %v2419, 0.0
      %2428 = vadd.xlane.f32.xlu0 %v2427
      %v2429 = vpop.xlane.xlu0 %2428
      %v2430 = vsel %vm2242, %v2420, 0.0
      %2431 = vadd.xlane.f32.xlu0 %v2430
      %v2432 = vpop.xlane.xlu0 %2431
      %v2433 = vsel %vm2242, %v2421, 0.0
      %2434 = vadd.xlane.f32.xlu0 %v2433
      %v2435 = vpop.xlane.xlu0 %2434
      %v2436 = vsel %vm2242, %v2422, 0.0
      %2437 = vadd.xlane.f32.xlu0 %v2436
      %v2438 = vpop.xlane.xlu0 %2437
      %v2439 = vsel %vm2242, %v2423, 0.0
      %2440 = vadd.xlane.f32.xlu0 %v2439
      %v2441 = vpop.xlane.xlu0 %2440
      %v2442 = vsel %vm2242, %v2424, 0.0
      %2443 = vadd.xlane.f32.xlu0 %v2442
      %v2444 = vpop.xlane.xlu0 %2443
      %v2445 = vsel %vm2242, %v2425, 0.0
      %2446 = vadd.xlane.f32.xlu0 %v2445
      %v2447 = vpop.xlane.xlu0 %2446
      %v2448 = vsel %vm2242, %v2426, 0.0
      %2449 = vadd.xlane.f32.xlu0 %v2448
      %v2450 = vpop.xlane.xlu0 %2449
      %v2451 = vadd.f32 %v2403, %v2429
      %v2452 = vadd.f32 %v2404, %v2432
      %v2453 = vadd.f32 %v2405, %v2435
      %v2454 = vadd.f32 %v2406, %v2438
      %v2455 = vadd.f32 %v2407, %v2441
      %v2456 = vadd.f32 %v2408, %v2444
      %v2457 = vadd.f32 %v2409, %v2447
      %v2458 = vadd.f32 %v2410, %v2450
      %v2459 = vmul.f32 %v2451, 0.03125
      %v2460 = vmul.f32 %v2452, 0.03125
      %v2461 = vmul.f32 %v2453, 0.03125
      %v2462 = vmul.f32 %v2454, 0.03125
      %v2463 = vmul.f32 %v2455, 0.03125
      %v2464 = vmul.f32 %v2456, 0.03125
      %v2465 = vmul.f32 %v2457, 0.03125
      %v2466 = vmul.f32 %v2458, 0.03125
      %v2467 = vld [vmem:[%s283] sm:$0xff]
      %v2468 = vld [vmem:[%s283 + $0x8] sm:$0xff]
      %v2469 = vld [vmem:[%s283 + $0x10] sm:$0xff]
      %v2470 = vld [vmem:[%s283 + $0x18] sm:$0xff]
      %v2471 = vld [vmem:[%s283 + $0x20] sm:$0xff]
      %v2472 = vld [vmem:[%s283 + $0x28] sm:$0xff]
      %v2473 = vld [vmem:[%s283 + $0x30] sm:$0xff]
      %v2474 = vld [vmem:[%s283 + $0x38] sm:$0xff]
      %v2475 = vadd.f32 %v2459, 1e-05
      %v2476 = vadd.f32 %v2460, 1e-05
      %v2477 = vadd.f32 %v2461, 1e-05
      %v2478 = vadd.f32 %v2462, 1e-05
      %v2479 = vadd.f32 %v2463, 1e-05
      %v2480 = vadd.f32 %v2464, 1e-05
      %v2481 = vadd.f32 %v2465, 1e-05
      %v2482 = vadd.f32 %v2466, 1e-05
      %v2483 = vrsqrt.pop %v2475
      %v2484 = vmul.f32 %v2483, %v2475
      %v2485 = vmul.f32 %v2484, %v2483
      %v2486 = vmul.f32 0.5, %v2485
      %v2487 = vsub.f32 1.5, %v2486
      %v2488 = vmul.f32 %v2483, %v2487
      %vm2489 = vweird.f32 %v2475
      %vm2490 = vweird.f32 %v2483
      %vm2491 = vmor %vm2489, %vm2490
      %v2492 = vsel %vm2491, %v2483, %v2488
      %v2493 = vrsqrt.pop %v2476
      %v2494 = vmul.f32 %v2493, %v2476
      %v2495 = vmul.f32 %v2494, %v2493
      %v2496 = vmul.f32 0.5, %v2495
      %v2497 = vsub.f32 1.5, %v2496
      %v2498 = vmul.f32 %v2493, %v2497
      %vm2499 = vweird.f32 %v2476
      %vm2500 = vweird.f32 %v2493
      %vm2501 = vmor %vm2499, %vm2500
      %v2502 = vsel %vm2501, %v2493, %v2498
      %v2503 = vrsqrt.pop %v2477
      %v2504 = vmul.f32 %v2503, %v2477
      %v2505 = vmul.f32 %v2504, %v2503
      %v2506 = vmul.f32 0.5, %v2505
      %v2507 = vsub.f32 1.5, %v2506
      %v2508 = vmul.f32 %v2503, %v2507
      %vm2509 = vweird.f32 %v2477
      %vm2510 = vweird.f32 %v2503
      %vm2511 = vmor %vm2509, %vm2510
      %v2512 = vsel %vm2511, %v2503, %v2508
      %v2513 = vrsqrt.pop %v2478
      %v2514 = vmul.f32 %v2513, %v2478
      %v2515 = vmul.f32 %v2514, %v2513
      %v2516 = vmul.f32 0.5, %v2515
      %v2517 = vsub.f32 1.5, %v2516
      %v2518 = vmul.f32 %v2513, %v2517
      %vm2519 = vweird.f32 %v2478
      %vm2520 = vweird.f32 %v2513
      %vm2521 = vmor %vm2519, %vm2520
      %v2522 = vsel %vm2521, %v2513, %v2518
      %v2523 = vrsqrt.pop %v2479
      %v2524 = vmul.f32 %v2523, %v2479
      %v2525 = vmul.f32 %v2524, %v2523
      %v2526 = vmul.f32 0.5, %v2525
      %v2527 = vsub.f32 1.5, %v2526
      %v2528 = vmul.f32 %v2523, %v2527
      %vm2529 = vweird.f32 %v2479
      %vm2530 = vweird.f32 %v2523
      %vm2531 = vmor %vm2529, %vm2530
      %v2532 = vsel %vm2531, %v2523, %v2528
      %v2533 = vrsqrt.pop %v2480
      %v2534 = vmul.f32 %v2533, %v2480
      %v2535 = vmul.f32 %v2534, %v2533
      %v2536 = vmul.f32 0.5, %v2535
      %v2537 = vsub.f32 1.5, %v2536
      %v2538 = vmul.f32 %v2533, %v2537
      %vm2539 = vweird.f32 %v2480
      %vm2540 = vweird.f32 %v2533
      %vm2541 = vmor %vm2539, %vm2540
      %v2542 = vsel %vm2541, %v2533, %v2538
      %v2543 = vrsqrt.pop %v2481
      %v2544 = vmul.f32 %v2543, %v2481
      %v2545 = vmul.f32 %v2544, %v2543
      %v2546 = vmul.f32 0.5, %v2545
      %v2547 = vsub.f32 1.5, %v2546
      %v2548 = vmul.f32 %v2543, %v2547
      %vm2549 = vweird.f32 %v2481
      %vm2550 = vweird.f32 %v2543
      %vm2551 = vmor %vm2549, %vm2550
      %v2552 = vsel %vm2551, %v2543, %v2548
      %v2553 = vrsqrt.pop %v2482
      %v2554 = vmul.f32 %v2553, %v2482
      %v2555 = vmul.f32 %v2554, %v2553
      %v2556 = vmul.f32 0.5, %v2555
      %v2557 = vsub.f32 1.5, %v2556
      %v2558 = vmul.f32 %v2553, %v2557
      %vm2559 = vweird.f32 %v2482
      %vm2560 = vweird.f32 %v2553
      %vm2561 = vmor %vm2559, %vm2560
      %v2562 = vsel %vm2561, %v2553, %v2558
      %v2563 = vmul.f32 %v2467, %v2492
      %v2564 = vmul.f32 %v2468, %v2502
      %v2565 = vmul.f32 %v2469, %v2512
      %v2566 = vmul.f32 %v2470, %v2522
      %v2567 = vmul.f32 %v2471, %v2532
      %v2568 = vmul.f32 %v2472, %v2542
      %v2569 = vmul.f32 %v2473, %v2552
      %v2570 = vmul.f32 %v2474, %v2562
      %2572 = vset.pattern.permute.xlu0 0
      %2573 = vperm.xlu0 %2572, %v2563
      %v2574 = vpop.permute.xlu0 %2573
      %2577 = vset.pattern.permute.xlu0 0
      %2578 = vperm.xlu0 %2577, %v2564
      %v2579 = vpop.permute.xlu0 %2578
      %2582 = vset.pattern.permute.xlu0 0
      %2583 = vperm.xlu0 %2582, %v2565
      %v2584 = vpop.permute.xlu0 %2583
      %2587 = vset.pattern.permute.xlu0 0
      %2588 = vperm.xlu0 %2587, %v2566
      %v2589 = vpop.permute.xlu0 %2588
      %2592 = vset.pattern.permute.xlu0 0
      %2593 = vperm.xlu0 %2592, %v2567
      %v2594 = vpop.permute.xlu0 %2593
      %2597 = vset.pattern.permute.xlu0 0
      %2598 = vperm.xlu0 %2597, %v2568
      %v2599 = vpop.permute.xlu0 %2598
      %2602 = vset.pattern.permute.xlu0 0
      %2603 = vperm.xlu0 %2602, %v2569
      %v2604 = vpop.permute.xlu0 %2603
      %2607 = vset.pattern.permute.xlu0 0
      %2608 = vperm.xlu0 %2607, %v2570
      %v2609 = vpop.permute.xlu0 %2608
      %v2611 = vmul.f32 %v2275, %v2574
      %v2612 = vmul.f32 %v2276, %v2579
      %v2613 = vmul.f32 %v2277, %v2584
      %v2614 = vmul.f32 %v2278, %v2589
      %v2615 = vmul.f32 %v2279, %v2594
      %v2616 = vmul.f32 %v2280, %v2599
      %v2617 = vmul.f32 %v2281, %v2604
      %v2618 = vmul.f32 %v2282, %v2609
      %v2619 = vld [vmem:[%s289] sm:$0xff]
      %v2620 = vld [vmem:[%s289 + $0x8] sm:$0xff]
      %v2621 = vld [vmem:[%s289 + $0x10] sm:$0xff]
      %v2622 = vld [vmem:[%s289 + $0x18] sm:$0xff]
      %v2623 = vld [vmem:[%s289 + $0x20] sm:$0xff]
      %v2624 = vld [vmem:[%s289 + $0x28] sm:$0xff]
      %v2625 = vld [vmem:[%s289 + $0x30] sm:$0xff]
      %v2626 = vld [vmem:[%s289 + $0x38] sm:$0xff]
      %2628 = vset.pattern.permute.xlu0 0
      %2629 = vperm.xlu0 %2628, %v2619
      %v2630 = vpop.permute.xlu0 %2629
      %2633 = vset.pattern.permute.xlu0 0
      %2634 = vperm.xlu0 %2633, %v2620
      %v2635 = vpop.permute.xlu0 %2634
      %2638 = vset.pattern.permute.xlu0 0
      %2639 = vperm.xlu0 %2638, %v2621
      %v2640 = vpop.permute.xlu0 %2639
      %2643 = vset.pattern.permute.xlu0 0
      %2644 = vperm.xlu0 %2643, %v2622
      %v2645 = vpop.permute.xlu0 %2644
      %2648 = vset.pattern.permute.xlu0 0
      %2649 = vperm.xlu0 %2648, %v2623
      %v2650 = vpop.permute.xlu0 %2649
      %2653 = vset.pattern.permute.xlu0 0
      %2654 = vperm.xlu0 %2653, %v2624
      %v2655 = vpop.permute.xlu0 %2654
      %2658 = vset.pattern.permute.xlu0 0
      %2659 = vperm.xlu0 %2658, %v2625
      %v2660 = vpop.permute.xlu0 %2659
      %2663 = vset.pattern.permute.xlu0 0
      %2664 = vperm.xlu0 %2663, %v2626
      %v2665 = vpop.permute.xlu0 %2664
      %v2667 = vadd.f32 %v2611, %v2630
      %v2668 = vadd.f32 %v2612, %v2635
      %v2669 = vadd.f32 %v2613, %v2640
      %v2670 = vadd.f32 %v2614, %v2645
      %v2671 = vadd.f32 %v2615, %v2650
      %v2672 = vadd.f32 %v2616, %v2655
      %v2673 = vadd.f32 %v2617, %v2660
      %v2674 = vadd.f32 %v2618, %v2665
      %v2675 = vmax.f32 %v2667, 0.0
      %v2676 = vmax.f32 %v2668, 0.0
      %v2677 = vmax.f32 %v2669, 0.0
      %v2678 = vmax.f32 %v2670, 0.0
      %v2679 = vmax.f32 %v2671, 0.0
      %v2680 = vmax.f32 %v2672, 0.0
      %v2681 = vmax.f32 %v2673, 0.0
      %v2682 = vmax.f32 %v2674, 0.0
      %v2683 = vmul.f32 %v2315, %v2574
      %v2684 = vmul.f32 %v2316, %v2579
      %v2685 = vmul.f32 %v2317, %v2584
      %v2686 = vmul.f32 %v2318, %v2589
      %v2687 = vmul.f32 %v2319, %v2594
      %v2688 = vmul.f32 %v2320, %v2599
      %v2689 = vmul.f32 %v2321, %v2604
      %v2690 = vmul.f32 %v2322, %v2609
      %v2691 = vadd.f32 %v2683, %v2630
      %v2692 = vadd.f32 %v2684, %v2635
      %v2693 = vadd.f32 %v2685, %v2640
      %v2694 = vadd.f32 %v2686, %v2645
      %v2695 = vadd.f32 %v2687, %v2650
      %v2696 = vadd.f32 %v2688, %v2655
      %v2697 = vadd.f32 %v2689, %v2660
      %v2698 = vadd.f32 %v2690, %v2665
      %v2699 = vmax.f32 %v2691, 0.0
      %v2700 = vmax.f32 %v2692, 0.0
      %v2701 = vmax.f32 %v2693, 0.0
      %v2702 = vmax.f32 %v2694, 0.0
      %v2703 = vmax.f32 %v2695, 0.0
      %v2704 = vmax.f32 %v2696, 0.0
      %v2705 = vmax.f32 %v2697, 0.0
      %v2706 = vmax.f32 %v2698, 0.0
      %v2707 = vmax.f32 %v2675, %v2699
      %v2708 = vmax.f32 %v2676, %v2700
      %v2709 = vmax.f32 %v2677, %v2701
      %v2710 = vmax.f32 %v2678, %v2702
      %v2711 = vmax.f32 %v2679, %v2703
      %v2712 = vmax.f32 %v2680, %v2704
      %v2713 = vmax.f32 %v2681, %v2705
      %v2714 = vmax.f32 %v2682, %v2706
      %v2715 = vmul.f32 %v2363, %v2574
      %v2716 = vmul.f32 %v2364, %v2579
      %v2717 = vmul.f32 %v2365, %v2584
      %v2718 = vmul.f32 %v2366, %v2589
      %v2719 = vmul.f32 %v2367, %v2594
      %v2720 = vmul.f32 %v2368, %v2599
      %v2721 = vmul.f32 %v2369, %v2604
      %v2722 = vmul.f32 %v2370, %v2609
      %v2723 = vadd.f32 %v2715, %v2630
      %v2724 = vadd.f32 %v2716, %v2635
      %v2725 = vadd.f32 %v2717, %v2640
      %v2726 = vadd.f32 %v2718, %v2645
      %v2727 = vadd.f32 %v2719, %v2650
      %v2728 = vadd.f32 %v2720, %v2655
      %v2729 = vadd.f32 %v2721, %v2660
      %v2730 = vadd.f32 %v2722, %v2665
      %v2731 = vmax.f32 %v2723, 0.0
      %v2732 = vmax.f32 %v2724, 0.0
      %v2733 = vmax.f32 %v2725, 0.0
      %v2734 = vmax.f32 %v2726, 0.0
      %v2735 = vmax.f32 %v2727, 0.0
      %v2736 = vmax.f32 %v2728, 0.0
      %v2737 = vmax.f32 %v2729, 0.0
      %v2738 = vmax.f32 %v2730, 0.0
      %v2739 = vmax.f32 %v2707, %v2731
      %v2740 = vmax.f32 %v2708, %v2732
      %v2741 = vmax.f32 %v2709, %v2733
      %v2742 = vmax.f32 %v2710, %v2734
      %v2743 = vmax.f32 %v2711, %v2735
      %v2744 = vmax.f32 %v2712, %v2736
      %v2745 = vmax.f32 %v2713, %v2737
      %v2746 = vmax.f32 %v2714, %v2738
      %v2747 = vmul.f32 %v2411, %v2574
      %v2748 = vmul.f32 %v2412, %v2579
      %v2749 = vmul.f32 %v2413, %v2584
      %v2750 = vmul.f32 %v2414, %v2589
      %v2751 = vmul.f32 %v2415, %v2594
      %v2752 = vmul.f32 %v2416, %v2599
      %v2753 = vmul.f32 %v2417, %v2604
      %v2754 = vmul.f32 %v2418, %v2609
      %v2755 = vadd.f32 %v2747, %v2630
      %v2756 = vadd.f32 %v2748, %v2635
      %v2757 = vadd.f32 %v2749, %v2640
      %v2758 = vadd.f32 %v2750, %v2645
      %v2759 = vadd.f32 %v2751, %v2650
      %v2760 = vadd.f32 %v2752, %v2655
      %v2761 = vadd.f32 %v2753, %v2660
      %v2762 = vadd.f32 %v2754, %v2665
      %v2763 = vmax.f32 %v2755, 0.0
      %v2764 = vmax.f32 %v2756, 0.0
      %v2765 = vmax.f32 %v2757, 0.0
      %v2766 = vmax.f32 %v2758, 0.0
      %v2767 = vmax.f32 %v2759, 0.0
      %v2768 = vmax.f32 %v2760, 0.0
      %v2769 = vmax.f32 %v2761, 0.0
      %v2770 = vmax.f32 %v2762, 0.0
      %v2771 = vmax.f32 %v2739, %v2763
      %v2772 = vmax.f32 %v2740, %v2764
      %v2773 = vmax.f32 %v2741, %v2765
      %v2774 = vmax.f32 %v2742, %v2766
      %v2775 = vmax.f32 %v2743, %v2767
      %v2776 = vmax.f32 %v2744, %v2768
      %v2777 = vmax.f32 %v2745, %v2769
      %v2778 = vmax.f32 %v2746, %v2770
      %v2779 = vpack.c.bf16 %v2771, %v2771
      %v2780 = vpack.c.bf16 %v2772, %v2772
      %v2781 = vpack.c.bf16 %v2773, %v2773
      %v2782 = vpack.c.bf16 %v2774, %v2774
      %v2783 = vpack.c.bf16 %v2775, %v2775
      %v2784 = vpack.c.bf16 %v2776, %v2776
      %v2785 = vpack.c.bf16 %v2777, %v2777
      %v2786 = vpack.c.bf16 %v2778, %v2778
      %vm2787 = vcmask 60416
      %2788 = vst.msk [vmem:[%s295] sm:$0xf] %vm2787, %v2779
      %2789 = vst.msk [vmem:[%s295 + $0x4] sm:$0xf] %vm2787, %v2780
      %2790 = vst.msk [vmem:[%s295 + $0x8] sm:$0xf] %vm2787, %v2781
      %2791 = vst.msk [vmem:[%s295 + $0xc] sm:$0xf] %vm2787, %v2782
      %2792 = vst.msk [vmem:[%s295 + $0x10] sm:$0xf] %vm2787, %v2783
      %2793 = vst.msk [vmem:[%s295 + $0x14] sm:$0xf] %vm2787, %v2784
      %2794 = vst.msk [vmem:[%s295 + $0x18] sm:$0xf] %vm2787, %v2785
      %2795 = vst.msk [vmem:[%s295 + $0x1c] sm:$0xf] %vm2787, %v2786
      %s2796 = smul.u32 8, %s16
      %p2797 = scmp.lt.s32.totalorder %s2796, 15
      %s2798 = scalar_select %p2797, %s2796, 15
      %s2799 = smul.addr %s2798, 4
      %s2800 = scalar_lea.vmem %s5, %s2799
      // Predicated region
      $region41: #{spatial_transformer_forward.7} parent=39 // pred_check
        %p2801 = pneg %p159
      $region42: #{spatial_transformer_forward.7} parent=39 // pred_check_branch
        %2803 = sbr.rel (%p2801) target = $region44
      $region43: #{spatial_transformer_forward.7} parent=39 // pred_region
        %s2804 = smul.u32 8, %s16
      $region44: #{spatial_transformer_forward.7} parent=39 // pred_fallthru
        _
    $region40: #{spatial_transformer_forward.7} parent=5 // pred_fallthru
      _
    %p2805 = scmp.le.s32.totalorder 2, %s11
    // Predicated region
    $region45: #{spatial_transformer_forward.7} parent=5 // pred_check
      %p2806 = pneg %p2805
    $region46: #{spatial_transformer_forward.7} parent=5 // pred_check_branch
      %2808 = sbr.rel (%p2806) target = $region48
    $region47: #{spatial_transformer_forward.7} parent=5 // pred_region
      %s2809 = ssub.s32 %s11, 2
      // Predicated region
      $region49: #{spatial_transformer_forward.7} parent=47 // pred_check
        %p2810 = pneg %p165
      $region50: #{spatial_transformer_forward.7} parent=47 // pred_check_branch
        %2812 = sbr.rel (%p2810) target = $region52
      $region51: #{spatial_transformer_forward.7} parent=47 // pred_region
        %s2813 = smul.u32 8, %s17
        %p2814 = scmp.lt.s32.totalorder %s2813, 15
        %s2815 = scalar_select %p2814, %s2813, 15
        %s2816 = smul.addr %s2815, 4
        %s2817 = scalar_lea.vmem %s5, %s2816
      $region52: #{spatial_transformer_forward.7} parent=47 // pred_fallthru
        _
    $region48: #{spatial_transformer_forward.7} parent=5 // pred_fallthru
      _
  $region6: #{spatial_transformer_forward.7} parent=0 // loop_footer
    %s15 = sadd.s32 1, %s11
  $region7: #{spatial_transformer_forward.7} parent=0 // loop_footer_branch
    %10 = sbr.rel target = $region3
  $region8: #{spatial_transformer_forward.7} parent=0 // loop_exit
    _

// kernel: spatial_transformer_forward.8
$region0: #{spatial_transformer_forward.8}
  #allocation0 [shape = 'u32[]', space=smem, size = 0x4, offset = 0x4, fixed_abs, tag = 'smem constant byte address 0x4 - core index']
  #allocation1 [shape = 'u32[72,128]{1,0:T(1,128)}', space=vmem, size = 0x9000, scoped, tag = 'internal scratch']
  %s0 = inlined_call_operand.vmem [shape: bf16[4,2,1152], index: 0, kind: input, shape index: {}]
  %s1 = inlined_call_operand.vmem [shape: bf16[1152,256], index: 1, kind: input, shape index: {}]
  %s2 = inlined_call_operand.vmem [shape: f32[1,256], index: 2, kind: input, shape index: {}]
  %s3 = inlined_call_operand.vmem [shape: f32[1,256], index: 3, kind: input, shape index: {}]
  %s4 = inlined_call_operand.vmem [shape: f32[1,256], index: 4, kind: input, shape index: {}]
  %s5 = inlined_call_operand.vmem [shape: f32[256,64], index: 5, kind: input, shape index: {}]
  %s6 = inlined_call_operand.vmem [shape: f32[1,64], index: 6, kind: input, shape index: {}]
  %s7 = inlined_call_operand.vmem [shape: f32[64,6], index: 7, kind: input, shape index: {}]
  %s8 = inlined_call_operand.vmem [shape: f32[1,6], index: 8, kind: input, shape index: {}]
  %s9 = inlined_call_operand.vmem [shape: f32[2,6], index: 9, kind: output, shape index: {}]
  %s10 = sld [smem:[#allocation0]]
  $region46: #{spatial_transformer_forward.8} parent=0
    _
  %s12 = ssub.s32 1, %s10
  %s13 = scalar_select 0, %s12, %s10
  // Predicated region
  $region2: #{spatial_transformer_forward.8} parent=0 // pred_check
    _
  $region3: #{spatial_transformer_forward.8} parent=0 // pred_check_branch
    %15 = sbr.rel (0) target = $region5
  $region4: #{spatial_transformer_forward.8} parent=0 // pred_region
    _
  $region5: #{spatial_transformer_forward.8} parent=0 // pred_fallthru
    _
  // Predicated region
  $region6: #{spatial_transformer_forward.8} parent=0 // pred_check
    _
  $region7: #{spatial_transformer_forward.8} parent=0 // pred_check_branch
    %17 = sbr.rel (0) target = $region9
  $region8: #{spatial_transformer_forward.8} parent=0 // pred_region
    _
  $region9: #{spatial_transformer_forward.8} parent=0 // pred_fallthru
    _
  // Predicated region
  $region10: #{spatial_transformer_forward.8} parent=0 // pred_check
    _
  $region11: #{spatial_transformer_forward.8} parent=0 // pred_check_branch
    %19 = sbr.rel (0) target = $region13
  $region12: #{spatial_transformer_forward.8} parent=0 // pred_region
    _
  $region13: #{spatial_transformer_forward.8} parent=0 // pred_fallthru
    _
  // Predicated region
  $region14: #{spatial_transformer_forward.8} parent=0 // pred_check
    _
  $region15: #{spatial_transformer_forward.8} parent=0 // pred_check_branch
    %21 = sbr.rel (0) target = $region17
  $region16: #{spatial_transformer_forward.8} parent=0 // pred_region
    _
  $region17: #{spatial_transformer_forward.8} parent=0 // pred_fallthru
    _
  // Predicated region
  $region18: #{spatial_transformer_forward.8} parent=0 // pred_check
    _
  $region19: #{spatial_transformer_forward.8} parent=0 // pred_check_branch
    %23 = sbr.rel (0) target = $region21
  $region20: #{spatial_transformer_forward.8} parent=0 // pred_region
    _
  $region21: #{spatial_transformer_forward.8} parent=0 // pred_fallthru
    _
  // Predicated region
  $region22: #{spatial_transformer_forward.8} parent=0 // pred_check
    _
  $region23: #{spatial_transformer_forward.8} parent=0 // pred_check_branch
    %25 = sbr.rel (0) target = $region25
  $region24: #{spatial_transformer_forward.8} parent=0 // pred_region
    _
  $region25: #{spatial_transformer_forward.8} parent=0 // pred_fallthru
    _
  // Predicated region
  $region26: #{spatial_transformer_forward.8} parent=0 // pred_check
    _
  $region27: #{spatial_transformer_forward.8} parent=0 // pred_check_branch
    %27 = sbr.rel (0) target = $region29
  $region28: #{spatial_transformer_forward.8} parent=0 // pred_region
    _
  $region29: #{spatial_transformer_forward.8} parent=0 // pred_fallthru
    _
  // Predicated region
  $region30: #{spatial_transformer_forward.8} parent=0 // pred_check
    _
  $region31: #{spatial_transformer_forward.8} parent=0 // pred_check_branch
    %29 = sbr.rel (0) target = $region33
  $region32: #{spatial_transformer_forward.8} parent=0 // pred_region
    _
  $region33: #{spatial_transformer_forward.8} parent=0 // pred_fallthru
    _
  // Predicated region
  $region34: #{spatial_transformer_forward.8} parent=0 // pred_check
    _
  $region35: #{spatial_transformer_forward.8} parent=0 // pred_check_branch
    %31 = sbr.rel (0) target = $region37
  $region36: #{spatial_transformer_forward.8} parent=0 // pred_region
    _
  $region37: #{spatial_transformer_forward.8} parent=0 // pred_fallthru
    _
  %v32 = vld [vmem:[%s1] sm:$0xff]
  %v33 = vld [vmem:[%s1 + $0x8] sm:$0xff]
  %v34 = vld [vmem:[%s1 + $0x10] sm:$0xff]
  %v35 = vld [vmem:[%s1 + $0x18] sm:$0xff]
  %v36 = vld [vmem:[%s1 + $0x20] sm:$0xff]
  %v37 = vld [vmem:[%s1 + $0x28] sm:$0xff]
  %v38 = vld [vmem:[%s1 + $0x30] sm:$0xff]
  %v39 = vld [vmem:[%s1 + $0x38] sm:$0xff]
  %v40 = vld [vmem:[%s1 + $0x40] sm:$0xff]
  %v41 = vld [vmem:[%s1 + $0x48] sm:$0xff]
  %v42 = vld [vmem:[%s1 + $0x50] sm:$0xff]
  %v43 = vld [vmem:[%s1 + $0x58] sm:$0xff]
  %v44 = vld [vmem:[%s1 + $0x60] sm:$0xff]
  %v45 = vld [vmem:[%s1 + $0x68] sm:$0xff]
  %v46 = vld [vmem:[%s1 + $0x70] sm:$0xff]
  %v47 = vld [vmem:[%s1 + $0x78] sm:$0xff]
  %v48 = vld [vmem:[%s1 + $0x80] sm:$0xff]
  %v49 = vld [vmem:[%s1 + $0x88] sm:$0xff]
  %v50 = vld [vmem:[%s1 + $0x90] sm:$0xff]
  %v51 = vld [vmem:[%s1 + $0x98] sm:$0xff]
  %v52 = vld [vmem:[%s1 + $0xa0] sm:$0xff]
  %v53 = vld [vmem:[%s1 + $0xa8] sm:$0xff]
  %v54 = vld [vmem:[%s1 + $0xb0] sm:$0xff]
  %v55 = vld [vmem:[%s1 + $0xb8] sm:$0xff]
  %v56 = vld [vmem:[%s1 + $0xc0] sm:$0xff]
  %v57 = vld [vmem:[%s1 + $0xc8] sm:$0xff]
  %v58 = vld [vmem:[%s1 + $0xd0] sm:$0xff]
  %v59 = vld [vmem:[%s1 + $0xd8] sm:$0xff]
  %v60 = vld [vmem:[%s1 + $0xe0] sm:$0xff]
  %v61 = vld [vmem:[%s1 + $0xe8] sm:$0xff]
  %v62 = vld [vmem:[%s1 + $0xf0] sm:$0xff]
  %v63 = vld [vmem:[%s1 + $0xf8] sm:$0xff]
  %v64 = vld [vmem:[%s1 + $0x100] sm:$0xff]
  %v65 = vld [vmem:[%s1 + $0x108] sm:$0xff]
  %v66 = vld [vmem:[%s1 + $0x110] sm:$0xff]
  %v67 = vld [vmem:[%s1 + $0x118] sm:$0xff]
  %v68 = vld [vmem:[%s1 + $0x120] sm:$0xff]
  %v69 = vld [vmem:[%s1 + $0x128] sm:$0xff]
  %v70 = vld [vmem:[%s1 + $0x130] sm:$0xff]
  %v71 = vld [vmem:[%s1 + $0x138] sm:$0xff]
  %v72 = vld [vmem:[%s1 + $0x140] sm:$0xff]
  %v73 = vld [vmem:[%s1 + $0x148] sm:$0xff]
  %v74 = vld [vmem:[%s1 + $0x150] sm:$0xff]
  %v75 = vld [vmem:[%s1 + $0x158] sm:$0xff]
  %v76 = vld [vmem:[%s1 + $0x160] sm:$0xff]
  %v77 = vld [vmem:[%s1 + $0x168] sm:$0xff]
  %v78 = vld [vmem:[%s1 + $0x170] sm:$0xff]
  %v79 = vld [vmem:[%s1 + $0x178] sm:$0xff]
  %v80 = vld [vmem:[%s1 + $0x180] sm:$0xff]
  %v81 = vld [vmem:[%s1 + $0x188] sm:$0xff]
  %v82 = vld [vmem:[%s1 + $0x190] sm:$0xff]
  %v83 = vld [vmem:[%s1 + $0x198] sm:$0xff]
  %v84 = vld [vmem:[%s1 + $0x1a0] sm:$0xff]
  %v85 = vld [vmem:[%s1 + $0x1a8] sm:$0xff]
  %v86 = vld [vmem:[%s1 + $0x1b0] sm:$0xff]
  %v87 = vld [vmem:[%s1 + $0x1b8] sm:$0xff]
  %v88 = vld [vmem:[%s1 + $0x1c0] sm:$0xff]
  %v89 = vld [vmem:[%s1 + $0x1c8] sm:$0xff]
  %v90 = vld [vmem:[%s1 + $0x1d0] sm:$0xff]
  %v91 = vld [vmem:[%s1 + $0x1d8] sm:$0xff]
  %v92 = vld [vmem:[%s1 + $0x1e0] sm:$0xff]
  %v93 = vld [vmem:[%s1 + $0x1e8] sm:$0xff]
  %v94 = vld [vmem:[%s1 + $0x1f0] sm:$0xff]
  %v95 = vld [vmem:[%s1 + $0x1f8] sm:$0xff]
  %v96 = vld [vmem:[%s1 + $0x200] sm:$0xff]
  %v97 = vld [vmem:[%s1 + $0x208] sm:$0xff]
  %v98 = vld [vmem:[%s1 + $0x210] sm:$0xff]
  %v99 = vld [vmem:[%s1 + $0x218] sm:$0xff]
  %v100 = vld [vmem:[%s1 + $0x220] sm:$0xff]
  %v101 = vld [vmem:[%s1 + $0x228] sm:$0xff]
  %v102 = vld [vmem:[%s1 + $0x230] sm:$0xff]
  %v103 = vld [vmem:[%s1 + $0x238] sm:$0xff]
  %v104 = vld [vmem:[%s1 + $0x240] sm:$0xff]
  %v105 = vld [vmem:[%s1 + $0x248] sm:$0xff]
  %v106 = vld [vmem:[%s1 + $0x250] sm:$0xff]
  %v107 = vld [vmem:[%s1 + $0x258] sm:$0xff]
  %v108 = vld [vmem:[%s1 + $0x260] sm:$0xff]
  %v109 = vld [vmem:[%s1 + $0x268] sm:$0xff]
  %v110 = vld [vmem:[%s1 + $0x270] sm:$0xff]
  %v111 = vld [vmem:[%s1 + $0x278] sm:$0xff]
  %v112 = vld [vmem:[%s1 + $0x280] sm:$0xff]
  %v113 = vld [vmem:[%s1 + $0x288] sm:$0xff]
  %v114 = vld [vmem:[%s1 + $0x290] sm:$0xff]
  %v115 = vld [vmem:[%s1 + $0x298] sm:$0xff]
  %v116 = vld [vmem:[%s1 + $0x2a0] sm:$0xff]
  %v117 = vld [vmem:[%s1 + $0x2a8] sm:$0xff]
  %v118 = vld [vmem:[%s1 + $0x2b0] sm:$0xff]
  %v119 = vld [vmem:[%s1 + $0x2b8] sm:$0xff]
  %v120 = vld [vmem:[%s1 + $0x2c0] sm:$0xff]
  %v121 = vld [vmem:[%s1 + $0x2c8] sm:$0xff]
  %v122 = vld [vmem:[%s1 + $0x2d0] sm:$0xff]
  %v123 = vld [vmem:[%s1 + $0x2d8] sm:$0xff]
  %v124 = vld [vmem:[%s1 + $0x2e0] sm:$0xff]
  %v125 = vld [vmem:[%s1 + $0x2e8] sm:$0xff]
  %v126 = vld [vmem:[%s1 + $0x2f0] sm:$0xff]
  %v127 = vld [vmem:[%s1 + $0x2f8] sm:$0xff]
  %v128 = vld [vmem:[%s1 + $0x300] sm:$0xff]
  %v129 = vld [vmem:[%s1 + $0x308] sm:$0xff]
  %v130 = vld [vmem:[%s1 + $0x310] sm:$0xff]
  %v131 = vld [vmem:[%s1 + $0x318] sm:$0xff]
  %v132 = vld [vmem:[%s1 + $0x320] sm:$0xff]
  %v133 = vld [vmem:[%s1 + $0x328] sm:$0xff]
  %v134 = vld [vmem:[%s1 + $0x330] sm:$0xff]
  %v135 = vld [vmem:[%s1 + $0x338] sm:$0xff]
  %v136 = vld [vmem:[%s1 + $0x340] sm:$0xff]
  %v137 = vld [vmem:[%s1 + $0x348] sm:$0xff]
  %v138 = vld [vmem:[%s1 + $0x350] sm:$0xff]
  %v139 = vld [vmem:[%s1 + $0x358] sm:$0xff]
  %v140 = vld [vmem:[%s1 + $0x360] sm:$0xff]
  %v141 = vld [vmem:[%s1 + $0x368] sm:$0xff]
  %v142 = vld [vmem:[%s1 + $0x370] sm:$0xff]
  %v143 = vld [vmem:[%s1 + $0x378] sm:$0xff]
  %v144 = vld [vmem:[%s1 + $0x380] sm:$0xff]
  %v145 = vld [vmem:[%s1 + $0x388] sm:$0xff]
  %v146 = vld [vmem:[%s1 + $0x390] sm:$0xff]
  %v147 = vld [vmem:[%s1 + $0x398] sm:$0xff]
  %v148 = vld [vmem:[%s1 + $0x3a0] sm:$0xff]
  %v149 = vld [vmem:[%s1 + $0x3a8] sm:$0xff]
  %v150 = vld [vmem:[%s1 + $0x3b0] sm:$0xff]
  %v151 = vld [vmem:[%s1 + $0x3b8] sm:$0xff]
  %v152 = vld [vmem:[%s1 + $0x3c0] sm:$0xff]
  %v153 = vld [vmem:[%s1 + $0x3c8] sm:$0xff]
  %v154 = vld [vmem:[%s1 + $0x3d0] sm:$0xff]
  %v155 = vld [vmem:[%s1 + $0x3d8] sm:$0xff]
  %v156 = vld [vmem:[%s1 + $0x3e0] sm:$0xff]
  %v157 = vld [vmem:[%s1 + $0x3e8] sm:$0xff]
  %v158 = vld [vmem:[%s1 + $0x3f0] sm:$0xff]
  %v159 = vld [vmem:[%s1 + $0x3f8] sm:$0xff]
  %v160 = vld [vmem:[%s1 + $0x400] sm:$0xff]
  %v161 = vld [vmem:[%s1 + $0x408] sm:$0xff]
  %v162 = vld [vmem:[%s1 + $0x410] sm:$0xff]
  %v163 = vld [vmem:[%s1 + $0x418] sm:$0xff]
  %v164 = vld [vmem:[%s1 + $0x420] sm:$0xff]
  %v165 = vld [vmem:[%s1 + $0x428] sm:$0xff]
  %v166 = vld [vmem:[%s1 + $0x430] sm:$0xff]
  %v167 = vld [vmem:[%s1 + $0x438] sm:$0xff]
  %v168 = vld [vmem:[%s1 + $0x440] sm:$0xff]
  %v169 = vld [vmem:[%s1 + $0x448] sm:$0xff]
  %v170 = vld [vmem:[%s1 + $0x450] sm:$0xff]
  %v171 = vld [vmem:[%s1 + $0x458] sm:$0xff]
  %v172 = vld [vmem:[%s1 + $0x460] sm:$0xff]
  %v173 = vld [vmem:[%s1 + $0x468] sm:$0xff]
  %v174 = vld [vmem:[%s1 + $0x470] sm:$0xff]
  %v175 = vld [vmem:[%s1 + $0x478] sm:$0xff]
  %v176 = vld [vmem:[%s0] sm:$0xff]
  %v177 = vld [vmem:[%s0 + $0x8] sm:$0x1]
  %v178 = vld [vmem:[%s2] sm:$0x3]
  %v180 = vperm.slane %v178, 0
  %v181 = vperm.slane %v178, 1
  %185 = vst [vmem:[#allocation1] ss:$9 sm:$0xff] %v176
  %v186 = vld [vmem:[#allocation1] sm:$0xff]
  %v187 = vld [vmem:[#allocation1 + $0x9] sm:$0xff]
  %v188 = vld [vmem:[#allocation1 + $0x12] sm:$0xff]
  %v189 = vld [vmem:[#allocation1 + $0x1b] sm:$0xff]
  %v190 = vld [vmem:[#allocation1 + $0x24] sm:$0xff]
  %v191 = vld [vmem:[#allocation1 + $0x2d] sm:$0xff]
  %v192 = vld [vmem:[#allocation1 + $0x36] sm:$0xff]
  %v193 = vld [vmem:[#allocation1 + $0x3f] sm:$0xff]
  %195 = vst [vmem:[#allocation1] ss:$9 sm:$0xff] %v177
  %v196 = vld [vmem:[#allocation1] sm:$0xff]
  %v350 = vunpack.c.l.b16 %v32
  %v351 = vunpack.c.h.b16 %v32
  %v352 = vunpack.c.l.b16 %v33
  %v353 = vunpack.c.h.b16 %v33
  %v354 = vunpack.c.l.b16 %v34
  %v355 = vunpack.c.h.b16 %v34
  %v356 = vunpack.c.l.b16 %v35
  %v357 = vunpack.c.h.b16 %v35
  %v358 = vunpack.c.l.b16 %v36
  %v359 = vunpack.c.h.b16 %v36
  %v360 = vunpack.c.l.b16 %v37
  %v361 = vunpack.c.h.b16 %v37
  %v362 = vunpack.c.l.b16 %v38
  %v363 = vunpack.c.h.b16 %v38
  %v364 = vunpack.c.l.b16 %v39
  %v365 = vunpack.c.h.b16 %v39
  %v366 = vunpack.c.l.b16 %v40
  %v367 = vunpack.c.h.b16 %v40
  %v368 = vunpack.c.l.b16 %v41
  %v369 = vunpack.c.h.b16 %v41
  %v370 = vunpack.c.l.b16 %v42
  %v371 = vunpack.c.h.b16 %v42
  %v372 = vunpack.c.l.b16 %v43
  %v373 = vunpack.c.h.b16 %v43
  %v374 = vunpack.c.l.b16 %v44
  %v375 = vunpack.c.h.b16 %v44
  %v376 = vunpack.c.l.b16 %v45
  %v377 = vunpack.c.h.b16 %v45
  %v378 = vunpack.c.l.b16 %v46
  %v379 = vunpack.c.h.b16 %v46
  %v380 = vunpack.c.l.b16 %v47
  %v381 = vunpack.c.h.b16 %v47
  %v382 = vunpack.c.l.b16 %v48
  %v383 = vunpack.c.h.b16 %v48
  %v384 = vunpack.c.l.b16 %v49
  %v385 = vunpack.c.h.b16 %v49
  %v386 = vunpack.c.l.b16 %v50
  %v387 = vunpack.c.h.b16 %v50
  %v388 = vunpack.c.l.b16 %v51
  %v389 = vunpack.c.h.b16 %v51
  %v390 = vunpack.c.l.b16 %v52
  %v391 = vunpack.c.h.b16 %v52
  %v392 = vunpack.c.l.b16 %v53
  %v393 = vunpack.c.h.b16 %v53
  %v394 = vunpack.c.l.b16 %v54
  %v395 = vunpack.c.h.b16 %v54
  %v396 = vunpack.c.l.b16 %v55
  %v397 = vunpack.c.h.b16 %v55
  %v398 = vunpack.c.l.b16 %v56
  %v399 = vunpack.c.h.b16 %v56
  %v400 = vunpack.c.l.b16 %v57
  %v401 = vunpack.c.h.b16 %v57
  %v402 = vunpack.c.l.b16 %v58
  %v403 = vunpack.c.h.b16 %v58
  %v404 = vunpack.c.l.b16 %v59
  %v405 = vunpack.c.h.b16 %v59
  %v406 = vunpack.c.l.b16 %v60
  %v407 = vunpack.c.h.b16 %v60
  %v408 = vunpack.c.l.b16 %v61
  %v409 = vunpack.c.h.b16 %v61
  %v410 = vunpack.c.l.b16 %v62
  %v411 = vunpack.c.h.b16 %v62
  %v412 = vunpack.c.l.b16 %v63
  %v413 = vunpack.c.h.b16 %v63
  %v414 = vunpack.c.l.b16 %v64
  %v415 = vunpack.c.h.b16 %v64
  %v416 = vunpack.c.l.b16 %v65
  %v417 = vunpack.c.h.b16 %v65
  %v418 = vunpack.c.l.b16 %v66
  %v419 = vunpack.c.h.b16 %v66
  %v420 = vunpack.c.l.b16 %v67
  %v421 = vunpack.c.h.b16 %v67
  %v422 = vunpack.c.l.b16 %v68
  %v423 = vunpack.c.h.b16 %v68
  %v424 = vunpack.c.l.b16 %v69
  %v425 = vunpack.c.h.b16 %v69
  %v426 = vunpack.c.l.b16 %v70
  %v427 = vunpack.c.h.b16 %v70
  %v428 = vunpack.c.l.b16 %v71
  %v429 = vunpack.c.h.b16 %v71
  %v430 = vunpack.c.l.b16 %v72
  %v431 = vunpack.c.h.b16 %v72
  %v432 = vunpack.c.l.b16 %v73
  %v433 = vunpack.c.h.b16 %v73
  %v434 = vunpack.c.l.b16 %v74
  %v435 = vunpack.c.h.b16 %v74
  %v436 = vunpack.c.l.b16 %v75
  %v437 = vunpack.c.h.b16 %v75
  %v438 = vunpack.c.l.b16 %v76
  %v439 = vunpack.c.h.b16 %v76
  %v440 = vunpack.c.l.b16 %v77
  %v441 = vunpack.c.h.b16 %v77
  %v442 = vunpack.c.l.b16 %v78
  %v443 = vunpack.c.h.b16 %v78
  %v444 = vunpack.c.l.b16 %v79
  %v445 = vunpack.c.h.b16 %v79
  %v446 = vunpack.c.l.b16 %v80
  %v447 = vunpack.c.h.b16 %v80
  %v448 = vunpack.c.l.b16 %v81
  %v449 = vunpack.c.h.b16 %v81
  %v450 = vunpack.c.l.b16 %v82
  %v451 = vunpack.c.h.b16 %v82
  %v452 = vunpack.c.l.b16 %v83
  %v453 = vunpack.c.h.b16 %v83
  %v454 = vunpack.c.l.b16 %v84
  %v455 = vunpack.c.h.b16 %v84
  %v456 = vunpack.c.l.b16 %v85
  %v457 = vunpack.c.h.b16 %v85
  %v458 = vunpack.c.l.b16 %v86
  %v459 = vunpack.c.h.b16 %v86
  %v460 = vunpack.c.l.b16 %v87
  %v461 = vunpack.c.h.b16 %v87
  %v462 = vunpack.c.l.b16 %v88
  %v463 = vunpack.c.h.b16 %v88
  %v464 = vunpack.c.l.b16 %v89
  %v465 = vunpack.c.h.b16 %v89
  %v466 = vunpack.c.l.b16 %v90
  %v467 = vunpack.c.h.b16 %v90
  %v468 = vunpack.c.l.b16 %v91
  %v469 = vunpack.c.h.b16 %v91
  %v470 = vunpack.c.l.b16 %v92
  %v471 = vunpack.c.h.b16 %v92
  %v472 = vunpack.c.l.b16 %v93
  %v473 = vunpack.c.h.b16 %v93
  %v474 = vunpack.c.l.b16 %v94
  %v475 = vunpack.c.h.b16 %v94
  %v476 = vunpack.c.l.b16 %v95
  %v477 = vunpack.c.h.b16 %v95
  %v478 = vunpack.c.l.b16 %v96
  %v479 = vunpack.c.h.b16 %v96
  %v480 = vunpack.c.l.b16 %v97
  %v481 = vunpack.c.h.b16 %v97
  %v482 = vunpack.c.l.b16 %v98
  %v483 = vunpack.c.h.b16 %v98
  %v484 = vunpack.c.l.b16 %v99
  %v485 = vunpack.c.h.b16 %v99
  %v486 = vunpack.c.l.b16 %v100
  %v487 = vunpack.c.h.b16 %v100
  %v488 = vunpack.c.l.b16 %v101
  %v489 = vunpack.c.h.b16 %v101
  %v490 = vunpack.c.l.b16 %v102
  %v491 = vunpack.c.h.b16 %v102
  %v492 = vunpack.c.l.b16 %v103
  %v493 = vunpack.c.h.b16 %v103
  %v494 = vunpack.c.l.b16 %v104
  %v495 = vunpack.c.h.b16 %v104
  %v496 = vunpack.c.l.b16 %v105
  %v497 = vunpack.c.h.b16 %v105
  %v498 = vunpack.c.l.b16 %v106
  %v499 = vunpack.c.h.b16 %v106
  %v500 = vunpack.c.l.b16 %v107
  %v501 = vunpack.c.h.b16 %v107
  %v502 = vunpack.c.l.b16 %v108
  %v503 = vunpack.c.h.b16 %v108
  %v504 = vunpack.c.l.b16 %v109
  %v505 = vunpack.c.h.b16 %v109
  %v506 = vunpack.c.l.b16 %v110
  %v507 = vunpack.c.h.b16 %v110
  %v508 = vunpack.c.l.b16 %v111
  %v509 = vunpack.c.h.b16 %v111
  %v510 = vunpack.c.l.b16 %v112
  %v511 = vunpack.c.h.b16 %v112
  %v512 = vunpack.c.l.b16 %v113
  %v513 = vunpack.c.h.b16 %v113
  %v514 = vunpack.c.l.b16 %v114
  %v515 = vunpack.c.h.b16 %v114
  %v516 = vunpack.c.l.b16 %v115
  %v517 = vunpack.c.h.b16 %v115
  %v518 = vunpack.c.l.b16 %v116
  %v519 = vunpack.c.h.b16 %v116
  %v520 = vunpack.c.l.b16 %v117
  %v521 = vunpack.c.h.b16 %v117
  %v522 = vunpack.c.l.b16 %v118
  %v523 = vunpack.c.h.b16 %v118
  %v524 = vunpack.c.l.b16 %v119
  %v525 = vunpack.c.h.b16 %v119
  %v526 = vunpack.c.l.b16 %v120
  %v527 = vunpack.c.h.b16 %v120
  %v528 = vunpack.c.l.b16 %v121
  %v529 = vunpack.c.h.b16 %v121
  %v530 = vunpack.c.l.b16 %v122
  %v531 = vunpack.c.h.b16 %v122
  %v532 = vunpack.c.l.b16 %v123
  %v533 = vunpack.c.h.b16 %v123
  %v534 = vunpack.c.l.b16 %v124
  %v535 = vunpack.c.h.b16 %v124
  %v536 = vunpack.c.l.b16 %v125
  %v537 = vunpack.c.h.b16 %v125
  %v538 = vunpack.c.l.b16 %v126
  %v539 = vunpack.c.h.b16 %v126
  %v540 = vunpack.c.l.b16 %v127
  %v541 = vunpack.c.h.b16 %v127
  %v542 = vunpack.c.l.b16 %v128
  %v543 = vunpack.c.h.b16 %v128
  %v544 = vunpack.c.l.b16 %v129
  %v545 = vunpack.c.h.b16 %v129
  %v546 = vunpack.c.l.b16 %v130
  %v547 = vunpack.c.h.b16 %v130
  %v548 = vunpack.c.l.b16 %v131
  %v549 = vunpack.c.h.b16 %v131
  %v550 = vunpack.c.l.b16 %v132
  %v551 = vunpack.c.h.b16 %v132
  %v552 = vunpack.c.l.b16 %v133
  %v553 = vunpack.c.h.b16 %v133
  %v554 = vunpack.c.l.b16 %v134
  %v555 = vunpack.c.h.b16 %v134
  %v556 = vunpack.c.l.b16 %v135
  %v557 = vunpack.c.h.b16 %v135
  %v558 = vunpack.c.l.b16 %v136
  %v559 = vunpack.c.h.b16 %v136
  %v560 = vunpack.c.l.b16 %v137
  %v561 = vunpack.c.h.b16 %v137
  %v562 = vunpack.c.l.b16 %v138
  %v563 = vunpack.c.h.b16 %v138
  %v564 = vunpack.c.l.b16 %v139
  %v565 = vunpack.c.h.b16 %v139
  %v566 = vunpack.c.l.b16 %v140
  %v567 = vunpack.c.h.b16 %v140
  %v568 = vunpack.c.l.b16 %v141
  %v569 = vunpack.c.h.b16 %v141
  %v570 = vunpack.c.l.b16 %v142
  %v571 = vunpack.c.h.b16 %v142
  %v572 = vunpack.c.l.b16 %v143
  %v573 = vunpack.c.h.b16 %v143
  %v574 = vunpack.c.l.b16 %v144
  %v575 = vunpack.c.h.b16 %v144
  %v576 = vunpack.c.l.b16 %v145
  %v577 = vunpack.c.h.b16 %v145
  %v578 = vunpack.c.l.b16 %v146
  %v579 = vunpack.c.h.b16 %v146
  %v580 = vunpack.c.l.b16 %v147
  %v581 = vunpack.c.h.b16 %v147
  %v582 = vunpack.c.l.b16 %v148
  %v583 = vunpack.c.h.b16 %v148
  %v584 = vunpack.c.l.b16 %v149
  %v585 = vunpack.c.h.b16 %v149
  %v586 = vunpack.c.l.b16 %v150
  %v587 = vunpack.c.h.b16 %v150
  %v588 = vunpack.c.l.b16 %v151
  %v589 = vunpack.c.h.b16 %v151
  %v590 = vunpack.c.l.b16 %v152
  %v591 = vunpack.c.h.b16 %v152
  %v592 = vunpack.c.l.b16 %v153
  %v593 = vunpack.c.h.b16 %v153
  %v594 = vunpack.c.l.b16 %v154
  %v595 = vunpack.c.h.b16 %v154
  %v596 = vunpack.c.l.b16 %v155
  %v597 = vunpack.c.h.b16 %v155
  %v598 = vunpack.c.l.b16 %v156
  %v599 = vunpack.c.h.b16 %v156
  %v600 = vunpack.c.l.b16 %v157
  %v601 = vunpack.c.h.b16 %v157
  %v602 = vunpack.c.l.b16 %v158
  %v603 = vunpack.c.h.b16 %v158
  %v604 = vunpack.c.l.b16 %v159
  %v605 = vunpack.c.h.b16 %v159
  %v606 = vunpack.c.l.b16 %v160
  %v607 = vunpack.c.h.b16 %v160
  %v608 = vunpack.c.l.b16 %v161
  %v609 = vunpack.c.h.b16 %v161
  %v610 = vunpack.c.l.b16 %v162
  %v611 = vunpack.c.h.b16 %v162
  %v612 = vunpack.c.l.b16 %v163
  %v613 = vunpack.c.h.b16 %v163
  %v614 = vunpack.c.l.b16 %v164
  %v615 = vunpack.c.h.b16 %v164
  %v616 = vunpack.c.l.b16 %v165
  %v617 = vunpack.c.h.b16 %v165
  %v618 = vunpack.c.l.b16 %v166
  %v619 = vunpack.c.h.b16 %v166
  %v620 = vunpack.c.l.b16 %v167
  %v621 = vunpack.c.h.b16 %v167
  %v622 = vunpack.c.l.b16 %v168
  %v623 = vunpack.c.h.b16 %v168
  %v624 = vunpack.c.l.b16 %v169
  %v625 = vunpack.c.h.b16 %v169
  %v626 = vunpack.c.l.b16 %v170
  %v627 = vunpack.c.h.b16 %v170
  %v628 = vunpack.c.l.b16 %v171
  %v629 = vunpack.c.h.b16 %v171
  %v630 = vunpack.c.l.b16 %v172
  %v631 = vunpack.c.h.b16 %v172
  %v632 = vunpack.c.l.b16 %v173
  %v633 = vunpack.c.h.b16 %v173
  %v634 = vunpack.c.l.b16 %v174
  %v635 = vunpack.c.h.b16 %v174
  %v636 = vunpack.c.l.b16 %v175
  %v637 = vunpack.c.h.b16 %v175
  %v638 = vpack.c.b16 %v352, %v350
  %v639 = vpack.c.b16 %v353, %v351
  %v640 = vpack.c.b16 %v356, %v354
  %v641 = vpack.c.b16 %v357, %v355
  %v642 = vpack.c.b16 %v360, %v358
  %v643 = vpack.c.b16 %v361, %v359
  %v644 = vpack.c.b16 %v364, %v362
  %v645 = vpack.c.b16 %v365, %v363
  %v646 = vpack.c.b16 %v368, %v366
  %v647 = vpack.c.b16 %v369, %v367
  %v648 = vpack.c.b16 %v372, %v370
  %v649 = vpack.c.b16 %v373, %v371
  %v650 = vpack.c.b16 %v376, %v374
  %v651 = vpack.c.b16 %v377, %v375
  %v652 = vpack.c.b16 %v380, %v378
  %v653 = vpack.c.b16 %v381, %v379
  %v654 = vpack.c.b16 %v384, %v382
  %v655 = vpack.c.b16 %v385, %v383
  %v656 = vpack.c.b16 %v388, %v386
  %v657 = vpack.c.b16 %v389, %v387
  %v658 = vpack.c.b16 %v392, %v390
  %v659 = vpack.c.b16 %v393, %v391
  %v660 = vpack.c.b16 %v396, %v394
  %v661 = vpack.c.b16 %v397, %v395
  %v662 = vpack.c.b16 %v400, %v398
  %v663 = vpack.c.b16 %v401, %v399
  %v664 = vpack.c.b16 %v404, %v402
  %v665 = vpack.c.b16 %v405, %v403
  %v666 = vpack.c.b16 %v408, %v406
  %v667 = vpack.c.b16 %v409, %v407
  %v668 = vpack.c.b16 %v412, %v410
  %v669 = vpack.c.b16 %v413, %v411
  %v670 = vpack.c.b16 %v416, %v414
  %v671 = vpack.c.b16 %v417, %v415
  %v672 = vpack.c.b16 %v420, %v418
  %v673 = vpack.c.b16 %v421, %v419
  %v674 = vpack.c.b16 %v424, %v422
  %v675 = vpack.c.b16 %v425, %v423
  %v676 = vpack.c.b16 %v428, %v426
  %v677 = vpack.c.b16 %v429, %v427
  %v678 = vpack.c.b16 %v432, %v430
  %v679 = vpack.c.b16 %v433, %v431
  %v680 = vpack.c.b16 %v436, %v434
  %v681 = vpack.c.b16 %v437, %v435
  %v682 = vpack.c.b16 %v440, %v438
  %v683 = vpack.c.b16 %v441, %v439
  %v684 = vpack.c.b16 %v444, %v442
  %v685 = vpack.c.b16 %v445, %v443
  %v686 = vpack.c.b16 %v448, %v446
  %v687 = vpack.c.b16 %v449, %v447
  %v688 = vpack.c.b16 %v452, %v450
  %v689 = vpack.c.b16 %v453, %v451
  %v690 = vpack.c.b16 %v456, %v454
  %v691 = vpack.c.b16 %v457, %v455
  %v692 = vpack.c.b16 %v460, %v458
  %v693 = vpack.c.b16 %v461, %v459
  %v694 = vpack.c.b16 %v464, %v462
  %v695 = vpack.c.b16 %v465, %v463
  %v696 = vpack.c.b16 %v468, %v466
  %v697 = vpack.c.b16 %v469, %v467
  %v698 = vpack.c.b16 %v472, %v470
  %v699 = vpack.c.b16 %v473, %v471
  %v700 = vpack.c.b16 %v476, %v474
  %v701 = vpack.c.b16 %v477, %v475
  %v702 = vpack.c.b16 %v480, %v478
  %v703 = vpack.c.b16 %v481, %v479
  %v704 = vpack.c.b16 %v484, %v482
  %v705 = vpack.c.b16 %v485, %v483
  %v706 = vpack.c.b16 %v488, %v486
  %v707 = vpack.c.b16 %v489, %v487
  %v708 = vpack.c.b16 %v492, %v490
  %v709 = vpack.c.b16 %v493, %v491
  %v710 = vpack.c.b16 %v496, %v494
  %v711 = vpack.c.b16 %v497, %v495
  %v712 = vpack.c.b16 %v500, %v498
  %v713 = vpack.c.b16 %v501, %v499
  %v714 = vpack.c.b16 %v504, %v502
  %v715 = vpack.c.b16 %v505, %v503
  %v716 = vpack.c.b16 %v508, %v506
  %v717 = vpack.c.b16 %v509, %v507
  %v718 = vpack.c.b16 %v512, %v510
  %v719 = vpack.c.b16 %v513, %v511
  %v720 = vpack.c.b16 %v516, %v514
  %v721 = vpack.c.b16 %v517, %v515
  %v722 = vpack.c.b16 %v520, %v518
  %v723 = vpack.c.b16 %v521, %v519
  %v724 = vpack.c.b16 %v524, %v522
  %v725 = vpack.c.b16 %v525, %v523
  %v726 = vpack.c.b16 %v528, %v526
  %v727 = vpack.c.b16 %v529, %v527
  %v728 = vpack.c.b16 %v532, %v530
  %v729 = vpack.c.b16 %v533, %v531
  %v730 = vpack.c.b16 %v536, %v534
  %v731 = vpack.c.b16 %v537, %v535
  %v732 = vpack.c.b16 %v540, %v538
  %v733 = vpack.c.b16 %v541, %v539
  %v734 = vpack.c.b16 %v544, %v542
  %v735 = vpack.c.b16 %v545, %v543
  %v736 = vpack.c.b16 %v548, %v546
  %v737 = vpack.c.b16 %v549, %v547
  %v738 = vpack.c.b16 %v552, %v550
  %v739 = vpack.c.b16 %v553, %v551
  %v740 = vpack.c.b16 %v556, %v554
  %v741 = vpack.c.b16 %v557, %v555
  %v742 = vpack.c.b16 %v560, %v558
  %v743 = vpack.c.b16 %v561, %v559
  %v744 = vpack.c.b16 %v564, %v562
  %v745 = vpack.c.b16 %v565, %v563
  %v746 = vpack.c.b16 %v568, %v566
  %v747 = vpack.c.b16 %v569, %v567
  %v748 = vpack.c.b16 %v572, %v570
  %v749 = vpack.c.b16 %v573, %v571
  %v750 = vpack.c.b16 %v576, %v574
  %v751 = vpack.c.b16 %v577, %v575
  %v752 = vpack.c.b16 %v580, %v578
  %v753 = vpack.c.b16 %v581, %v579
  %v754 = vpack.c.b16 %v584, %v582
  %v755 = vpack.c.b16 %v585, %v583
  %v756 = vpack.c.b16 %v588, %v586
  %v757 = vpack.c.b16 %v589, %v587
  %v758 = vpack.c.b16 %v592, %v590
  %v759 = vpack.c.b16 %v593, %v591
  %v760 = vpack.c.b16 %v596, %v594
  %v761 = vpack.c.b16 %v597, %v595
  %v762 = vpack.c.b16 %v600, %v598
  %v763 = vpack.c.b16 %v601, %v599
  %v764 = vpack.c.b16 %v604, %v602
  %v765 = vpack.c.b16 %v605, %v603
  %v766 = vpack.c.b16 %v608, %v606
  %v767 = vpack.c.b16 %v609, %v607
  %v768 = vpack.c.b16 %v612, %v610
  %v769 = vpack.c.b16 %v613, %v611
  %v770 = vpack.c.b16 %v616, %v614
  %v771 = vpack.c.b16 %v617, %v615
  %v772 = vpack.c.b16 %v620, %v618
  %v773 = vpack.c.b16 %v621, %v619
  %v774 = vpack.c.b16 %v624, %v622
  %v775 = vpack.c.b16 %v625, %v623
  %v776 = vpack.c.b16 %v628, %v626
  %v777 = vpack.c.b16 %v629, %v627
  %v778 = vpack.c.b16 %v632, %v630
  %v779 = vpack.c.b16 %v633, %v631
  %v780 = vpack.c.b16 %v636, %v634
  %v781 = vpack.c.b16 %v637, %v635
  %926 = vmatpush.bf16.msra.mxu0 %v652
  %927 = vmatpush.bf16.msra.mxu0 %v650
  %928 = vmatpush.bf16.msra.mxu0 %v648
  %929 = vmatpush.bf16.msra.mxu0 %v646
  %930 = vmatpush.bf16.msra.mxu0 %v644
  %931 = vmatpush.bf16.msra.mxu0 %v642
  %932 = vmatpush.bf16.msra.mxu0 %v640
  %933 = vmatpush.bf16.msra.mxu0 %v638
  %934 = vmatmul.bf16.gmra.mxu0 %v186
  %v935 = vpop.f32.mrf.mxu0
  %v936 = vadd.f32 %v180, %v935
  %v937 = vpop.f32.mrf.mxu0
  %938 = vdwg.mxu0
  %939 = vmatpush.bf16.msra.mxu0 %v668
  %940 = vmatpush.bf16.msra.mxu0 %v666
  %941 = vmatpush.bf16.msra.mxu0 %v664
  %942 = vmatpush.bf16.msra.mxu0 %v662
  %943 = vmatpush.bf16.msra.mxu0 %v660
  %944 = vmatpush.bf16.msra.mxu0 %v658
  %945 = vmatpush.bf16.msra.mxu0 %v656
  %946 = vmatpush.bf16.msra.mxu0 %v654
  %947 = vmatmul.bf16.gmra.mxu0 %v187
  %v948 = vpop.f32.mrf.mxu0
  %v949 = vadd.f32 %v936, %v948
  %v950 = vpop.f32.mrf.mxu0
  %951 = vdwg.mxu0
  %952 = vmatpush.bf16.msra.mxu0 %v684
  %953 = vmatpush.bf16.msra.mxu0 %v682
  %954 = vmatpush.bf16.msra.mxu0 %v680
  %955 = vmatpush.bf16.msra.mxu0 %v678
  %956 = vmatpush.bf16.msra.mxu0 %v676
  %957 = vmatpush.bf16.msra.mxu0 %v674
  %958 = vmatpush.bf16.msra.mxu0 %v672
  %959 = vmatpush.bf16.msra.mxu0 %v670
  %960 = vmatmul.bf16.gmra.mxu0 %v188
  %v961 = vpop.f32.mrf.mxu0
  %v962 = vadd.f32 %v949, %v961
  %v963 = vpop.f32.mrf.mxu0
  %964 = vdwg.mxu0
  %965 = vmatpush.bf16.msra.mxu0 %v700
  %966 = vmatpush.bf16.msra.mxu0 %v698
  %967 = vmatpush.bf16.msra.mxu0 %v696
  %968 = vmatpush.bf16.msra.mxu0 %v694
  %969 = vmatpush.bf16.msra.mxu0 %v692
  %970 = vmatpush.bf16.msra.mxu0 %v690
  %971 = vmatpush.bf16.msra.mxu0 %v688
  %972 = vmatpush.bf16.msra.mxu0 %v686
  %973 = vmatmul.bf16.gmra.mxu0 %v189
  %v974 = vpop.f32.mrf.mxu0
  %v975 = vadd.f32 %v962, %v974
  %v976 = vpop.f32.mrf.mxu0
  %977 = vdwg.mxu0
  %978 = vmatpush.bf16.msra.mxu0 %v716
  %979 = vmatpush.bf16.msra.mxu0 %v714
  %980 = vmatpush.bf16.msra.mxu0 %v712
  %981 = vmatpush.bf16.msra.mxu0 %v710
  %982 = vmatpush.bf16.msra.mxu0 %v708
  %983 = vmatpush.bf16.msra.mxu0 %v706
  %984 = vmatpush.bf16.msra.mxu0 %v704
  %985 = vmatpush.bf16.msra.mxu0 %v702
  %986 = vmatmul.bf16.gmra.mxu0 %v190
  %v987 = vpop.f32.mrf.mxu0
  %v988 = vadd.f32 %v975, %v987
  %v989 = vpop.f32.mrf.mxu0
  %990 = vdwg.mxu0
  %991 = vmatpush.bf16.msra.mxu0 %v732
  %992 = vmatpush.bf16.msra.mxu0 %v730
  %993 = vmatpush.bf16.msra.mxu0 %v728
  %994 = vmatpush.bf16.msra.mxu0 %v726
  %995 = vmatpush.bf16.msra.mxu0 %v724
  %996 = vmatpush.bf16.msra.mxu0 %v722
  %997 = vmatpush.bf16.msra.mxu0 %v720
  %998 = vmatpush.bf16.msra.mxu0 %v718
  %999 = vmatmul.bf16.gmra.mxu0 %v191
  %v1000 = vpop.f32.mrf.mxu0
  %v1001 = vadd.f32 %v988, %v1000
  %v1002 = vpop.f32.mrf.mxu0
  %1003 = vdwg.mxu0
  %1004 = vmatpush.bf16.msra.mxu0 %v748
  %1005 = vmatpush.bf16.msra.mxu0 %v746
  %1006 = vmatpush.bf16.msra.mxu0 %v744
  %1007 = vmatpush.bf16.msra.mxu0 %v742
  %1008 = vmatpush.bf16.msra.mxu0 %v740
  %1009 = vmatpush.bf16.msra.mxu0 %v738
  %1010 = vmatpush.bf16.msra.mxu0 %v736
  %1011 = vmatpush.bf16.msra.mxu0 %v734
  %1012 = vmatmul.bf16.gmra.mxu0 %v192
  %v1013 = vpop.f32.mrf.mxu0
  %v1014 = vadd.f32 %v1001, %v1013
  %v1015 = vpop.f32.mrf.mxu0
  %1016 = vdwg.mxu0
  %1017 = vmatpush.bf16.msra.mxu0 %v764
  %1018 = vmatpush.bf16.msra.mxu0 %v762
  %1019 = vmatpush.bf16.msra.mxu0 %v760
  %1020 = vmatpush.bf16.msra.mxu0 %v758
  %1021 = vmatpush.bf16.msra.mxu0 %v756
  %1022 = vmatpush.bf16.msra.mxu0 %v754
  %1023 = vmatpush.bf16.msra.mxu0 %v752
  %1024 = vmatpush.bf16.msra.mxu0 %v750
  %1025 = vmatmul.bf16.gmra.mxu0 %v193
  %v1026 = vpop.f32.mrf.mxu0
  %v1027 = vadd.f32 %v1014, %v1026
  %v1028 = vpop.f32.mrf.mxu0
  %1029 = vdwg.mxu0
  %1030 = vmatpush.bf16.msra.mxu0 %v780
  %1031 = vmatpush.bf16.msra.mxu0 %v778
  %1032 = vmatpush.bf16.msra.mxu0 %v776
  %1033 = vmatpush.bf16.msra.mxu0 %v774
  %1034 = vmatpush.bf16.msra.mxu0 %v772
  %1035 = vmatpush.bf16.msra.mxu0 %v770
  %1036 = vmatpush.bf16.msra.mxu0 %v768
  %1037 = vmatpush.bf16.msra.mxu0 %v766
  %1038 = vmatmul.bf16.gmra.mxu0 %v196
  %v1039 = vpop.f32.mrf.mxu0
  %v1040 = vadd.f32 %v1027, %v1039
  %v1041 = vpop.f32.mrf.mxu0
  %1042 = vdwg.mxu0
  %1043 = vmatpush.bf16.msra.mxu0 %v653
  %1044 = vmatpush.bf16.msra.mxu0 %v651
  %1045 = vmatpush.bf16.msra.mxu0 %v649
  %1046 = vmatpush.bf16.msra.mxu0 %v647
  %1047 = vmatpush.bf16.msra.mxu0 %v645
  %1048 = vmatpush.bf16.msra.mxu0 %v643
  %1049 = vmatpush.bf16.msra.mxu0 %v641
  %1050 = vmatpush.bf16.msra.mxu0 %v639
  %1051 = vmatmul.bf16.gmra.mxu0 %v186
  %v1052 = vpop.f32.mrf.mxu0
  %v1053 = vadd.f32 %v181, %v1052
  %v1054 = vpop.f32.mrf.mxu0
  %1055 = vdwg.mxu0
  %1056 = vmatpush.bf16.msra.mxu0 %v669
  %1057 = vmatpush.bf16.msra.mxu0 %v667
  %1058 = vmatpush.bf16.msra.mxu0 %v665
  %1059 = vmatpush.bf16.msra.mxu0 %v663
  %1060 = vmatpush.bf16.msra.mxu0 %v661
  %1061 = vmatpush.bf16.msra.mxu0 %v659
  %1062 = vmatpush.bf16.msra.mxu0 %v657
  %1063 = vmatpush.bf16.msra.mxu0 %v655
  %1064 = vmatmul.bf16.gmra.mxu0 %v187
  %v1065 = vpop.f32.mrf.mxu0
  %v1066 = vadd.f32 %v1053, %v1065
  %v1067 = vpop.f32.mrf.mxu0
  %1068 = vdwg.mxu0
  %1069 = vmatpush.bf16.msra.mxu0 %v685
  %1070 = vmatpush.bf16.msra.mxu0 %v683
  %1071 = vmatpush.bf16.msra.mxu0 %v681
  %1072 = vmatpush.bf16.msra.mxu0 %v679
  %1073 = vmatpush.bf16.msra.mxu0 %v677
  %1074 = vmatpush.bf16.msra.mxu0 %v675
  %1075 = vmatpush.bf16.msra.mxu0 %v673
  %1076 = vmatpush.bf16.msra.mxu0 %v671
  %1077 = vmatmul.bf16.gmra.mxu0 %v188
  %v1078 = vpop.f32.mrf.mxu0
  %v1079 = vadd.f32 %v1066, %v1078
  %v1080 = vpop.f32.mrf.mxu0
  %1081 = vdwg.mxu0
  %1082 = vmatpush.bf16.msra.mxu0 %v701
  %1083 = vmatpush.bf16.msra.mxu0 %v699
  %1084 = vmatpush.bf16.msra.mxu0 %v697
  %1085 = vmatpush.bf16.msra.mxu0 %v695
  %1086 = vmatpush.bf16.msra.mxu0 %v693
  %1087 = vmatpush.bf16.msra.mxu0 %v691
  %1088 = vmatpush.bf16.msra.mxu0 %v689
  %1089 = vmatpush.bf16.msra.mxu0 %v687
  %1090 = vmatmul.bf16.gmra.mxu0 %v189
  %v1091 = vpop.f32.mrf.mxu0
  %v1092 = vadd.f32 %v1079, %v1091
  %v1093 = vpop.f32.mrf.mxu0
  %1094 = vdwg.mxu0
  %1095 = vmatpush.bf16.msra.mxu0 %v717
  %1096 = vmatpush.bf16.msra.mxu0 %v715
  %1097 = vmatpush.bf16.msra.mxu0 %v713
  %1098 = vmatpush.bf16.msra.mxu0 %v711
  %1099 = vmatpush.bf16.msra.mxu0 %v709
  %1100 = vmatpush.bf16.msra.mxu0 %v707
  %1101 = vmatpush.bf16.msra.mxu0 %v705
  %1102 = vmatpush.bf16.msra.mxu0 %v703
  %1103 = vmatmul.bf16.gmra.mxu0 %v190
  %v1104 = vpop.f32.mrf.mxu0
  %v1105 = vadd.f32 %v1092, %v1104
  %v1106 = vpop.f32.mrf.mxu0
  %1107 = vdwg.mxu0
  %1108 = vmatpush.bf16.msra.mxu0 %v733
  %1109 = vmatpush.bf16.msra.mxu0 %v731
  %1110 = vmatpush.bf16.msra.mxu0 %v729
  %1111 = vmatpush.bf16.msra.mxu0 %v727
  %1112 = vmatpush.bf16.msra.mxu0 %v725
  %1113 = vmatpush.bf16.msra.mxu0 %v723
  %1114 = vmatpush.bf16.msra.mxu0 %v721
  %1115 = vmatpush.bf16.msra.mxu0 %v719
  %1116 = vmatmul.bf16.gmra.mxu0 %v191
  %v1117 = vpop.f32.mrf.mxu0
  %v1118 = vadd.f32 %v1105, %v1117
  %v1119 = vpop.f32.mrf.mxu0
  %1120 = vdwg.mxu0
  %1121 = vmatpush.bf16.msra.mxu0 %v749
  %1122 = vmatpush.bf16.msra.mxu0 %v747
  %1123 = vmatpush.bf16.msra.mxu0 %v745
  %1124 = vmatpush.bf16.msra.mxu0 %v743
  %1125 = vmatpush.bf16.msra.mxu0 %v741
  %1126 = vmatpush.bf16.msra.mxu0 %v739
  %1127 = vmatpush.bf16.msra.mxu0 %v737
  %1128 = vmatpush.bf16.msra.mxu0 %v735
  %1129 = vmatmul.bf16.gmra.mxu0 %v192
  %v1130 = vpop.f32.mrf.mxu0
  %v1131 = vadd.f32 %v1118, %v1130
  %v1132 = vpop.f32.mrf.mxu0
  %1133 = vdwg.mxu0
  %1134 = vmatpush.bf16.msra.mxu0 %v765
  %1135 = vmatpush.bf16.msra.mxu0 %v763
  %1136 = vmatpush.bf16.msra.mxu0 %v761
  %1137 = vmatpush.bf16.msra.mxu0 %v759
  %1138 = vmatpush.bf16.msra.mxu0 %v757
  %1139 = vmatpush.bf16.msra.mxu0 %v755
  %1140 = vmatpush.bf16.msra.mxu0 %v753
  %1141 = vmatpush.bf16.msra.mxu0 %v751
  %1142 = vmatmul.bf16.gmra.mxu0 %v193
  %v1143 = vpop.f32.mrf.mxu0
  %v1144 = vadd.f32 %v1131, %v1143
  %v1145 = vpop.f32.mrf.mxu0
  %1146 = vdwg.mxu0
  %1147 = vmatpush.bf16.msra.mxu0 %v781
  %1148 = vmatpush.bf16.msra.mxu0 %v779
  %1149 = vmatpush.bf16.msra.mxu0 %v777
  %1150 = vmatpush.bf16.msra.mxu0 %v775
  %1151 = vmatpush.bf16.msra.mxu0 %v773
  %1152 = vmatpush.bf16.msra.mxu0 %v771
  %1153 = vmatpush.bf16.msra.mxu0 %v769
  %1154 = vmatpush.bf16.msra.mxu0 %v767
  %1155 = vmatmul.bf16.gmra.mxu0 %v196
  %v1156 = vpop.f32.mrf.mxu0
  %v1157 = vadd.f32 %v1144, %v1156
  %v1158 = vpop.f32.mrf.mxu0
  %1159 = vdwg.mxu0
  %s1160 = scalar_lea.vmem %s0, 9
  %v1161 = vld [vmem:[%s1160] sm:$0xff]
  %v1162 = vld [vmem:[%s1160 + $0x8] sm:$0x1]
  %1164 = vst [vmem:[#allocation1] ss:$9 sm:$0xff] %v1161
  %v1165 = vld [vmem:[#allocation1] sm:$0xff]
  %v1166 = vld [vmem:[#allocation1 + $0x9] sm:$0xff]
  %v1167 = vld [vmem:[#allocation1 + $0x12] sm:$0xff]
  %v1168 = vld [vmem:[#allocation1 + $0x1b] sm:$0xff]
  %v1169 = vld [vmem:[#allocation1 + $0x24] sm:$0xff]
  %v1170 = vld [vmem:[#allocation1 + $0x2d] sm:$0xff]
  %v1171 = vld [vmem:[#allocation1 + $0x36] sm:$0xff]
  %v1172 = vld [vmem:[#allocation1 + $0x3f] sm:$0xff]
  %1174 = vst [vmem:[#allocation1] ss:$9 sm:$0xff] %v1162
  %v1175 = vld [vmem:[#allocation1] sm:$0xff]
  %1185 = vmatpush.bf16.msra.mxu0 %v652
  %1186 = vmatpush.bf16.msra.mxu0 %v650
  %1187 = vmatpush.bf16.msra.mxu0 %v648
  %1188 = vmatpush.bf16.msra.mxu0 %v646
  %1189 = vmatpush.bf16.msra.mxu0 %v644
  %1190 = vmatpush.bf16.msra.mxu0 %v642
  %1191 = vmatpush.bf16.msra.mxu0 %v640
  %1192 = vmatpush.bf16.msra.mxu0 %v638
  %1193 = vmatmul.bf16.gmra.mxu0 %v1165
  %v1194 = vpop.f32.mrf.mxu0
  %v1195 = vadd.f32 %v180, %v1194
  %v1196 = vpop.f32.mrf.mxu0
  %1197 = vdwg.mxu0
  %1198 = vmatpush.bf16.msra.mxu0 %v668
  %1199 = vmatpush.bf16.msra.mxu0 %v666
  %1200 = vmatpush.bf16.msra.mxu0 %v664
  %1201 = vmatpush.bf16.msra.mxu0 %v662
  %1202 = vmatpush.bf16.msra.mxu0 %v660
  %1203 = vmatpush.bf16.msra.mxu0 %v658
  %1204 = vmatpush.bf16.msra.mxu0 %v656
  %1205 = vmatpush.bf16.msra.mxu0 %v654
  %1206 = vmatmul.bf16.gmra.mxu0 %v1166
  %v1207 = vpop.f32.mrf.mxu0
  %v1208 = vadd.f32 %v1195, %v1207
  %v1209 = vpop.f32.mrf.mxu0
  %1210 = vdwg.mxu0
  %1211 = vmatpush.bf16.msra.mxu0 %v684
  %1212 = vmatpush.bf16.msra.mxu0 %v682
  %1213 = vmatpush.bf16.msra.mxu0 %v680
  %1214 = vmatpush.bf16.msra.mxu0 %v678
  %1215 = vmatpush.bf16.msra.mxu0 %v676
  %1216 = vmatpush.bf16.msra.mxu0 %v674
  %1217 = vmatpush.bf16.msra.mxu0 %v672
  %1218 = vmatpush.bf16.msra.mxu0 %v670
  %1219 = vmatmul.bf16.gmra.mxu0 %v1167
  %v1220 = vpop.f32.mrf.mxu0
  %v1221 = vadd.f32 %v1208, %v1220
  %v1222 = vpop.f32.mrf.mxu0
  %1223 = vdwg.mxu0
  %1224 = vmatpush.bf16.msra.mxu0 %v700
  %1225 = vmatpush.bf16.msra.mxu0 %v698
  %1226 = vmatpush.bf16.msra.mxu0 %v696
  %1227 = vmatpush.bf16.msra.mxu0 %v694
  %1228 = vmatpush.bf16.msra.mxu0 %v692
  %1229 = vmatpush.bf16.msra.mxu0 %v690
  %1230 = vmatpush.bf16.msra.mxu0 %v688
  %1231 = vmatpush.bf16.msra.mxu0 %v686
  %1232 = vmatmul.bf16.gmra.mxu0 %v1168
  %v1233 = vpop.f32.mrf.mxu0
  %v1234 = vadd.f32 %v1221, %v1233
  %v1235 = vpop.f32.mrf.mxu0
  %1236 = vdwg.mxu0
  %1237 = vmatpush.bf16.msra.mxu0 %v716
  %1238 = vmatpush.bf16.msra.mxu0 %v714
  %1239 = vmatpush.bf16.msra.mxu0 %v712
  %1240 = vmatpush.bf16.msra.mxu0 %v710
  %1241 = vmatpush.bf16.msra.mxu0 %v708
  %1242 = vmatpush.bf16.msra.mxu0 %v706
  %1243 = vmatpush.bf16.msra.mxu0 %v704
  %1244 = vmatpush.bf16.msra.mxu0 %v702
  %1245 = vmatmul.bf16.gmra.mxu0 %v1169
  %v1246 = vpop.f32.mrf.mxu0
  %v1247 = vadd.f32 %v1234, %v1246
  %v1248 = vpop.f32.mrf.mxu0
  %1249 = vdwg.mxu0
  %1250 = vmatpush.bf16.msra.mxu0 %v732
  %1251 = vmatpush.bf16.msra.mxu0 %v730
  %1252 = vmatpush.bf16.msra.mxu0 %v728
  %1253 = vmatpush.bf16.msra.mxu0 %v726
  %1254 = vmatpush.bf16.msra.mxu0 %v724
  %1255 = vmatpush.bf16.msra.mxu0 %v722
  %1256 = vmatpush.bf16.msra.mxu0 %v720
  %1257 = vmatpush.bf16.msra.mxu0 %v718
  %1258 = vmatmul.bf16.gmra.mxu0 %v1170
  %v1259 = vpop.f32.mrf.mxu0
  %v1260 = vadd.f32 %v1247, %v1259
  %v1261 = vpop.f32.mrf.mxu0
  %1262 = vdwg.mxu0
  %1263 = vmatpush.bf16.msra.mxu0 %v748
  %1264 = vmatpush.bf16.msra.mxu0 %v746
  %1265 = vmatpush.bf16.msra.mxu0 %v744
  %1266 = vmatpush.bf16.msra.mxu0 %v742
  %1267 = vmatpush.bf16.msra.mxu0 %v740
  %1268 = vmatpush.bf16.msra.mxu0 %v738
  %1269 = vmatpush.bf16.msra.mxu0 %v736
  %1270 = vmatpush.bf16.msra.mxu0 %v734
  %1271 = vmatmul.bf16.gmra.mxu0 %v1171
  %v1272 = vpop.f32.mrf.mxu0
  %v1273 = vadd.f32 %v1260, %v1272
  %v1274 = vpop.f32.mrf.mxu0
  %1275 = vdwg.mxu0
  %1276 = vmatpush.bf16.msra.mxu0 %v764
  %1277 = vmatpush.bf16.msra.mxu0 %v762
  %1278 = vmatpush.bf16.msra.mxu0 %v760
  %1279 = vmatpush.bf16.msra.mxu0 %v758
  %1280 = vmatpush.bf16.msra.mxu0 %v756
  %1281 = vmatpush.bf16.msra.mxu0 %v754
  %1282 = vmatpush.bf16.msra.mxu0 %v752
  %1283 = vmatpush.bf16.msra.mxu0 %v750
  %1284 = vmatmul.bf16.gmra.mxu0 %v1172
  %v1285 = vpop.f32.mrf.mxu0
  %v1286 = vadd.f32 %v1273, %v1285
  %v1287 = vpop.f32.mrf.mxu0
  %1288 = vdwg.mxu0
  %1289 = vmatpush.bf16.msra.mxu0 %v780
  %1290 = vmatpush.bf16.msra.mxu0 %v778
  %1291 = vmatpush.bf16.msra.mxu0 %v776
  %1292 = vmatpush.bf16.msra.mxu0 %v774
  %1293 = vmatpush.bf16.msra.mxu0 %v772
  %1294 = vmatpush.bf16.msra.mxu0 %v770
  %1295 = vmatpush.bf16.msra.mxu0 %v768
  %1296 = vmatpush.bf16.msra.mxu0 %v766
  %1297 = vmatmul.bf16.gmra.mxu0 %v1175
  %v1298 = vpop.f32.mrf.mxu0
  %v1299 = vadd.f32 %v1286, %v1298
  %v1300 = vpop.f32.mrf.mxu0
  %1301 = vdwg.mxu0
  %1302 = vmatpush.bf16.msra.mxu0 %v653
  %1303 = vmatpush.bf16.msra.mxu0 %v651
  %1304 = vmatpush.bf16.msra.mxu0 %v649
  %1305 = vmatpush.bf16.msra.mxu0 %v647
  %1306 = vmatpush.bf16.msra.mxu0 %v645
  %1307 = vmatpush.bf16.msra.mxu0 %v643
  %1308 = vmatpush.bf16.msra.mxu0 %v641
  %1309 = vmatpush.bf16.msra.mxu0 %v639
  %1310 = vmatmul.bf16.gmra.mxu0 %v1165
  %v1311 = vpop.f32.mrf.mxu0
  %v1312 = vadd.f32 %v181, %v1311
  %v1313 = vpop.f32.mrf.mxu0
  %1314 = vdwg.mxu0
  %1315 = vmatpush.bf16.msra.mxu0 %v669
  %1316 = vmatpush.bf16.msra.mxu0 %v667
  %1317 = vmatpush.bf16.msra.mxu0 %v665
  %1318 = vmatpush.bf16.msra.mxu0 %v663
  %1319 = vmatpush.bf16.msra.mxu0 %v661
  %1320 = vmatpush.bf16.msra.mxu0 %v659
  %1321 = vmatpush.bf16.msra.mxu0 %v657
  %1322 = vmatpush.bf16.msra.mxu0 %v655
  %1323 = vmatmul.bf16.gmra.mxu0 %v1166
  %v1324 = vpop.f32.mrf.mxu0
  %v1325 = vadd.f32 %v1312, %v1324
  %v1326 = vpop.f32.mrf.mxu0
  %1327 = vdwg.mxu0
  %1328 = vmatpush.bf16.msra.mxu0 %v685
  %1329 = vmatpush.bf16.msra.mxu0 %v683
  %1330 = vmatpush.bf16.msra.mxu0 %v681
  %1331 = vmatpush.bf16.msra.mxu0 %v679
  %1332 = vmatpush.bf16.msra.mxu0 %v677
  %1333 = vmatpush.bf16.msra.mxu0 %v675
  %1334 = vmatpush.bf16.msra.mxu0 %v673
  %1335 = vmatpush.bf16.msra.mxu0 %v671
  %1336 = vmatmul.bf16.gmra.mxu0 %v1167
  %v1337 = vpop.f32.mrf.mxu0
  %v1338 = vadd.f32 %v1325, %v1337
  %v1339 = vpop.f32.mrf.mxu0
  %1340 = vdwg.mxu0
  %1341 = vmatpush.bf16.msra.mxu0 %v701
  %1342 = vmatpush.bf16.msra.mxu0 %v699
  %1343 = vmatpush.bf16.msra.mxu0 %v697
  %1344 = vmatpush.bf16.msra.mxu0 %v695
  %1345 = vmatpush.bf16.msra.mxu0 %v693
  %1346 = vmatpush.bf16.msra.mxu0 %v691
  %1347 = vmatpush.bf16.msra.mxu0 %v689
  %1348 = vmatpush.bf16.msra.mxu0 %v687
  %1349 = vmatmul.bf16.gmra.mxu0 %v1168
  %v1350 = vpop.f32.mrf.mxu0
  %v1351 = vadd.f32 %v1338, %v1350
  %v1352 = vpop.f32.mrf.mxu0
  %1353 = vdwg.mxu0
  %1354 = vmatpush.bf16.msra.mxu0 %v717
  %1355 = vmatpush.bf16.msra.mxu0 %v715
  %1356 = vmatpush.bf16.msra.mxu0 %v713
  %1357 = vmatpush.bf16.msra.mxu0 %v711
  %1358 = vmatpush.bf16.msra.mxu0 %v709
  %1359 = vmatpush.bf16.msra.mxu0 %v707
  %1360 = vmatpush.bf16.msra.mxu0 %v705
  %1361 = vmatpush.bf16.msra.mxu0 %v703
  %1362 = vmatmul.bf16.gmra.mxu0 %v1169
  %v1363 = vpop.f32.mrf.mxu0
  %v1364 = vadd.f32 %v1351, %v1363
  %v1365 = vpop.f32.mrf.mxu0
  %1366 = vdwg.mxu0
  %1367 = vmatpush.bf16.msra.mxu0 %v733
  %1368 = vmatpush.bf16.msra.mxu0 %v731
  %1369 = vmatpush.bf16.msra.mxu0 %v729
  %1370 = vmatpush.bf16.msra.mxu0 %v727
  %1371 = vmatpush.bf16.msra.mxu0 %v725
  %1372 = vmatpush.bf16.msra.mxu0 %v723
  %1373 = vmatpush.bf16.msra.mxu0 %v721
  %1374 = vmatpush.bf16.msra.mxu0 %v719
  %1375 = vmatmul.bf16.gmra.mxu0 %v1170
  %v1376 = vpop.f32.mrf.mxu0
  %v1377 = vadd.f32 %v1364, %v1376
  %v1378 = vpop.f32.mrf.mxu0
  %1379 = vdwg.mxu0
  %1380 = vmatpush.bf16.msra.mxu0 %v749
  %1381 = vmatpush.bf16.msra.mxu0 %v747
  %1382 = vmatpush.bf16.msra.mxu0 %v745
  %1383 = vmatpush.bf16.msra.mxu0 %v743
  %1384 = vmatpush.bf16.msra.mxu0 %v741
  %1385 = vmatpush.bf16.msra.mxu0 %v739
  %1386 = vmatpush.bf16.msra.mxu0 %v737
  %1387 = vmatpush.bf16.msra.mxu0 %v735
  %1388 = vmatmul.bf16.gmra.mxu0 %v1171
  %v1389 = vpop.f32.mrf.mxu0
  %v1390 = vadd.f32 %v1377, %v1389
  %v1391 = vpop.f32.mrf.mxu0
  %1392 = vdwg.mxu0
  %1393 = vmatpush.bf16.msra.mxu0 %v765
  %1394 = vmatpush.bf16.msra.mxu0 %v763
  %1395 = vmatpush.bf16.msra.mxu0 %v761
  %1396 = vmatpush.bf16.msra.mxu0 %v759
  %1397 = vmatpush.bf16.msra.mxu0 %v757
  %1398 = vmatpush.bf16.msra.mxu0 %v755
  %1399 = vmatpush.bf16.msra.mxu0 %v753
  %1400 = vmatpush.bf16.msra.mxu0 %v751
  %1401 = vmatmul.bf16.gmra.mxu0 %v1172
  %v1402 = vpop.f32.mrf.mxu0
  %v1403 = vadd.f32 %v1390, %v1402
  %v1404 = vpop.f32.mrf.mxu0
  %1405 = vdwg.mxu0
  %1406 = vmatpush.bf16.msra.mxu0 %v781
  %1407 = vmatpush.bf16.msra.mxu0 %v779
  %1408 = vmatpush.bf16.msra.mxu0 %v777
  %1409 = vmatpush.bf16.msra.mxu0 %v775
  %1410 = vmatpush.bf16.msra.mxu0 %v773
  %1411 = vmatpush.bf16.msra.mxu0 %v771
  %1412 = vmatpush.bf16.msra.mxu0 %v769
  %1413 = vmatpush.bf16.msra.mxu0 %v767
  %1414 = vmatmul.bf16.gmra.mxu0 %v1175
  %v1415 = vpop.f32.mrf.mxu0
  %v1416 = vadd.f32 %v1403, %v1415
  %v1417 = vpop.f32.mrf.mxu0
  %1418 = vdwg.mxu0
  %s1419 = scalar_lea.vmem %s0, 18
  %v1420 = vld [vmem:[%s1419] sm:$0xff]
  %v1421 = vld [vmem:[%s1419 + $0x8] sm:$0x1]
  %1423 = vst [vmem:[#allocation1] ss:$9 sm:$0xff] %v1420
  %v1424 = vld [vmem:[#allocation1] sm:$0xff]
  %v1425 = vld [vmem:[#allocation1 + $0x9] sm:$0xff]
  %v1426 = vld [vmem:[#allocation1 + $0x12] sm:$0xff]
  %v1427 = vld [vmem:[#allocation1 + $0x1b] sm:$0xff]
  %v1428 = vld [vmem:[#allocation1 + $0x24] sm:$0xff]
  %v1429 = vld [vmem:[#allocation1 + $0x2d] sm:$0xff]
  %v1430 = vld [vmem:[#allocation1 + $0x36] sm:$0xff]
  %v1431 = vld [vmem:[#allocation1 + $0x3f] sm:$0xff]
  %1433 = vst [vmem:[#allocation1] ss:$9 sm:$0xff] %v1421
  %v1434 = vld [vmem:[#allocation1] sm:$0xff]
  %1444 = vmatpush.bf16.msra.mxu0 %v652
  %1445 = vmatpush.bf16.msra.mxu0 %v650
  %1446 = vmatpush.bf16.msra.mxu0 %v648
  %1447 = vmatpush.bf16.msra.mxu0 %v646
  %1448 = vmatpush.bf16.msra.mxu0 %v644
  %1449 = vmatpush.bf16.msra.mxu0 %v642
  %1450 = vmatpush.bf16.msra.mxu0 %v640
  %1451 = vmatpush.bf16.msra.mxu0 %v638
  %1452 = vmatmul.bf16.gmra.mxu0 %v1424
  %v1453 = vpop.f32.mrf.mxu0
  %v1454 = vadd.f32 %v180, %v1453
  %v1455 = vpop.f32.mrf.mxu0
  %1456 = vdwg.mxu0
  %1457 = vmatpush.bf16.msra.mxu0 %v668
  %1458 = vmatpush.bf16.msra.mxu0 %v666
  %1459 = vmatpush.bf16.msra.mxu0 %v664
  %1460 = vmatpush.bf16.msra.mxu0 %v662
  %1461 = vmatpush.bf16.msra.mxu0 %v660
  %1462 = vmatpush.bf16.msra.mxu0 %v658
  %1463 = vmatpush.bf16.msra.mxu0 %v656
  %1464 = vmatpush.bf16.msra.mxu0 %v654
  %1465 = vmatmul.bf16.gmra.mxu0 %v1425
  %v1466 = vpop.f32.mrf.mxu0
  %v1467 = vadd.f32 %v1454, %v1466
  %v1468 = vpop.f32.mrf.mxu0
  %1469 = vdwg.mxu0
  %1470 = vmatpush.bf16.msra.mxu0 %v684
  %1471 = vmatpush.bf16.msra.mxu0 %v682
  %1472 = vmatpush.bf16.msra.mxu0 %v680
  %1473 = vmatpush.bf16.msra.mxu0 %v678
  %1474 = vmatpush.bf16.msra.mxu0 %v676
  %1475 = vmatpush.bf16.msra.mxu0 %v674
  %1476 = vmatpush.bf16.msra.mxu0 %v672
  %1477 = vmatpush.bf16.msra.mxu0 %v670
  %1478 = vmatmul.bf16.gmra.mxu0 %v1426
  %v1479 = vpop.f32.mrf.mxu0
  %v1480 = vadd.f32 %v1467, %v1479
  %v1481 = vpop.f32.mrf.mxu0
  %1482 = vdwg.mxu0
  %1483 = vmatpush.bf16.msra.mxu0 %v700
  %1484 = vmatpush.bf16.msra.mxu0 %v698
  %1485 = vmatpush.bf16.msra.mxu0 %v696
  %1486 = vmatpush.bf16.msra.mxu0 %v694
  %1487 = vmatpush.bf16.msra.mxu0 %v692
  %1488 = vmatpush.bf16.msra.mxu0 %v690
  %1489 = vmatpush.bf16.msra.mxu0 %v688
  %1490 = vmatpush.bf16.msra.mxu0 %v686
  %1491 = vmatmul.bf16.gmra.mxu0 %v1427
  %v1492 = vpop.f32.mrf.mxu0
  %v1493 = vadd.f32 %v1480, %v1492
  %v1494 = vpop.f32.mrf.mxu0
  %1495 = vdwg.mxu0
  %1496 = vmatpush.bf16.msra.mxu0 %v716
  %1497 = vmatpush.bf16.msra.mxu0 %v714
  %1498 = vmatpush.bf16.msra.mxu0 %v712
  %1499 = vmatpush.bf16.msra.mxu0 %v710
  %1500 = vmatpush.bf16.msra.mxu0 %v708
  %1501 = vmatpush.bf16.msra.mxu0 %v706
  %1502 = vmatpush.bf16.msra.mxu0 %v704
  %1503 = vmatpush.bf16.msra.mxu0 %v702
  %1504 = vmatmul.bf16.gmra.mxu0 %v1428
  %v1505 = vpop.f32.mrf.mxu0
  %v1506 = vadd.f32 %v1493, %v1505
  %v1507 = vpop.f32.mrf.mxu0
  %1508 = vdwg.mxu0
  %1509 = vmatpush.bf16.msra.mxu0 %v732
  %1510 = vmatpush.bf16.msra.mxu0 %v730
  %1511 = vmatpush.bf16.msra.mxu0 %v728
  %1512 = vmatpush.bf16.msra.mxu0 %v726
  %1513 = vmatpush.bf16.msra.mxu0 %v724
  %1514 = vmatpush.bf16.msra.mxu0 %v722
  %1515 = vmatpush.bf16.msra.mxu0 %v720
  %1516 = vmatpush.bf16.msra.mxu0 %v718
  %1517 = vmatmul.bf16.gmra.mxu0 %v1429
  %v1518 = vpop.f32.mrf.mxu0
  %v1519 = vadd.f32 %v1506, %v1518
  %v1520 = vpop.f32.mrf.mxu0
  %1521 = vdwg.mxu0
  %1522 = vmatpush.bf16.msra.mxu0 %v748
  %1523 = vmatpush.bf16.msra.mxu0 %v746
  %1524 = vmatpush.bf16.msra.mxu0 %v744
  %1525 = vmatpush.bf16.msra.mxu0 %v742
  %1526 = vmatpush.bf16.msra.mxu0 %v740
  %1527 = vmatpush.bf16.msra.mxu0 %v738
  %1528 = vmatpush.bf16.msra.mxu0 %v736
  %1529 = vmatpush.bf16.msra.mxu0 %v734
  %1530 = vmatmul.bf16.gmra.mxu0 %v1430
  %v1531 = vpop.f32.mrf.mxu0
  %v1532 = vadd.f32 %v1519, %v1531
  %v1533 = vpop.f32.mrf.mxu0
  %1534 = vdwg.mxu0
  %1535 = vmatpush.bf16.msra.mxu0 %v764
  %1536 = vmatpush.bf16.msra.mxu0 %v762
  %1537 = vmatpush.bf16.msra.mxu0 %v760
  %1538 = vmatpush.bf16.msra.mxu0 %v758
  %1539 = vmatpush.bf16.msra.mxu0 %v756
  %1540 = vmatpush.bf16.msra.mxu0 %v754
  %1541 = vmatpush.bf16.msra.mxu0 %v752
  %1542 = vmatpush.bf16.msra.mxu0 %v750
  %1543 = vmatmul.bf16.gmra.mxu0 %v1431
  %v1544 = vpop.f32.mrf.mxu0
  %v1545 = vadd.f32 %v1532, %v1544
  %v1546 = vpop.f32.mrf.mxu0
  %1547 = vdwg.mxu0
  %1548 = vmatpush.bf16.msra.mxu0 %v780
  %1549 = vmatpush.bf16.msra.mxu0 %v778
  %1550 = vmatpush.bf16.msra.mxu0 %v776
  %1551 = vmatpush.bf16.msra.mxu0 %v774
  %1552 = vmatpush.bf16.msra.mxu0 %v772
  %1553 = vmatpush.bf16.msra.mxu0 %v770
  %1554 = vmatpush.bf16.msra.mxu0 %v768
  %1555 = vmatpush.bf16.msra.mxu0 %v766
  %1556 = vmatmul.bf16.gmra.mxu0 %v1434
  %v1557 = vpop.f32.mrf.mxu0
  %v1558 = vadd.f32 %v1545, %v1557
  %v1559 = vpop.f32.mrf.mxu0
  %1560 = vdwg.mxu0
  %1561 = vmatpush.bf16.msra.mxu0 %v653
  %1562 = vmatpush.bf16.msra.mxu0 %v651
  %1563 = vmatpush.bf16.msra.mxu0 %v649
  %1564 = vmatpush.bf16.msra.mxu0 %v647
  %1565 = vmatpush.bf16.msra.mxu0 %v645
  %1566 = vmatpush.bf16.msra.mxu0 %v643
  %1567 = vmatpush.bf16.msra.mxu0 %v641
  %1568 = vmatpush.bf16.msra.mxu0 %v639
  %1569 = vmatmul.bf16.gmra.mxu0 %v1424
  %v1570 = vpop.f32.mrf.mxu0
  %v1571 = vadd.f32 %v181, %v1570
  %v1572 = vpop.f32.mrf.mxu0
  %1573 = vdwg.mxu0
  %1574 = vmatpush.bf16.msra.mxu0 %v669
  %1575 = vmatpush.bf16.msra.mxu0 %v667
  %1576 = vmatpush.bf16.msra.mxu0 %v665
  %1577 = vmatpush.bf16.msra.mxu0 %v663
  %1578 = vmatpush.bf16.msra.mxu0 %v661
  %1579 = vmatpush.bf16.msra.mxu0 %v659
  %1580 = vmatpush.bf16.msra.mxu0 %v657
  %1581 = vmatpush.bf16.msra.mxu0 %v655
  %1582 = vmatmul.bf16.gmra.mxu0 %v1425
  %v1583 = vpop.f32.mrf.mxu0
  %v1584 = vadd.f32 %v1571, %v1583
  %v1585 = vpop.f32.mrf.mxu0
  %1586 = vdwg.mxu0
  %1587 = vmatpush.bf16.msra.mxu0 %v685
  %1588 = vmatpush.bf16.msra.mxu0 %v683
  %1589 = vmatpush.bf16.msra.mxu0 %v681
  %1590 = vmatpush.bf16.msra.mxu0 %v679
  %1591 = vmatpush.bf16.msra.mxu0 %v677
  %1592 = vmatpush.bf16.msra.mxu0 %v675
  %1593 = vmatpush.bf16.msra.mxu0 %v673
  %1594 = vmatpush.bf16.msra.mxu0 %v671
  %1595 = vmatmul.bf16.gmra.mxu0 %v1426
  %v1596 = vpop.f32.mrf.mxu0
  %v1597 = vadd.f32 %v1584, %v1596
  %v1598 = vpop.f32.mrf.mxu0
  %1599 = vdwg.mxu0
  %1600 = vmatpush.bf16.msra.mxu0 %v701
  %1601 = vmatpush.bf16.msra.mxu0 %v699
  %1602 = vmatpush.bf16.msra.mxu0 %v697
  %1603 = vmatpush.bf16.msra.mxu0 %v695
  %1604 = vmatpush.bf16.msra.mxu0 %v693
  %1605 = vmatpush.bf16.msra.mxu0 %v691
  %1606 = vmatpush.bf16.msra.mxu0 %v689
  %1607 = vmatpush.bf16.msra.mxu0 %v687
  %1608 = vmatmul.bf16.gmra.mxu0 %v1427
  %v1609 = vpop.f32.mrf.mxu0
  %v1610 = vadd.f32 %v1597, %v1609
  %v1611 = vpop.f32.mrf.mxu0
  %1612 = vdwg.mxu0
  %1613 = vmatpush.bf16.msra.mxu0 %v717
  %1614 = vmatpush.bf16.msra.mxu0 %v715
  %1615 = vmatpush.bf16.msra.mxu0 %v713
  %1616 = vmatpush.bf16.msra.mxu0 %v711
  %1617 = vmatpush.bf16.msra.mxu0 %v709
  %1618 = vmatpush.bf16.msra.mxu0 %v707
  %1619 = vmatpush.bf16.msra.mxu0 %v705
  %1620 = vmatpush.bf16.msra.mxu0 %v703
  %1621 = vmatmul.bf16.gmra.mxu0 %v1428
  %v1622 = vpop.f32.mrf.mxu0
  %v1623 = vadd.f32 %v1610, %v1622
  %v1624 = vpop.f32.mrf.mxu0
  %1625 = vdwg.mxu0
  %1626 = vmatpush.bf16.msra.mxu0 %v733
  %1627 = vmatpush.bf16.msra.mxu0 %v731
  %1628 = vmatpush.bf16.msra.mxu0 %v729
  %1629 = vmatpush.bf16.msra.mxu0 %v727
  %1630 = vmatpush.bf16.msra.mxu0 %v725
  %1631 = vmatpush.bf16.msra.mxu0 %v723
  %1632 = vmatpush.bf16.msra.mxu0 %v721
  %1633 = vmatpush.bf16.msra.mxu0 %v719
  %1634 = vmatmul.bf16.gmra.mxu0 %v1429
  %v1635 = vpop.f32.mrf.mxu0
  %v1636 = vadd.f32 %v1623, %v1635
  %v1637 = vpop.f32.mrf.mxu0
  %1638 = vdwg.mxu0
  %1639 = vmatpush.bf16.msra.mxu0 %v749
  %1640 = vmatpush.bf16.msra.mxu0 %v747
  %1641 = vmatpush.bf16.msra.mxu0 %v745
  %1642 = vmatpush.bf16.msra.mxu0 %v743
  %1643 = vmatpush.bf16.msra.mxu0 %v741
  %1644 = vmatpush.bf16.msra.mxu0 %v739
  %1645 = vmatpush.bf16.msra.mxu0 %v737
  %1646 = vmatpush.bf16.msra.mxu0 %v735
  %1647 = vmatmul.bf16.gmra.mxu0 %v1430
  %v1648 = vpop.f32.mrf.mxu0
  %v1649 = vadd.f32 %v1636, %v1648
  %v1650 = vpop.f32.mrf.mxu0
  %1651 = vdwg.mxu0
  %1652 = vmatpush.bf16.msra.mxu0 %v765
  %1653 = vmatpush.bf16.msra.mxu0 %v763
  %1654 = vmatpush.bf16.msra.mxu0 %v761
  %1655 = vmatpush.bf16.msra.mxu0 %v759
  %1656 = vmatpush.bf16.msra.mxu0 %v757
  %1657 = vmatpush.bf16.msra.mxu0 %v755
  %1658 = vmatpush.bf16.msra.mxu0 %v753
  %1659 = vmatpush.bf16.msra.mxu0 %v751
  %1660 = vmatmul.bf16.gmra.mxu0 %v1431
  %v1661 = vpop.f32.mrf.mxu0
  %v1662 = vadd.f32 %v1649, %v1661
  %v1663 = vpop.f32.mrf.mxu0
  %1664 = vdwg.mxu0
  %1665 = vmatpush.bf16.msra.mxu0 %v781
  %1666 = vmatpush.bf16.msra.mxu0 %v779
  %1667 = vmatpush.bf16.msra.mxu0 %v777
  %1668 = vmatpush.bf16.msra.mxu0 %v775
  %1669 = vmatpush.bf16.msra.mxu0 %v773
  %1670 = vmatpush.bf16.msra.mxu0 %v771
  %1671 = vmatpush.bf16.msra.mxu0 %v769
  %1672 = vmatpush.bf16.msra.mxu0 %v767
  %1673 = vmatmul.bf16.gmra.mxu0 %v1434
  %v1674 = vpop.f32.mrf.mxu0
  %v1675 = vadd.f32 %v1662, %v1674
  %v1676 = vpop.f32.mrf.mxu0
  %1677 = vdwg.mxu0
  %s1678 = scalar_lea.vmem %s0, 27
  %v1679 = vld [vmem:[%s1678] sm:$0xff]
  %v1680 = vld [vmem:[%s1678 + $0x8] sm:$0x1]
  %1682 = vst [vmem:[#allocation1] ss:$9 sm:$0xff] %v1679
  %v1683 = vld [vmem:[#allocation1] sm:$0xff]
  %v1684 = vld [vmem:[#allocation1 + $0x9] sm:$0xff]
  %v1685 = vld [vmem:[#allocation1 + $0x12] sm:$0xff]
  %v1686 = vld [vmem:[#allocation1 + $0x1b] sm:$0xff]
  %v1687 = vld [vmem:[#allocation1 + $0x24] sm:$0xff]
  %v1688 = vld [vmem:[#allocation1 + $0x2d] sm:$0xff]
  %v1689 = vld [vmem:[#allocation1 + $0x36] sm:$0xff]
  %v1690 = vld [vmem:[#allocation1 + $0x3f] sm:$0xff]
  %1692 = vst [vmem:[#allocation1] ss:$9 sm:$0xff] %v1680
  %v1693 = vld [vmem:[#allocation1] sm:$0xff]
  %1703 = vmatpush.bf16.msra.mxu0 %v652
  %1704 = vmatpush.bf16.msra.mxu0 %v650
  %1705 = vmatpush.bf16.msra.mxu0 %v648
  %1706 = vmatpush.bf16.msra.mxu0 %v646
  %1707 = vmatpush.bf16.msra.mxu0 %v644
  %1708 = vmatpush.bf16.msra.mxu0 %v642
  %1709 = vmatpush.bf16.msra.mxu0 %v640
  %1710 = vmatpush.bf16.msra.mxu0 %v638
  %1711 = vmatmul.bf16.gmra.mxu0 %v1683
  %v1712 = vpop.f32.mrf.mxu0
  %v1713 = vadd.f32 %v180, %v1712
  %v1714 = vpop.f32.mrf.mxu0
  %1715 = vdwg.mxu0
  %1716 = vmatpush.bf16.msra.mxu0 %v668
  %1717 = vmatpush.bf16.msra.mxu0 %v666
  %1718 = vmatpush.bf16.msra.mxu0 %v664
  %1719 = vmatpush.bf16.msra.mxu0 %v662
  %1720 = vmatpush.bf16.msra.mxu0 %v660
  %1721 = vmatpush.bf16.msra.mxu0 %v658
  %1722 = vmatpush.bf16.msra.mxu0 %v656
  %1723 = vmatpush.bf16.msra.mxu0 %v654
  %1724 = vmatmul.bf16.gmra.mxu0 %v1684
  %v1725 = vpop.f32.mrf.mxu0
  %v1726 = vadd.f32 %v1713, %v1725
  %v1727 = vpop.f32.mrf.mxu0
  %1728 = vdwg.mxu0
  %1729 = vmatpush.bf16.msra.mxu0 %v684
  %1730 = vmatpush.bf16.msra.mxu0 %v682
  %1731 = vmatpush.bf16.msra.mxu0 %v680
  %1732 = vmatpush.bf16.msra.mxu0 %v678
  %1733 = vmatpush.bf16.msra.mxu0 %v676
  %1734 = vmatpush.bf16.msra.mxu0 %v674
  %1735 = vmatpush.bf16.msra.mxu0 %v672
  %1736 = vmatpush.bf16.msra.mxu0 %v670
  %1737 = vmatmul.bf16.gmra.mxu0 %v1685
  %v1738 = vpop.f32.mrf.mxu0
  %v1739 = vadd.f32 %v1726, %v1738
  %v1740 = vpop.f32.mrf.mxu0
  %1741 = vdwg.mxu0
  %1742 = vmatpush.bf16.msra.mxu0 %v700
  %1743 = vmatpush.bf16.msra.mxu0 %v698
  %1744 = vmatpush.bf16.msra.mxu0 %v696
  %1745 = vmatpush.bf16.msra.mxu0 %v694
  %1746 = vmatpush.bf16.msra.mxu0 %v692
  %1747 = vmatpush.bf16.msra.mxu0 %v690
  %1748 = vmatpush.bf16.msra.mxu0 %v688
  %1749 = vmatpush.bf16.msra.mxu0 %v686
  %1750 = vmatmul.bf16.gmra.mxu0 %v1686
  %v1751 = vpop.f32.mrf.mxu0
  %v1752 = vadd.f32 %v1739, %v1751
  %v1753 = vpop.f32.mrf.mxu0
  %1754 = vdwg.mxu0
  %1755 = vmatpush.bf16.msra.mxu0 %v716
  %1756 = vmatpush.bf16.msra.mxu0 %v714
  %1757 = vmatpush.bf16.msra.mxu0 %v712
  %1758 = vmatpush.bf16.msra.mxu0 %v710
  %1759 = vmatpush.bf16.msra.mxu0 %v708
  %1760 = vmatpush.bf16.msra.mxu0 %v706
  %1761 = vmatpush.bf16.msra.mxu0 %v704
  %1762 = vmatpush.bf16.msra.mxu0 %v702
  %1763 = vmatmul.bf16.gmra.mxu0 %v1687
  %v1764 = vpop.f32.mrf.mxu0
  %v1765 = vadd.f32 %v1752, %v1764
  %v1766 = vpop.f32.mrf.mxu0
  %1767 = vdwg.mxu0
  %1768 = vmatpush.bf16.msra.mxu0 %v732
  %1769 = vmatpush.bf16.msra.mxu0 %v730
  %1770 = vmatpush.bf16.msra.mxu0 %v728
  %1771 = vmatpush.bf16.msra.mxu0 %v726
  %1772 = vmatpush.bf16.msra.mxu0 %v724
  %1773 = vmatpush.bf16.msra.mxu0 %v722
  %1774 = vmatpush.bf16.msra.mxu0 %v720
  %1775 = vmatpush.bf16.msra.mxu0 %v718
  %1776 = vmatmul.bf16.gmra.mxu0 %v1688
  %v1777 = vpop.f32.mrf.mxu0
  %v1778 = vadd.f32 %v1765, %v1777
  %v1779 = vpop.f32.mrf.mxu0
  %1780 = vdwg.mxu0
  %1781 = vmatpush.bf16.msra.mxu0 %v748
  %1782 = vmatpush.bf16.msra.mxu0 %v746
  %1783 = vmatpush.bf16.msra.mxu0 %v744
  %1784 = vmatpush.bf16.msra.mxu0 %v742
  %1785 = vmatpush.bf16.msra.mxu0 %v740
  %1786 = vmatpush.bf16.msra.mxu0 %v738
  %1787 = vmatpush.bf16.msra.mxu0 %v736
  %1788 = vmatpush.bf16.msra.mxu0 %v734
  %1789 = vmatmul.bf16.gmra.mxu0 %v1689
  %v1790 = vpop.f32.mrf.mxu0
  %v1791 = vadd.f32 %v1778, %v1790
  %v1792 = vpop.f32.mrf.mxu0
  %1793 = vdwg.mxu0
  %1794 = vmatpush.bf16.msra.mxu0 %v764
  %1795 = vmatpush.bf16.msra.mxu0 %v762
  %1796 = vmatpush.bf16.msra.mxu0 %v760
  %1797 = vmatpush.bf16.msra.mxu0 %v758
  %1798 = vmatpush.bf16.msra.mxu0 %v756
  %1799 = vmatpush.bf16.msra.mxu0 %v754
  %1800 = vmatpush.bf16.msra.mxu0 %v752
  %1801 = vmatpush.bf16.msra.mxu0 %v750
  %1802 = vmatmul.bf16.gmra.mxu0 %v1690
  %v1803 = vpop.f32.mrf.mxu0
  %v1804 = vadd.f32 %v1791, %v1803
  %v1805 = vpop.f32.mrf.mxu0
  %1806 = vdwg.mxu0
  %1807 = vmatpush.bf16.msra.mxu0 %v780
  %1808 = vmatpush.bf16.msra.mxu0 %v778
  %1809 = vmatpush.bf16.msra.mxu0 %v776
  %1810 = vmatpush.bf16.msra.mxu0 %v774
  %1811 = vmatpush.bf16.msra.mxu0 %v772
  %1812 = vmatpush.bf16.msra.mxu0 %v770
  %1813 = vmatpush.bf16.msra.mxu0 %v768
  %1814 = vmatpush.bf16.msra.mxu0 %v766
  %1815 = vmatmul.bf16.gmra.mxu0 %v1693
  %v1816 = vpop.f32.mrf.mxu0
  %v1817 = vadd.f32 %v1804, %v1816
  %v1818 = vpop.f32.mrf.mxu0
  %1819 = vdwg.mxu0
  %1820 = vmatpush.bf16.msra.mxu0 %v653
  %1821 = vmatpush.bf16.msra.mxu0 %v651
  %1822 = vmatpush.bf16.msra.mxu0 %v649
  %1823 = vmatpush.bf16.msra.mxu0 %v647
  %1824 = vmatpush.bf16.msra.mxu0 %v645
  %1825 = vmatpush.bf16.msra.mxu0 %v643
  %1826 = vmatpush.bf16.msra.mxu0 %v641
  %1827 = vmatpush.bf16.msra.mxu0 %v639
  %1828 = vmatmul.bf16.gmra.mxu0 %v1683
  %v1829 = vpop.f32.mrf.mxu0
  %v1830 = vadd.f32 %v181, %v1829
  %v1831 = vpop.f32.mrf.mxu0
  %1832 = vdwg.mxu0
  %1833 = vmatpush.bf16.msra.mxu0 %v669
  %1834 = vmatpush.bf16.msra.mxu0 %v667
  %1835 = vmatpush.bf16.msra.mxu0 %v665
  %1836 = vmatpush.bf16.msra.mxu0 %v663
  %1837 = vmatpush.bf16.msra.mxu0 %v661
  %1838 = vmatpush.bf16.msra.mxu0 %v659
  %1839 = vmatpush.bf16.msra.mxu0 %v657
  %1840 = vmatpush.bf16.msra.mxu0 %v655
  %1841 = vmatmul.bf16.gmra.mxu0 %v1684
  %v1842 = vpop.f32.mrf.mxu0
  %v1843 = vadd.f32 %v1830, %v1842
  %v1844 = vpop.f32.mrf.mxu0
  %1845 = vdwg.mxu0
  %1846 = vmatpush.bf16.msra.mxu0 %v685
  %1847 = vmatpush.bf16.msra.mxu0 %v683
  %1848 = vmatpush.bf16.msra.mxu0 %v681
  %1849 = vmatpush.bf16.msra.mxu0 %v679
  %1850 = vmatpush.bf16.msra.mxu0 %v677
  %1851 = vmatpush.bf16.msra.mxu0 %v675
  %1852 = vmatpush.bf16.msra.mxu0 %v673
  %1853 = vmatpush.bf16.msra.mxu0 %v671
  %1854 = vmatmul.bf16.gmra.mxu0 %v1685
  %v1855 = vpop.f32.mrf.mxu0
  %v1856 = vadd.f32 %v1843, %v1855
  %v1857 = vpop.f32.mrf.mxu0
  %1858 = vdwg.mxu0
  %1859 = vmatpush.bf16.msra.mxu0 %v701
  %1860 = vmatpush.bf16.msra.mxu0 %v699
  %1861 = vmatpush.bf16.msra.mxu0 %v697
  %1862 = vmatpush.bf16.msra.mxu0 %v695
  %1863 = vmatpush.bf16.msra.mxu0 %v693
  %1864 = vmatpush.bf16.msra.mxu0 %v691
  %1865 = vmatpush.bf16.msra.mxu0 %v689
  %1866 = vmatpush.bf16.msra.mxu0 %v687
  %1867 = vmatmul.bf16.gmra.mxu0 %v1686
  %v1868 = vpop.f32.mrf.mxu0
  %v1869 = vadd.f32 %v1856, %v1868
  %v1870 = vpop.f32.mrf.mxu0
  %1871 = vdwg.mxu0
  %1872 = vmatpush.bf16.msra.mxu0 %v717
  %1873 = vmatpush.bf16.msra.mxu0 %v715
  %1874 = vmatpush.bf16.msra.mxu0 %v713
  %1875 = vmatpush.bf16.msra.mxu0 %v711
  %1876 = vmatpush.bf16.msra.mxu0 %v709
  %1877 = vmatpush.bf16.msra.mxu0 %v707
  %1878 = vmatpush.bf16.msra.mxu0 %v705
  %1879 = vmatpush.bf16.msra.mxu0 %v703
  %1880 = vmatmul.bf16.gmra.mxu0 %v1687
  %v1881 = vpop.f32.mrf.mxu0
  %v1882 = vadd.f32 %v1869, %v1881
  %v1883 = vpop.f32.mrf.mxu0
  %1884 = vdwg.mxu0
  %1885 = vmatpush.bf16.msra.mxu0 %v733
  %1886 = vmatpush.bf16.msra.mxu0 %v731
  %1887 = vmatpush.bf16.msra.mxu0 %v729
  %1888 = vmatpush.bf16.msra.mxu0 %v727
  %1889 = vmatpush.bf16.msra.mxu0 %v725
  %1890 = vmatpush.bf16.msra.mxu0 %v723
  %1891 = vmatpush.bf16.msra.mxu0 %v721
  %1892 = vmatpush.bf16.msra.mxu0 %v719
  %1893 = vmatmul.bf16.gmra.mxu0 %v1688
  %v1894 = vpop.f32.mrf.mxu0
  %v1895 = vadd.f32 %v1882, %v1894
  %v1896 = vpop.f32.mrf.mxu0
  %1897 = vdwg.mxu0
  %1898 = vmatpush.bf16.msra.mxu0 %v749
  %1899 = vmatpush.bf16.msra.mxu0 %v747
  %1900 = vmatpush.bf16.msra.mxu0 %v745
  %1901 = vmatpush.bf16.msra.mxu0 %v743
  %1902 = vmatpush.bf16.msra.mxu0 %v741
  %1903 = vmatpush.bf16.msra.mxu0 %v739
  %1904 = vmatpush.bf16.msra.mxu0 %v737
  %1905 = vmatpush.bf16.msra.mxu0 %v735
  %1906 = vmatmul.bf16.gmra.mxu0 %v1689
  %v1907 = vpop.f32.mrf.mxu0
  %v1908 = vadd.f32 %v1895, %v1907
  %v1909 = vpop.f32.mrf.mxu0
  %1910 = vdwg.mxu0
  %1911 = vmatpush.bf16.msra.mxu0 %v765
  %1912 = vmatpush.bf16.msra.mxu0 %v763
  %1913 = vmatpush.bf16.msra.mxu0 %v761
  %1914 = vmatpush.bf16.msra.mxu0 %v759
  %1915 = vmatpush.bf16.msra.mxu0 %v757
  %1916 = vmatpush.bf16.msra.mxu0 %v755
  %1917 = vmatpush.bf16.msra.mxu0 %v753
  %1918 = vmatpush.bf16.msra.mxu0 %v751
  %1919 = vmatmul.bf16.gmra.mxu0 %v1690
  %v1920 = vpop.f32.mrf.mxu0
  %v1921 = vadd.f32 %v1908, %v1920
  %v1922 = vpop.f32.mrf.mxu0
  %1923 = vdwg.mxu0
  %1924 = vmatpush.bf16.msra.mxu0 %v781
  %1925 = vmatpush.bf16.msra.mxu0 %v779
  %1926 = vmatpush.bf16.msra.mxu0 %v777
  %1927 = vmatpush.bf16.msra.mxu0 %v775
  %1928 = vmatpush.bf16.msra.mxu0 %v773
  %1929 = vmatpush.bf16.msra.mxu0 %v771
  %1930 = vmatpush.bf16.msra.mxu0 %v769
  %1931 = vmatpush.bf16.msra.mxu0 %v767
  %1932 = vmatmul.bf16.gmra.mxu0 %v1693
  %v1933 = vpop.f32.mrf.mxu0
  %v1934 = vadd.f32 %v1921, %v1933
  %v1935 = vpop.f32.mrf.mxu0
  %1936 = vdwg.mxu0
  %v1937 = vadd.f32 %v1040, %v1299
  %v1938 = vadd.f32 %v1157, %v1416
  %v1939 = vadd.f32 %v1937, %v1558
  %v1940 = vadd.f32 %v1938, %v1675
  %v1941 = vadd.f32 %v1939, %v1817
  %v1942 = vadd.f32 %v1940, %v1934
  %vm1943 = vcmask 1041408
  %v1944 = vsel %vm1943, %v1941, 0.0
  %v1945 = vrot.slane %v1944, 4
  %v1946 = vadd.f32 %v1944, %v1945
  %v1947 = vrot.slane %v1946, 2
  %v1948 = vadd.f32 %v1946, %v1947
  %v1949 = vrot.slane %v1948, 1
  %v1950 = vadd.f32 %v1948, %v1949
  %v1951 = vsel %vm1943, %v1942, 0.0
  %v1952 = vrot.slane %v1951, 4
  %v1953 = vadd.f32 %v1951, %v1952
  %v1954 = vrot.slane %v1953, 2
  %v1955 = vadd.f32 %v1953, %v1954
  %v1956 = vrot.slane %v1955, 1
  %v1957 = vadd.f32 %v1955, %v1956
  %v1958 = vmul.f32 %v1950, 0.125
  %v1959 = vmul.f32 %v1957, 0.125
  %v1960 = vsub.f32 %v1040, %v1958
  %v1961 = vsub.f32 %v1157, %v1959
  %v1962 = vmul.f32 %v1960, %v1960
  %v1963 = vmul.f32 %v1961, %v1961
  %v1964 = vsel %vm1943, %v1962, 0.0
  %v1965 = vrot.slane %v1964, 4
  %v1966 = vadd.f32 %v1964, %v1965
  %v1967 = vrot.slane %v1966, 2
  %v1968 = vadd.f32 %v1966, %v1967
  %v1969 = vrot.slane %v1968, 1
  %v1970 = vadd.f32 %v1968, %v1969
  %v1971 = vsel %vm1943, %v1963, 0.0
  %v1972 = vrot.slane %v1971, 4
  %v1973 = vadd.f32 %v1971, %v1972
  %v1974 = vrot.slane %v1973, 2
  %v1975 = vadd.f32 %v1973, %v1974
  %v1976 = vrot.slane %v1975, 1
  %v1977 = vadd.f32 %v1975, %v1976
  %v1978 = vsub.f32 %v1299, %v1958
  %v1979 = vsub.f32 %v1416, %v1959
  %v1980 = vmul.f32 %v1978, %v1978
  %v1981 = vmul.f32 %v1979, %v1979
  %v1982 = vsel %vm1943, %v1980, 0.0
  %v1983 = vrot.slane %v1982, 4
  %v1984 = vadd.f32 %v1982, %v1983
  %v1985 = vrot.slane %v1984, 2
  %v1986 = vadd.f32 %v1984, %v1985
  %v1987 = vrot.slane %v1986, 1
  %v1988 = vadd.f32 %v1986, %v1987
  %v1989 = vsel %vm1943, %v1981, 0.0
  %v1990 = vrot.slane %v1989, 4
  %v1991 = vadd.f32 %v1989, %v1990
  %v1992 = vrot.slane %v1991, 2
  %v1993 = vadd.f32 %v1991, %v1992
  %v1994 = vrot.slane %v1993, 1
  %v1995 = vadd.f32 %v1993, %v1994
  %v1996 = vadd.f32 %v1970, %v1988
  %v1997 = vadd.f32 %v1977, %v1995
  %v1998 = vsub.f32 %v1558, %v1958
  %v1999 = vsub.f32 %v1675, %v1959
  %v2000 = vmul.f32 %v1998, %v1998
  %v2001 = vmul.f32 %v1999, %v1999
  %v2002 = vsel %vm1943, %v2000, 0.0
  %v2003 = vrot.slane %v2002, 4
  %v2004 = vadd.f32 %v2002, %v2003
  %v2005 = vrot.slane %v2004, 2
  %v2006 = vadd.f32 %v2004, %v2005
  %v2007 = vrot.slane %v2006, 1
  %v2008 = vadd.f32 %v2006, %v2007
  %v2009 = vsel %vm1943, %v2001, 0.0
  %v2010 = vrot.slane %v2009, 4
  %v2011 = vadd.f32 %v2009, %v2010
  %v2012 = vrot.slane %v2011, 2
  %v2013 = vadd.f32 %v2011, %v2012
  %v2014 = vrot.slane %v2013, 1
  %v2015 = vadd.f32 %v2013, %v2014
  %v2016 = vadd.f32 %v1996, %v2008
  %v2017 = vadd.f32 %v1997, %v2015
  %v2018 = vsub.f32 %v1817, %v1958
  %v2019 = vsub.f32 %v1934, %v1959
  %v2020 = vmul.f32 %v2018, %v2018
  %v2021 = vmul.f32 %v2019, %v2019
  %v2022 = vsel %vm1943, %v2020, 0.0
  %v2023 = vrot.slane %v2022, 4
  %v2024 = vadd.f32 %v2022, %v2023
  %v2025 = vrot.slane %v2024, 2
  %v2026 = vadd.f32 %v2024, %v2025
  %v2027 = vrot.slane %v2026, 1
  %v2028 = vadd.f32 %v2026, %v2027
  %v2029 = vsel %vm1943, %v2021, 0.0
  %v2030 = vrot.slane %v2029, 4
  %v2031 = vadd.f32 %v2029, %v2030
  %v2032 = vrot.slane %v2031, 2
  %v2033 = vadd.f32 %v2031, %v2032
  %v2034 = vrot.slane %v2033, 1
  %v2035 = vadd.f32 %v2033, %v2034
  %v2036 = vadd.f32 %v2016, %v2028
  %v2037 = vadd.f32 %v2017, %v2035
  %v2038 = vmul.f32 %v2036, 0.125
  %v2039 = vmul.f32 %v2037, 0.125
  %v2040 = vld [vmem:[%s3] sm:$0x3]
  %v2041 = vadd.f32 %v2038, 1e-05
  %v2042 = vadd.f32 %v2039, 1e-05
  %v2043 = vrsqrt.pop %v2041
  %v2044 = vmul.f32 %v2043, %v2041
  %v2045 = vmul.f32 %v2044, %v2043
  %v2046 = vmul.f32 0.5, %v2045
  %v2047 = vsub.f32 1.5, %v2046
  %v2048 = vmul.f32 %v2043, %v2047
  %vm2049 = vweird.f32 %v2041
  %vm2050 = vweird.f32 %v2043
  %vm2051 = vmor %vm2049, %vm2050
  %v2052 = vsel %vm2051, %v2043, %v2048
  %v2053 = vrsqrt.pop %v2042
  %v2054 = vmul.f32 %v2053, %v2042
  %v2055 = vmul.f32 %v2054, %v2053
  %v2056 = vmul.f32 0.5, %v2055
  %v2057 = vsub.f32 1.5, %v2056
  %v2058 = vmul.f32 %v2053, %v2057
  %vm2059 = vweird.f32 %v2042
  %vm2060 = vweird.f32 %v2053
  %vm2061 = vmor %vm2059, %vm2060
  %v2062 = vsel %vm2061, %v2053, %v2058
  %v2065 = vrot.slane %v2062, 7
  %vm2066 = vcmask 1040384
  %v2067 = vsel %vm2066, %v2052, %v2065
  %v2069 = vmul.f32 %v2040, %v2067
  %v2071 = vperm.slane %v2069, 0
  %v2072 = vperm.slane %v2069, 1
  %v2075 = vmul.f32 %v1960, %v2071
  %v2076 = vmul.f32 %v1961, %v2072
  %v2077 = vld [vmem:[%s4] sm:$0x3]
  %v2079 = vperm.slane %v2077, 0
  %v2080 = vperm.slane %v2077, 1
  %v2083 = vadd.f32 %v2075, %v2079
  %v2084 = vadd.f32 %v2076, %v2080
  %v2085 = vmax.f32 %v2083, 0.0
  %v2086 = vmax.f32 %v2084, 0.0
  %v2087 = vmul.f32 %v1978, %v2071
  %v2088 = vmul.f32 %v1979, %v2072
  %v2089 = vadd.f32 %v2087, %v2079
  %v2090 = vadd.f32 %v2088, %v2080
  %v2091 = vmax.f32 %v2089, 0.0
  %v2092 = vmax.f32 %v2090, 0.0
  %v2093 = vadd.f32 %v2085, %v2091
  %v2094 = vadd.f32 %v2086, %v2092
  %v2095 = vmul.f32 %v1998, %v2071
  %v2096 = vmul.f32 %v1999, %v2072
  %v2097 = vadd.f32 %v2095, %v2079
  %v2098 = vadd.f32 %v2096, %v2080
  %v2099 = vmax.f32 %v2097, 0.0
  %v2100 = vmax.f32 %v2098, 0.0
  %v2101 = vadd.f32 %v2093, %v2099
  %v2102 = vadd.f32 %v2094, %v2100
  %v2103 = vmul.f32 %v2018, %v2071
  %v2104 = vmul.f32 %v2019, %v2072
  %v2105 = vadd.f32 %v2103, %v2079
  %v2106 = vadd.f32 %v2104, %v2080
  %v2107 = vmax.f32 %v2105, 0.0
  %v2108 = vmax.f32 %v2106, 0.0
  %v2109 = vadd.f32 %v2101, %v2107
  %v2110 = vadd.f32 %v2102, %v2108
  %v2111 = vmul.f32 %v2109, 0.25
  %v2112 = vmul.f32 %v2110, 0.25
  %v2113 = vld [vmem:[%s5] sm:$0xff]
  %v2114 = vld [vmem:[%s5 + $0x8] sm:$0xff]
  %v2115 = vld [vmem:[%s5 + $0x10] sm:$0xff]
  %v2116 = vld [vmem:[%s5 + $0x18] sm:$0xff]
  %v2117 = vld [vmem:[%s5 + $0x20] sm:$0xff]
  %v2118 = vld [vmem:[%s5 + $0x28] sm:$0xff]
  %v2119 = vld [vmem:[%s5 + $0x30] sm:$0xff]
  %v2120 = vld [vmem:[%s5 + $0x38] sm:$0xff]
  %v2121 = vld [vmem:[%s5 + $0x40] sm:$0xff]
  %v2122 = vld [vmem:[%s5 + $0x48] sm:$0xff]
  %v2123 = vld [vmem:[%s5 + $0x50] sm:$0xff]
  %v2124 = vld [vmem:[%s5 + $0x58] sm:$0xff]
  %v2125 = vld [vmem:[%s5 + $0x60] sm:$0xff]
  %v2126 = vld [vmem:[%s5 + $0x68] sm:$0xff]
  %v2127 = vld [vmem:[%s5 + $0x70] sm:$0xff]
  %v2128 = vld [vmem:[%s5 + $0x78] sm:$0xff]
  %v2129 = vld [vmem:[%s5 + $0x80] sm:$0xff]
  %v2130 = vld [vmem:[%s5 + $0x88] sm:$0xff]
  %v2131 = vld [vmem:[%s5 + $0x90] sm:$0xff]
  %v2132 = vld [vmem:[%s5 + $0x98] sm:$0xff]
  %v2133 = vld [vmem:[%s5 + $0xa0] sm:$0xff]
  %v2134 = vld [vmem:[%s5 + $0xa8] sm:$0xff]
  %v2135 = vld [vmem:[%s5 + $0xb0] sm:$0xff]
  %v2136 = vld [vmem:[%s5 + $0xb8] sm:$0xff]
  %v2137 = vld [vmem:[%s5 + $0xc0] sm:$0xff]
  %v2138 = vld [vmem:[%s5 + $0xc8] sm:$0xff]
  %v2139 = vld [vmem:[%s5 + $0xd0] sm:$0xff]
  %v2140 = vld [vmem:[%s5 + $0xd8] sm:$0xff]
  %v2141 = vld [vmem:[%s5 + $0xe0] sm:$0xff]
  %v2142 = vld [vmem:[%s5 + $0xe8] sm:$0xff]
  %v2143 = vld [vmem:[%s5 + $0xf0] sm:$0xff]
  %v2144 = vld [vmem:[%s5 + $0xf8] sm:$0xff]
  %v2145 = vld [vmem:[%s6] sm:$0x1]
  %v2147 = vperm.slane %v2145, 0
  %2149 = vmatpush.msra.mxu0 %v2128
  %2150 = vmatpush.msra.mxu0 %v2127
  %2151 = vmatpush.msra.mxu0 %v2126
  %2152 = vmatpush.msra.mxu0 %v2125
  %2153 = vmatpush.msra.mxu0 %v2124
  %2154 = vmatpush.msra.mxu0 %v2123
  %2155 = vmatpush.msra.mxu0 %v2122
  %2156 = vmatpush.msra.mxu0 %v2121
  %2157 = vmatpush.msra.mxu0 %v2120
  %2158 = vmatpush.msra.mxu0 %v2119
  %2159 = vmatpush.msra.mxu0 %v2118
  %2160 = vmatpush.msra.mxu0 %v2117
  %2161 = vmatpush.msra.mxu0 %v2116
  %2162 = vmatpush.msra.mxu0 %v2115
  %2163 = vmatpush.msra.mxu0 %v2114
  %2164 = vmatpush.msra.mxu0 %v2113
  %2165 = vmatmul.f32.gmra.mxu0 %v2111
  %v2166 = vpop.f32.mrf.mxu0
  %v2167 = vadd.f32 %v2147, %v2166
  %2168 = vdwg.mxu0
  %2169 = vmatpush.msra.mxu0 %v2144
  %2170 = vmatpush.msra.mxu0 %v2143
  %2171 = vmatpush.msra.mxu0 %v2142
  %2172 = vmatpush.msra.mxu0 %v2141
  %2173 = vmatpush.msra.mxu0 %v2140
  %2174 = vmatpush.msra.mxu0 %v2139
  %2175 = vmatpush.msra.mxu0 %v2138
  %2176 = vmatpush.msra.mxu0 %v2137
  %2177 = vmatpush.msra.mxu0 %v2136
  %2178 = vmatpush.msra.mxu0 %v2135
  %2179 = vmatpush.msra.mxu0 %v2134
  %2180 = vmatpush.msra.mxu0 %v2133
  %2181 = vmatpush.msra.mxu0 %v2132
  %2182 = vmatpush.msra.mxu0 %v2131
  %2183 = vmatpush.msra.mxu0 %v2130
  %2184 = vmatpush.msra.mxu0 %v2129
  %2185 = vmatmul.f32.gmra.mxu0 %v2112
  %v2186 = vpop.f32.mrf.mxu0
  %v2187 = vadd.f32 %v2167, %v2186
  %2188 = vdwg.mxu0
  %v2189 = vmax.f32 %v2187, 0.0
  %v2190 = vld [vmem:[%s7] sm:$0xff]
  %v2191 = vld [vmem:[%s7 + $0x8] sm:$0xff]
  %v2192 = vld [vmem:[%s7 + $0x10] sm:$0xff]
  %v2193 = vld [vmem:[%s7 + $0x18] sm:$0xff]
  %v2194 = vld [vmem:[%s7 + $0x20] sm:$0xff]
  %v2195 = vld [vmem:[%s7 + $0x28] sm:$0xff]
  %v2196 = vld [vmem:[%s7 + $0x30] sm:$0xff]
  %v2197 = vld [vmem:[%s7 + $0x38] sm:$0xff]
  %v2198 = vld [vmem:[%s8] sm:$0x1]
  %v2200 = vperm.slane %v2198, 0
  %vm2202 = vcmask 523264
  %v2204 = vsel %vm2202, %v2189, 0
  %2206 = vmatpush.msra.mxu0 0.0
  %2207 = vmatpush.msra.mxu0 0.0
  %2208 = vmatpush.msra.mxu0 0.0
  %2209 = vmatpush.msra.mxu0 0.0
  %2210 = vmatpush.msra.mxu0 0.0
  %2211 = vmatpush.msra.mxu0 0.0
  %2212 = vmatpush.msra.mxu0 0.0
  %2213 = vmatpush.msra.mxu0 0.0
  %2214 = vmatpush.msra.mxu0 %v2197
  %2215 = vmatpush.msra.mxu0 %v2196
  %2216 = vmatpush.msra.mxu0 %v2195
  %2217 = vmatpush.msra.mxu0 %v2194
  %2218 = vmatpush.msra.mxu0 %v2193
  %2219 = vmatpush.msra.mxu0 %v2192
  %2220 = vmatpush.msra.mxu0 %v2191
  %2221 = vmatpush.msra.mxu0 %v2190
  %2222 = vmatmul.f32.gmra.mxu0 %v2204
  %v2223 = vpop.f32.mrf.mxu0
  %v2224 = vadd.f32 %v2200, %v2223
  %2225 = vdwg.mxu0
  %vm2226 = vcmask 41984
  %2227 = vst.msk [vmem:[%s9] sm:$0x3] %vm2226, %v2224
  // Predicated region
  $region38: #{spatial_transformer_forward.8} parent=0 // pred_check
    _
  $region39: #{spatial_transformer_forward.8} parent=0 // pred_check_branch
    %2229 = sbr.rel (0) target = $region41
  $region40: #{spatial_transformer_forward.8} parent=0 // pred_region
    _
  $region41: #{spatial_transformer_forward.8} parent=0 // pred_fallthru
    _
  // Predicated region
  $region42: #{spatial_transformer_forward.8} parent=0 // pred_check
    _
  $region43: #{spatial_transformer_forward.8} parent=0 // pred_check_branch
    %2231 = sbr.rel (0) target = $region45
  $region44: #{spatial_transformer_forward.8} parent=0 // pred_region
    _
  $region45: #{spatial_transformer_forward.8} parent=0 // pred_fallthru
    _

</llo_original>
